<compile_context>
chip_gen: v7x
topology: tpu7x:2x2x1
jax: 0.10.0
libtpu: 0.0.40
codegen_flags: <defaults>
</compile_context>

<pallas_src>
import jax
import jax.numpy as jnp
from jax import lax
from jax.experimental import pallas as pl
from jax.experimental.pallas import tpu as pltpu


_VMEM_LIMIT = 48 * 1024 * 1024  # safe on v5e/v6e (128 MiB) and v7x (64 MiB)


def _pick_tile(m):
    """Largest lane tile in {512,256,128} dividing m, else the full extent."""
    for tn in (512, 256, 128):
        if m % tn == 0:
            return tn
    return m


# ---------------------------------------------------------------------------
# Pallas kernels
# ---------------------------------------------------------------------------

def _mm_lrelu_kernel(a_ref, b_ref, bias_ref, o_ref):
    # (Cout, K) @ (K, tn) on the MXU (bf16 in, f32 acc) + bias + LeakyReLU(0.2)
    y = jnp.dot(a_ref[...], b_ref[...], preferred_element_type=jnp.float32)
    y = y + bias_ref[...]
    o_ref[...] = jnp.maximum(y, 0.2 * y).astype(o_ref.dtype)


def _mm_sigmoid_kernel(a_ref, b_ref, bias_ref, o_ref):
    y = jnp.dot(a_ref[...], b_ref[...], preferred_element_type=jnp.float32)
    y = y + bias_ref[...]
    o_ref[...] = (1.0 / (1.0 + jnp.exp(-y))).astype(o_ref.dtype)


def _mm_stats_kernel(a_ref, b_ref, bias_ref, o_ref, st_ref):
    # matmul + bias, plus per-tile per-channel sum / sum-of-squares partials
    # (lane 0 = sum, lane 1 = sumsq of this tile) so BatchNorm statistics do
    # not need a second full read of the activation.
    y = jnp.dot(a_ref[...], b_ref[...], preferred_element_type=jnp.float32)
    y = y + bias_ref[...]
    o_ref[...] = y.astype(o_ref.dtype)
    ps = jnp.sum(y, axis=1, keepdims=True)          # (Cout, 1)
    pq = jnp.sum(y * y, axis=1, keepdims=True)      # (Cout, 1)
    lane = lax.broadcasted_iota(jnp.int32, st_ref.shape, 1)
    st_ref[...] = jnp.where(lane == 0, ps, jnp.where(lane == 1, pq, 0.0))


def _bn_lrelu_kernel(x_ref, s_ref, t_ref, o_ref):
    # per-channel (per-row) scale/shift + LeakyReLU(0.2), f32 math
    y = x_ref[...].astype(jnp.float32) * s_ref[...] + t_ref[...]
    o_ref[...] = jnp.maximum(y, 0.2 * y).astype(o_ref.dtype)


# ---------------------------------------------------------------------------
# Kernel wrappers
# ---------------------------------------------------------------------------

def conv_matmul(a, b, bias, mode, out_dtype):
    """a: (Cout, K) bf16, b: (K, M) bf16, bias: (Cout, 1) f32.
    mode: 'lrelu' | 'sigmoid' | 'stats'."""
    cout, k = a.shape
    m = b.shape[1]
    tn = _pick_tile(m)
    g = m // tn
    cparams = pltpu.CompilerParams(dimension_semantics=("parallel",),
                                   vmem_limit_bytes=_VMEM_LIMIT)
    in_specs = [pl.BlockSpec((cout, k), lambda i: (0, 0)),
                pl.BlockSpec((k, tn), lambda i: (0, i)),
                pl.BlockSpec((cout, 1), lambda i: (0, 0))]

    if mode == "stats":
        y, st = pl.pallas_call(
            _mm_stats_kernel,
            out_shape=(jax.ShapeDtypeStruct((cout, m), out_dtype),
                       jax.ShapeDtypeStruct((cout, g * 128), jnp.float32)),
            grid=(g,),
            in_specs=in_specs,
            out_specs=(pl.BlockSpec((cout, tn), lambda i: (0, i)),
                       pl.BlockSpec((cout, 128), lambda i: (0, i))),
            compiler_params=cparams,
        )(a, b, bias)
        sums = jnp.sum(st[:, 0::128], axis=1)    # tiny (Cout,) reductions
        sqs = jnp.sum(st[:, 1::128], axis=1)
        return y, sums, sqs

    kern = _mm_lrelu_kernel if mode == "lrelu" else _mm_sigmoid_kernel
    return pl.pallas_call(
        kern,
        out_shape=jax.ShapeDtypeStruct((cout, m), out_dtype),
        grid=(g,),
        in_specs=in_specs,
        out_specs=pl.BlockSpec((cout, tn), lambda i: (0, i)),
        compiler_params=cparams,
    )(a, b, bias)


def bn_lrelu(x, scale, shift, out_dtype=jnp.bfloat16):
    """x: (Cout, M) f32, scale/shift: (Cout, 1) f32."""
    cout, m = x.shape
    tn = _pick_tile(m)
    return pl.pallas_call(
        _bn_lrelu_kernel,
        out_shape=jax.ShapeDtypeStruct((cout, m), out_dtype),
        grid=(m // tn,),
        in_specs=[pl.BlockSpec((cout, tn), lambda i: (0, i)),
                  pl.BlockSpec((cout, 1), lambda i: (0, 0)),
                  pl.BlockSpec((cout, 1), lambda i: (0, 0))],
        out_specs=pl.BlockSpec((cout, tn), lambda i: (0, i)),
        compiler_params=pltpu.CompilerParams(dimension_semantics=("parallel",),
                                             vmem_limit_bytes=_VMEM_LIMIT),
    )(x, scale, shift)


# ---------------------------------------------------------------------------
# im2col in channel-first layout (strided slices; no structural zeros, no
# layout transposes between layers).  Done in plain JAX / XLA.
# ---------------------------------------------------------------------------

def im2col_cfirst(x, k, s, p):
    """x: (C, N, H, W) -> (k*k*C, N*OH*OW) with k-index order (kh, kw, ci)."""
    c, n, h, w = x.shape
    oh = (h + 2 * p - k) // s + 1
    ow = (w + 2 * p - k) // s + 1
    xp = jnp.pad(x, ((0, 0), (0, 0), (p, p), (p, p))) if p > 0 else x
    cols = [xp[:, :, kh:kh + s * (oh - 1) + 1:s, kw:kw + s * (ow - 1) + 1:s]
            for kh in range(k) for kw in range(k)]
    pat = jnp.stack(cols, axis=0)                       # (k*k, C, N, OH, OW)
    return pat.reshape(k * k * c, n * oh * ow), (oh, ow)


# ---------------------------------------------------------------------------
# Parameters (PyTorch layout) + hoisted kernel-ready transforms
# ---------------------------------------------------------------------------

def init_params(key, in_dim, dim):
    """weights_init: Conv weight ~ N(0, 0.02); BN weight ~ N(1, 0.02), bias 0."""
    ks = jax.random.split(key, 16)
    chans = [in_dim, dim, dim * 2, dim * 4, dim * 8]
    p = {}
    for i in range(4):
        cin, cout = chans[i], chans[i + 1]
        p[f"conv{i}_w"] = 0.02 * jax.random.normal(ks[2 * i], (cout, cin, 5, 5),
                                                   jnp.float32)
        # TODO(synk): PyTorch's default Conv2d bias init is uniform(+-1/sqrt(fan_in));
        # a deterministic small normal is used here (forward math is unchanged).
        p[f"conv{i}_b"] = 0.02 * jax.random.normal(ks[2 * i + 1], (cout,),
                                                   jnp.float32)
        if i >= 1:
            p[f"bn{i}_g"] = 1.0 + 0.02 * jax.random.normal(ks[8 + i], (cout,),
                                                           jnp.float32)
            p[f"bn{i}_b"] = jnp.zeros((cout,), jnp.float32)
    p["conv4_w"] = 0.02 * jax.random.normal(ks[12], (1, dim * 8, 4, 4),
                                            jnp.float32)
    p["conv4_b"] = 0.02 * jax.random.normal(ks[13], (1,), jnp.float32)
    return p


def prepare_params(p):
    """Hoist static weight transforms (transpose/reshape, bf16 cast) out of the
    forward: A[co, (kh*k+kw)*Cin+ci] = w[co, ci, kh, kw]."""
    q = {}
    for i in range(5):
        w = p[f"conv{i}_w"]
        cout = w.shape[0]
        q[f"A{i}"] = w.transpose(0, 2, 3, 1).reshape(cout, -1).astype(jnp.bfloat16)
        q[f"b{i}"] = p[f"conv{i}_b"].reshape(cout, 1).astype(jnp.float32)
        if 1 <= i <= 3:
            q[f"g{i}"] = p[f"bn{i}_g"].astype(jnp.float32)
            q[f"beta{i}"] = p[f"bn{i}_b"].astype(jnp.float32)
    return q


# ---------------------------------------------------------------------------
# Forward
# ---------------------------------------------------------------------------

def discriminator_forward(x, q):
    """x: (N, in_dim, 64, 64) NCHW -> (N,) sigmoid scores."""
    n = x.shape[0]
    # single small permute at entry; channel-first (C, N, H, W) afterwards
    y = jnp.transpose(x, (1, 0, 2, 3)).astype(jnp.bfloat16)

    # layer 0: Conv(5,2,2) + LeakyReLU(0.2)  (fused epilogue)
    b0, (oh, ow) = im2col_cfirst(y, 5, 2, 2)
    y = conv_matmul(q["A0"], b0, q["b0"], "lrelu", out_dtype=jnp.bfloat16)
    y = y.reshape(-1, n, oh, ow)

    # layers 1..3: Conv(5,2,2) + BatchNorm(train-mode batch stats) + LeakyReLU
    for i in (1, 2, 3):
        bm, (oh, ow) = im2col_cfirst(y, 5, 2, 2)
        m = bm.shape[1]
        conv, sums, sqs = conv_matmul(q[f"A{i}"], bm, q[f"b{i}"], "stats",
                                      out_dtype=jnp.float32)
        cnt = jnp.float32(m)
        mean = sums / cnt
        var = jnp.maximum(sqs / cnt - mean * mean, 0.0)   # biased, as PyTorch
        scale = q[f"g{i}"] / jnp.sqrt(var + 1e-5)
        shift = q[f"beta{i}"] - mean * scale
        y = bn_lrelu(conv, scale.reshape(-1, 1), shift.reshape(-1, 1),
                     out_dtype=jnp.bfloat16)
        y = y.reshape(-1, n, oh, ow)

    # layer 4: Conv(4, s=1, p=0) + bias + Sigmoid  (fused epilogue)
    b4, _ = im2col_cfirst(y, 4, 1, 0)
    out = conv_matmul(q["A4"], b4, q["b4"], "sigmoid", out_dtype=jnp.float32)
    return out.reshape(-1)                                # == y.view(-1)


# ---------------------------------------------------------------------------
# Pure-JAX reference (independent of the Pallas/im2col path)
# ---------------------------------------------------------------------------

def reference_forward(x, p):
    def conv(z, w, b, s, pad):
        y = lax.conv_general_dilated(z, w, (s, s), ((pad, pad), (pad, pad)),
                                     dimension_numbers=("NCHW", "OIHW", "NCHW"))
        return y + b.reshape(1, -1, 1, 1)

    def lrelu(z):
        return jnp.where(z > 0, z, 0.2 * z)

    def bn(z, g, b, eps=1e-5):
        mean = jnp.mean(z, axis=(0, 2, 3), keepdims=True)
        var = jnp.var(z, axis=(0, 2, 3), keepdims=True)
        return (z - mean) / jnp.sqrt(var + eps) * g.reshape(1, -1, 1, 1) \
            + b.reshape(1, -1, 1, 1)

    y = lrelu(conv(x, p["conv0_w"], p["conv0_b"], 2, 2))
    for i in (1, 2, 3):
        y = conv(y, p[f"conv{i}_w"], p[f"conv{i}_b"], 2, 2)
        y = lrelu(bn(y, p[f"bn{i}_g"], p[f"bn{i}_b"]))
    y = conv(y, p["conv4_w"], p["conv4_b"], 1, 0)
    return jax.nn.sigmoid(y).reshape(-1)


# ---------------------------------------------------------------------------

if __name__ == "__main__":
    in_dim, dim, batch = 3, 16, 2          # input must be (N, 3, 64, 64)
    key = jax.random.PRNGKey(0)
    k_x, k_p = jax.random.split(key)
    x = jax.random.normal(k_x, (batch, in_dim, 64, 64), jnp.float32)

    params = init_params(k_p, in_dim, dim)
    prepared = prepare_params(params)

    fwd = jax.jit(discriminator_forward)
    out = jax.block_until_ready(fwd(x, prepared))

    assert out.shape == (batch,), out.shape
    assert out.dtype == jnp.float32
    assert bool(jnp.all(jnp.isfinite(out)))
    assert bool(jnp.all((out >= 0.0) & (out <= 1.0)))     # sigmoid range

    ref = reference_forward(x, params)
    assert float(jnp.max(jnp.abs(out - ref))) < 0.1, (out, ref)

    print("KERNEL_OK")
</pallas_src>

<mosaic_0001>
module attributes {stable_mosaic.version = 11 : i64} {
  func.func @_mm_lrelu_kernel(%arg0: i32, %arg1: memref<16x75xbf16, #tpu.memory_space<vmem>>, %arg2: memref<75x512xbf16, #tpu.memory_space<vmem>>, %arg3: memref<16x1xf32, #tpu.memory_space<vmem>>, %arg4: memref<16x512xbf16, #tpu.memory_space<vmem>>) attributes {dimension_semantics = [#tpu.dimension_semantics<parallel>], iteration_bounds = array<i64: 4>, scalar_prefetch = 0 : i64, scratch_operands = 0 : i64, tpu.core_type = #tpu.core_type<tc>, window_params = [{pipeline_mode = #tpu.pipeline_mode<synchronous>, transform_indices = @transform_0, window_bounds = array<i64: 16, 75>}, {transform_indices = @transform_1, window_bounds = array<i64: 75, 512>}, {pipeline_mode = #tpu.pipeline_mode<synchronous>, transform_indices = @transform_2, window_bounds = array<i64: 16, 1>}, {transform_indices = @transform_3, window_bounds = array<i64: 16, 512>}]} {
    %c0 = arith.constant 0 : index
    %c0_0 = arith.constant 0 : index
    %0 = vector.load %arg1[%c0, %c0_0] : memref<16x75xbf16, #tpu.memory_space<vmem>>, vector<16x75xbf16>
    %c0_1 = arith.constant 0 : index
    %c0_2 = arith.constant 0 : index
    %1 = vector.load %arg2[%c0_1, %c0_2] : memref<75x512xbf16, #tpu.memory_space<vmem>>, vector<75x512xbf16>
    %cst = arith.constant dense<0.000000e+00> : vector<16x512xf32>
    %2 = tpu.matmul %0, %1, %cst {dimension_numbers = #tpu.dot_dimension_numbers<[1], [0], [0], [1], [0, 0, 1, 1], [], []>} : vector<16x75xbf16>, vector<75x512xbf16>, vector<16x512xf32> -> vector<16x512xf32>
    %c0_3 = arith.constant 0 : index
    %c0_4 = arith.constant 0 : index
    %3 = vector.load %arg3[%c0_3, %c0_4] : memref<16x1xf32, #tpu.memory_space<vmem>>, vector<16x1xf32>
    %4 = vector.broadcast %3 : vector<16x1xf32> to vector<16x512xf32>
    %5 = arith.addf %2, %4 : vector<16x512xf32>
    %cst_5 = arith.constant 2.000000e-01 : f32
    %6 = vector.broadcast %cst_5 : f32 to vector<16x512xf32>
    %7 = arith.mulf %6, %5 : vector<16x512xf32>
    %8 = arith.maximumf %5, %7 : vector<16x512xf32>
    %9 = arith.truncf %8 : vector<16x512xf32> to vector<16x512xbf16>
    %c0_6 = arith.constant 0 : index
    %c0_7 = arith.constant 0 : index
    %10 = vector.load %arg4[%c0_6, %c0_7] : memref<16x512xbf16, #tpu.memory_space<vmem>>, vector<16x512xbf16>
    tpu.vector_store %arg4[%c0_6, %c0_7], %9 {strides = array<i32>} : memref<16x512xbf16, #tpu.memory_space<vmem>>, vector<16x512xbf16>,
    return
  }
  func.func @transform_0(%arg0: i32) -> (i32, i32) {
    %c0_i32 = arith.constant 0 : i32
    %c0_i32_0 = arith.constant 0 : i32
    %c0_i32_1 = arith.constant 0 : i32
    return %c0_i32, %c0_i32_0 : i32, i32
  }
  func.func @transform_1(%arg0: i32) -> (i32, i32) {
    %c0_i32 = arith.constant 0 : i32
    %c0_i32_0 = arith.constant 0 : i32
    return %c0_i32, %arg0 : i32, i32
  }
  func.func @transform_2(%arg0: i32) -> (i32, i32) {
    %c0_i32 = arith.constant 0 : i32
    %c0_i32_0 = arith.constant 0 : i32
    %c0_i32_1 = arith.constant 0 : i32
    return %c0_i32, %c0_i32_0 : i32, i32
  }
  func.func @transform_3(%arg0: i32) -> (i32, i32) {
    %c0_i32 = arith.constant 0 : i32
    %c0_i32_0 = arith.constant 0 : i32
    return %c0_i32, %arg0 : i32, i32
  }
}

module attributes {stable_mosaic.version = 11 : i64} {
  func.func @_mm_stats_kernel(%arg0: i32, %arg1: memref<32x400xbf16, #tpu.memory_space<vmem>>, %arg2: memref<400x512xbf16, #tpu.memory_space<vmem>>, %arg3: memref<32x1xf32, #tpu.memory_space<vmem>>, %arg4: memref<32x512xf32, #tpu.memory_space<vmem>>, %arg5: memref<32x128xf32, #tpu.memory_space<vmem>>) attributes {dimension_semantics = [#tpu.dimension_semantics<parallel>], iteration_bounds = array<i64: 1>, scalar_prefetch = 0 : i64, scratch_operands = 0 : i64, tpu.core_type = #tpu.core_type<tc>, window_params = [{pipeline_mode = #tpu.pipeline_mode<synchronous>, transform_indices = @transform_0, window_bounds = array<i64: 32, 400>}, {transform_indices = @transform_1, window_bounds = array<i64: 400, 512>}, {pipeline_mode = #tpu.pipeline_mode<synchronous>, transform_indices = @transform_2, window_bounds = array<i64: 32, 1>}, {transform_indices = @transform_3, window_bounds = array<i64: 32, 512>}, {transform_indices = @transform_4, window_bounds = array<i64: 32, 128>}]} {
    %c0 = arith.constant 0 : index
    %c0_0 = arith.constant 0 : index
    %0 = vector.load %arg1[%c0, %c0_0] : memref<32x400xbf16, #tpu.memory_space<vmem>>, vector<32x400xbf16>
    %c0_1 = arith.constant 0 : index
    %c0_2 = arith.constant 0 : index
    %1 = vector.load %arg2[%c0_1, %c0_2] : memref<400x512xbf16, #tpu.memory_space<vmem>>, vector<400x512xbf16>
    %cst = arith.constant dense<0.000000e+00> : vector<32x512xf32>
    %2 = tpu.matmul %0, %1, %cst {dimension_numbers = #tpu.dot_dimension_numbers<[1], [0], [0], [1], [0, 0, 1, 1], [], []>} : vector<32x400xbf16>, vector<400x512xbf16>, vector<32x512xf32> -> vector<32x512xf32>
    %c0_3 = arith.constant 0 : index
    %c0_4 = arith.constant 0 : index
    %3 = vector.load %arg3[%c0_3, %c0_4] : memref<32x1xf32, #tpu.memory_space<vmem>>, vector<32x1xf32>
    %4 = vector.broadcast %3 : vector<32x1xf32> to vector<32x512xf32>
    %5 = arith.addf %2, %4 : vector<32x512xf32>
    %c0_5 = arith.constant 0 : index
    %c0_6 = arith.constant 0 : index
    %6 = vector.load %arg4[%c0_5, %c0_6] : memref<32x512xf32, #tpu.memory_space<vmem>>, vector<32x512xf32>
    tpu.vector_store %arg4[%c0_5, %c0_6], %5 {strides = array<i32>} : memref<32x512xf32, #tpu.memory_space<vmem>>, vector<32x512xf32>,
    %cst_7 = arith.constant dense<0.000000e+00> : vector<32xf32>
    %7 = vector.multi_reduction <add>, %5, %cst_7 [1] : vector<32x512xf32> to vector<32xf32>
    %8 = vector.shape_cast %7 : vector<32xf32> to vector<32x1xf32>
    %9 = arith.mulf %5, %5 : vector<32x512xf32>
    %cst_8 = arith.constant dense<0.000000e+00> : vector<32xf32>
    %10 = vector.multi_reduction <add>, %9, %cst_8 [1] : vector<32x512xf32> to vector<32xf32>
    %11 = vector.shape_cast %10 : vector<32xf32> to vector<32x1xf32>
    %12 = tpu.iota {dimensions = array<i32: 1>} : vector<32x128xi32>
    %c0_i32 = arith.constant 0 : i32
    %13 = vector.broadcast %c0_i32 : i32 to vector<32x128xi32>
    %14 = arith.cmpi eq, %12, %13 : vector<32x128xi32>
    %c1_i32 = arith.constant 1 : i32
    %15 = vector.broadcast %c1_i32 : i32 to vector<32x128xi32>
    %16 = arith.cmpi eq, %12, %15 : vector<32x128xi32>
    %cst_9 = arith.constant 0.000000e+00 : f32
    %17 = vector.shape_cast %11 : vector<32x1xf32> to vector<32x1xf32>
    %18 = vector.broadcast %17 : vector<32x1xf32> to vector<32x128xf32>
    %19 = vector.broadcast %cst_9 : f32 to vector<32x128xf32>
    %20 = arith.select %16, %18, %19 : vector<32x128xi1>, vector<32x128xf32>
    %21 = vector.shape_cast %8 : vector<32x1xf32> to vector<32x1xf32>
    %22 = vector.broadcast %21 : vector<32x1xf32> to vector<32x128xf32>
    %23 = arith.select %14, %22, %20 : vector<32x128xi1>, vector<32x128xf32>
    %c0_10 = arith.constant 0 : index
    %c0_11 = arith.constant 0 : index
    %24 = vector.load %arg5[%c0_10, %c0_11] : memref<32x128xf32, #tpu.memory_space<vmem>>, vector<32x128xf32>
    tpu.vector_store %arg5[%c0_10, %c0_11], %23 {strides = array<i32>} : memref<32x128xf32, #tpu.memory_space<vmem>>, vector<32x128xf32>,
    return
  }
  func.func @transform_0(%arg0: i32) -> (i32, i32) {
    %c0_i32 = arith.constant 0 : i32
    %c0_i32_0 = arith.constant 0 : i32
    %c0_i32_1 = arith.constant 0 : i32
    return %c0_i32, %c0_i32_0 : i32, i32
  }
  func.func @transform_1(%arg0: i32) -> (i32, i32) {
    %c0_i32 = arith.constant 0 : i32
    %c0_i32_0 = arith.constant 0 : i32
    return %c0_i32, %arg0 : i32, i32
  }
  func.func @transform_2(%arg0: i32) -> (i32, i32) {
    %c0_i32 = arith.constant 0 : i32
    %c0_i32_0 = arith.constant 0 : i32
    %c0_i32_1 = arith.constant 0 : i32
    return %c0_i32, %c0_i32_0 : i32, i32
  }
  func.func @transform_3(%arg0: i32) -> (i32, i32) {
    %c0_i32 = arith.constant 0 : i32
    %c0_i32_0 = arith.constant 0 : i32
    return %c0_i32, %arg0 : i32, i32
  }
  func.func @transform_4(%arg0: i32) -> (i32, i32) {
    %c0_i32 = arith.constant 0 : i32
    %c0_i32_0 = arith.constant 0 : i32
    return %c0_i32, %arg0 : i32, i32
  }
}

module attributes {stable_mosaic.version = 11 : i64} {
  func.func @_bn_lrelu_kernel(%arg0: i32, %arg1: memref<32x512xf32, #tpu.memory_space<vmem>>, %arg2: memref<32x1xf32, #tpu.memory_space<vmem>>, %arg3: memref<32x1xf32, #tpu.memory_space<vmem>>, %arg4: memref<32x512xbf16, #tpu.memory_space<vmem>>) attributes {dimension_semantics = [#tpu.dimension_semantics<parallel>], iteration_bounds = array<i64: 1>, scalar_prefetch = 0 : i64, scratch_operands = 0 : i64, tpu.core_type = #tpu.core_type<tc>, window_params = [{transform_indices = @transform_0, window_bounds = array<i64: 32, 512>}, {pipeline_mode = #tpu.pipeline_mode<synchronous>, transform_indices = @transform_1, window_bounds = array<i64: 32, 1>}, {pipeline_mode = #tpu.pipeline_mode<synchronous>, transform_indices = @transform_2, window_bounds = array<i64: 32, 1>}, {transform_indices = @transform_3, window_bounds = array<i64: 32, 512>}]} {
    %c0 = arith.constant 0 : index
    %c0_0 = arith.constant 0 : index
    %0 = vector.load %arg1[%c0, %c0_0] : memref<32x512xf32, #tpu.memory_space<vmem>>, vector<32x512xf32>
    %c0_1 = arith.constant 0 : index
    %c0_2 = arith.constant 0 : index
    %1 = vector.load %arg2[%c0_1, %c0_2] : memref<32x1xf32, #tpu.memory_space<vmem>>, vector<32x1xf32>
    %2 = vector.broadcast %1 : vector<32x1xf32> to vector<32x512xf32>
    %3 = arith.mulf %0, %2 : vector<32x512xf32>
    %c0_3 = arith.constant 0 : index
    %c0_4 = arith.constant 0 : index
    %4 = vector.load %arg3[%c0_3, %c0_4] : memref<32x1xf32, #tpu.memory_space<vmem>>, vector<32x1xf32>
    %5 = vector.broadcast %4 : vector<32x1xf32> to vector<32x512xf32>
    %6 = arith.addf %3, %5 : vector<32x512xf32>
    %cst = arith.constant 2.000000e-01 : f32
    %7 = vector.broadcast %cst : f32 to vector<32x512xf32>
    %8 = arith.mulf %7, %6 : vector<32x512xf32>
    %9 = arith.maximumf %6, %8 : vector<32x512xf32>
    %10 = arith.truncf %9 : vector<32x512xf32> to vector<32x512xbf16>
    %c0_5 = arith.constant 0 : index
    %c0_6 = arith.constant 0 : index
    %11 = vector.load %arg4[%c0_5, %c0_6] : memref<32x512xbf16, #tpu.memory_space<vmem>>, vector<32x512xbf16>
    tpu.vector_store %arg4[%c0_5, %c0_6], %10 {strides = array<i32>} : memref<32x512xbf16, #tpu.memory_space<vmem>>, vector<32x512xbf16>,
    return
  }
  func.func @transform_0(%arg0: i32) -> (i32, i32) {
    %c0_i32 = arith.constant 0 : i32
    %c0_i32_0 = arith.constant 0 : i32
    return %c0_i32, %arg0 : i32, i32
  }
  func.func @transform_1(%arg0: i32) -> (i32, i32) {
    %c0_i32 = arith.constant 0 : i32
    %c0_i32_0 = arith.constant 0 : i32
    %c0_i32_1 = arith.constant 0 : i32
    return %c0_i32, %c0_i32_0 : i32, i32
  }
  func.func @transform_2(%arg0: i32) -> (i32, i32) {
    %c0_i32 = arith.constant 0 : i32
    %c0_i32_0 = arith.constant 0 : i32
    %c0_i32_1 = arith.constant 0 : i32
    return %c0_i32, %c0_i32_0 : i32, i32
  }
  func.func @transform_3(%arg0: i32) -> (i32, i32) {
    %c0_i32 = arith.constant 0 : i32
    %c0_i32_0 = arith.constant 0 : i32
    return %c0_i32, %arg0 : i32, i32
  }
}

module attributes {stable_mosaic.version = 11 : i64} {
  func.func @_mm_stats_kernel(%arg0: i32, %arg1: memref<64x800xbf16, #tpu.memory_space<vmem>>, %arg2: memref<800x128xbf16, #tpu.memory_space<vmem>>, %arg3: memref<64x1xf32, #tpu.memory_space<vmem>>, %arg4: memref<64x128xf32, #tpu.memory_space<vmem>>, %arg5: memref<64x128xf32, #tpu.memory_space<vmem>>) attributes {dimension_semantics = [#tpu.dimension_semantics<parallel>], iteration_bounds = array<i64: 1>, scalar_prefetch = 0 : i64, scratch_operands = 0 : i64, tpu.core_type = #tpu.core_type<tc>, window_params = [{pipeline_mode = #tpu.pipeline_mode<synchronous>, transform_indices = @transform_0, window_bounds = array<i64: 64, 800>}, {transform_indices = @transform_1, window_bounds = array<i64: 800, 128>}, {pipeline_mode = #tpu.pipeline_mode<synchronous>, transform_indices = @transform_2, window_bounds = array<i64: 64, 1>}, {transform_indices = @transform_3, window_bounds = array<i64: 64, 128>}, {transform_indices = @transform_4, window_bounds = array<i64: 64, 128>}]} {
    %c0 = arith.constant 0 : index
    %c0_0 = arith.constant 0 : index
    %0 = vector.load %arg1[%c0, %c0_0] : memref<64x800xbf16, #tpu.memory_space<vmem>>, vector<64x800xbf16>
    %c0_1 = arith.constant 0 : index
    %c0_2 = arith.constant 0 : index
    %1 = vector.load %arg2[%c0_1, %c0_2] : memref<800x128xbf16, #tpu.memory_space<vmem>>, vector<800x128xbf16>
    %cst = arith.constant dense<0.000000e+00> : vector<64x128xf32>
    %2 = tpu.matmul %0, %1, %cst {dimension_numbers = #tpu.dot_dimension_numbers<[1], [0], [0], [1], [0, 0, 1, 1], [], []>} : vector<64x800xbf16>, vector<800x128xbf16>, vector<64x128xf32> -> vector<64x128xf32>
    %c0_3 = arith.constant 0 : index
    %c0_4 = arith.constant 0 : index
    %3 = vector.load %arg3[%c0_3, %c0_4] : memref<64x1xf32, #tpu.memory_space<vmem>>, vector<64x1xf32>
    %4 = vector.broadcast %3 : vector<64x1xf32> to vector<64x128xf32>
    %5 = arith.addf %2, %4 : vector<64x128xf32>
    %c0_5 = arith.constant 0 : index
    %c0_6 = arith.constant 0 : index
    %6 = vector.load %arg4[%c0_5, %c0_6] : memref<64x128xf32, #tpu.memory_space<vmem>>, vector<64x128xf32>
    tpu.vector_store %arg4[%c0_5, %c0_6], %5 {strides = array<i32>} : memref<64x128xf32, #tpu.memory_space<vmem>>, vector<64x128xf32>,
    %cst_7 = arith.constant dense<0.000000e+00> : vector<64xf32>
    %7 = vector.multi_reduction <add>, %5, %cst_7 [1] : vector<64x128xf32> to vector<64xf32>
    %8 = vector.shape_cast %7 : vector<64xf32> to vector<64x1xf32>
    %9 = arith.mulf %5, %5 : vector<64x128xf32>
    %cst_8 = arith.constant dense<0.000000e+00> : vector<64xf32>
    %10 = vector.multi_reduction <add>, %9, %cst_8 [1] : vector<64x128xf32> to vector<64xf32>
    %11 = vector.shape_cast %10 : vector<64xf32> to vector<64x1xf32>
    %12 = tpu.iota {dimensions = array<i32: 1>} : vector<64x128xi32>
    %c0_i32 = arith.constant 0 : i32
    %13 = vector.broadcast %c0_i32 : i32 to vector<64x128xi32>
    %14 = arith.cmpi eq, %12, %13 : vector<64x128xi32>
    %c1_i32 = arith.constant 1 : i32
    %15 = vector.broadcast %c1_i32 : i32 to vector<64x128xi32>
    %16 = arith.cmpi eq, %12, %15 : vector<64x128xi32>
    %cst_9 = arith.constant 0.000000e+00 : f32
    %17 = vector.shape_cast %11 : vector<64x1xf32> to vector<64x1xf32>
    %18 = vector.broadcast %17 : vector<64x1xf32> to vector<64x128xf32>
    %19 = vector.broadcast %cst_9 : f32 to vector<64x128xf32>
    %20 = arith.select %16, %18, %19 : vector<64x128xi1>, vector<64x128xf32>
    %21 = vector.shape_cast %8 : vector<64x1xf32> to vector<64x1xf32>
    %22 = vector.broadcast %21 : vector<64x1xf32> to vector<64x128xf32>
    %23 = arith.select %14, %22, %20 : vector<64x128xi1>, vector<64x128xf32>
    %c0_10 = arith.constant 0 : index
    %c0_11 = arith.constant 0 : index
    %24 = vector.load %arg5[%c0_10, %c0_11] : memref<64x128xf32, #tpu.memory_space<vmem>>, vector<64x128xf32>
    tpu.vector_store %arg5[%c0_10, %c0_11], %23 {strides = array<i32>} : memref<64x128xf32, #tpu.memory_space<vmem>>, vector<64x128xf32>,
    return
  }
  func.func @transform_0(%arg0: i32) -> (i32, i32) {
    %c0_i32 = arith.constant 0 : i32
    %c0_i32_0 = arith.constant 0 : i32
    %c0_i32_1 = arith.constant 0 : i32
    return %c0_i32, %c0_i32_0 : i32, i32
  }
  func.func @transform_1(%arg0: i32) -> (i32, i32) {
    %c0_i32 = arith.constant 0 : i32
    %c0_i32_0 = arith.constant 0 : i32
    return %c0_i32, %arg0 : i32, i32
  }
  func.func @transform_2(%arg0: i32) -> (i32, i32) {
    %c0_i32 = arith.constant 0 : i32
    %c0_i32_0 = arith.constant 0 : i32
    %c0_i32_1 = arith.constant 0 : i32
    return %c0_i32, %c0_i32_0 : i32, i32
  }
  func.func @transform_3(%arg0: i32) -> (i32, i32) {
    %c0_i32 = arith.constant 0 : i32
    %c0_i32_0 = arith.constant 0 : i32
    return %c0_i32, %arg0 : i32, i32
  }
  func.func @transform_4(%arg0: i32) -> (i32, i32) {
    %c0_i32 = arith.constant 0 : i32
    %c0_i32_0 = arith.constant 0 : i32
    return %c0_i32, %arg0 : i32, i32
  }
}

module attributes {stable_mosaic.version = 11 : i64} {
  func.func @_bn_lrelu_kernel(%arg0: i32, %arg1: memref<64x128xf32, #tpu.memory_space<vmem>>, %arg2: memref<64x1xf32, #tpu.memory_space<vmem>>, %arg3: memref<64x1xf32, #tpu.memory_space<vmem>>, %arg4: memref<64x128xbf16, #tpu.memory_space<vmem>>) attributes {dimension_semantics = [#tpu.dimension_semantics<parallel>], iteration_bounds = array<i64: 1>, scalar_prefetch = 0 : i64, scratch_operands = 0 : i64, tpu.core_type = #tpu.core_type<tc>, window_params = [{transform_indices = @transform_0, window_bounds = array<i64: 64, 128>}, {pipeline_mode = #tpu.pipeline_mode<synchronous>, transform_indices = @transform_1, window_bounds = array<i64: 64, 1>}, {pipeline_mode = #tpu.pipeline_mode<synchronous>, transform_indices = @transform_2, window_bounds = array<i64: 64, 1>}, {transform_indices = @transform_3, window_bounds = array<i64: 64, 128>}]} {
    %c0 = arith.constant 0 : index
    %c0_0 = arith.constant 0 : index
    %0 = vector.load %arg1[%c0, %c0_0] : memref<64x128xf32, #tpu.memory_space<vmem>>, vector<64x128xf32>
    %c0_1 = arith.constant 0 : index
    %c0_2 = arith.constant 0 : index
    %1 = vector.load %arg2[%c0_1, %c0_2] : memref<64x1xf32, #tpu.memory_space<vmem>>, vector<64x1xf32>
    %2 = vector.broadcast %1 : vector<64x1xf32> to vector<64x128xf32>
    %3 = arith.mulf %0, %2 : vector<64x128xf32>
    %c0_3 = arith.constant 0 : index
    %c0_4 = arith.constant 0 : index
    %4 = vector.load %arg3[%c0_3, %c0_4] : memref<64x1xf32, #tpu.memory_space<vmem>>, vector<64x1xf32>
    %5 = vector.broadcast %4 : vector<64x1xf32> to vector<64x128xf32>
    %6 = arith.addf %3, %5 : vector<64x128xf32>
    %cst = arith.constant 2.000000e-01 : f32
    %7 = vector.broadcast %cst : f32 to vector<64x128xf32>
    %8 = arith.mulf %7, %6 : vector<64x128xf32>
    %9 = arith.maximumf %6, %8 : vector<64x128xf32>
    %10 = arith.truncf %9 : vector<64x128xf32> to vector<64x128xbf16>
    %c0_5 = arith.constant 0 : index
    %c0_6 = arith.constant 0 : index
    %11 = vector.load %arg4[%c0_5, %c0_6] : memref<64x128xbf16, #tpu.memory_space<vmem>>, vector<64x128xbf16>
    tpu.vector_store %arg4[%c0_5, %c0_6], %10 {strides = array<i32>} : memref<64x128xbf16, #tpu.memory_space<vmem>>, vector<64x128xbf16>,
    return
  }
  func.func @transform_0(%arg0: i32) -> (i32, i32) {
    %c0_i32 = arith.constant 0 : i32
    %c0_i32_0 = arith.constant 0 : i32
    return %c0_i32, %arg0 : i32, i32
  }
  func.func @transform_1(%arg0: i32) -> (i32, i32) {
    %c0_i32 = arith.constant 0 : i32
    %c0_i32_0 = arith.constant 0 : i32
    %c0_i32_1 = arith.constant 0 : i32
    return %c0_i32, %c0_i32_0 : i32, i32
  }
  func.func @transform_2(%arg0: i32) -> (i32, i32) {
    %c0_i32 = arith.constant 0 : i32
    %c0_i32_0 = arith.constant 0 : i32
    %c0_i32_1 = arith.constant 0 : i32
    return %c0_i32, %c0_i32_0 : i32, i32
  }
  func.func @transform_3(%arg0: i32) -> (i32, i32) {
    %c0_i32 = arith.constant 0 : i32
    %c0_i32_0 = arith.constant 0 : i32
    return %c0_i32, %arg0 : i32, i32
  }
}

module attributes {stable_mosaic.version = 11 : i64} {
  func.func @_mm_stats_kernel(%arg0: i32, %arg1: memref<128x1600xbf16, #tpu.memory_space<vmem>>, %arg2: memref<1600x32xbf16, #tpu.memory_space<vmem>>, %arg3: memref<128x1xf32, #tpu.memory_space<vmem>>, %arg4: memref<128x32xf32, #tpu.memory_space<vmem>>, %arg5: memref<128x128xf32, #tpu.memory_space<vmem>>) attributes {dimension_semantics = [#tpu.dimension_semantics<parallel>], iteration_bounds = array<i64: 1>, scalar_prefetch = 0 : i64, scratch_operands = 0 : i64, tpu.core_type = #tpu.core_type<tc>, window_params = [{pipeline_mode = #tpu.pipeline_mode<synchronous>, transform_indices = @transform_0, window_bounds = array<i64: 128, 1600>}, {transform_indices = @transform_1, window_bounds = array<i64: 1600, 32>}, {pipeline_mode = #tpu.pipeline_mode<synchronous>, transform_indices = @transform_2, window_bounds = array<i64: 128, 1>}, {transform_indices = @transform_3, window_bounds = array<i64: 128, 32>}, {transform_indices = @transform_4, window_bounds = array<i64: 128, 128>}]} {
    %c0 = arith.constant 0 : index
    %c0_0 = arith.constant 0 : index
    %0 = vector.load %arg1[%c0, %c0_0] : memref<128x1600xbf16, #tpu.memory_space<vmem>>, vector<128x1600xbf16>
    %c0_1 = arith.constant 0 : index
    %c0_2 = arith.constant 0 : index
    %1 = vector.load %arg2[%c0_1, %c0_2] : memref<1600x32xbf16, #tpu.memory_space<vmem>>, vector<1600x32xbf16>
    %cst = arith.constant dense<0.000000e+00> : vector<128x32xf32>
    %2 = tpu.matmul %0, %1, %cst {dimension_numbers = #tpu.dot_dimension_numbers<[1], [0], [0], [1], [0, 0, 1, 1], [], []>} : vector<128x1600xbf16>, vector<1600x32xbf16>, vector<128x32xf32> -> vector<128x32xf32>
    %c0_3 = arith.constant 0 : index
    %c0_4 = arith.constant 0 : index
    %3 = vector.load %arg3[%c0_3, %c0_4] : memref<128x1xf32, #tpu.memory_space<vmem>>, vector<128x1xf32>
    %4 = vector.broadcast %3 : vector<128x1xf32> to vector<128x32xf32>
    %5 = arith.addf %2, %4 : vector<128x32xf32>
    %c0_5 = arith.constant 0 : index
    %c0_6 = arith.constant 0 : index
    %6 = vector.load %arg4[%c0_5, %c0_6] : memref<128x32xf32, #tpu.memory_space<vmem>>, vector<128x32xf32>
    tpu.vector_store %arg4[%c0_5, %c0_6], %5 {strides = array<i32>} : memref<128x32xf32, #tpu.memory_space<vmem>>, vector<128x32xf32>,
    %cst_7 = arith.constant dense<0.000000e+00> : vector<128xf32>
    %7 = vector.multi_reduction <add>, %5, %cst_7 [1] : vector<128x32xf32> to vector<128xf32>
    %8 = vector.shape_cast %7 : vector<128xf32> to vector<128x1xf32>
    %9 = arith.mulf %5, %5 : vector<128x32xf32>
    %cst_8 = arith.constant dense<0.000000e+00> : vector<128xf32>
    %10 = vector.multi_reduction <add>, %9, %cst_8 [1] : vector<128x32xf32> to vector<128xf32>
    %11 = vector.shape_cast %10 : vector<128xf32> to vector<128x1xf32>
    %12 = tpu.iota {dimensions = array<i32: 1>} : vector<128x128xi32>
    %c0_i32 = arith.constant 0 : i32
    %13 = vector.broadcast %c0_i32 : i32 to vector<128x128xi32>
    %14 = arith.cmpi eq, %12, %13 : vector<128x128xi32>
    %c1_i32 = arith.constant 1 : i32
    %15 = vector.broadcast %c1_i32 : i32 to vector<128x128xi32>
    %16 = arith.cmpi eq, %12, %15 : vector<128x128xi32>
    %cst_9 = arith.constant 0.000000e+00 : f32
    %17 = vector.shape_cast %11 : vector<128x1xf32> to vector<128x1xf32>
    %18 = vector.broadcast %17 : vector<128x1xf32> to vector<128x128xf32>
    %19 = vector.broadcast %cst_9 : f32 to vector<128x128xf32>
    %20 = arith.select %16, %18, %19 : vector<128x128xi1>, vector<128x128xf32>
    %21 = vector.shape_cast %8 : vector<128x1xf32> to vector<128x1xf32>
    %22 = vector.broadcast %21 : vector<128x1xf32> to vector<128x128xf32>
    %23 = arith.select %14, %22, %20 : vector<128x128xi1>, vector<128x128xf32>
    %c0_10 = arith.constant 0 : index
    %c0_11 = arith.constant 0 : index
    %24 = vector.load %arg5[%c0_10, %c0_11] : memref<128x128xf32, #tpu.memory_space<vmem>>, vector<128x128xf32>
    tpu.vector_store %arg5[%c0_10, %c0_11], %23 {strides = array<i32>} : memref<128x128xf32, #tpu.memory_space<vmem>>, vector<128x128xf32>,
    return
  }
  func.func @transform_0(%arg0: i32) -> (i32, i32) {
    %c0_i32 = arith.constant 0 : i32
    %c0_i32_0 = arith.constant 0 : i32
    %c0_i32_1 = arith.constant 0 : i32
    return %c0_i32, %c0_i32_0 : i32, i32
  }
  func.func @transform_1(%arg0: i32) -> (i32, i32) {
    %c0_i32 = arith.constant 0 : i32
    %c0_i32_0 = arith.constant 0 : i32
    return %c0_i32, %arg0 : i32, i32
  }
  func.func @transform_2(%arg0: i32) -> (i32, i32) {
    %c0_i32 = arith.constant 0 : i32
    %c0_i32_0 = arith.constant 0 : i32
    %c0_i32_1 = arith.constant 0 : i32
    return %c0_i32, %c0_i32_0 : i32, i32
  }
  func.func @transform_3(%arg0: i32) -> (i32, i32) {
    %c0_i32 = arith.constant 0 : i32
    %c0_i32_0 = arith.constant 0 : i32
    return %c0_i32, %arg0 : i32, i32
  }
  func.func @transform_4(%arg0: i32) -> (i32, i32) {
    %c0_i32 = arith.constant 0 : i32
    %c0_i32_0 = arith.constant 0 : i32
    return %c0_i32, %arg0 : i32, i32
  }
}

module attributes {stable_mosaic.version = 11 : i64} {
  func.func @_bn_lrelu_kernel(%arg0: i32, %arg1: memref<128x32xf32, #tpu.memory_space<vmem>>, %arg2: memref<128x1xf32, #tpu.memory_space<vmem>>, %arg3: memref<128x1xf32, #tpu.memory_space<vmem>>, %arg4: memref<128x32xbf16, #tpu.memory_space<vmem>>) attributes {dimension_semantics = [#tpu.dimension_semantics<parallel>], iteration_bounds = array<i64: 1>, scalar_prefetch = 0 : i64, scratch_operands = 0 : i64, tpu.core_type = #tpu.core_type<tc>, window_params = [{transform_indices = @transform_0, window_bounds = array<i64: 128, 32>}, {pipeline_mode = #tpu.pipeline_mode<synchronous>, transform_indices = @transform_1, window_bounds = array<i64: 128, 1>}, {pipeline_mode = #tpu.pipeline_mode<synchronous>, transform_indices = @transform_2, window_bounds = array<i64: 128, 1>}, {transform_indices = @transform_3, window_bounds = array<i64: 128, 32>}]} {
    %c0 = arith.constant 0 : index
    %c0_0 = arith.constant 0 : index
    %0 = vector.load %arg1[%c0, %c0_0] : memref<128x32xf32, #tpu.memory_space<vmem>>, vector<128x32xf32>
    %c0_1 = arith.constant 0 : index
    %c0_2 = arith.constant 0 : index
    %1 = vector.load %arg2[%c0_1, %c0_2] : memref<128x1xf32, #tpu.memory_space<vmem>>, vector<128x1xf32>
    %2 = vector.broadcast %1 : vector<128x1xf32> to vector<128x32xf32>
    %3 = arith.mulf %0, %2 : vector<128x32xf32>
    %c0_3 = arith.constant 0 : index
    %c0_4 = arith.constant 0 : index
    %4 = vector.load %arg3[%c0_3, %c0_4] : memref<128x1xf32, #tpu.memory_space<vmem>>, vector<128x1xf32>
    %5 = vector.broadcast %4 : vector<128x1xf32> to vector<128x32xf32>
    %6 = arith.addf %3, %5 : vector<128x32xf32>
    %cst = arith.constant 2.000000e-01 : f32
    %7 = vector.broadcast %cst : f32 to vector<128x32xf32>
    %8 = arith.mulf %7, %6 : vector<128x32xf32>
    %9 = arith.maximumf %6, %8 : vector<128x32xf32>
    %10 = arith.truncf %9 : vector<128x32xf32> to vector<128x32xbf16>
    %c0_5 = arith.constant 0 : index
    %c0_6 = arith.constant 0 : index
    %11 = vector.load %arg4[%c0_5, %c0_6] : memref<128x32xbf16, #tpu.memory_space<vmem>>, vector<128x32xbf16>
    tpu.vector_store %arg4[%c0_5, %c0_6], %10 {strides = array<i32>} : memref<128x32xbf16, #tpu.memory_space<vmem>>, vector<128x32xbf16>,
    return
  }
  func.func @transform_0(%arg0: i32) -> (i32, i32) {
    %c0_i32 = arith.constant 0 : i32
    %c0_i32_0 = arith.constant 0 : i32
    return %c0_i32, %arg0 : i32, i32
  }
  func.func @transform_1(%arg0: i32) -> (i32, i32) {
    %c0_i32 = arith.constant 0 : i32
    %c0_i32_0 = arith.constant 0 : i32
    %c0_i32_1 = arith.constant 0 : i32
    return %c0_i32, %c0_i32_0 : i32, i32
  }
  func.func @transform_2(%arg0: i32) -> (i32, i32) {
    %c0_i32 = arith.constant 0 : i32
    %c0_i32_0 = arith.constant 0 : i32
    %c0_i32_1 = arith.constant 0 : i32
    return %c0_i32, %c0_i32_0 : i32, i32
  }
  func.func @transform_3(%arg0: i32) -> (i32, i32) {
    %c0_i32 = arith.constant 0 : i32
    %c0_i32_0 = arith.constant 0 : i32
    return %c0_i32, %arg0 : i32, i32
  }
}

module attributes {stable_mosaic.version = 11 : i64} {
  func.func @_mm_sigmoid_kernel(%arg0: i32, %arg1: memref<1x2048xbf16, #tpu.memory_space<vmem>>, %arg2: memref<2048x2xbf16, #tpu.memory_space<vmem>>, %arg3: memref<1x1xf32, #tpu.memory_space<vmem>>, %arg4: memref<1x2xf32, #tpu.memory_space<vmem>>) attributes {dimension_semantics = [#tpu.dimension_semantics<parallel>], iteration_bounds = array<i64: 1>, scalar_prefetch = 0 : i64, scratch_operands = 0 : i64, tpu.core_type = #tpu.core_type<tc>, window_params = [{pipeline_mode = #tpu.pipeline_mode<synchronous>, transform_indices = @transform_0, window_bounds = array<i64: 1, 2048>}, {transform_indices = @transform_1, window_bounds = array<i64: 2048, 2>}, {pipeline_mode = #tpu.pipeline_mode<synchronous>, transform_indices = @transform_2, window_bounds = array<i64: 1, 1>}, {transform_indices = @transform_3, window_bounds = array<i64: 1, 2>}]} {
    %c0 = arith.constant 0 : index
    %c0_0 = arith.constant 0 : index
    %0 = vector.load %arg1[%c0, %c0_0] : memref<1x2048xbf16, #tpu.memory_space<vmem>>, vector<1x2048xbf16>
    %c0_1 = arith.constant 0 : index
    %c0_2 = arith.constant 0 : index
    %1 = vector.load %arg2[%c0_1, %c0_2] : memref<2048x2xbf16, #tpu.memory_space<vmem>>, vector<2048x2xbf16>
    %cst = arith.constant dense<0.000000e+00> : vector<1x2xf32>
    %2 = tpu.matmul %0, %1, %cst {dimension_numbers = #tpu.dot_dimension_numbers<[1], [0], [0], [1], [0, 0, 1, 1], [], []>} : vector<1x2048xbf16>, vector<2048x2xbf16>, vector<1x2xf32> -> vector<1x2xf32>
    %c0_3 = arith.constant 0 : index
    %c0_4 = arith.constant 0 : index
    %3 = vector.load %arg3[%c0_3, %c0_4] : memref<1x1xf32, #tpu.memory_space<vmem>>, vector<1x1xf32>
    %4 = vector.broadcast %3 : vector<1x1xf32> to vector<1x2xf32>
    %5 = arith.addf %2, %4 : vector<1x2xf32>
    %cst_5 = arith.constant 0.000000e+00 : f32
    %6 = vector.broadcast %cst_5 : f32 to vector<1x2xf32>
    %7 = arith.subf %6, %5 : vector<1x2xf32>
    %8 = math.exp %7 : vector<1x2xf32>
    %cst_6 = arith.constant 1.000000e+00 : f32
    %9 = vector.broadcast %cst_6 : f32 to vector<1x2xf32>
    %10 = arith.addf %9, %8 : vector<1x2xf32>
    %cst_7 = arith.constant 1.000000e+00 : f32
    %11 = vector.broadcast %cst_7 : f32 to vector<1x2xf32>
    %12 = arith.divf %11, %10 : vector<1x2xf32>
    %c0_8 = arith.constant 0 : index
    %c0_9 = arith.constant 0 : index
    %13 = vector.load %arg4[%c0_8, %c0_9] : memref<1x2xf32, #tpu.memory_space<vmem>>, vector<1x2xf32>
    tpu.vector_store %arg4[%c0_8, %c0_9], %12 {strides = array<i32>} : memref<1x2xf32, #tpu.memory_space<vmem>>, vector<1x2xf32>,
    return
  }
  func.func @transform_0(%arg0: i32) -> (i32, i32) {
    %c0_i32 = arith.constant 0 : i32
    %c0_i32_0 = arith.constant 0 : i32
    %c0_i32_1 = arith.constant 0 : i32
    return %c0_i32, %c0_i32_0 : i32, i32
  }
  func.func @transform_1(%arg0: i32) -> (i32, i32) {
    %c0_i32 = arith.constant 0 : i32
    %c0_i32_0 = arith.constant 0 : i32
    return %c0_i32, %arg0 : i32, i32
  }
  func.func @transform_2(%arg0: i32) -> (i32, i32) {
    %c0_i32 = arith.constant 0 : i32
    %c0_i32_0 = arith.constant 0 : i32
    %c0_i32_1 = arith.constant 0 : i32
    return %c0_i32, %c0_i32_0 : i32, i32
  }
  func.func @transform_3(%arg0: i32) -> (i32, i32) {
    %c0_i32 = arith.constant 0 : i32
    %c0_i32_0 = arith.constant 0 : i32
    return %c0_i32, %arg0 : i32, i32
  }
}

</mosaic_0001>

<llo_original>
// kernel: discriminator_forward.8
$region0: #{discriminator_forward.8}
  #allocation0 [shape = 'u32[]', space=smem, size = 0x4, offset = 0x4, fixed_abs, tag = 'smem constant byte address 0x4 - core index']
  #allocation1 [shape = 'u32[144,128]{1,0:T(1,128)}', space=vmem, size = 0x12000, scoped, tag = 'internal scratch']
  %s0 = inlined_call_operand.vmem [shape: bf16[16,75], index: 0, kind: input, shape index: {}]
  %s1 = inlined_call_operand.vmem [shape: bf16[75,2048], index: 1, kind: input, shape index: {}]
  %s2 = inlined_call_operand.vmem [shape: f32[16,1], index: 2, kind: input, shape index: {}]
  %s3 = inlined_call_operand.vmem [shape: bf16[16,2048], index: 3, kind: output, shape index: {}]
  %s4 = sld [smem:[#allocation0]]
  $region87: #{discriminator_forward.8} parent=0
    _
  %s6 = ssub.s32 1, %s4
  %s7 = scalar_select 0, %s6, %s4
  $region1: #{discriminator_forward.8} parent=0
    #allocation2 [shape = 'u8[163840]{0}', space=vmem, size = 0x28000, scoped, tag = 'input window, operand 1']
    #allocation3 [shape = 'u8[32768]{0}', space=vmem, size = 0x8000, scoped, tag = 'output window, operand 0']
    loop: start=0, step=1, limit=6
    $region2: #{discriminator_forward.8} parent=1 // loop_pre_header
      _
    $region3: #{discriminator_forward.8} parent=1 // loop_header
      %s9 = sphi 0, %s13
      %p10 = scmp.ge.s32.totalorder %s9, 6
      %s17 = sphi 0, %s17
      %s19 = sphi 0, %s17
      %s20 = sphi 0, %s19
      %s34 = sphi 0, %s20
      %s40 = sphi 0, %s42
      %s43 = sphi 0, %s40
      %s44 = sphi 0, %s43
      %s60 = sphi 0, %s44
      %s64 = sphi 0, %s64
      %s66 = sphi 0, %s64
      %s67 = sphi 0, %s66
      %s81 = sphi 0, %s67
      %s87 = sphi 0, %s89
      %s90 = sphi 0, %s87
      %s91 = sphi 0, %s90
      %s107 = sphi 0, %s91
    $region4: #{discriminator_forward.8} parent=1 // loop_header_branch
      %12 = sbr.rel (%p10) target = $region8
    $region5: #{discriminator_forward.8} parent=1 // loop_body
      %s14 = ssub.s32 %s9, 1
      %s15 = ssub.s32 %s9, 2
      %s16 = sadd.s32 %s9, 1
      %s18 = sadd.s32 %s17, 1
      %p21 = scmp.eq.s32.totalorder %s9, 3
      %p22 = scmp.ne.s32.totalorder %s17, %s19
      %p23 = scmp.eq.s32.totalorder %s9, 0
      %p24 = por %p22, %p23
      %p25 = scmp.ne.s32.totalorder %s17, %s19
      %p26 = scmp.eq.s32.totalorder %s14, 3
      %p27 = por %p25, %p26
      %p28 = scmp.ne.s32.totalorder %s19, %s20
      %p29 = scmp.eq.s32.totalorder %s14, 0
      %p30 = por %p28, %p29
      %p31 = scmp.ne.s32.totalorder %s19, %s20
      %p32 = scmp.eq.s32.totalorder %s15, 3
      %p33 = por %p31, %p32
      %p35 = scmp.ne.s32.totalorder %s20, %s34
      %p36 = scmp.eq.s32.totalorder %s15, 0
      %p37 = por %p35, %p36
      %s38 = ssub.s32 %s9, %s16
      %p39 = scmp.eq.s32.totalorder %s38, 0
      %s41 = sadd.s32 %s40, 1
      %s42 = scalar_select %p39, %s40, %s41
      %p45 = pneg %p39
      %p46 = scmp.eq.s32.totalorder %s9, 3
      %p47 = por %p45, %p46
      %p48 = scmp.ne.s32.totalorder %s40, %s43
      %p49 = scmp.eq.s32.totalorder %s9, 0
      %p50 = por %p48, %p49
      %p51 = scmp.ne.s32.totalorder %s40, %s43
      %p52 = scmp.eq.s32.totalorder %s14, 3
      %p53 = por %p51, %p52
      %p54 = scmp.ne.s32.totalorder %s43, %s44
      %p55 = scmp.eq.s32.totalorder %s14, 0
      %p56 = por %p54, %p55
      %p57 = scmp.ne.s32.totalorder %s43, %s44
      %p58 = scmp.eq.s32.totalorder %s15, 3
      %p59 = por %p57, %p58
      %p61 = scmp.ne.s32.totalorder %s44, %s60
      %p62 = scmp.eq.s32.totalorder %s15, 0
      %p63 = por %p61, %p62
      %s65 = sadd.s32 %s64, 1
      %p68 = scmp.eq.s32.totalorder %s9, 3
      %p69 = scmp.ne.s32.totalorder %s64, %s66
      %p70 = scmp.eq.s32.totalorder %s9, 0
      %p71 = por %p69, %p70
      %p72 = scmp.ne.s32.totalorder %s64, %s66
      %p73 = scmp.eq.s32.totalorder %s14, 3
      %p74 = por %p72, %p73
      %p75 = scmp.ne.s32.totalorder %s66, %s67
      %p76 = scmp.eq.s32.totalorder %s14, 0
      %p77 = por %p75, %p76
      %p78 = scmp.ne.s32.totalorder %s66, %s67
      %p79 = scmp.eq.s32.totalorder %s15, 3
      %p80 = por %p78, %p79
      %p82 = scmp.ne.s32.totalorder %s67, %s81
      %p83 = scmp.eq.s32.totalorder %s15, 0
      %p84 = por %p82, %p83
      %s85 = ssub.s32 %s9, %s16
      %p86 = scmp.eq.s32.totalorder %s85, 0
      %s88 = sadd.s32 %s87, 1
      %s89 = scalar_select %p86, %s87, %s88
      %p92 = pneg %p86
      %p93 = scmp.eq.s32.totalorder %s9, 3
      %p94 = por %p92, %p93
      %p95 = scmp.ne.s32.totalorder %s87, %s90
      %p96 = scmp.eq.s32.totalorder %s9, 0
      %p97 = por %p95, %p96
      %p98 = scmp.ne.s32.totalorder %s87, %s90
      %p99 = scmp.eq.s32.totalorder %s14, 3
      %p100 = por %p98, %p99
      %p101 = scmp.ne.s32.totalorder %s90, %s91
      %p102 = scmp.eq.s32.totalorder %s14, 0
      %p103 = por %p101, %p102
      %p104 = scmp.ne.s32.totalorder %s90, %s91
      %p105 = scmp.eq.s32.totalorder %s15, 3
      %p106 = por %p104, %p105
      %p108 = scmp.ne.s32.totalorder %s91, %s107
      %p109 = scmp.eq.s32.totalorder %s15, 0
      %p110 = por %p108, %p109
      %p111 = scmp.le.s32.totalorder 1, %s9
      %p112 = scmp.lt.s32.totalorder %s9, 5
      %p113 = pnand %p111, %p112
      %p114 = pneg %p113
      // Predicated region
      $region9: #{discriminator_forward.8} parent=5 // pred_check
        _
      $region10: #{discriminator_forward.8} parent=5 // pred_check_branch
        %116 = sbr.rel (%p113) target = $region12
      $region11: #{discriminator_forward.8} parent=5 // pred_region
        %s117 = ssub.s32 %s9, 1
        // Predicated region
        $region13: #{discriminator_forward.8} parent=11 // pred_check
          %p118 = pneg %p30
        $region14: #{discriminator_forward.8} parent=11 // pred_check_branch
          %120 = sbr.rel (%p118) target = $region16
        $region15: #{discriminator_forward.8} parent=11 // pred_region
          _
        $region16: #{discriminator_forward.8} parent=11 // pred_fallthru
          _
        // Predicated region
        $region17: #{discriminator_forward.8} parent=11 // pred_check
          %p121 = pneg %p77
        $region18: #{discriminator_forward.8} parent=11 // pred_check_branch
          %123 = sbr.rel (%p121) target = $region20
        $region19: #{discriminator_forward.8} parent=11 // pred_region
          _
        $region20: #{discriminator_forward.8} parent=11 // pred_fallthru
          _
      $region12: #{discriminator_forward.8} parent=5 // pred_fallthru
        _
      %p124 = scmp.lt.s32.totalorder %s9, 4
      // Predicated region
      $region21: #{discriminator_forward.8} parent=5 // pred_check
        %p125 = pneg %p124
      $region22: #{discriminator_forward.8} parent=5 // pred_check_branch
        %127 = sbr.rel (%p125) target = $region24
      $region23: #{discriminator_forward.8} parent=5 // pred_region
        // Predicated region
        $region25: #{discriminator_forward.8} parent=23 // pred_check
          %p128 = pneg %p50
        $region26: #{discriminator_forward.8} parent=23 // pred_check_branch
          %130 = sbr.rel (%p128) target = $region28
        $region27: #{discriminator_forward.8} parent=23 // pred_region
          %s131 = sand.u32 %s40, 1
          %s132 = sand.u32 %s40, 1
          %s133 = smul.addr %s132, 160
          %s134 = scalar_lea.vmem [#allocation2], %s133
          %s135 = smul.u32 4, %s9
          %s136 = smul.addr %s135, 4
          %s137 = scalar_lea.vmem %s1, %s136
          // Predicated region
          $region29: #{discriminator_forward.8} parent=27 // pred_check
            _
          $region30: #{discriminator_forward.8} parent=27 // pred_check_branch
            %139 = sbr.rel (0) target = $region32
          $region31: #{discriminator_forward.8} parent=27 // pred_region
            // Predicated region
            $region33: #{discriminator_forward.8} parent=31 // pred_check
              _
            $region34: #{discriminator_forward.8} parent=31 // pred_check_branch
              %141 = sbr.rel (0) target = $region36
            $region35: #{discriminator_forward.8} parent=31 // pred_region
              loop: start=0, step=1, limit=1
              $region37: #{discriminator_forward.8} parent=35 // loop_pre_header
                _
              $region38: #{discriminator_forward.8} parent=35 // loop_header
                %s143 = sphi 0, %s147
                %p144 = scmp.ge.s32.totalorder %s143, 1
                %s148 = sphi %s137, %s137
                %s149 = sphi %s134, %s134
              $region39: #{discriminator_forward.8} parent=35 // loop_header_branch
                %146 = sbr.rel (%p144) target = $region43
              $region40: #{discriminator_forward.8} parent=35 // loop_body
                %v150 = vld [vmem:[%s148] sm:$0xff]
                %151 = vst [vmem:[%s149] sm:$0xff] %v150
                %v152 = vld [vmem:[%s148 + $0x8] sm:$0xff]
                %153 = vst [vmem:[%s149 + $0x8] sm:$0xff] %v152
                %v154 = vld [vmem:[%s148 + $0x40] sm:$0xff]
                %155 = vst [vmem:[%s149 + $0x10] sm:$0xff] %v154
                %v156 = vld [vmem:[%s148 + $0x48] sm:$0xff]
                %157 = vst [vmem:[%s149 + $0x18] sm:$0xff] %v156
                %v158 = vld [vmem:[%s148 + $0x80] sm:$0xff]
                %159 = vst [vmem:[%s149 + $0x20] sm:$0xff] %v158
                %v160 = vld [vmem:[%s148 + $0x88] sm:$0xff]
                %161 = vst [vmem:[%s149 + $0x28] sm:$0xff] %v160
                %v162 = vld [vmem:[%s148 + $0xc0] sm:$0xff]
                %163 = vst [vmem:[%s149 + $0x30] sm:$0xff] %v162
                %v164 = vld [vmem:[%s148 + $0xc8] sm:$0xff]
                %165 = vst [vmem:[%s149 + $0x38] sm:$0xff] %v164
                %v166 = vld [vmem:[%s148 + $0x100] sm:$0xff]
                %167 = vst [vmem:[%s149 + $0x40] sm:$0xff] %v166
                %v168 = vld [vmem:[%s148 + $0x108] sm:$0xff]
                %169 = vst [vmem:[%s149 + $0x48] sm:$0xff] %v168
                %v170 = vld [vmem:[%s148 + $0x140] sm:$0xff]
                %171 = vst [vmem:[%s149 + $0x50] sm:$0xff] %v170
                %v172 = vld [vmem:[%s148 + $0x148] sm:$0xff]
                %173 = vst [vmem:[%s149 + $0x58] sm:$0xff] %v172
                %v174 = vld [vmem:[%s148 + $0x180] sm:$0xff]
                %175 = vst [vmem:[%s149 + $0x60] sm:$0xff] %v174
                %v176 = vld [vmem:[%s148 + $0x188] sm:$0xff]
                %177 = vst [vmem:[%s149 + $0x68] sm:$0xff] %v176
                %v178 = vld [vmem:[%s148 + $0x1c0] sm:$0xff]
                %179 = vst [vmem:[%s149 + $0x70] sm:$0xff] %v178
                %v180 = vld [vmem:[%s148 + $0x1c8] sm:$0xff]
                %181 = vst [vmem:[%s149 + $0x78] sm:$0xff] %v180
                %v182 = vld [vmem:[%s148 + $0x200] sm:$0xff]
                %183 = vst [vmem:[%s149 + $0x80] sm:$0xff] %v182
                %v184 = vld [vmem:[%s148 + $0x208] sm:$0xff]
                %185 = vst [vmem:[%s149 + $0x88] sm:$0xff] %v184
                %v186 = vld [vmem:[%s148 + $0x240] sm:$0xff]
                %187 = vst [vmem:[%s149 + $0x90] sm:$0xff] %v186
                %v188 = vld [vmem:[%s148 + $0x248] sm:$0xff]
                %189 = vst [vmem:[%s149 + $0x98] sm:$0xff] %v188
              $region41: #{discriminator_forward.8} parent=35 // loop_footer
                %s147 = sadd.s32 1, %s143
              $region42: #{discriminator_forward.8} parent=35 // loop_footer_branch
                %142 = sbr.rel target = $region38
              $region43: #{discriminator_forward.8} parent=35 // loop_exit
                _
            $region36: #{discriminator_forward.8} parent=31 // pred_fallthru
              _
            // Predicated region
            $region44: #{discriminator_forward.8} parent=31 // pred_check
              _
            $region45: #{discriminator_forward.8} parent=31 // pred_check_branch
              %191 = sbr.rel target = $region47
            $region46: #{discriminator_forward.8} parent=31 // pred_region
              _
            $region47: #{discriminator_forward.8} parent=31 // pred_fallthru
              _
          $region32: #{discriminator_forward.8} parent=27 // pred_fallthru
            _
          %192 = vnop
        $region28: #{discriminator_forward.8} parent=23 // pred_fallthru
          _
      $region24: #{discriminator_forward.8} parent=5 // pred_fallthru
        _
      %p193 = scmp.le.s32.totalorder 1, %s9
      %p194 = scmp.lt.s32.totalorder %s9, 5
      %p195 = pnand %p193, %p194
      %p196 = pneg %p195
      // Predicated region
      $region48: #{discriminator_forward.8} parent=5 // pred_check
        _
      $region49: #{discriminator_forward.8} parent=5 // pred_check_branch
        %198 = sbr.rel (%p195) target = $region51
      $region50: #{discriminator_forward.8} parent=5 // pred_region
        %s199 = ssub.s32 %s9, 1
        %s200 = sand.u32 %s43, 1
        %s201 = sand.u32 %s43, 1
        %s202 = smul.addr %s201, 160
        %s203 = scalar_lea.vmem [#allocation2], %s202
        // Predicated region
        $region52: #{discriminator_forward.8} parent=50 // pred_check
          %p204 = pneg %p56
        $region53: #{discriminator_forward.8} parent=50 // pred_check_branch
          %206 = sbr.rel (%p204) target = $region55
        $region54: #{discriminator_forward.8} parent=50 // pred_region
          _
        $region55: #{discriminator_forward.8} parent=50 // pred_fallthru
          _
        %p207 = pneg %p30
        %p208 = pneg %p27
        %s209 = sand.u32 %s43, 1
        %s210 = sand.u32 %s43, 1
        %s211 = smul.addr %s210, 160
        %s212 = scalar_lea.vmem [#allocation2], %s211
        %p213 = pneg %p56
        %p214 = pneg %p53
        %p215 = pneg %p77
        %p216 = pneg %p74
        %p217 = pneg %p103
        %p218 = pneg %p100
        %s219 = sand.u32 %s90, 1
        %s220 = sand.u32 %s90, 1
        %s221 = smul.addr %s220, 32
        %s222 = scalar_lea.vmem [#allocation3], %s221
        %s223 = smul.u32 4, %s14
        %s224 = smul.u32 4, %s14
        %v226 = vld [vmem:[%s0] sm:$0xf]
        %v227 = vld [vmem:[%s0 + $0x4] sm:$0xf]
        %v228 = vld [vmem:[%s203] sm:$0xff]
        %v229 = vld [vmem:[%s203 + $0x8] sm:$0xff]
        %v230 = vld [vmem:[%s203 + $0x10] sm:$0xff]
        %v231 = vld [vmem:[%s203 + $0x18] sm:$0xff]
        %v232 = vld [vmem:[%s203 + $0x20] sm:$0xff]
        %v233 = vld [vmem:[%s203 + $0x28] sm:$0xff]
        %v234 = vld [vmem:[%s203 + $0x30] sm:$0xff]
        %v235 = vld [vmem:[%s203 + $0x38] sm:$0xff]
        %v236 = vld [vmem:[%s203 + $0x40] sm:$0xff]
        %v237 = vld [vmem:[%s203 + $0x48] sm:$0xff]
        %v238 = vld [vmem:[%s203 + $0x50] sm:$0xff]
        %v239 = vld [vmem:[%s203 + $0x58] sm:$0xff]
        %v240 = vld [vmem:[%s203 + $0x60] sm:$0xff]
        %v241 = vld [vmem:[%s203 + $0x68] sm:$0xff]
        %v242 = vld [vmem:[%s203 + $0x70] sm:$0xff]
        %v243 = vld [vmem:[%s203 + $0x78] sm:$0xff]
        %v244 = vld [vmem:[%s203 + $0x80] sm:$0xff]
        %v245 = vld [vmem:[%s203 + $0x88] sm:$0xff]
        %v246 = vld [vmem:[%s203 + $0x90] sm:$0x33]
        %v247 = vld [vmem:[%s203 + $0x98] sm:$0x33]
        %v248 = vld [vmem:[%s2] sm:$0xff]
        %v249 = vld [vmem:[%s2 + $0x8] sm:$0xff]
        %251 = vset.pattern.permute.xlu0 0
        %252 = vperm.xlu0 %251, %v248
        %v253 = vpop.permute.xlu0 %252
        %256 = vset.pattern.permute.xlu0 0
        %257 = vperm.xlu0 %256, %v249
        %v258 = vpop.permute.xlu0 %257
        %v262 = vunpack.c.l.b16 %v226
        %v263 = vunpack.c.l.b16 %v227
        %v264 = vpack.c.b16 %v263, %v262
        %v285 = vunpack.c.l.b16 %v228
        %v286 = vunpack.c.h.b16 %v228
        %v287 = vunpack.c.l.b16 %v229
        %v288 = vunpack.c.h.b16 %v229
        %v289 = vunpack.c.l.b16 %v230
        %v290 = vunpack.c.h.b16 %v230
        %v291 = vunpack.c.l.b16 %v231
        %v292 = vunpack.c.h.b16 %v231
        %v293 = vunpack.c.l.b16 %v232
        %v294 = vunpack.c.h.b16 %v232
        %v295 = vunpack.c.l.b16 %v233
        %v296 = vunpack.c.h.b16 %v233
        %v297 = vunpack.c.l.b16 %v234
        %v298 = vunpack.c.h.b16 %v234
        %v299 = vunpack.c.l.b16 %v235
        %v300 = vunpack.c.h.b16 %v235
        %v301 = vunpack.c.l.b16 %v236
        %v302 = vunpack.c.h.b16 %v236
        %v303 = vunpack.c.l.b16 %v237
        %v304 = vunpack.c.h.b16 %v237
        %v305 = vunpack.c.l.b16 %v238
        %v306 = vunpack.c.h.b16 %v238
        %v307 = vunpack.c.l.b16 %v239
        %v308 = vunpack.c.h.b16 %v239
        %v309 = vunpack.c.l.b16 %v240
        %v310 = vunpack.c.h.b16 %v240
        %v311 = vunpack.c.l.b16 %v241
        %v312 = vunpack.c.h.b16 %v241
        %v313 = vunpack.c.l.b16 %v242
        %v314 = vunpack.c.h.b16 %v242
        %v315 = vunpack.c.l.b16 %v243
        %v316 = vunpack.c.h.b16 %v243
        %v317 = vunpack.c.l.b16 %v244
        %v318 = vunpack.c.h.b16 %v244
        %v319 = vunpack.c.l.b16 %v245
        %v320 = vunpack.c.h.b16 %v245
        %v321 = vunpack.c.l.b16 %v246
        %v322 = vunpack.c.h.b16 %v246
        %v323 = vunpack.c.l.b16 %v247
        %v324 = vunpack.c.h.b16 %v247
        %v325 = vpack.c.b16 %v289, %v285
        %v326 = vpack.c.b16 %v290, %v286
        %v327 = vpack.c.b16 %v291, %v287
        %v328 = vpack.c.b16 %v292, %v288
        %v329 = vpack.c.b16 %v297, %v293
        %v330 = vpack.c.b16 %v298, %v294
        %v331 = vpack.c.b16 %v299, %v295
        %v332 = vpack.c.b16 %v300, %v296
        %v333 = vpack.c.b16 %v305, %v301
        %v334 = vpack.c.b16 %v306, %v302
        %v335 = vpack.c.b16 %v307, %v303
        %v336 = vpack.c.b16 %v308, %v304
        %v337 = vpack.c.b16 %v313, %v309
        %v338 = vpack.c.b16 %v314, %v310
        %v339 = vpack.c.b16 %v315, %v311
        %v340 = vpack.c.b16 %v316, %v312
        %v341 = vpack.c.b16 %v321, %v317
        %v342 = vpack.c.b16 %v322, %v318
        %v343 = vpack.c.b16 %v323, %v319
        %v344 = vpack.c.b16 %v324, %v320
        %vm361 = vcmask 613376
        %v363 = vsel %vm361, %v264, 0
        %vm365 = vcmask 1044480
        %vm366 = vcmask 1045504
        %v367 = vsel %vm365, 4294967295, 65535
        %v368 = vsel %vm366, %v367, 0
        %v370 = vand.u32 %v341, %v368
        %v373 = vand.u32 %v342, %v368
        %v376 = vand.u32 %v343, %v368
        %v379 = vand.u32 %v344, %v368
        %381 = vmatprep.subr.bf16.mxu0 %v326
        %382 = vmatpush1.bf16.msra.mxu0 %v325
        %383 = vmatprep.subr.bf16.mxu0 %v330
        %384 = vmatpush1.bf16.msra.mxu0 %v329
        %385 = vmatprep.subr.bf16.mxu0 %v334
        %386 = vmatpush1.bf16.msra.mxu0 %v333
        %387 = vmatprep.subr.bf16.mxu0 %v338
        %388 = vmatpush1.bf16.msra.mxu0 %v337
        %389 = vmatprep.subr.bf16.mxu0 %v373
        %390 = vmatpush1.bf16.msra.mxu0 %v370
        %391 = vmatprep.subr.bf16.mxu0 0
        %392 = vmatpush1.bf16.msra.mxu0 0
        %393 = vmatprep.subr.bf16.mxu0 0
        %394 = vmatpush1.bf16.msra.mxu0 0
        %395 = vmatprep.subr.bf16.mxu0 0
        %396 = vmatpush1.bf16.msra.mxu0 0
        %397 = vmatprep.subr.bf16.mxu0 0
        %398 = vmatpush1.bf16.msra.mxu0 0
        %399 = vmatprep.subr.bf16.mxu0 0
        %400 = vmatpush1.bf16.msra.mxu0 0
        %401 = vmatprep.subr.bf16.mxu0 0
        %402 = vmatpush1.bf16.msra.mxu0 0
        %403 = vmatprep.subr.bf16.mxu0 0
        %404 = vmatpush1.bf16.msra.mxu0 0
        %405 = vmatprep.subr.bf16.mxu0 0
        %406 = vmatpush1.bf16.msra.mxu0 0
        %407 = vmatprep.subr.bf16.mxu0 0
        %408 = vmatpush1.bf16.msra.mxu0 0
        %409 = vmatprep.subr.bf16.mxu0 0
        %410 = vmatpush1.bf16.msra.mxu0 0
        %411 = vmatprep.subr.bf16.mxu0 0
        %412 = vmatpush1.bf16.msra.mxu0 0
        %413 = vmatprep.mubr.bf16.mxu0 0
        %414 = vmatmul.mubr.bf16.gmra.mrb[0].mxu0 %v363
        %v415 = vpop.f32.mrb[0].mxu0
        %v416 = vadd.f32 %v253, %v415
        %v417 = vpop.f32.mrb[0].mxu0
        %v418 = vadd.f32 %v253, %v417
        %v419 = vpop.f32.mrb[0].mxu0
        %v420 = vadd.f32 %v258, %v419
        %v421 = vpop.f32.mrb[0].mxu0
        %v422 = vadd.f32 %v258, %v421
        %423 = vdwg.mxu0
        %424 = vmatprep.subr.bf16.mxu0 %v328
        %425 = vmatpush1.bf16.msra.mxu0 %v327
        %426 = vmatprep.subr.bf16.mxu0 %v332
        %427 = vmatpush1.bf16.msra.mxu0 %v331
        %428 = vmatprep.subr.bf16.mxu0 %v336
        %429 = vmatpush1.bf16.msra.mxu0 %v335
        %430 = vmatprep.subr.bf16.mxu0 %v340
        %431 = vmatpush1.bf16.msra.mxu0 %v339
        %432 = vmatprep.subr.bf16.mxu0 %v379
        %433 = vmatpush1.bf16.msra.mxu0 %v376
        %434 = vmatprep.subr.bf16.mxu0 0
        %435 = vmatpush1.bf16.msra.mxu0 0
        %436 = vmatprep.subr.bf16.mxu0 0
        %437 = vmatpush1.bf16.msra.mxu0 0
        %438 = vmatprep.subr.bf16.mxu0 0
        %439 = vmatpush1.bf16.msra.mxu0 0
        %440 = vmatprep.subr.bf16.mxu0 0
        %441 = vmatpush1.bf16.msra.mxu0 0
        %442 = vmatprep.subr.bf16.mxu0 0
        %443 = vmatpush1.bf16.msra.mxu0 0
        %444 = vmatprep.subr.bf16.mxu0 0
        %445 = vmatpush1.bf16.msra.mxu0 0
        %446 = vmatprep.subr.bf16.mxu0 0
        %447 = vmatpush1.bf16.msra.mxu0 0
        %448 = vmatprep.subr.bf16.mxu0 0
        %449 = vmatpush1.bf16.msra.mxu0 0
        %450 = vmatprep.subr.bf16.mxu0 0
        %451 = vmatpush1.bf16.msra.mxu0 0
        %452 = vmatprep.subr.bf16.mxu0 0
        %453 = vmatpush1.bf16.msra.mxu0 0
        %454 = vmatprep.subr.bf16.mxu0 0
        %455 = vmatpush1.bf16.msra.mxu0 0
        %456 = vmatprep.mubr.bf16.mxu0 0
        %457 = vmatmul.mubr.bf16.gmra.mrb[0].mxu0 %v363
        %v458 = vpop.f32.mrb[0].mxu0
        %v459 = vadd.f32 %v253, %v458
        %v460 = vpop.f32.mrb[0].mxu0
        %v461 = vadd.f32 %v253, %v460
        %v462 = vpop.f32.mrb[0].mxu0
        %v463 = vadd.f32 %v258, %v462
        %v464 = vpop.f32.mrb[0].mxu0
        %v465 = vadd.f32 %v258, %v464
        %466 = vdwg.mxu0
        %v467 = vmul.f32 %v416, 0.2
        %v468 = vmul.f32 %v418, 0.2
        %v469 = vmul.f32 %v459, 0.2
        %v470 = vmul.f32 %v461, 0.2
        %v471 = vmul.f32 %v420, 0.2
        %v472 = vmul.f32 %v422, 0.2
        %v473 = vmul.f32 %v463, 0.2
        %v474 = vmul.f32 %v465, 0.2
        %v475 = vmax.f32 %v416, %v467
        %v476 = vmax.f32 %v418, %v468
        %v477 = vmax.f32 %v459, %v469
        %v478 = vmax.f32 %v461, %v470
        %v479 = vmax.f32 %v420, %v471
        %v480 = vmax.f32 %v422, %v472
        %v481 = vmax.f32 %v463, %v473
        %v482 = vmax.f32 %v465, %v474
        %v483 = vpack.c.bf16 %v479, %v475
        %v484 = vpack.c.bf16 %v480, %v476
        %v485 = vpack.c.bf16 %v481, %v477
        %v486 = vpack.c.bf16 %v482, %v478
        %v491 = vunpack.c.l.b16 %v483
        %v492 = vunpack.c.l.b16 %v484
        %v493 = vunpack.c.l.b16 %v485
        %v494 = vunpack.c.l.b16 %v486
        %v495 = vunpack.c.h.b16 %v483
        %v496 = vunpack.c.h.b16 %v484
        %v497 = vunpack.c.h.b16 %v485
        %v498 = vunpack.c.h.b16 %v486
        %v499 = vpack.c.b16 %v492, %v491
        %v500 = vpack.c.b16 %v494, %v493
        %v501 = vpack.c.b16 %v496, %v495
        %v502 = vpack.c.b16 %v498, %v497
        %507 = vst [vmem:[%s222] sm:$0xff] %v499
        %508 = vst [vmem:[%s222 + $0x8] sm:$0xff] %v500
        %509 = vst [vmem:[%s222 + $0x10] sm:$0xff] %v501
        %510 = vst [vmem:[%s222 + $0x18] sm:$0xff] %v502
        %s511 = sand.u32 %s90, 1
        %s512 = sand.u32 %s90, 1
        %s513 = smul.addr %s512, 32
        %s514 = scalar_lea.vmem [#allocation3], %s513
        // Predicated region
        $region56: #{discriminator_forward.8} parent=50 // pred_check
          %p515 = pneg %p100
        $region57: #{discriminator_forward.8} parent=50 // pred_check_branch
          %517 = sbr.rel (%p515) target = $region59
        $region58: #{discriminator_forward.8} parent=50 // pred_region
          %s518 = smul.u32 4, %s14
          %s519 = smul.addr %s518, 4
          %s520 = scalar_lea.vmem %s3, %s519
          // Predicated region
          $region60: #{discriminator_forward.8} parent=58 // pred_check
            _
          $region61: #{discriminator_forward.8} parent=58 // pred_check_branch
            %522 = sbr.rel (0) target = $region63
          $region62: #{discriminator_forward.8} parent=58 // pred_region
            // Predicated region
            $region64: #{discriminator_forward.8} parent=62 // pred_check
              _
            $region65: #{discriminator_forward.8} parent=62 // pred_check_branch
              %524 = sbr.rel (0) target = $region67
            $region66: #{discriminator_forward.8} parent=62 // pred_region
              loop: start=0, step=1, limit=1
              $region68: #{discriminator_forward.8} parent=66 // loop_pre_header
                _
              $region69: #{discriminator_forward.8} parent=66 // loop_header
                %s526 = sphi 0, %s530
                %p527 = scmp.ge.s32.totalorder %s526, 1
                %s531 = sphi %s514, %s514
                %s532 = sphi %s520, %s520
              $region70: #{discriminator_forward.8} parent=66 // loop_header_branch
                %529 = sbr.rel (%p527) target = $region74
              $region71: #{discriminator_forward.8} parent=66 // loop_body
                %v533 = vld [vmem:[%s531] sm:$0xff]
                %534 = vst [vmem:[%s532] sm:$0xff] %v533
                %v535 = vld [vmem:[%s531 + $0x8] sm:$0xff]
                %536 = vst [vmem:[%s532 + $0x8] sm:$0xff] %v535
                %v537 = vld [vmem:[%s531 + $0x10] sm:$0xff]
                %538 = vst [vmem:[%s532 + $0x40] sm:$0xff] %v537
                %v539 = vld [vmem:[%s531 + $0x18] sm:$0xff]
                %540 = vst [vmem:[%s532 + $0x48] sm:$0xff] %v539
              $region72: #{discriminator_forward.8} parent=66 // loop_footer
                %s530 = sadd.s32 1, %s526
              $region73: #{discriminator_forward.8} parent=66 // loop_footer_branch
                %525 = sbr.rel target = $region69
              $region74: #{discriminator_forward.8} parent=66 // loop_exit
                _
            $region67: #{discriminator_forward.8} parent=62 // pred_fallthru
              _
            // Predicated region
            $region75: #{discriminator_forward.8} parent=62 // pred_check
              _
            $region76: #{discriminator_forward.8} parent=62 // pred_check_branch
              %542 = sbr.rel target = $region78
            $region77: #{discriminator_forward.8} parent=62 // pred_region
              _
            $region78: #{discriminator_forward.8} parent=62 // pred_fallthru
              _
          $region63: #{discriminator_forward.8} parent=58 // pred_fallthru
            _
          %543 = vnop
        $region59: #{discriminator_forward.8} parent=50 // pred_fallthru
          _
      $region51: #{discriminator_forward.8} parent=5 // pred_fallthru
        _
      %p544 = scmp.le.s32.totalorder 2, %s9
      // Predicated region
      $region79: #{discriminator_forward.8} parent=5 // pred_check
        %p545 = pneg %p544
      $region80: #{discriminator_forward.8} parent=5 // pred_check_branch
        %547 = sbr.rel (%p545) target = $region82
      $region81: #{discriminator_forward.8} parent=5 // pred_region
        %s548 = ssub.s32 %s9, 2
        // Predicated region
        $region83: #{discriminator_forward.8} parent=81 // pred_check
          %p549 = pneg %p106
        $region84: #{discriminator_forward.8} parent=81 // pred_check_branch
          %551 = sbr.rel (%p549) target = $region86
        $region85: #{discriminator_forward.8} parent=81 // pred_region
          %s552 = sand.u32 %s91, 1
          %s553 = sand.u32 %s91, 1
          %s554 = smul.addr %s553, 32
          %s555 = scalar_lea.vmem [#allocation3], %s554
        $region86: #{discriminator_forward.8} parent=81 // pred_fallthru
          _
      $region82: #{discriminator_forward.8} parent=5 // pred_fallthru
        _
    $region6: #{discriminator_forward.8} parent=1 // loop_footer
      %s13 = sadd.s32 1, %s9
    $region7: #{discriminator_forward.8} parent=1 // loop_footer_branch
      %8 = sbr.rel target = $region3
    $region8: #{discriminator_forward.8} parent=1 // loop_exit
      _

// kernel: discriminator_forward.10
$region0: #{discriminator_forward.10}
  #allocation0 [shape = 'u32[]', space=smem, size = 0x4, offset = 0x4, fixed_abs, tag = 'smem constant byte address 0x4 - core index']
  #allocation1 [shape = 'u32[144,128]{1,0:T(1,128)}', space=vmem, size = 0x12000, scoped, tag = 'internal scratch']
  %s0 = inlined_call_operand.vmem [shape: f32[32,512], index: 0, kind: input, shape index: {}]
  %s1 = inlined_call_operand.vmem [shape: f32[32,1], index: 1, kind: input, shape index: {}]
  %s2 = inlined_call_operand.vmem [shape: f32[32,1], index: 2, kind: input, shape index: {}]
  %s3 = inlined_call_operand.vmem [shape: bf16[32,512], index: 3, kind: output, shape index: {}]
  %s4 = sld [smem:[#allocation0]]
  $region22: #{discriminator_forward.10} parent=0
    _
  %s6 = ssub.s32 1, %s4
  %s7 = scalar_select 0, %s6, %s4
  // Predicated region
  $region2: #{discriminator_forward.10} parent=0 // pred_check
    _
  $region3: #{discriminator_forward.10} parent=0 // pred_check_branch
    %9 = sbr.rel (0) target = $region5
  $region4: #{discriminator_forward.10} parent=0 // pred_region
    _
  $region5: #{discriminator_forward.10} parent=0 // pred_fallthru
    _
  // Predicated region
  $region6: #{discriminator_forward.10} parent=0 // pred_check
    _
  $region7: #{discriminator_forward.10} parent=0 // pred_check_branch
    %11 = sbr.rel (0) target = $region9
  $region8: #{discriminator_forward.10} parent=0 // pred_region
    _
  $region9: #{discriminator_forward.10} parent=0 // pred_fallthru
    _
  // Predicated region
  $region10: #{discriminator_forward.10} parent=0 // pred_check
    _
  $region11: #{discriminator_forward.10} parent=0 // pred_check_branch
    %13 = sbr.rel (0) target = $region13
  $region12: #{discriminator_forward.10} parent=0 // pred_region
    _
  $region13: #{discriminator_forward.10} parent=0 // pred_fallthru
    _
  %v14 = vld [vmem:[%s0] sm:$0xff]
  %v15 = vld [vmem:[%s0 + $0x8] sm:$0xff]
  %v16 = vld [vmem:[%s0 + $0x10] sm:$0xff]
  %v17 = vld [vmem:[%s0 + $0x18] sm:$0xff]
  %v18 = vld [vmem:[%s0 + $0x20] sm:$0xff]
  %v19 = vld [vmem:[%s0 + $0x28] sm:$0xff]
  %v20 = vld [vmem:[%s0 + $0x30] sm:$0xff]
  %v21 = vld [vmem:[%s0 + $0x38] sm:$0xff]
  %v22 = vld [vmem:[%s0 + $0x40] sm:$0xff]
  %v23 = vld [vmem:[%s0 + $0x48] sm:$0xff]
  %v24 = vld [vmem:[%s0 + $0x50] sm:$0xff]
  %v25 = vld [vmem:[%s0 + $0x58] sm:$0xff]
  %v26 = vld [vmem:[%s0 + $0x60] sm:$0xff]
  %v27 = vld [vmem:[%s0 + $0x68] sm:$0xff]
  %v28 = vld [vmem:[%s0 + $0x70] sm:$0xff]
  %v29 = vld [vmem:[%s0 + $0x78] sm:$0xff]
  %v30 = vld [vmem:[%s1] sm:$0xff]
  %v31 = vld [vmem:[%s1 + $0x8] sm:$0xff]
  %v32 = vld [vmem:[%s1 + $0x10] sm:$0xff]
  %v33 = vld [vmem:[%s1 + $0x18] sm:$0xff]
  %35 = vset.pattern.permute.xlu0 0
  %36 = vperm.xlu0 %35, %v30
  %v37 = vpop.permute.xlu0 %36
  %40 = vset.pattern.permute.xlu0 0
  %41 = vperm.xlu0 %40, %v31
  %v42 = vpop.permute.xlu0 %41
  %45 = vset.pattern.permute.xlu0 0
  %46 = vperm.xlu0 %45, %v32
  %v47 = vpop.permute.xlu0 %46
  %50 = vset.pattern.permute.xlu0 0
  %51 = vperm.xlu0 %50, %v33
  %v52 = vpop.permute.xlu0 %51
  %v54 = vmul.f32 %v14, %v37
  %v55 = vmul.f32 %v15, %v37
  %v56 = vmul.f32 %v16, %v37
  %v57 = vmul.f32 %v17, %v37
  %v58 = vmul.f32 %v18, %v42
  %v59 = vmul.f32 %v19, %v42
  %v60 = vmul.f32 %v20, %v42
  %v61 = vmul.f32 %v21, %v42
  %v62 = vmul.f32 %v22, %v47
  %v63 = vmul.f32 %v23, %v47
  %v64 = vmul.f32 %v24, %v47
  %v65 = vmul.f32 %v25, %v47
  %v66 = vmul.f32 %v26, %v52
  %v67 = vmul.f32 %v27, %v52
  %v68 = vmul.f32 %v28, %v52
  %v69 = vmul.f32 %v29, %v52
  %v70 = vld [vmem:[%s2] sm:$0xff]
  %v71 = vld [vmem:[%s2 + $0x8] sm:$0xff]
  %v72 = vld [vmem:[%s2 + $0x10] sm:$0xff]
  %v73 = vld [vmem:[%s2 + $0x18] sm:$0xff]
  %75 = vset.pattern.permute.xlu0 0
  %76 = vperm.xlu0 %75, %v70
  %v77 = vpop.permute.xlu0 %76
  %80 = vset.pattern.permute.xlu0 0
  %81 = vperm.xlu0 %80, %v71
  %v82 = vpop.permute.xlu0 %81
  %85 = vset.pattern.permute.xlu0 0
  %86 = vperm.xlu0 %85, %v72
  %v87 = vpop.permute.xlu0 %86
  %90 = vset.pattern.permute.xlu0 0
  %91 = vperm.xlu0 %90, %v73
  %v92 = vpop.permute.xlu0 %91
  %v94 = vadd.f32 %v54, %v77
  %v95 = vadd.f32 %v55, %v77
  %v96 = vadd.f32 %v56, %v77
  %v97 = vadd.f32 %v57, %v77
  %v98 = vadd.f32 %v58, %v82
  %v99 = vadd.f32 %v59, %v82
  %v100 = vadd.f32 %v60, %v82
  %v101 = vadd.f32 %v61, %v82
  %v102 = vadd.f32 %v62, %v87
  %v103 = vadd.f32 %v63, %v87
  %v104 = vadd.f32 %v64, %v87
  %v105 = vadd.f32 %v65, %v87
  %v106 = vadd.f32 %v66, %v92
  %v107 = vadd.f32 %v67, %v92
  %v108 = vadd.f32 %v68, %v92
  %v109 = vadd.f32 %v69, %v92
  %v110 = vmul.f32 %v94, 0.2
  %v111 = vmul.f32 %v95, 0.2
  %v112 = vmul.f32 %v96, 0.2
  %v113 = vmul.f32 %v97, 0.2
  %v114 = vmul.f32 %v98, 0.2
  %v115 = vmul.f32 %v99, 0.2
  %v116 = vmul.f32 %v100, 0.2
  %v117 = vmul.f32 %v101, 0.2
  %v118 = vmul.f32 %v102, 0.2
  %v119 = vmul.f32 %v103, 0.2
  %v120 = vmul.f32 %v104, 0.2
  %v121 = vmul.f32 %v105, 0.2
  %v122 = vmul.f32 %v106, 0.2
  %v123 = vmul.f32 %v107, 0.2
  %v124 = vmul.f32 %v108, 0.2
  %v125 = vmul.f32 %v109, 0.2
  %v126 = vmax.f32 %v94, %v110
  %v127 = vmax.f32 %v95, %v111
  %v128 = vmax.f32 %v96, %v112
  %v129 = vmax.f32 %v97, %v113
  %v130 = vmax.f32 %v98, %v114
  %v131 = vmax.f32 %v99, %v115
  %v132 = vmax.f32 %v100, %v116
  %v133 = vmax.f32 %v101, %v117
  %v134 = vmax.f32 %v102, %v118
  %v135 = vmax.f32 %v103, %v119
  %v136 = vmax.f32 %v104, %v120
  %v137 = vmax.f32 %v105, %v121
  %v138 = vmax.f32 %v106, %v122
  %v139 = vmax.f32 %v107, %v123
  %v140 = vmax.f32 %v108, %v124
  %v141 = vmax.f32 %v109, %v125
  %v142 = vpack.c.bf16 %v130, %v126
  %v143 = vpack.c.bf16 %v131, %v127
  %v144 = vpack.c.bf16 %v132, %v128
  %v145 = vpack.c.bf16 %v133, %v129
  %v146 = vpack.c.bf16 %v138, %v134
  %v147 = vpack.c.bf16 %v139, %v135
  %v148 = vpack.c.bf16 %v140, %v136
  %v149 = vpack.c.bf16 %v141, %v137
  %v158 = vunpack.c.l.b16 %v142
  %v159 = vunpack.c.l.b16 %v143
  %v160 = vunpack.c.l.b16 %v144
  %v161 = vunpack.c.l.b16 %v145
  %v162 = vunpack.c.h.b16 %v142
  %v163 = vunpack.c.h.b16 %v143
  %v164 = vunpack.c.h.b16 %v144
  %v165 = vunpack.c.h.b16 %v145
  %v166 = vunpack.c.l.b16 %v146
  %v167 = vunpack.c.l.b16 %v147
  %v168 = vunpack.c.l.b16 %v148
  %v169 = vunpack.c.l.b16 %v149
  %v170 = vunpack.c.h.b16 %v146
  %v171 = vunpack.c.h.b16 %v147
  %v172 = vunpack.c.h.b16 %v148
  %v173 = vunpack.c.h.b16 %v149
  %v174 = vpack.c.b16 %v159, %v158
  %v175 = vpack.c.b16 %v161, %v160
  %v176 = vpack.c.b16 %v163, %v162
  %v177 = vpack.c.b16 %v165, %v164
  %v178 = vpack.c.b16 %v167, %v166
  %v179 = vpack.c.b16 %v169, %v168
  %v180 = vpack.c.b16 %v171, %v170
  %v181 = vpack.c.b16 %v173, %v172
  %190 = vst [vmem:[%s3] sm:$0xff] %v174
  %191 = vst [vmem:[%s3 + $0x8] sm:$0xff] %v175
  %192 = vst [vmem:[%s3 + $0x10] sm:$0xff] %v176
  %193 = vst [vmem:[%s3 + $0x18] sm:$0xff] %v177
  %194 = vst [vmem:[%s3 + $0x20] sm:$0xff] %v178
  %195 = vst [vmem:[%s3 + $0x28] sm:$0xff] %v179
  %196 = vst [vmem:[%s3 + $0x30] sm:$0xff] %v180
  %197 = vst [vmem:[%s3 + $0x38] sm:$0xff] %v181
  // Predicated region
  $region14: #{discriminator_forward.10} parent=0 // pred_check
    _
  $region15: #{discriminator_forward.10} parent=0 // pred_check_branch
    %199 = sbr.rel (0) target = $region17
  $region16: #{discriminator_forward.10} parent=0 // pred_region
    _
  $region17: #{discriminator_forward.10} parent=0 // pred_fallthru
    _
  // Predicated region
  $region18: #{discriminator_forward.10} parent=0 // pred_check
    _
  $region19: #{discriminator_forward.10} parent=0 // pred_check_branch
    %201 = sbr.rel (0) target = $region21
  $region20: #{discriminator_forward.10} parent=0 // pred_region
    _
  $region21: #{discriminator_forward.10} parent=0 // pred_fallthru
    _

// kernel: discriminator_forward.9
$region0: #{discriminator_forward.9}
  #allocation0 [shape = 'u32[]', space=smem, size = 0x4, offset = 0x4, fixed_abs, tag = 'smem constant byte address 0x4 - core index']
  #allocation1 [shape = 'u32[144,128]{1,0:T(1,128)}', space=vmem, size = 0x12000, scoped, tag = 'internal scratch']
  %s0 = inlined_call_operand.vmem [shape: bf16[32,400], index: 0, kind: input, shape index: {}]
  %s1 = inlined_call_operand.vmem [shape: bf16[400,512], index: 1, kind: input, shape index: {}]
  %s2 = inlined_call_operand.vmem [shape: f32[32,1], index: 2, kind: input, shape index: {}]
  %s3 = inlined_call_operand.vmem [shape: f32[32,512], index: 3, kind: output, shape index: {0}]
  %s4 = inlined_call_operand.vmem [shape: f32[32,128], index: 4, kind: output, shape index: {1}]
  %5 = xla_tuple %s3, %s4
  %s6 = sld [smem:[#allocation0]]
  $region30: #{discriminator_forward.9} parent=0
    _
  %s8 = ssub.s32 1, %s6
  %s9 = scalar_select 0, %s8, %s6
  // Predicated region
  $region2: #{discriminator_forward.9} parent=0 // pred_check
    _
  $region3: #{discriminator_forward.9} parent=0 // pred_check_branch
    %11 = sbr.rel (0) target = $region5
  $region4: #{discriminator_forward.9} parent=0 // pred_region
    _
  $region5: #{discriminator_forward.9} parent=0 // pred_fallthru
    _
  // Predicated region
  $region6: #{discriminator_forward.9} parent=0 // pred_check
    _
  $region7: #{discriminator_forward.9} parent=0 // pred_check_branch
    %13 = sbr.rel (0) target = $region9
  $region8: #{discriminator_forward.9} parent=0 // pred_region
    _
  $region9: #{discriminator_forward.9} parent=0 // pred_fallthru
    _
  // Predicated region
  $region10: #{discriminator_forward.9} parent=0 // pred_check
    _
  $region11: #{discriminator_forward.9} parent=0 // pred_check_branch
    %15 = sbr.rel (0) target = $region13
  $region12: #{discriminator_forward.9} parent=0 // pred_region
    _
  $region13: #{discriminator_forward.9} parent=0 // pred_fallthru
    _
  %v17 = vld [vmem:[%s0] sm:$0xff]
  %v18 = vld [vmem:[%s0 + $0x8] sm:$0xff]
  %v19 = vld [vmem:[%s0 + $0x10] sm:$0xff]
  %v20 = vld [vmem:[%s0 + $0x18] sm:$0xff]
  %v21 = vld [vmem:[%s0 + $0x20] sm:$0xff]
  %v22 = vld [vmem:[%s0 + $0x28] sm:$0xff]
  %v23 = vld [vmem:[%s0 + $0x30] sm:$0xff]
  %v24 = vld [vmem:[%s0 + $0x38] sm:$0xff]
  %v25 = vld [vmem:[%s1] sm:$0xff]
  %v26 = vld [vmem:[%s1 + $0x8] sm:$0xff]
  %v27 = vld [vmem:[%s1 + $0x10] sm:$0xff]
  %v28 = vld [vmem:[%s1 + $0x18] sm:$0xff]
  %v29 = vld [vmem:[%s1 + $0x20] sm:$0xff]
  %v30 = vld [vmem:[%s1 + $0x28] sm:$0xff]
  %v31 = vld [vmem:[%s1 + $0x30] sm:$0xff]
  %v32 = vld [vmem:[%s1 + $0x38] sm:$0xff]
  %v33 = vld [vmem:[%s1 + $0x40] sm:$0xff]
  %v34 = vld [vmem:[%s1 + $0x48] sm:$0xff]
  %v35 = vld [vmem:[%s1 + $0x50] sm:$0xff]
  %v36 = vld [vmem:[%s1 + $0x58] sm:$0xff]
  %v37 = vld [vmem:[%s1 + $0x60] sm:$0xff]
  %v38 = vld [vmem:[%s1 + $0x68] sm:$0xff]
  %v39 = vld [vmem:[%s1 + $0x70] sm:$0xff]
  %v40 = vld [vmem:[%s1 + $0x78] sm:$0xff]
  %v41 = vld [vmem:[%s1 + $0x80] sm:$0xff]
  %v42 = vld [vmem:[%s1 + $0x88] sm:$0xff]
  %v43 = vld [vmem:[%s1 + $0x90] sm:$0xff]
  %v44 = vld [vmem:[%s1 + $0x98] sm:$0xff]
  %v45 = vld [vmem:[%s1 + $0xa0] sm:$0xff]
  %v46 = vld [vmem:[%s1 + $0xa8] sm:$0xff]
  %v47 = vld [vmem:[%s1 + $0xb0] sm:$0xff]
  %v48 = vld [vmem:[%s1 + $0xb8] sm:$0xff]
  %v49 = vld [vmem:[%s1 + $0xc0] sm:$0xff]
  %v50 = vld [vmem:[%s1 + $0xc8] sm:$0xff]
  %v51 = vld [vmem:[%s1 + $0xd0] sm:$0xff]
  %v52 = vld [vmem:[%s1 + $0xd8] sm:$0xff]
  %v53 = vld [vmem:[%s1 + $0xe0] sm:$0xff]
  %v54 = vld [vmem:[%s1 + $0xe8] sm:$0xff]
  %v55 = vld [vmem:[%s1 + $0xf0] sm:$0xff]
  %v56 = vld [vmem:[%s1 + $0xf8] sm:$0xff]
  %v57 = vld [vmem:[%s1 + $0x100] sm:$0xff]
  %v58 = vld [vmem:[%s1 + $0x108] sm:$0xff]
  %v59 = vld [vmem:[%s1 + $0x110] sm:$0xff]
  %v60 = vld [vmem:[%s1 + $0x118] sm:$0xff]
  %v61 = vld [vmem:[%s1 + $0x120] sm:$0xff]
  %v62 = vld [vmem:[%s1 + $0x128] sm:$0xff]
  %v63 = vld [vmem:[%s1 + $0x130] sm:$0xff]
  %v64 = vld [vmem:[%s1 + $0x138] sm:$0xff]
  %v65 = vld [vmem:[%s1 + $0x140] sm:$0xff]
  %v66 = vld [vmem:[%s1 + $0x148] sm:$0xff]
  %v67 = vld [vmem:[%s1 + $0x150] sm:$0xff]
  %v68 = vld [vmem:[%s1 + $0x158] sm:$0xff]
  %v69 = vld [vmem:[%s1 + $0x160] sm:$0xff]
  %v70 = vld [vmem:[%s1 + $0x168] sm:$0xff]
  %v71 = vld [vmem:[%s1 + $0x170] sm:$0xff]
  %v72 = vld [vmem:[%s1 + $0x178] sm:$0xff]
  %v73 = vld [vmem:[%s1 + $0x180] sm:$0xff]
  %v74 = vld [vmem:[%s1 + $0x188] sm:$0xff]
  %v75 = vld [vmem:[%s1 + $0x190] sm:$0xff]
  %v76 = vld [vmem:[%s1 + $0x198] sm:$0xff]
  %v77 = vld [vmem:[%s1 + $0x1a0] sm:$0xff]
  %v78 = vld [vmem:[%s1 + $0x1a8] sm:$0xff]
  %v79 = vld [vmem:[%s1 + $0x1b0] sm:$0xff]
  %v80 = vld [vmem:[%s1 + $0x1b8] sm:$0xff]
  %v81 = vld [vmem:[%s1 + $0x1c0] sm:$0xff]
  %v82 = vld [vmem:[%s1 + $0x1c8] sm:$0xff]
  %v83 = vld [vmem:[%s1 + $0x1d0] sm:$0xff]
  %v84 = vld [vmem:[%s1 + $0x1d8] sm:$0xff]
  %v85 = vld [vmem:[%s1 + $0x1e0] sm:$0xff]
  %v86 = vld [vmem:[%s1 + $0x1e8] sm:$0xff]
  %v87 = vld [vmem:[%s1 + $0x1f0] sm:$0xff]
  %v88 = vld [vmem:[%s1 + $0x1f8] sm:$0xff]
  %v89 = vld [vmem:[%s1 + $0x200] sm:$0xff]
  %v90 = vld [vmem:[%s1 + $0x208] sm:$0xff]
  %v91 = vld [vmem:[%s1 + $0x210] sm:$0xff]
  %v92 = vld [vmem:[%s1 + $0x218] sm:$0xff]
  %v93 = vld [vmem:[%s1 + $0x220] sm:$0xff]
  %v94 = vld [vmem:[%s1 + $0x228] sm:$0xff]
  %v95 = vld [vmem:[%s1 + $0x230] sm:$0xff]
  %v96 = vld [vmem:[%s1 + $0x238] sm:$0xff]
  %v97 = vld [vmem:[%s1 + $0x240] sm:$0xff]
  %v98 = vld [vmem:[%s1 + $0x248] sm:$0xff]
  %v99 = vld [vmem:[%s1 + $0x250] sm:$0xff]
  %v100 = vld [vmem:[%s1 + $0x258] sm:$0xff]
  %v101 = vld [vmem:[%s1 + $0x260] sm:$0xff]
  %v102 = vld [vmem:[%s1 + $0x268] sm:$0xff]
  %v103 = vld [vmem:[%s1 + $0x270] sm:$0xff]
  %v104 = vld [vmem:[%s1 + $0x278] sm:$0xff]
  %v105 = vld [vmem:[%s1 + $0x280] sm:$0xff]
  %v106 = vld [vmem:[%s1 + $0x288] sm:$0xff]
  %v107 = vld [vmem:[%s1 + $0x290] sm:$0xff]
  %v108 = vld [vmem:[%s1 + $0x298] sm:$0xff]
  %v109 = vld [vmem:[%s1 + $0x2a0] sm:$0xff]
  %v110 = vld [vmem:[%s1 + $0x2a8] sm:$0xff]
  %v111 = vld [vmem:[%s1 + $0x2b0] sm:$0xff]
  %v112 = vld [vmem:[%s1 + $0x2b8] sm:$0xff]
  %v113 = vld [vmem:[%s1 + $0x2c0] sm:$0xff]
  %v114 = vld [vmem:[%s1 + $0x2c8] sm:$0xff]
  %v115 = vld [vmem:[%s1 + $0x2d0] sm:$0xff]
  %v116 = vld [vmem:[%s1 + $0x2d8] sm:$0xff]
  %v117 = vld [vmem:[%s1 + $0x2e0] sm:$0xff]
  %v118 = vld [vmem:[%s1 + $0x2e8] sm:$0xff]
  %v119 = vld [vmem:[%s1 + $0x2f0] sm:$0xff]
  %v120 = vld [vmem:[%s1 + $0x2f8] sm:$0xff]
  %v121 = vld [vmem:[%s1 + $0x300] sm:$0xff]
  %v122 = vld [vmem:[%s1 + $0x308] sm:$0xff]
  %v123 = vld [vmem:[%s1 + $0x310] sm:$0xff]
  %v124 = vld [vmem:[%s1 + $0x318] sm:$0xff]
  %v125 = vld [vmem:[%s2] sm:$0xff]
  %v126 = vld [vmem:[%s2 + $0x8] sm:$0xff]
  %v127 = vld [vmem:[%s2 + $0x10] sm:$0xff]
  %v128 = vld [vmem:[%s2 + $0x18] sm:$0xff]
  %130 = vset.pattern.permute.xlu0 0
  %131 = vperm.xlu0 %130, %v125
  %v132 = vpop.permute.xlu0 %131
  %135 = vset.pattern.permute.xlu0 0
  %136 = vperm.xlu0 %135, %v126
  %v137 = vpop.permute.xlu0 %136
  %140 = vset.pattern.permute.xlu0 0
  %141 = vperm.xlu0 %140, %v127
  %v142 = vpop.permute.xlu0 %141
  %145 = vset.pattern.permute.xlu0 0
  %146 = vperm.xlu0 %145, %v128
  %v147 = vpop.permute.xlu0 %146
  %v157 = vunpack.c.l.b16 %v17
  %v158 = vunpack.c.h.b16 %v17
  %v159 = vunpack.c.l.b16 %v18
  %v160 = vunpack.c.h.b16 %v18
  %v161 = vunpack.c.l.b16 %v19
  %v162 = vunpack.c.h.b16 %v19
  %v163 = vunpack.c.l.b16 %v20
  %v164 = vunpack.c.h.b16 %v20
  %v165 = vunpack.c.l.b16 %v21
  %v166 = vunpack.c.h.b16 %v21
  %v167 = vunpack.c.l.b16 %v22
  %v168 = vunpack.c.h.b16 %v22
  %v169 = vunpack.c.l.b16 %v23
  %v170 = vunpack.c.h.b16 %v23
  %v171 = vunpack.c.l.b16 %v24
  %v172 = vunpack.c.h.b16 %v24
  %v173 = vpack.c.b16 %v161, %v157
  %v174 = vpack.c.b16 %v162, %v158
  %v175 = vpack.c.b16 %v163, %v159
  %v176 = vpack.c.b16 %v164, %v160
  %v177 = vpack.c.b16 %v169, %v165
  %v178 = vpack.c.b16 %v170, %v166
  %v179 = vpack.c.b16 %v171, %v167
  %v180 = vpack.c.b16 %v172, %v168
  %v287 = vunpack.c.l.b16 %v25
  %v288 = vunpack.c.h.b16 %v25
  %v289 = vunpack.c.l.b16 %v26
  %v290 = vunpack.c.h.b16 %v26
  %v291 = vunpack.c.l.b16 %v27
  %v292 = vunpack.c.h.b16 %v27
  %v293 = vunpack.c.l.b16 %v28
  %v294 = vunpack.c.h.b16 %v28
  %v295 = vunpack.c.l.b16 %v29
  %v296 = vunpack.c.h.b16 %v29
  %v297 = vunpack.c.l.b16 %v30
  %v298 = vunpack.c.h.b16 %v30
  %v299 = vunpack.c.l.b16 %v31
  %v300 = vunpack.c.h.b16 %v31
  %v301 = vunpack.c.l.b16 %v32
  %v302 = vunpack.c.h.b16 %v32
  %v303 = vunpack.c.l.b16 %v33
  %v304 = vunpack.c.h.b16 %v33
  %v305 = vunpack.c.l.b16 %v34
  %v306 = vunpack.c.h.b16 %v34
  %v307 = vunpack.c.l.b16 %v35
  %v308 = vunpack.c.h.b16 %v35
  %v309 = vunpack.c.l.b16 %v36
  %v310 = vunpack.c.h.b16 %v36
  %v311 = vunpack.c.l.b16 %v37
  %v312 = vunpack.c.h.b16 %v37
  %v313 = vunpack.c.l.b16 %v38
  %v314 = vunpack.c.h.b16 %v38
  %v315 = vunpack.c.l.b16 %v39
  %v316 = vunpack.c.h.b16 %v39
  %v317 = vunpack.c.l.b16 %v40
  %v318 = vunpack.c.h.b16 %v40
  %v319 = vunpack.c.l.b16 %v41
  %v320 = vunpack.c.h.b16 %v41
  %v321 = vunpack.c.l.b16 %v42
  %v322 = vunpack.c.h.b16 %v42
  %v323 = vunpack.c.l.b16 %v43
  %v324 = vunpack.c.h.b16 %v43
  %v325 = vunpack.c.l.b16 %v44
  %v326 = vunpack.c.h.b16 %v44
  %v327 = vunpack.c.l.b16 %v45
  %v328 = vunpack.c.h.b16 %v45
  %v329 = vunpack.c.l.b16 %v46
  %v330 = vunpack.c.h.b16 %v46
  %v331 = vunpack.c.l.b16 %v47
  %v332 = vunpack.c.h.b16 %v47
  %v333 = vunpack.c.l.b16 %v48
  %v334 = vunpack.c.h.b16 %v48
  %v335 = vunpack.c.l.b16 %v49
  %v336 = vunpack.c.h.b16 %v49
  %v337 = vunpack.c.l.b16 %v50
  %v338 = vunpack.c.h.b16 %v50
  %v339 = vunpack.c.l.b16 %v51
  %v340 = vunpack.c.h.b16 %v51
  %v341 = vunpack.c.l.b16 %v52
  %v342 = vunpack.c.h.b16 %v52
  %v343 = vunpack.c.l.b16 %v53
  %v344 = vunpack.c.h.b16 %v53
  %v345 = vunpack.c.l.b16 %v54
  %v346 = vunpack.c.h.b16 %v54
  %v347 = vunpack.c.l.b16 %v55
  %v348 = vunpack.c.h.b16 %v55
  %v349 = vunpack.c.l.b16 %v56
  %v350 = vunpack.c.h.b16 %v56
  %v351 = vunpack.c.l.b16 %v57
  %v352 = vunpack.c.h.b16 %v57
  %v353 = vunpack.c.l.b16 %v58
  %v354 = vunpack.c.h.b16 %v58
  %v355 = vunpack.c.l.b16 %v59
  %v356 = vunpack.c.h.b16 %v59
  %v357 = vunpack.c.l.b16 %v60
  %v358 = vunpack.c.h.b16 %v60
  %v359 = vunpack.c.l.b16 %v61
  %v360 = vunpack.c.h.b16 %v61
  %v361 = vunpack.c.l.b16 %v62
  %v362 = vunpack.c.h.b16 %v62
  %v363 = vunpack.c.l.b16 %v63
  %v364 = vunpack.c.h.b16 %v63
  %v365 = vunpack.c.l.b16 %v64
  %v366 = vunpack.c.h.b16 %v64
  %v367 = vunpack.c.l.b16 %v65
  %v368 = vunpack.c.h.b16 %v65
  %v369 = vunpack.c.l.b16 %v66
  %v370 = vunpack.c.h.b16 %v66
  %v371 = vunpack.c.l.b16 %v67
  %v372 = vunpack.c.h.b16 %v67
  %v373 = vunpack.c.l.b16 %v68
  %v374 = vunpack.c.h.b16 %v68
  %v375 = vunpack.c.l.b16 %v69
  %v376 = vunpack.c.h.b16 %v69
  %v377 = vunpack.c.l.b16 %v70
  %v378 = vunpack.c.h.b16 %v70
  %v379 = vunpack.c.l.b16 %v71
  %v380 = vunpack.c.h.b16 %v71
  %v381 = vunpack.c.l.b16 %v72
  %v382 = vunpack.c.h.b16 %v72
  %v383 = vunpack.c.l.b16 %v73
  %v384 = vunpack.c.h.b16 %v73
  %v385 = vunpack.c.l.b16 %v74
  %v386 = vunpack.c.h.b16 %v74
  %v387 = vunpack.c.l.b16 %v75
  %v388 = vunpack.c.h.b16 %v75
  %v389 = vunpack.c.l.b16 %v76
  %v390 = vunpack.c.h.b16 %v76
  %v391 = vunpack.c.l.b16 %v77
  %v392 = vunpack.c.h.b16 %v77
  %v393 = vunpack.c.l.b16 %v78
  %v394 = vunpack.c.h.b16 %v78
  %v395 = vunpack.c.l.b16 %v79
  %v396 = vunpack.c.h.b16 %v79
  %v397 = vunpack.c.l.b16 %v80
  %v398 = vunpack.c.h.b16 %v80
  %v399 = vunpack.c.l.b16 %v81
  %v400 = vunpack.c.h.b16 %v81
  %v401 = vunpack.c.l.b16 %v82
  %v402 = vunpack.c.h.b16 %v82
  %v403 = vunpack.c.l.b16 %v83
  %v404 = vunpack.c.h.b16 %v83
  %v405 = vunpack.c.l.b16 %v84
  %v406 = vunpack.c.h.b16 %v84
  %v407 = vunpack.c.l.b16 %v85
  %v408 = vunpack.c.h.b16 %v85
  %v409 = vunpack.c.l.b16 %v86
  %v410 = vunpack.c.h.b16 %v86
  %v411 = vunpack.c.l.b16 %v87
  %v412 = vunpack.c.h.b16 %v87
  %v413 = vunpack.c.l.b16 %v88
  %v414 = vunpack.c.h.b16 %v88
  %v415 = vunpack.c.l.b16 %v89
  %v416 = vunpack.c.h.b16 %v89
  %v417 = vunpack.c.l.b16 %v90
  %v418 = vunpack.c.h.b16 %v90
  %v419 = vunpack.c.l.b16 %v91
  %v420 = vunpack.c.h.b16 %v91
  %v421 = vunpack.c.l.b16 %v92
  %v422 = vunpack.c.h.b16 %v92
  %v423 = vunpack.c.l.b16 %v93
  %v424 = vunpack.c.h.b16 %v93
  %v425 = vunpack.c.l.b16 %v94
  %v426 = vunpack.c.h.b16 %v94
  %v427 = vunpack.c.l.b16 %v95
  %v428 = vunpack.c.h.b16 %v95
  %v429 = vunpack.c.l.b16 %v96
  %v430 = vunpack.c.h.b16 %v96
  %v431 = vunpack.c.l.b16 %v97
  %v432 = vunpack.c.h.b16 %v97
  %v433 = vunpack.c.l.b16 %v98
  %v434 = vunpack.c.h.b16 %v98
  %v435 = vunpack.c.l.b16 %v99
  %v436 = vunpack.c.h.b16 %v99
  %v437 = vunpack.c.l.b16 %v100
  %v438 = vunpack.c.h.b16 %v100
  %v439 = vunpack.c.l.b16 %v101
  %v440 = vunpack.c.h.b16 %v101
  %v441 = vunpack.c.l.b16 %v102
  %v442 = vunpack.c.h.b16 %v102
  %v443 = vunpack.c.l.b16 %v103
  %v444 = vunpack.c.h.b16 %v103
  %v445 = vunpack.c.l.b16 %v104
  %v446 = vunpack.c.h.b16 %v104
  %v447 = vunpack.c.l.b16 %v105
  %v448 = vunpack.c.h.b16 %v105
  %v449 = vunpack.c.l.b16 %v106
  %v450 = vunpack.c.h.b16 %v106
  %v451 = vunpack.c.l.b16 %v107
  %v452 = vunpack.c.h.b16 %v107
  %v453 = vunpack.c.l.b16 %v108
  %v454 = vunpack.c.h.b16 %v108
  %v455 = vunpack.c.l.b16 %v109
  %v456 = vunpack.c.h.b16 %v109
  %v457 = vunpack.c.l.b16 %v110
  %v458 = vunpack.c.h.b16 %v110
  %v459 = vunpack.c.l.b16 %v111
  %v460 = vunpack.c.h.b16 %v111
  %v461 = vunpack.c.l.b16 %v112
  %v462 = vunpack.c.h.b16 %v112
  %v463 = vunpack.c.l.b16 %v113
  %v464 = vunpack.c.h.b16 %v113
  %v465 = vunpack.c.l.b16 %v114
  %v466 = vunpack.c.h.b16 %v114
  %v467 = vunpack.c.l.b16 %v115
  %v468 = vunpack.c.h.b16 %v115
  %v469 = vunpack.c.l.b16 %v116
  %v470 = vunpack.c.h.b16 %v116
  %v471 = vunpack.c.l.b16 %v117
  %v472 = vunpack.c.h.b16 %v117
  %v473 = vunpack.c.l.b16 %v118
  %v474 = vunpack.c.h.b16 %v118
  %v475 = vunpack.c.l.b16 %v119
  %v476 = vunpack.c.h.b16 %v119
  %v477 = vunpack.c.l.b16 %v120
  %v478 = vunpack.c.h.b16 %v120
  %v479 = vunpack.c.l.b16 %v121
  %v480 = vunpack.c.h.b16 %v121
  %v481 = vunpack.c.l.b16 %v122
  %v482 = vunpack.c.h.b16 %v122
  %v483 = vunpack.c.l.b16 %v123
  %v484 = vunpack.c.h.b16 %v123
  %v485 = vunpack.c.l.b16 %v124
  %v486 = vunpack.c.h.b16 %v124
  %v487 = vpack.c.b16 %v291, %v287
  %v488 = vpack.c.b16 %v292, %v288
  %v489 = vpack.c.b16 %v293, %v289
  %v490 = vpack.c.b16 %v294, %v290
  %v491 = vpack.c.b16 %v299, %v295
  %v492 = vpack.c.b16 %v300, %v296
  %v493 = vpack.c.b16 %v301, %v297
  %v494 = vpack.c.b16 %v302, %v298
  %v495 = vpack.c.b16 %v307, %v303
  %v496 = vpack.c.b16 %v308, %v304
  %v497 = vpack.c.b16 %v309, %v305
  %v498 = vpack.c.b16 %v310, %v306
  %v499 = vpack.c.b16 %v315, %v311
  %v500 = vpack.c.b16 %v316, %v312
  %v501 = vpack.c.b16 %v317, %v313
  %v502 = vpack.c.b16 %v318, %v314
  %v503 = vpack.c.b16 %v323, %v319
  %v504 = vpack.c.b16 %v324, %v320
  %v505 = vpack.c.b16 %v325, %v321
  %v506 = vpack.c.b16 %v326, %v322
  %v507 = vpack.c.b16 %v331, %v327
  %v508 = vpack.c.b16 %v332, %v328
  %v509 = vpack.c.b16 %v333, %v329
  %v510 = vpack.c.b16 %v334, %v330
  %v511 = vpack.c.b16 %v339, %v335
  %v512 = vpack.c.b16 %v340, %v336
  %v513 = vpack.c.b16 %v341, %v337
  %v514 = vpack.c.b16 %v342, %v338
  %v515 = vpack.c.b16 %v347, %v343
  %v516 = vpack.c.b16 %v348, %v344
  %v517 = vpack.c.b16 %v349, %v345
  %v518 = vpack.c.b16 %v350, %v346
  %v519 = vpack.c.b16 %v355, %v351
  %v520 = vpack.c.b16 %v356, %v352
  %v521 = vpack.c.b16 %v357, %v353
  %v522 = vpack.c.b16 %v358, %v354
  %v523 = vpack.c.b16 %v363, %v359
  %v524 = vpack.c.b16 %v364, %v360
  %v525 = vpack.c.b16 %v365, %v361
  %v526 = vpack.c.b16 %v366, %v362
  %v527 = vpack.c.b16 %v371, %v367
  %v528 = vpack.c.b16 %v372, %v368
  %v529 = vpack.c.b16 %v373, %v369
  %v530 = vpack.c.b16 %v374, %v370
  %v531 = vpack.c.b16 %v379, %v375
  %v532 = vpack.c.b16 %v380, %v376
  %v533 = vpack.c.b16 %v381, %v377
  %v534 = vpack.c.b16 %v382, %v378
  %v535 = vpack.c.b16 %v387, %v383
  %v536 = vpack.c.b16 %v388, %v384
  %v537 = vpack.c.b16 %v389, %v385
  %v538 = vpack.c.b16 %v390, %v386
  %v539 = vpack.c.b16 %v395, %v391
  %v540 = vpack.c.b16 %v396, %v392
  %v541 = vpack.c.b16 %v397, %v393
  %v542 = vpack.c.b16 %v398, %v394
  %v543 = vpack.c.b16 %v403, %v399
  %v544 = vpack.c.b16 %v404, %v400
  %v545 = vpack.c.b16 %v405, %v401
  %v546 = vpack.c.b16 %v406, %v402
  %v547 = vpack.c.b16 %v411, %v407
  %v548 = vpack.c.b16 %v412, %v408
  %v549 = vpack.c.b16 %v413, %v409
  %v550 = vpack.c.b16 %v414, %v410
  %v551 = vpack.c.b16 %v419, %v415
  %v552 = vpack.c.b16 %v420, %v416
  %v553 = vpack.c.b16 %v421, %v417
  %v554 = vpack.c.b16 %v422, %v418
  %v555 = vpack.c.b16 %v427, %v423
  %v556 = vpack.c.b16 %v428, %v424
  %v557 = vpack.c.b16 %v429, %v425
  %v558 = vpack.c.b16 %v430, %v426
  %v559 = vpack.c.b16 %v435, %v431
  %v560 = vpack.c.b16 %v436, %v432
  %v561 = vpack.c.b16 %v437, %v433
  %v562 = vpack.c.b16 %v438, %v434
  %v563 = vpack.c.b16 %v443, %v439
  %v564 = vpack.c.b16 %v444, %v440
  %v565 = vpack.c.b16 %v445, %v441
  %v566 = vpack.c.b16 %v446, %v442
  %v567 = vpack.c.b16 %v451, %v447
  %v568 = vpack.c.b16 %v452, %v448
  %v569 = vpack.c.b16 %v453, %v449
  %v570 = vpack.c.b16 %v454, %v450
  %v571 = vpack.c.b16 %v459, %v455
  %v572 = vpack.c.b16 %v460, %v456
  %v573 = vpack.c.b16 %v461, %v457
  %v574 = vpack.c.b16 %v462, %v458
  %v575 = vpack.c.b16 %v467, %v463
  %v576 = vpack.c.b16 %v468, %v464
  %v577 = vpack.c.b16 %v469, %v465
  %v578 = vpack.c.b16 %v470, %v466
  %v579 = vpack.c.b16 %v475, %v471
  %v580 = vpack.c.b16 %v476, %v472
  %v581 = vpack.c.b16 %v477, %v473
  %v582 = vpack.c.b16 %v478, %v474
  %v583 = vpack.c.b16 %v483, %v479
  %v584 = vpack.c.b16 %v484, %v480
  %v585 = vpack.c.b16 %v485, %v481
  %v586 = vpack.c.b16 %v486, %v482
  %vm687 = vcmask 130048
  %v689 = vsel %vm687, %v176, 0
  %v692 = vsel %vm687, %v180, 0
  %694 = vmatprep.subr.bf16.mxu0 %v488
  %695 = vmatpush1.bf16.msra.mxu0 %v487
  %696 = vmatprep.subr.bf16.mxu0 %v492
  %697 = vmatpush1.bf16.msra.mxu0 %v491
  %698 = vmatprep.subr.bf16.mxu0 %v496
  %699 = vmatpush1.bf16.msra.mxu0 %v495
  %700 = vmatprep.subr.bf16.mxu0 %v500
  %701 = vmatpush1.bf16.msra.mxu0 %v499
  %702 = vmatprep.subr.bf16.mxu0 %v504
  %703 = vmatpush1.bf16.msra.mxu0 %v503
  %704 = vmatprep.subr.bf16.mxu0 %v508
  %705 = vmatpush1.bf16.msra.mxu0 %v507
  %706 = vmatprep.subr.bf16.mxu0 %v512
  %707 = vmatpush1.bf16.msra.mxu0 %v511
  %708 = vmatprep.subr.bf16.mxu0 %v516
  %709 = vmatpush1.bf16.msra.mxu0 %v515
  %710 = vmatprep.subr.bf16.mxu0 %v520
  %711 = vmatpush1.bf16.msra.mxu0 %v519
  %712 = vmatprep.subr.bf16.mxu0 %v524
  %713 = vmatpush1.bf16.msra.mxu0 %v523
  %714 = vmatprep.subr.bf16.mxu0 %v528
  %715 = vmatpush1.bf16.msra.mxu0 %v527
  %716 = vmatprep.subr.bf16.mxu0 %v532
  %717 = vmatpush1.bf16.msra.mxu0 %v531
  %718 = vmatprep.subr.bf16.mxu0 %v536
  %719 = vmatpush1.bf16.msra.mxu0 %v535
  %720 = vmatprep.subr.bf16.mxu0 %v540
  %721 = vmatpush1.bf16.msra.mxu0 %v539
  %722 = vmatprep.subr.bf16.mxu0 %v544
  %723 = vmatpush1.bf16.msra.mxu0 %v543
  %724 = vmatprep.subr.bf16.mxu0 %v548
  %725 = vmatpush1.bf16.msra.mxu0 %v547
  %726 = vmatprep.mubr.bf16.mxu0 %v174
  %727 = vmatmul.mubr.bf16.gmra.mrb[0].mxu0 %v173
  %v728 = vpop.f32.mrb[0].mxu0
  %v729 = vadd.f32 %v132, %v728
  %v730 = vpop.f32.mrb[0].mxu0
  %v731 = vadd.f32 %v132, %v730
  %v732 = vpop.f32.mrb[0].mxu0
  %v733 = vadd.f32 %v137, %v732
  %v734 = vpop.f32.mrb[0].mxu0
  %v735 = vadd.f32 %v137, %v734
  %736 = vmatprep.mubr.bf16.mxu0 %v178
  %737 = vmatmul.mubr.bf16.gmra.mrb[0].mxu0 %v177
  %v738 = vpop.f32.mrb[0].mxu0
  %v739 = vadd.f32 %v142, %v738
  %v740 = vpop.f32.mrb[0].mxu0
  %v741 = vadd.f32 %v142, %v740
  %v742 = vpop.f32.mrb[0].mxu0
  %v743 = vadd.f32 %v147, %v742
  %v744 = vpop.f32.mrb[0].mxu0
  %v745 = vadd.f32 %v147, %v744
  %746 = vdwg.mxu0
  %747 = vmatprep.subr.bf16.mxu0 %v552
  %748 = vmatpush1.bf16.msra.mxu0 %v551
  %749 = vmatprep.subr.bf16.mxu0 %v556
  %750 = vmatpush1.bf16.msra.mxu0 %v555
  %751 = vmatprep.subr.bf16.mxu0 %v560
  %752 = vmatpush1.bf16.msra.mxu0 %v559
  %753 = vmatprep.subr.bf16.mxu0 %v564
  %754 = vmatpush1.bf16.msra.mxu0 %v563
  %755 = vmatprep.subr.bf16.mxu0 %v568
  %756 = vmatpush1.bf16.msra.mxu0 %v567
  %757 = vmatprep.subr.bf16.mxu0 %v572
  %758 = vmatpush1.bf16.msra.mxu0 %v571
  %759 = vmatprep.subr.bf16.mxu0 %v576
  %760 = vmatpush1.bf16.msra.mxu0 %v575
  %761 = vmatprep.subr.bf16.mxu0 %v580
  %762 = vmatpush1.bf16.msra.mxu0 %v579
  %763 = vmatprep.subr.bf16.mxu0 %v584
  %764 = vmatpush1.bf16.msra.mxu0 %v583
  %765 = vmatprep.subr.bf16.mxu0 0
  %766 = vmatpush1.bf16.msra.mxu0 0
  %767 = vmatprep.subr.bf16.mxu0 0
  %768 = vmatpush1.bf16.msra.mxu0 0
  %769 = vmatprep.subr.bf16.mxu0 0
  %770 = vmatpush1.bf16.msra.mxu0 0
  %771 = vmatprep.subr.bf16.mxu0 0
  %772 = vmatpush1.bf16.msra.mxu0 0
  %773 = vmatprep.subr.bf16.mxu0 0
  %774 = vmatpush1.bf16.msra.mxu0 0
  %775 = vmatprep.subr.bf16.mxu0 0
  %776 = vmatpush1.bf16.msra.mxu0 0
  %777 = vmatprep.subr.bf16.mxu0 0
  %778 = vmatpush1.bf16.msra.mxu0 0
  %779 = vmatprep.mubr.bf16.mxu0 %v689
  %780 = vmatmul.mubr.bf16.gmra.mrb[0].mxu0 %v175
  %v781 = vpop.f32.mrb[0].mxu0
  %v782 = vadd.f32 %v729, %v781
  %v783 = vpop.f32.mrb[0].mxu0
  %v784 = vadd.f32 %v731, %v783
  %v785 = vpop.f32.mrb[0].mxu0
  %v786 = vadd.f32 %v733, %v785
  %v787 = vpop.f32.mrb[0].mxu0
  %v788 = vadd.f32 %v735, %v787
  %789 = vmatprep.mubr.bf16.mxu0 %v692
  %790 = vmatmul.mubr.bf16.gmra.mrb[0].mxu0 %v179
  %v791 = vpop.f32.mrb[0].mxu0
  %v792 = vadd.f32 %v739, %v791
  %v793 = vpop.f32.mrb[0].mxu0
  %v794 = vadd.f32 %v741, %v793
  %v795 = vpop.f32.mrb[0].mxu0
  %v796 = vadd.f32 %v743, %v795
  %v797 = vpop.f32.mrb[0].mxu0
  %v798 = vadd.f32 %v745, %v797
  %799 = vdwg.mxu0
  %800 = vmatprep.subr.bf16.mxu0 %v490
  %801 = vmatpush1.bf16.msra.mxu0 %v489
  %802 = vmatprep.subr.bf16.mxu0 %v494
  %803 = vmatpush1.bf16.msra.mxu0 %v493
  %804 = vmatprep.subr.bf16.mxu0 %v498
  %805 = vmatpush1.bf16.msra.mxu0 %v497
  %806 = vmatprep.subr.bf16.mxu0 %v502
  %807 = vmatpush1.bf16.msra.mxu0 %v501
  %808 = vmatprep.subr.bf16.mxu0 %v506
  %809 = vmatpush1.bf16.msra.mxu0 %v505
  %810 = vmatprep.subr.bf16.mxu0 %v510
  %811 = vmatpush1.bf16.msra.mxu0 %v509
  %812 = vmatprep.subr.bf16.mxu0 %v514
  %813 = vmatpush1.bf16.msra.mxu0 %v513
  %814 = vmatprep.subr.bf16.mxu0 %v518
  %815 = vmatpush1.bf16.msra.mxu0 %v517
  %816 = vmatprep.subr.bf16.mxu0 %v522
  %817 = vmatpush1.bf16.msra.mxu0 %v521
  %818 = vmatprep.subr.bf16.mxu0 %v526
  %819 = vmatpush1.bf16.msra.mxu0 %v525
  %820 = vmatprep.subr.bf16.mxu0 %v530
  %821 = vmatpush1.bf16.msra.mxu0 %v529
  %822 = vmatprep.subr.bf16.mxu0 %v534
  %823 = vmatpush1.bf16.msra.mxu0 %v533
  %824 = vmatprep.subr.bf16.mxu0 %v538
  %825 = vmatpush1.bf16.msra.mxu0 %v537
  %826 = vmatprep.subr.bf16.mxu0 %v542
  %827 = vmatpush1.bf16.msra.mxu0 %v541
  %828 = vmatprep.subr.bf16.mxu0 %v546
  %829 = vmatpush1.bf16.msra.mxu0 %v545
  %830 = vmatprep.subr.bf16.mxu0 %v550
  %831 = vmatpush1.bf16.msra.mxu0 %v549
  %832 = vmatprep.mubr.bf16.mxu0 %v174
  %833 = vmatmul.mubr.bf16.gmra.mrb[0].mxu0 %v173
  %v834 = vpop.f32.mrb[0].mxu0
  %v835 = vadd.f32 %v132, %v834
  %v836 = vpop.f32.mrb[0].mxu0
  %v837 = vadd.f32 %v132, %v836
  %v838 = vpop.f32.mrb[0].mxu0
  %v839 = vadd.f32 %v137, %v838
  %v840 = vpop.f32.mrb[0].mxu0
  %v841 = vadd.f32 %v137, %v840
  %842 = vmatprep.mubr.bf16.mxu0 %v178
  %843 = vmatmul.mubr.bf16.gmra.mrb[0].mxu0 %v177
  %v844 = vpop.f32.mrb[0].mxu0
  %v845 = vadd.f32 %v142, %v844
  %v846 = vpop.f32.mrb[0].mxu0
  %v847 = vadd.f32 %v142, %v846
  %v848 = vpop.f32.mrb[0].mxu0
  %v849 = vadd.f32 %v147, %v848
  %v850 = vpop.f32.mrb[0].mxu0
  %v851 = vadd.f32 %v147, %v850
  %852 = vdwg.mxu0
  %853 = vmatprep.subr.bf16.mxu0 %v554
  %854 = vmatpush1.bf16.msra.mxu0 %v553
  %855 = vmatprep.subr.bf16.mxu0 %v558
  %856 = vmatpush1.bf16.msra.mxu0 %v557
  %857 = vmatprep.subr.bf16.mxu0 %v562
  %858 = vmatpush1.bf16.msra.mxu0 %v561
  %859 = vmatprep.subr.bf16.mxu0 %v566
  %860 = vmatpush1.bf16.msra.mxu0 %v565
  %861 = vmatprep.subr.bf16.mxu0 %v570
  %862 = vmatpush1.bf16.msra.mxu0 %v569
  %863 = vmatprep.subr.bf16.mxu0 %v574
  %864 = vmatpush1.bf16.msra.mxu0 %v573
  %865 = vmatprep.subr.bf16.mxu0 %v578
  %866 = vmatpush1.bf16.msra.mxu0 %v577
  %867 = vmatprep.subr.bf16.mxu0 %v582
  %868 = vmatpush1.bf16.msra.mxu0 %v581
  %869 = vmatprep.subr.bf16.mxu0 %v586
  %870 = vmatpush1.bf16.msra.mxu0 %v585
  %871 = vmatprep.subr.bf16.mxu0 0
  %872 = vmatpush1.bf16.msra.mxu0 0
  %873 = vmatprep.subr.bf16.mxu0 0
  %874 = vmatpush1.bf16.msra.mxu0 0
  %875 = vmatprep.subr.bf16.mxu0 0
  %876 = vmatpush1.bf16.msra.mxu0 0
  %877 = vmatprep.subr.bf16.mxu0 0
  %878 = vmatpush1.bf16.msra.mxu0 0
  %879 = vmatprep.subr.bf16.mxu0 0
  %880 = vmatpush1.bf16.msra.mxu0 0
  %881 = vmatprep.subr.bf16.mxu0 0
  %882 = vmatpush1.bf16.msra.mxu0 0
  %883 = vmatprep.subr.bf16.mxu0 0
  %884 = vmatpush1.bf16.msra.mxu0 0
  %885 = vmatprep.mubr.bf16.mxu0 %v689
  %886 = vmatmul.mubr.bf16.gmra.mrb[0].mxu0 %v175
  %v887 = vpop.f32.mrb[0].mxu0
  %v888 = vadd.f32 %v835, %v887
  %v889 = vpop.f32.mrb[0].mxu0
  %v890 = vadd.f32 %v837, %v889
  %v891 = vpop.f32.mrb[0].mxu0
  %v892 = vadd.f32 %v839, %v891
  %v893 = vpop.f32.mrb[0].mxu0
  %v894 = vadd.f32 %v841, %v893
  %895 = vmatprep.mubr.bf16.mxu0 %v692
  %896 = vmatmul.mubr.bf16.gmra.mrb[0].mxu0 %v179
  %v897 = vpop.f32.mrb[0].mxu0
  %v898 = vadd.f32 %v845, %v897
  %v899 = vpop.f32.mrb[0].mxu0
  %v900 = vadd.f32 %v847, %v899
  %v901 = vpop.f32.mrb[0].mxu0
  %v902 = vadd.f32 %v849, %v901
  %v903 = vpop.f32.mrb[0].mxu0
  %v904 = vadd.f32 %v851, %v903
  %905 = vdwg.mxu0
  %906 = vst [vmem:[%s3] sm:$0xff] %v782
  %907 = vst [vmem:[%s3 + $0x8] sm:$0xff] %v784
  %908 = vst [vmem:[%s3 + $0x10] sm:$0xff] %v888
  %909 = vst [vmem:[%s3 + $0x18] sm:$0xff] %v890
  %910 = vst [vmem:[%s3 + $0x20] sm:$0xff] %v786
  %911 = vst [vmem:[%s3 + $0x28] sm:$0xff] %v788
  %912 = vst [vmem:[%s3 + $0x30] sm:$0xff] %v892
  %913 = vst [vmem:[%s3 + $0x38] sm:$0xff] %v894
  %914 = vst [vmem:[%s3 + $0x40] sm:$0xff] %v792
  %915 = vst [vmem:[%s3 + $0x48] sm:$0xff] %v794
  %916 = vst [vmem:[%s3 + $0x50] sm:$0xff] %v898
  %917 = vst [vmem:[%s3 + $0x58] sm:$0xff] %v900
  %918 = vst [vmem:[%s3 + $0x60] sm:$0xff] %v796
  %919 = vst [vmem:[%s3 + $0x68] sm:$0xff] %v798
  %920 = vst [vmem:[%s3 + $0x70] sm:$0xff] %v902
  %921 = vst [vmem:[%s3 + $0x78] sm:$0xff] %v904
  %v922 = vadd.f32 %v782, %v784
  %v923 = vadd.f32 %v922, %v888
  %v924 = vadd.f32 %v923, %v890
  %925 = vadd.xlane.f32.xlu0 %v924
  %v926 = vpop.xlane.xlu0 %925
  %v927 = vadd.f32 %v786, %v788
  %v928 = vadd.f32 %v927, %v892
  %v929 = vadd.f32 %v928, %v894
  %930 = vadd.xlane.f32.xlu0 %v929
  %v931 = vpop.xlane.xlu0 %930
  %v932 = vadd.f32 %v792, %v794
  %v933 = vadd.f32 %v932, %v898
  %v934 = vadd.f32 %v933, %v900
  %935 = vadd.xlane.f32.xlu0 %v934
  %v936 = vpop.xlane.xlu0 %935
  %v937 = vadd.f32 %v796, %v798
  %v938 = vadd.f32 %v937, %v902
  %v939 = vadd.f32 %v938, %v904
  %940 = vadd.xlane.f32.xlu0 %v939
  %v941 = vpop.xlane.xlu0 %940
  %v942 = vmul.f32 %v782, %v782
  %v943 = vmul.f32 %v784, %v784
  %v944 = vmul.f32 %v888, %v888
  %v945 = vmul.f32 %v890, %v890
  %v946 = vmul.f32 %v786, %v786
  %v947 = vmul.f32 %v788, %v788
  %v948 = vmul.f32 %v892, %v892
  %v949 = vmul.f32 %v894, %v894
  %v950 = vmul.f32 %v792, %v792
  %v951 = vmul.f32 %v794, %v794
  %v952 = vmul.f32 %v898, %v898
  %v953 = vmul.f32 %v900, %v900
  %v954 = vmul.f32 %v796, %v796
  %v955 = vmul.f32 %v798, %v798
  %v956 = vmul.f32 %v902, %v902
  %v957 = vmul.f32 %v904, %v904
  %v958 = vadd.f32 %v942, %v943
  %v959 = vadd.f32 %v958, %v944
  %v960 = vadd.f32 %v959, %v945
  %961 = vadd.xlane.f32.xlu0 %v960
  %v962 = vpop.xlane.xlu0 %961
  %v963 = vadd.f32 %v946, %v947
  %v964 = vadd.f32 %v963, %v948
  %v965 = vadd.f32 %v964, %v949
  %966 = vadd.xlane.f32.xlu0 %v965
  %v967 = vpop.xlane.xlu0 %966
  %v968 = vadd.f32 %v950, %v951
  %v969 = vadd.f32 %v968, %v952
  %v970 = vadd.f32 %v969, %v953
  %971 = vadd.xlane.f32.xlu0 %v970
  %v972 = vpop.xlane.xlu0 %971
  %v973 = vadd.f32 %v954, %v955
  %v974 = vadd.f32 %v973, %v956
  %v975 = vadd.f32 %v974, %v957
  %976 = vadd.xlane.f32.xlu0 %v975
  %v977 = vpop.xlane.xlu0 %976
  %v978 = vlaneseq
  %v979 = vand.u32 %v978, 127
  %vm980 = vcmp.eq.s32.totalorder %v979, 0
  %vm981 = vcmp.eq.s32.totalorder %v979, 1
  %v982 = vsel %vm981, %v962, 0.0
  %v983 = vsel %vm981, %v967, 0.0
  %v984 = vsel %vm981, %v972, 0.0
  %v985 = vsel %vm981, %v977, 0.0
  %v986 = vsel %vm980, %v926, %v982
  %v987 = vsel %vm980, %v931, %v983
  %v988 = vsel %vm980, %v936, %v984
  %v989 = vsel %vm980, %v941, %v985
  %990 = vst [vmem:[%s4] sm:$0xff] %v986
  %991 = vst [vmem:[%s4 + $0x8] sm:$0xff] %v987
  %992 = vst [vmem:[%s4 + $0x10] sm:$0xff] %v988
  %993 = vst [vmem:[%s4 + $0x18] sm:$0xff] %v989
  // Predicated region
  $region14: #{discriminator_forward.9} parent=0 // pred_check
    _
  $region15: #{discriminator_forward.9} parent=0 // pred_check_branch
    %995 = sbr.rel (0) target = $region17
  $region16: #{discriminator_forward.9} parent=0 // pred_region
    _
  $region17: #{discriminator_forward.9} parent=0 // pred_fallthru
    _
  // Predicated region
  $region18: #{discriminator_forward.9} parent=0 // pred_check
    _
  $region19: #{discriminator_forward.9} parent=0 // pred_check_branch
    %997 = sbr.rel (0) target = $region21
  $region20: #{discriminator_forward.9} parent=0 // pred_region
    _
  $region21: #{discriminator_forward.9} parent=0 // pred_fallthru
    _
  // Predicated region
  $region22: #{discriminator_forward.9} parent=0 // pred_check
    _
  $region23: #{discriminator_forward.9} parent=0 // pred_check_branch
    %999 = sbr.rel (0) target = $region25
  $region24: #{discriminator_forward.9} parent=0 // pred_region
    _
  $region25: #{discriminator_forward.9} parent=0 // pred_fallthru
    _
  // Predicated region
  $region26: #{discriminator_forward.9} parent=0 // pred_check
    _
  $region27: #{discriminator_forward.9} parent=0 // pred_check_branch
    %1001 = sbr.rel (0) target = $region29
  $region28: #{discriminator_forward.9} parent=0 // pred_region
    _
  $region29: #{discriminator_forward.9} parent=0 // pred_fallthru
    _

// kernel: discriminator_forward.12
$region0: #{discriminator_forward.12}
  #allocation0 [shape = 'u32[]', space=smem, size = 0x4, offset = 0x4, fixed_abs, tag = 'smem constant byte address 0x4 - core index']
  #allocation1 [shape = 'u32[144,128]{1,0:T(1,128)}', space=vmem, size = 0x12000, scoped, tag = 'internal scratch']
  %s0 = inlined_call_operand.vmem [shape: f32[64,128], index: 0, kind: input, shape index: {}]
  %s1 = inlined_call_operand.vmem [shape: f32[64,1], index: 1, kind: input, shape index: {}]
  %s2 = inlined_call_operand.vmem [shape: f32[64,1], index: 2, kind: input, shape index: {}]
  %s3 = inlined_call_operand.vmem [shape: bf16[64,128], index: 3, kind: output, shape index: {}]
  %s4 = sld [smem:[#allocation0]]
  $region22: #{discriminator_forward.12} parent=0
    _
  %s6 = ssub.s32 1, %s4
  %s7 = scalar_select 0, %s6, %s4
  // Predicated region
  $region2: #{discriminator_forward.12} parent=0 // pred_check
    _
  $region3: #{discriminator_forward.12} parent=0 // pred_check_branch
    %9 = sbr.rel (0) target = $region5
  $region4: #{discriminator_forward.12} parent=0 // pred_region
    _
  $region5: #{discriminator_forward.12} parent=0 // pred_fallthru
    _
  // Predicated region
  $region6: #{discriminator_forward.12} parent=0 // pred_check
    _
  $region7: #{discriminator_forward.12} parent=0 // pred_check_branch
    %11 = sbr.rel (0) target = $region9
  $region8: #{discriminator_forward.12} parent=0 // pred_region
    _
  $region9: #{discriminator_forward.12} parent=0 // pred_fallthru
    _
  // Predicated region
  $region10: #{discriminator_forward.12} parent=0 // pred_check
    _
  $region11: #{discriminator_forward.12} parent=0 // pred_check_branch
    %13 = sbr.rel (0) target = $region13
  $region12: #{discriminator_forward.12} parent=0 // pred_region
    _
  $region13: #{discriminator_forward.12} parent=0 // pred_fallthru
    _
  %v14 = vld [vmem:[%s0] sm:$0xff]
  %v15 = vld [vmem:[%s0 + $0x8] sm:$0xff]
  %v16 = vld [vmem:[%s0 + $0x10] sm:$0xff]
  %v17 = vld [vmem:[%s0 + $0x18] sm:$0xff]
  %v18 = vld [vmem:[%s0 + $0x20] sm:$0xff]
  %v19 = vld [vmem:[%s0 + $0x28] sm:$0xff]
  %v20 = vld [vmem:[%s0 + $0x30] sm:$0xff]
  %v21 = vld [vmem:[%s0 + $0x38] sm:$0xff]
  %v22 = vld [vmem:[%s1] sm:$0xff]
  %v23 = vld [vmem:[%s1 + $0x8] sm:$0xff]
  %v24 = vld [vmem:[%s1 + $0x10] sm:$0xff]
  %v25 = vld [vmem:[%s1 + $0x18] sm:$0xff]
  %v26 = vld [vmem:[%s1 + $0x20] sm:$0xff]
  %v27 = vld [vmem:[%s1 + $0x28] sm:$0xff]
  %v28 = vld [vmem:[%s1 + $0x30] sm:$0xff]
  %v29 = vld [vmem:[%s1 + $0x38] sm:$0xff]
  %31 = vset.pattern.permute.xlu0 0
  %32 = vperm.xlu0 %31, %v22
  %v33 = vpop.permute.xlu0 %32
  %36 = vset.pattern.permute.xlu0 0
  %37 = vperm.xlu0 %36, %v23
  %v38 = vpop.permute.xlu0 %37
  %41 = vset.pattern.permute.xlu0 0
  %42 = vperm.xlu0 %41, %v24
  %v43 = vpop.permute.xlu0 %42
  %46 = vset.pattern.permute.xlu0 0
  %47 = vperm.xlu0 %46, %v25
  %v48 = vpop.permute.xlu0 %47
  %51 = vset.pattern.permute.xlu0 0
  %52 = vperm.xlu0 %51, %v26
  %v53 = vpop.permute.xlu0 %52
  %56 = vset.pattern.permute.xlu0 0
  %57 = vperm.xlu0 %56, %v27
  %v58 = vpop.permute.xlu0 %57
  %61 = vset.pattern.permute.xlu0 0
  %62 = vperm.xlu0 %61, %v28
  %v63 = vpop.permute.xlu0 %62
  %66 = vset.pattern.permute.xlu0 0
  %67 = vperm.xlu0 %66, %v29
  %v68 = vpop.permute.xlu0 %67
  %v70 = vmul.f32 %v14, %v33
  %v71 = vmul.f32 %v15, %v38
  %v72 = vmul.f32 %v16, %v43
  %v73 = vmul.f32 %v17, %v48
  %v74 = vmul.f32 %v18, %v53
  %v75 = vmul.f32 %v19, %v58
  %v76 = vmul.f32 %v20, %v63
  %v77 = vmul.f32 %v21, %v68
  %v78 = vld [vmem:[%s2] sm:$0xff]
  %v79 = vld [vmem:[%s2 + $0x8] sm:$0xff]
  %v80 = vld [vmem:[%s2 + $0x10] sm:$0xff]
  %v81 = vld [vmem:[%s2 + $0x18] sm:$0xff]
  %v82 = vld [vmem:[%s2 + $0x20] sm:$0xff]
  %v83 = vld [vmem:[%s2 + $0x28] sm:$0xff]
  %v84 = vld [vmem:[%s2 + $0x30] sm:$0xff]
  %v85 = vld [vmem:[%s2 + $0x38] sm:$0xff]
  %87 = vset.pattern.permute.xlu0 0
  %88 = vperm.xlu0 %87, %v78
  %v89 = vpop.permute.xlu0 %88
  %92 = vset.pattern.permute.xlu0 0
  %93 = vperm.xlu0 %92, %v79
  %v94 = vpop.permute.xlu0 %93
  %97 = vset.pattern.permute.xlu0 0
  %98 = vperm.xlu0 %97, %v80
  %v99 = vpop.permute.xlu0 %98
  %102 = vset.pattern.permute.xlu0 0
  %103 = vperm.xlu0 %102, %v81
  %v104 = vpop.permute.xlu0 %103
  %107 = vset.pattern.permute.xlu0 0
  %108 = vperm.xlu0 %107, %v82
  %v109 = vpop.permute.xlu0 %108
  %112 = vset.pattern.permute.xlu0 0
  %113 = vperm.xlu0 %112, %v83
  %v114 = vpop.permute.xlu0 %113
  %117 = vset.pattern.permute.xlu0 0
  %118 = vperm.xlu0 %117, %v84
  %v119 = vpop.permute.xlu0 %118
  %122 = vset.pattern.permute.xlu0 0
  %123 = vperm.xlu0 %122, %v85
  %v124 = vpop.permute.xlu0 %123
  %v126 = vadd.f32 %v70, %v89
  %v127 = vadd.f32 %v71, %v94
  %v128 = vadd.f32 %v72, %v99
  %v129 = vadd.f32 %v73, %v104
  %v130 = vadd.f32 %v74, %v109
  %v131 = vadd.f32 %v75, %v114
  %v132 = vadd.f32 %v76, %v119
  %v133 = vadd.f32 %v77, %v124
  %v134 = vmul.f32 %v126, 0.2
  %v135 = vmul.f32 %v127, 0.2
  %v136 = vmul.f32 %v128, 0.2
  %v137 = vmul.f32 %v129, 0.2
  %v138 = vmul.f32 %v130, 0.2
  %v139 = vmul.f32 %v131, 0.2
  %v140 = vmul.f32 %v132, 0.2
  %v141 = vmul.f32 %v133, 0.2
  %v142 = vmax.f32 %v126, %v134
  %v143 = vmax.f32 %v127, %v135
  %v144 = vmax.f32 %v128, %v136
  %v145 = vmax.f32 %v129, %v137
  %v146 = vmax.f32 %v130, %v138
  %v147 = vmax.f32 %v131, %v139
  %v148 = vmax.f32 %v132, %v140
  %v149 = vmax.f32 %v133, %v141
  %v150 = vpack.c.bf16 %v143, %v142
  %v151 = vpack.c.bf16 %v145, %v144
  %v152 = vpack.c.bf16 %v147, %v146
  %v153 = vpack.c.bf16 %v149, %v148
  %v158 = vunpack.c.l.b16 %v150
  %v159 = vunpack.c.h.b16 %v150
  %v160 = vunpack.c.l.b16 %v151
  %v161 = vunpack.c.h.b16 %v151
  %v162 = vunpack.c.l.b16 %v152
  %v163 = vunpack.c.h.b16 %v152
  %v164 = vunpack.c.l.b16 %v153
  %v165 = vunpack.c.h.b16 %v153
  %v166 = vpack.c.b16 %v158, %v158
  %v167 = vpack.c.b16 %v159, %v159
  %v168 = vpack.c.b16 %v160, %v160
  %v169 = vpack.c.b16 %v161, %v161
  %v170 = vpack.c.b16 %v162, %v162
  %v171 = vpack.c.b16 %v163, %v163
  %v172 = vpack.c.b16 %v164, %v164
  %v173 = vpack.c.b16 %v165, %v165
  %182 = vst [vmem:[%s3] sm:$0xf] %v166
  %183 = vst [vmem:[%s3 + $0x4] sm:$0xf] %v167
  %184 = vst [vmem:[%s3 + $0x8] sm:$0xf] %v168
  %185 = vst [vmem:[%s3 + $0xc] sm:$0xf] %v169
  %186 = vst [vmem:[%s3 + $0x10] sm:$0xf] %v170
  %187 = vst [vmem:[%s3 + $0x14] sm:$0xf] %v171
  %188 = vst [vmem:[%s3 + $0x18] sm:$0xf] %v172
  %189 = vst [vmem:[%s3 + $0x1c] sm:$0xf] %v173
  // Predicated region
  $region14: #{discriminator_forward.12} parent=0 // pred_check
    _
  $region15: #{discriminator_forward.12} parent=0 // pred_check_branch
    %191 = sbr.rel (0) target = $region17
  $region16: #{discriminator_forward.12} parent=0 // pred_region
    _
  $region17: #{discriminator_forward.12} parent=0 // pred_fallthru
    _
  // Predicated region
  $region18: #{discriminator_forward.12} parent=0 // pred_check
    _
  $region19: #{discriminator_forward.12} parent=0 // pred_check_branch
    %193 = sbr.rel (0) target = $region21
  $region20: #{discriminator_forward.12} parent=0 // pred_region
    _
  $region21: #{discriminator_forward.12} parent=0 // pred_fallthru
    _

// kernel: discriminator_forward.11
$region0: #{discriminator_forward.11}
  #allocation0 [shape = 'u32[]', space=smem, size = 0x4, offset = 0x4, fixed_abs, tag = 'smem constant byte address 0x4 - core index']
  #allocation1 [shape = 'u32[144,128]{1,0:T(1,128)}', space=vmem, size = 0x12000, scoped, tag = 'internal scratch']
  %s0 = inlined_call_operand.vmem [shape: bf16[64,800], index: 0, kind: input, shape index: {}]
  %s1 = inlined_call_operand.vmem [shape: bf16[800,128], index: 1, kind: input, shape index: {}]
  %s2 = inlined_call_operand.vmem [shape: f32[64,1], index: 2, kind: input, shape index: {}]
  %s3 = inlined_call_operand.vmem [shape: f32[64,128], index: 3, kind: output, shape index: {0}]
  %s4 = inlined_call_operand.vmem [shape: f32[64,128], index: 4, kind: output, shape index: {1}]
  %5 = xla_tuple %s3, %s4
  %s6 = sld [smem:[#allocation0]]
  $region30: #{discriminator_forward.11} parent=0
    _
  %s8 = ssub.s32 1, %s6
  %s9 = scalar_select 0, %s8, %s6
  // Predicated region
  $region2: #{discriminator_forward.11} parent=0 // pred_check
    _
  $region3: #{discriminator_forward.11} parent=0 // pred_check_branch
    %11 = sbr.rel (0) target = $region5
  $region4: #{discriminator_forward.11} parent=0 // pred_region
    _
  $region5: #{discriminator_forward.11} parent=0 // pred_fallthru
    _
  // Predicated region
  $region6: #{discriminator_forward.11} parent=0 // pred_check
    _
  $region7: #{discriminator_forward.11} parent=0 // pred_check_branch
    %13 = sbr.rel (0) target = $region9
  $region8: #{discriminator_forward.11} parent=0 // pred_region
    _
  $region9: #{discriminator_forward.11} parent=0 // pred_fallthru
    _
  // Predicated region
  $region10: #{discriminator_forward.11} parent=0 // pred_check
    _
  $region11: #{discriminator_forward.11} parent=0 // pred_check_branch
    %15 = sbr.rel (0) target = $region13
  $region12: #{discriminator_forward.11} parent=0 // pred_region
    _
  $region13: #{discriminator_forward.11} parent=0 // pred_fallthru
    _
  %v17 = vld [vmem:[%s0] sm:$0xff]
  %v18 = vld [vmem:[%s0 + $0x8] sm:$0xff]
  %v19 = vld [vmem:[%s0 + $0x10] sm:$0xff]
  %v20 = vld [vmem:[%s0 + $0x18] sm:$0xf]
  %v21 = vld [vmem:[%s0 + $0x1c] sm:$0xff]
  %v22 = vld [vmem:[%s0 + $0x24] sm:$0xff]
  %v23 = vld [vmem:[%s0 + $0x2c] sm:$0xff]
  %v24 = vld [vmem:[%s0 + $0x34] sm:$0xf]
  %v25 = vld [vmem:[%s0 + $0x38] sm:$0xff]
  %v26 = vld [vmem:[%s0 + $0x40] sm:$0xff]
  %v27 = vld [vmem:[%s0 + $0x48] sm:$0xff]
  %v28 = vld [vmem:[%s0 + $0x50] sm:$0xf]
  %v29 = vld [vmem:[%s0 + $0x54] sm:$0xff]
  %v30 = vld [vmem:[%s0 + $0x5c] sm:$0xff]
  %v31 = vld [vmem:[%s0 + $0x64] sm:$0xff]
  %v32 = vld [vmem:[%s0 + $0x6c] sm:$0xf]
  %v33 = vld [vmem:[%s0 + $0x70] sm:$0xff]
  %v34 = vld [vmem:[%s0 + $0x78] sm:$0xff]
  %v35 = vld [vmem:[%s0 + $0x80] sm:$0xff]
  %v36 = vld [vmem:[%s0 + $0x88] sm:$0xf]
  %v37 = vld [vmem:[%s0 + $0x8c] sm:$0xff]
  %v38 = vld [vmem:[%s0 + $0x94] sm:$0xff]
  %v39 = vld [vmem:[%s0 + $0x9c] sm:$0xff]
  %v40 = vld [vmem:[%s0 + $0xa4] sm:$0xf]
  %v41 = vld [vmem:[%s0 + $0xa8] sm:$0xff]
  %v42 = vld [vmem:[%s0 + $0xb0] sm:$0xff]
  %v43 = vld [vmem:[%s0 + $0xb8] sm:$0xff]
  %v44 = vld [vmem:[%s0 + $0xc0] sm:$0xf]
  %v45 = vld [vmem:[%s0 + $0xc4] sm:$0xff]
  %v46 = vld [vmem:[%s0 + $0xcc] sm:$0xff]
  %v47 = vld [vmem:[%s0 + $0xd4] sm:$0xff]
  %v48 = vld [vmem:[%s0 + $0xdc] sm:$0xf]
  %v49 = vld [vmem:[%s1] sm:$0xf]
  %v50 = vld [vmem:[%s1 + $0x4] sm:$0xf]
  %v51 = vld [vmem:[%s1 + $0x8] sm:$0xf]
  %v52 = vld [vmem:[%s1 + $0xc] sm:$0xf]
  %v53 = vld [vmem:[%s1 + $0x10] sm:$0xf]
  %v54 = vld [vmem:[%s1 + $0x14] sm:$0xf]
  %v55 = vld [vmem:[%s1 + $0x18] sm:$0xf]
  %v56 = vld [vmem:[%s1 + $0x1c] sm:$0xf]
  %v57 = vld [vmem:[%s1 + $0x20] sm:$0xf]
  %v58 = vld [vmem:[%s1 + $0x24] sm:$0xf]
  %v59 = vld [vmem:[%s1 + $0x28] sm:$0xf]
  %v60 = vld [vmem:[%s1 + $0x2c] sm:$0xf]
  %v61 = vld [vmem:[%s1 + $0x30] sm:$0xf]
  %v62 = vld [vmem:[%s1 + $0x34] sm:$0xf]
  %v63 = vld [vmem:[%s1 + $0x38] sm:$0xf]
  %v64 = vld [vmem:[%s1 + $0x3c] sm:$0xf]
  %v65 = vld [vmem:[%s1 + $0x40] sm:$0xf]
  %v66 = vld [vmem:[%s1 + $0x44] sm:$0xf]
  %v67 = vld [vmem:[%s1 + $0x48] sm:$0xf]
  %v68 = vld [vmem:[%s1 + $0x4c] sm:$0xf]
  %v69 = vld [vmem:[%s1 + $0x50] sm:$0xf]
  %v70 = vld [vmem:[%s1 + $0x54] sm:$0xf]
  %v71 = vld [vmem:[%s1 + $0x58] sm:$0xf]
  %v72 = vld [vmem:[%s1 + $0x5c] sm:$0xf]
  %v73 = vld [vmem:[%s1 + $0x60] sm:$0xf]
  %v74 = vld [vmem:[%s1 + $0x64] sm:$0xf]
  %v75 = vld [vmem:[%s1 + $0x68] sm:$0xf]
  %v76 = vld [vmem:[%s1 + $0x6c] sm:$0xf]
  %v77 = vld [vmem:[%s1 + $0x70] sm:$0xf]
  %v78 = vld [vmem:[%s1 + $0x74] sm:$0xf]
  %v79 = vld [vmem:[%s1 + $0x78] sm:$0xf]
  %v80 = vld [vmem:[%s1 + $0x7c] sm:$0xf]
  %v81 = vld [vmem:[%s1 + $0x80] sm:$0xf]
  %v82 = vld [vmem:[%s1 + $0x84] sm:$0xf]
  %v83 = vld [vmem:[%s1 + $0x88] sm:$0xf]
  %v84 = vld [vmem:[%s1 + $0x8c] sm:$0xf]
  %v85 = vld [vmem:[%s1 + $0x90] sm:$0xf]
  %v86 = vld [vmem:[%s1 + $0x94] sm:$0xf]
  %v87 = vld [vmem:[%s1 + $0x98] sm:$0xf]
  %v88 = vld [vmem:[%s1 + $0x9c] sm:$0xf]
  %v89 = vld [vmem:[%s1 + $0xa0] sm:$0xf]
  %v90 = vld [vmem:[%s1 + $0xa4] sm:$0xf]
  %v91 = vld [vmem:[%s1 + $0xa8] sm:$0xf]
  %v92 = vld [vmem:[%s1 + $0xac] sm:$0xf]
  %v93 = vld [vmem:[%s1 + $0xb0] sm:$0xf]
  %v94 = vld [vmem:[%s1 + $0xb4] sm:$0xf]
  %v95 = vld [vmem:[%s1 + $0xb8] sm:$0xf]
  %v96 = vld [vmem:[%s1 + $0xbc] sm:$0xf]
  %v97 = vld [vmem:[%s1 + $0xc0] sm:$0xf]
  %v98 = vld [vmem:[%s1 + $0xc4] sm:$0xf]
  %v99 = vld [vmem:[%s1 + $0xc8] sm:$0xf]
  %v100 = vld [vmem:[%s1 + $0xcc] sm:$0xf]
  %v101 = vld [vmem:[%s1 + $0xd0] sm:$0xf]
  %v102 = vld [vmem:[%s1 + $0xd4] sm:$0xf]
  %v103 = vld [vmem:[%s1 + $0xd8] sm:$0xf]
  %v104 = vld [vmem:[%s1 + $0xdc] sm:$0xf]
  %v105 = vld [vmem:[%s1 + $0xe0] sm:$0xf]
  %v106 = vld [vmem:[%s1 + $0xe4] sm:$0xf]
  %v107 = vld [vmem:[%s1 + $0xe8] sm:$0xf]
  %v108 = vld [vmem:[%s1 + $0xec] sm:$0xf]
  %v109 = vld [vmem:[%s1 + $0xf0] sm:$0xf]
  %v110 = vld [vmem:[%s1 + $0xf4] sm:$0xf]
  %v111 = vld [vmem:[%s1 + $0xf8] sm:$0xf]
  %v112 = vld [vmem:[%s1 + $0xfc] sm:$0xf]
  %v113 = vld [vmem:[%s1 + $0x100] sm:$0xf]
  %v114 = vld [vmem:[%s1 + $0x104] sm:$0xf]
  %v115 = vld [vmem:[%s1 + $0x108] sm:$0xf]
  %v116 = vld [vmem:[%s1 + $0x10c] sm:$0xf]
  %v117 = vld [vmem:[%s1 + $0x110] sm:$0xf]
  %v118 = vld [vmem:[%s1 + $0x114] sm:$0xf]
  %v119 = vld [vmem:[%s1 + $0x118] sm:$0xf]
  %v120 = vld [vmem:[%s1 + $0x11c] sm:$0xf]
  %v121 = vld [vmem:[%s1 + $0x120] sm:$0xf]
  %v122 = vld [vmem:[%s1 + $0x124] sm:$0xf]
  %v123 = vld [vmem:[%s1 + $0x128] sm:$0xf]
  %v124 = vld [vmem:[%s1 + $0x12c] sm:$0xf]
  %v125 = vld [vmem:[%s1 + $0x130] sm:$0xf]
  %v126 = vld [vmem:[%s1 + $0x134] sm:$0xf]
  %v127 = vld [vmem:[%s1 + $0x138] sm:$0xf]
  %v128 = vld [vmem:[%s1 + $0x13c] sm:$0xf]
  %v129 = vld [vmem:[%s1 + $0x140] sm:$0xf]
  %v130 = vld [vmem:[%s1 + $0x144] sm:$0xf]
  %v131 = vld [vmem:[%s1 + $0x148] sm:$0xf]
  %v132 = vld [vmem:[%s1 + $0x14c] sm:$0xf]
  %v133 = vld [vmem:[%s1 + $0x150] sm:$0xf]
  %v134 = vld [vmem:[%s1 + $0x154] sm:$0xf]
  %v135 = vld [vmem:[%s1 + $0x158] sm:$0xf]
  %v136 = vld [vmem:[%s1 + $0x15c] sm:$0xf]
  %v137 = vld [vmem:[%s1 + $0x160] sm:$0xf]
  %v138 = vld [vmem:[%s1 + $0x164] sm:$0xf]
  %v139 = vld [vmem:[%s1 + $0x168] sm:$0xf]
  %v140 = vld [vmem:[%s1 + $0x16c] sm:$0xf]
  %v141 = vld [vmem:[%s1 + $0x170] sm:$0xf]
  %v142 = vld [vmem:[%s1 + $0x174] sm:$0xf]
  %v143 = vld [vmem:[%s1 + $0x178] sm:$0xf]
  %v144 = vld [vmem:[%s1 + $0x17c] sm:$0xf]
  %v145 = vld [vmem:[%s1 + $0x180] sm:$0xf]
  %v146 = vld [vmem:[%s1 + $0x184] sm:$0xf]
  %v147 = vld [vmem:[%s1 + $0x188] sm:$0xf]
  %v148 = vld [vmem:[%s1 + $0x18c] sm:$0xf]
  %v149 = vld [vmem:[%s2] sm:$0xff]
  %v150 = vld [vmem:[%s2 + $0x8] sm:$0xff]
  %v151 = vld [vmem:[%s2 + $0x10] sm:$0xff]
  %v152 = vld [vmem:[%s2 + $0x18] sm:$0xff]
  %v153 = vld [vmem:[%s2 + $0x20] sm:$0xff]
  %v154 = vld [vmem:[%s2 + $0x28] sm:$0xff]
  %v155 = vld [vmem:[%s2 + $0x30] sm:$0xff]
  %v156 = vld [vmem:[%s2 + $0x38] sm:$0xff]
  %158 = vset.pattern.permute.xlu0 0
  %159 = vperm.xlu0 %158, %v149
  %v160 = vpop.permute.xlu0 %159
  %163 = vset.pattern.permute.xlu0 0
  %164 = vperm.xlu0 %163, %v150
  %v165 = vpop.permute.xlu0 %164
  %168 = vset.pattern.permute.xlu0 0
  %169 = vperm.xlu0 %168, %v151
  %v170 = vpop.permute.xlu0 %169
  %173 = vset.pattern.permute.xlu0 0
  %174 = vperm.xlu0 %173, %v152
  %v175 = vpop.permute.xlu0 %174
  %178 = vset.pattern.permute.xlu0 0
  %179 = vperm.xlu0 %178, %v153
  %v180 = vpop.permute.xlu0 %179
  %183 = vset.pattern.permute.xlu0 0
  %184 = vperm.xlu0 %183, %v154
  %v185 = vpop.permute.xlu0 %184
  %188 = vset.pattern.permute.xlu0 0
  %189 = vperm.xlu0 %188, %v155
  %v190 = vpop.permute.xlu0 %189
  %193 = vset.pattern.permute.xlu0 0
  %194 = vperm.xlu0 %193, %v156
  %v195 = vpop.permute.xlu0 %194
  %v229 = vunpack.c.l.b16 %v17
  %v230 = vunpack.c.h.b16 %v17
  %v231 = vunpack.c.l.b16 %v18
  %v232 = vunpack.c.h.b16 %v18
  %v233 = vunpack.c.l.b16 %v19
  %v234 = vunpack.c.h.b16 %v19
  %v235 = vunpack.c.l.b16 %v20
  %v236 = vunpack.c.l.b16 %v21
  %v237 = vunpack.c.h.b16 %v21
  %v238 = vunpack.c.l.b16 %v22
  %v239 = vunpack.c.h.b16 %v22
  %v240 = vunpack.c.l.b16 %v23
  %v241 = vunpack.c.h.b16 %v23
  %v242 = vunpack.c.l.b16 %v24
  %v243 = vunpack.c.l.b16 %v25
  %v244 = vunpack.c.h.b16 %v25
  %v245 = vunpack.c.l.b16 %v26
  %v246 = vunpack.c.h.b16 %v26
  %v247 = vunpack.c.l.b16 %v27
  %v248 = vunpack.c.h.b16 %v27
  %v249 = vunpack.c.l.b16 %v28
  %v250 = vunpack.c.l.b16 %v29
  %v251 = vunpack.c.h.b16 %v29
  %v252 = vunpack.c.l.b16 %v30
  %v253 = vunpack.c.h.b16 %v30
  %v254 = vunpack.c.l.b16 %v31
  %v255 = vunpack.c.h.b16 %v31
  %v256 = vunpack.c.l.b16 %v32
  %v257 = vunpack.c.l.b16 %v33
  %v258 = vunpack.c.h.b16 %v33
  %v259 = vunpack.c.l.b16 %v34
  %v260 = vunpack.c.h.b16 %v34
  %v261 = vunpack.c.l.b16 %v35
  %v262 = vunpack.c.h.b16 %v35
  %v263 = vunpack.c.l.b16 %v36
  %v264 = vunpack.c.l.b16 %v37
  %v265 = vunpack.c.h.b16 %v37
  %v266 = vunpack.c.l.b16 %v38
  %v267 = vunpack.c.h.b16 %v38
  %v268 = vunpack.c.l.b16 %v39
  %v269 = vunpack.c.h.b16 %v39
  %v270 = vunpack.c.l.b16 %v40
  %v271 = vunpack.c.l.b16 %v41
  %v272 = vunpack.c.h.b16 %v41
  %v273 = vunpack.c.l.b16 %v42
  %v274 = vunpack.c.h.b16 %v42
  %v275 = vunpack.c.l.b16 %v43
  %v276 = vunpack.c.h.b16 %v43
  %v277 = vunpack.c.l.b16 %v44
  %v278 = vunpack.c.l.b16 %v45
  %v279 = vunpack.c.h.b16 %v45
  %v280 = vunpack.c.l.b16 %v46
  %v281 = vunpack.c.h.b16 %v46
  %v282 = vunpack.c.l.b16 %v47
  %v283 = vunpack.c.h.b16 %v47
  %v284 = vunpack.c.l.b16 %v48
  %v285 = vpack.c.b16 %v236, %v229
  %v286 = vpack.c.b16 %v237, %v230
  %v287 = vpack.c.b16 %v238, %v231
  %v288 = vpack.c.b16 %v239, %v232
  %v289 = vpack.c.b16 %v240, %v233
  %v290 = vpack.c.b16 %v241, %v234
  %v291 = vpack.c.b16 %v242, %v235
  %v292 = vpack.c.b16 %v250, %v243
  %v293 = vpack.c.b16 %v251, %v244
  %v294 = vpack.c.b16 %v252, %v245
  %v295 = vpack.c.b16 %v253, %v246
  %v296 = vpack.c.b16 %v254, %v247
  %v297 = vpack.c.b16 %v255, %v248
  %v298 = vpack.c.b16 %v256, %v249
  %v299 = vpack.c.b16 %v264, %v257
  %v300 = vpack.c.b16 %v265, %v258
  %v301 = vpack.c.b16 %v266, %v259
  %v302 = vpack.c.b16 %v267, %v260
  %v303 = vpack.c.b16 %v268, %v261
  %v304 = vpack.c.b16 %v269, %v262
  %v305 = vpack.c.b16 %v270, %v263
  %v306 = vpack.c.b16 %v278, %v271
  %v307 = vpack.c.b16 %v279, %v272
  %v308 = vpack.c.b16 %v280, %v273
  %v309 = vpack.c.b16 %v281, %v274
  %v310 = vpack.c.b16 %v282, %v275
  %v311 = vpack.c.b16 %v283, %v276
  %v312 = vpack.c.b16 %v284, %v277
  %v437 = vunpack.c.l.b16 %v49
  %v438 = vunpack.c.l.b16 %v50
  %v439 = vunpack.c.l.b16 %v51
  %v440 = vunpack.c.l.b16 %v52
  %v441 = vunpack.c.l.b16 %v53
  %v442 = vunpack.c.l.b16 %v54
  %v443 = vunpack.c.l.b16 %v55
  %v444 = vunpack.c.l.b16 %v56
  %v445 = vunpack.c.l.b16 %v57
  %v446 = vunpack.c.l.b16 %v58
  %v447 = vunpack.c.l.b16 %v59
  %v448 = vunpack.c.l.b16 %v60
  %v449 = vunpack.c.l.b16 %v61
  %v450 = vunpack.c.l.b16 %v62
  %v451 = vunpack.c.l.b16 %v63
  %v452 = vunpack.c.l.b16 %v64
  %v453 = vunpack.c.l.b16 %v65
  %v454 = vunpack.c.l.b16 %v66
  %v455 = vunpack.c.l.b16 %v67
  %v456 = vunpack.c.l.b16 %v68
  %v457 = vunpack.c.l.b16 %v69
  %v458 = vunpack.c.l.b16 %v70
  %v459 = vunpack.c.l.b16 %v71
  %v460 = vunpack.c.l.b16 %v72
  %v461 = vunpack.c.l.b16 %v73
  %v462 = vunpack.c.l.b16 %v74
  %v463 = vunpack.c.l.b16 %v75
  %v464 = vunpack.c.l.b16 %v76
  %v465 = vunpack.c.l.b16 %v77
  %v466 = vunpack.c.l.b16 %v78
  %v467 = vunpack.c.l.b16 %v79
  %v468 = vunpack.c.l.b16 %v80
  %v469 = vunpack.c.l.b16 %v81
  %v470 = vunpack.c.l.b16 %v82
  %v471 = vunpack.c.l.b16 %v83
  %v472 = vunpack.c.l.b16 %v84
  %v473 = vunpack.c.l.b16 %v85
  %v474 = vunpack.c.l.b16 %v86
  %v475 = vunpack.c.l.b16 %v87
  %v476 = vunpack.c.l.b16 %v88
  %v477 = vunpack.c.l.b16 %v89
  %v478 = vunpack.c.l.b16 %v90
  %v479 = vunpack.c.l.b16 %v91
  %v480 = vunpack.c.l.b16 %v92
  %v481 = vunpack.c.l.b16 %v93
  %v482 = vunpack.c.l.b16 %v94
  %v483 = vunpack.c.l.b16 %v95
  %v484 = vunpack.c.l.b16 %v96
  %v485 = vunpack.c.l.b16 %v97
  %v486 = vunpack.c.l.b16 %v98
  %v487 = vunpack.c.l.b16 %v99
  %v488 = vunpack.c.l.b16 %v100
  %v489 = vunpack.c.l.b16 %v101
  %v490 = vunpack.c.l.b16 %v102
  %v491 = vunpack.c.l.b16 %v103
  %v492 = vunpack.c.l.b16 %v104
  %v493 = vunpack.c.l.b16 %v105
  %v494 = vunpack.c.l.b16 %v106
  %v495 = vunpack.c.l.b16 %v107
  %v496 = vunpack.c.l.b16 %v108
  %v497 = vunpack.c.l.b16 %v109
  %v498 = vunpack.c.l.b16 %v110
  %v499 = vunpack.c.l.b16 %v111
  %v500 = vunpack.c.l.b16 %v112
  %v501 = vunpack.c.l.b16 %v113
  %v502 = vunpack.c.l.b16 %v114
  %v503 = vunpack.c.l.b16 %v115
  %v504 = vunpack.c.l.b16 %v116
  %v505 = vunpack.c.l.b16 %v117
  %v506 = vunpack.c.l.b16 %v118
  %v507 = vunpack.c.l.b16 %v119
  %v508 = vunpack.c.l.b16 %v120
  %v509 = vunpack.c.l.b16 %v121
  %v510 = vunpack.c.l.b16 %v122
  %v511 = vunpack.c.l.b16 %v123
  %v512 = vunpack.c.l.b16 %v124
  %v513 = vunpack.c.l.b16 %v125
  %v514 = vunpack.c.l.b16 %v126
  %v515 = vunpack.c.l.b16 %v127
  %v516 = vunpack.c.l.b16 %v128
  %v517 = vunpack.c.l.b16 %v129
  %v518 = vunpack.c.l.b16 %v130
  %v519 = vunpack.c.l.b16 %v131
  %v520 = vunpack.c.l.b16 %v132
  %v521 = vunpack.c.l.b16 %v133
  %v522 = vunpack.c.l.b16 %v134
  %v523 = vunpack.c.l.b16 %v135
  %v524 = vunpack.c.l.b16 %v136
  %v525 = vunpack.c.l.b16 %v137
  %v526 = vunpack.c.l.b16 %v138
  %v527 = vunpack.c.l.b16 %v139
  %v528 = vunpack.c.l.b16 %v140
  %v529 = vunpack.c.l.b16 %v141
  %v530 = vunpack.c.l.b16 %v142
  %v531 = vunpack.c.l.b16 %v143
  %v532 = vunpack.c.l.b16 %v144
  %v533 = vunpack.c.l.b16 %v145
  %v534 = vunpack.c.l.b16 %v146
  %v535 = vunpack.c.l.b16 %v147
  %v536 = vunpack.c.l.b16 %v148
  %v537 = vpack.c.b16 %v438, %v437
  %v538 = vpack.c.b16 %v440, %v439
  %v539 = vpack.c.b16 %v442, %v441
  %v540 = vpack.c.b16 %v444, %v443
  %v541 = vpack.c.b16 %v446, %v445
  %v542 = vpack.c.b16 %v448, %v447
  %v543 = vpack.c.b16 %v450, %v449
  %v544 = vpack.c.b16 %v452, %v451
  %v545 = vpack.c.b16 %v454, %v453
  %v546 = vpack.c.b16 %v456, %v455
  %v547 = vpack.c.b16 %v458, %v457
  %v548 = vpack.c.b16 %v460, %v459
  %v549 = vpack.c.b16 %v462, %v461
  %v550 = vpack.c.b16 %v464, %v463
  %v551 = vpack.c.b16 %v466, %v465
  %v552 = vpack.c.b16 %v468, %v467
  %v553 = vpack.c.b16 %v470, %v469
  %v554 = vpack.c.b16 %v472, %v471
  %v555 = vpack.c.b16 %v474, %v473
  %v556 = vpack.c.b16 %v476, %v475
  %v557 = vpack.c.b16 %v478, %v477
  %v558 = vpack.c.b16 %v480, %v479
  %v559 = vpack.c.b16 %v482, %v481
  %v560 = vpack.c.b16 %v484, %v483
  %v561 = vpack.c.b16 %v486, %v485
  %v562 = vpack.c.b16 %v488, %v487
  %v563 = vpack.c.b16 %v490, %v489
  %v564 = vpack.c.b16 %v492, %v491
  %v565 = vpack.c.b16 %v494, %v493
  %v566 = vpack.c.b16 %v496, %v495
  %v567 = vpack.c.b16 %v498, %v497
  %v568 = vpack.c.b16 %v500, %v499
  %v569 = vpack.c.b16 %v502, %v501
  %v570 = vpack.c.b16 %v504, %v503
  %v571 = vpack.c.b16 %v506, %v505
  %v572 = vpack.c.b16 %v508, %v507
  %v573 = vpack.c.b16 %v510, %v509
  %v574 = vpack.c.b16 %v512, %v511
  %v575 = vpack.c.b16 %v514, %v513
  %v576 = vpack.c.b16 %v516, %v515
  %v577 = vpack.c.b16 %v518, %v517
  %v578 = vpack.c.b16 %v520, %v519
  %v579 = vpack.c.b16 %v522, %v521
  %v580 = vpack.c.b16 %v524, %v523
  %v581 = vpack.c.b16 %v526, %v525
  %v582 = vpack.c.b16 %v528, %v527
  %v583 = vpack.c.b16 %v530, %v529
  %v584 = vpack.c.b16 %v532, %v531
  %v585 = vpack.c.b16 %v534, %v533
  %v586 = vpack.c.b16 %v536, %v535
  %vm637 = vcmask 261120
  %v639 = vsel %vm637, %v291, 0
  %v642 = vsel %vm637, %v298, 0
  %v645 = vsel %vm637, %v305, 0
  %v648 = vsel %vm637, %v312, 0
  %650 = vmatprep.subr.bf16.mxu0 0
  %651 = vmatpush1.bf16.msra.mxu0 %v537
  %652 = vmatprep.subr.bf16.mxu0 0
  %653 = vmatpush1.bf16.msra.mxu0 %v538
  %654 = vmatprep.subr.bf16.mxu0 0
  %655 = vmatpush1.bf16.msra.mxu0 %v539
  %656 = vmatprep.subr.bf16.mxu0 0
  %657 = vmatpush1.bf16.msra.mxu0 %v540
  %658 = vmatprep.subr.bf16.mxu0 0
  %659 = vmatpush1.bf16.msra.mxu0 %v541
  %660 = vmatprep.subr.bf16.mxu0 0
  %661 = vmatpush1.bf16.msra.mxu0 %v542
  %662 = vmatprep.subr.bf16.mxu0 0
  %663 = vmatpush1.bf16.msra.mxu0 %v543
  %664 = vmatprep.subr.bf16.mxu0 0
  %665 = vmatpush1.bf16.msra.mxu0 %v544
  %666 = vmatprep.subr.bf16.mxu0 0
  %667 = vmatpush1.bf16.msra.mxu0 %v545
  %668 = vmatprep.subr.bf16.mxu0 0
  %669 = vmatpush1.bf16.msra.mxu0 %v546
  %670 = vmatprep.subr.bf16.mxu0 0
  %671 = vmatpush1.bf16.msra.mxu0 %v547
  %672 = vmatprep.subr.bf16.mxu0 0
  %673 = vmatpush1.bf16.msra.mxu0 %v548
  %674 = vmatprep.subr.bf16.mxu0 0
  %675 = vmatpush1.bf16.msra.mxu0 %v549
  %676 = vmatprep.subr.bf16.mxu0 0
  %677 = vmatpush1.bf16.msra.mxu0 %v550
  %678 = vmatprep.subr.bf16.mxu0 0
  %679 = vmatpush1.bf16.msra.mxu0 %v551
  %680 = vmatprep.subr.bf16.mxu0 0
  %681 = vmatpush1.bf16.msra.mxu0 %v552
  %682 = vmatprep.mubr.bf16.mxu0 %v286
  %683 = vmatmul.mubr.bf16.gmra.mrb[0].mxu0 %v285
  %v684 = vpop.f32.mrb[0].mxu0
  %v685 = vadd.f32 %v160, %v684
  %v686 = vpop.f32.mrb[0].mxu0
  %v687 = vpop.f32.mrb[0].mxu0
  %v688 = vadd.f32 %v165, %v687
  %v689 = vpop.f32.mrb[0].mxu0
  %690 = vmatprep.mubr.bf16.mxu0 %v293
  %691 = vmatmul.mubr.bf16.gmra.mrb[0].mxu0 %v292
  %v692 = vpop.f32.mrb[0].mxu0
  %v693 = vadd.f32 %v170, %v692
  %v694 = vpop.f32.mrb[0].mxu0
  %v695 = vpop.f32.mrb[0].mxu0
  %v696 = vadd.f32 %v175, %v695
  %v697 = vpop.f32.mrb[0].mxu0
  %698 = vmatprep.mubr.bf16.mxu0 %v300
  %699 = vmatmul.mubr.bf16.gmra.mrb[0].mxu0 %v299
  %v700 = vpop.f32.mrb[0].mxu0
  %v701 = vadd.f32 %v180, %v700
  %v702 = vpop.f32.mrb[0].mxu0
  %v703 = vpop.f32.mrb[0].mxu0
  %v704 = vadd.f32 %v185, %v703
  %v705 = vpop.f32.mrb[0].mxu0
  %706 = vmatprep.mubr.bf16.mxu0 %v307
  %707 = vmatmul.mubr.bf16.gmra.mrb[0].mxu0 %v306
  %v708 = vpop.f32.mrb[0].mxu0
  %v709 = vadd.f32 %v190, %v708
  %v710 = vpop.f32.mrb[0].mxu0
  %v711 = vpop.f32.mrb[0].mxu0
  %v712 = vadd.f32 %v195, %v711
  %v713 = vpop.f32.mrb[0].mxu0
  %714 = vdwg.mxu0
  %715 = vmatprep.subr.bf16.mxu0 0
  %716 = vmatpush1.bf16.msra.mxu0 %v553
  %717 = vmatprep.subr.bf16.mxu0 0
  %718 = vmatpush1.bf16.msra.mxu0 %v554
  %719 = vmatprep.subr.bf16.mxu0 0
  %720 = vmatpush1.bf16.msra.mxu0 %v555
  %721 = vmatprep.subr.bf16.mxu0 0
  %722 = vmatpush1.bf16.msra.mxu0 %v556
  %723 = vmatprep.subr.bf16.mxu0 0
  %724 = vmatpush1.bf16.msra.mxu0 %v557
  %725 = vmatprep.subr.bf16.mxu0 0
  %726 = vmatpush1.bf16.msra.mxu0 %v558
  %727 = vmatprep.subr.bf16.mxu0 0
  %728 = vmatpush1.bf16.msra.mxu0 %v559
  %729 = vmatprep.subr.bf16.mxu0 0
  %730 = vmatpush1.bf16.msra.mxu0 %v560
  %731 = vmatprep.subr.bf16.mxu0 0
  %732 = vmatpush1.bf16.msra.mxu0 %v561
  %733 = vmatprep.subr.bf16.mxu0 0
  %734 = vmatpush1.bf16.msra.mxu0 %v562
  %735 = vmatprep.subr.bf16.mxu0 0
  %736 = vmatpush1.bf16.msra.mxu0 %v563
  %737 = vmatprep.subr.bf16.mxu0 0
  %738 = vmatpush1.bf16.msra.mxu0 %v564
  %739 = vmatprep.subr.bf16.mxu0 0
  %740 = vmatpush1.bf16.msra.mxu0 %v565
  %741 = vmatprep.subr.bf16.mxu0 0
  %742 = vmatpush1.bf16.msra.mxu0 %v566
  %743 = vmatprep.subr.bf16.mxu0 0
  %744 = vmatpush1.bf16.msra.mxu0 %v567
  %745 = vmatprep.subr.bf16.mxu0 0
  %746 = vmatpush1.bf16.msra.mxu0 %v568
  %747 = vmatprep.mubr.bf16.mxu0 %v288
  %748 = vmatmul.mubr.bf16.gmra.mrb[0].mxu0 %v287
  %v749 = vpop.f32.mrb[0].mxu0
  %v750 = vadd.f32 %v685, %v749
  %v751 = vpop.f32.mrb[0].mxu0
  %v752 = vpop.f32.mrb[0].mxu0
  %v753 = vadd.f32 %v688, %v752
  %v754 = vpop.f32.mrb[0].mxu0
  %755 = vmatprep.mubr.bf16.mxu0 %v295
  %756 = vmatmul.mubr.bf16.gmra.mrb[0].mxu0 %v294
  %v757 = vpop.f32.mrb[0].mxu0
  %v758 = vadd.f32 %v693, %v757
  %v759 = vpop.f32.mrb[0].mxu0
  %v760 = vpop.f32.mrb[0].mxu0
  %v761 = vadd.f32 %v696, %v760
  %v762 = vpop.f32.mrb[0].mxu0
  %763 = vmatprep.mubr.bf16.mxu0 %v302
  %764 = vmatmul.mubr.bf16.gmra.mrb[0].mxu0 %v301
  %v765 = vpop.f32.mrb[0].mxu0
  %v766 = vadd.f32 %v701, %v765
  %v767 = vpop.f32.mrb[0].mxu0
  %v768 = vpop.f32.mrb[0].mxu0
  %v769 = vadd.f32 %v704, %v768
  %v770 = vpop.f32.mrb[0].mxu0
  %771 = vmatprep.mubr.bf16.mxu0 %v309
  %772 = vmatmul.mubr.bf16.gmra.mrb[0].mxu0 %v308
  %v773 = vpop.f32.mrb[0].mxu0
  %v774 = vadd.f32 %v709, %v773
  %v775 = vpop.f32.mrb[0].mxu0
  %v776 = vpop.f32.mrb[0].mxu0
  %v777 = vadd.f32 %v712, %v776
  %v778 = vpop.f32.mrb[0].mxu0
  %779 = vdwg.mxu0
  %780 = vmatprep.subr.bf16.mxu0 0
  %781 = vmatpush1.bf16.msra.mxu0 %v569
  %782 = vmatprep.subr.bf16.mxu0 0
  %783 = vmatpush1.bf16.msra.mxu0 %v570
  %784 = vmatprep.subr.bf16.mxu0 0
  %785 = vmatpush1.bf16.msra.mxu0 %v571
  %786 = vmatprep.subr.bf16.mxu0 0
  %787 = vmatpush1.bf16.msra.mxu0 %v572
  %788 = vmatprep.subr.bf16.mxu0 0
  %789 = vmatpush1.bf16.msra.mxu0 %v573
  %790 = vmatprep.subr.bf16.mxu0 0
  %791 = vmatpush1.bf16.msra.mxu0 %v574
  %792 = vmatprep.subr.bf16.mxu0 0
  %793 = vmatpush1.bf16.msra.mxu0 %v575
  %794 = vmatprep.subr.bf16.mxu0 0
  %795 = vmatpush1.bf16.msra.mxu0 %v576
  %796 = vmatprep.subr.bf16.mxu0 0
  %797 = vmatpush1.bf16.msra.mxu0 %v577
  %798 = vmatprep.subr.bf16.mxu0 0
  %799 = vmatpush1.bf16.msra.mxu0 %v578
  %800 = vmatprep.subr.bf16.mxu0 0
  %801 = vmatpush1.bf16.msra.mxu0 %v579
  %802 = vmatprep.subr.bf16.mxu0 0
  %803 = vmatpush1.bf16.msra.mxu0 %v580
  %804 = vmatprep.subr.bf16.mxu0 0
  %805 = vmatpush1.bf16.msra.mxu0 %v581
  %806 = vmatprep.subr.bf16.mxu0 0
  %807 = vmatpush1.bf16.msra.mxu0 %v582
  %808 = vmatprep.subr.bf16.mxu0 0
  %809 = vmatpush1.bf16.msra.mxu0 %v583
  %810 = vmatprep.subr.bf16.mxu0 0
  %811 = vmatpush1.bf16.msra.mxu0 %v584
  %812 = vmatprep.mubr.bf16.mxu0 %v290
  %813 = vmatmul.mubr.bf16.gmra.mrb[0].mxu0 %v289
  %v814 = vpop.f32.mrb[0].mxu0
  %v815 = vadd.f32 %v750, %v814
  %v816 = vpop.f32.mrb[0].mxu0
  %v817 = vpop.f32.mrb[0].mxu0
  %v818 = vadd.f32 %v753, %v817
  %v819 = vpop.f32.mrb[0].mxu0
  %820 = vmatprep.mubr.bf16.mxu0 %v297
  %821 = vmatmul.mubr.bf16.gmra.mrb[0].mxu0 %v296
  %v822 = vpop.f32.mrb[0].mxu0
  %v823 = vadd.f32 %v758, %v822
  %v824 = vpop.f32.mrb[0].mxu0
  %v825 = vpop.f32.mrb[0].mxu0
  %v826 = vadd.f32 %v761, %v825
  %v827 = vpop.f32.mrb[0].mxu0
  %828 = vmatprep.mubr.bf16.mxu0 %v304
  %829 = vmatmul.mubr.bf16.gmra.mrb[0].mxu0 %v303
  %v830 = vpop.f32.mrb[0].mxu0
  %v831 = vadd.f32 %v766, %v830
  %v832 = vpop.f32.mrb[0].mxu0
  %v833 = vpop.f32.mrb[0].mxu0
  %v834 = vadd.f32 %v769, %v833
  %v835 = vpop.f32.mrb[0].mxu0
  %836 = vmatprep.mubr.bf16.mxu0 %v311
  %837 = vmatmul.mubr.bf16.gmra.mrb[0].mxu0 %v310
  %v838 = vpop.f32.mrb[0].mxu0
  %v839 = vadd.f32 %v774, %v838
  %v840 = vpop.f32.mrb[0].mxu0
  %v841 = vpop.f32.mrb[0].mxu0
  %v842 = vadd.f32 %v777, %v841
  %v843 = vpop.f32.mrb[0].mxu0
  %844 = vdwg.mxu0
  %845 = vmatprep.subr.bf16.mxu0 0
  %846 = vmatpush1.bf16.msra.mxu0 %v585
  %847 = vmatprep.subr.bf16.mxu0 0
  %848 = vmatpush1.bf16.msra.mxu0 %v586
  %849 = vmatprep.subr.bf16.mxu0 0
  %850 = vmatpush1.bf16.msra.mxu0 0
  %851 = vmatprep.subr.bf16.mxu0 0
  %852 = vmatpush1.bf16.msra.mxu0 0
  %853 = vmatprep.subr.bf16.mxu0 0
  %854 = vmatpush1.bf16.msra.mxu0 0
  %855 = vmatprep.subr.bf16.mxu0 0
  %856 = vmatpush1.bf16.msra.mxu0 0
  %857 = vmatprep.subr.bf16.mxu0 0
  %858 = vmatpush1.bf16.msra.mxu0 0
  %859 = vmatprep.subr.bf16.mxu0 0
  %860 = vmatpush1.bf16.msra.mxu0 0
  %861 = vmatprep.subr.bf16.mxu0 0
  %862 = vmatpush1.bf16.msra.mxu0 0
  %863 = vmatprep.subr.bf16.mxu0 0
  %864 = vmatpush1.bf16.msra.mxu0 0
  %865 = vmatprep.subr.bf16.mxu0 0
  %866 = vmatpush1.bf16.msra.mxu0 0
  %867 = vmatprep.subr.bf16.mxu0 0
  %868 = vmatpush1.bf16.msra.mxu0 0
  %869 = vmatprep.subr.bf16.mxu0 0
  %870 = vmatpush1.bf16.msra.mxu0 0
  %871 = vmatprep.subr.bf16.mxu0 0
  %872 = vmatpush1.bf16.msra.mxu0 0
  %873 = vmatprep.subr.bf16.mxu0 0
  %874 = vmatpush1.bf16.msra.mxu0 0
  %875 = vmatprep.subr.bf16.mxu0 0
  %876 = vmatpush1.bf16.msra.mxu0 0
  %877 = vmatprep.mubr.bf16.mxu0 0
  %878 = vmatmul.mubr.bf16.gmra.mrb[0].mxu0 %v639
  %v879 = vpop.f32.mrb[0].mxu0
  %v880 = vadd.f32 %v815, %v879
  %v881 = vpop.f32.mrb[0].mxu0
  %v882 = vpop.f32.mrb[0].mxu0
  %v883 = vadd.f32 %v818, %v882
  %v884 = vpop.f32.mrb[0].mxu0
  %885 = vmatprep.mubr.bf16.mxu0 0
  %886 = vmatmul.mubr.bf16.gmra.mrb[0].mxu0 %v642
  %v887 = vpop.f32.mrb[0].mxu0
  %v888 = vadd.f32 %v823, %v887
  %v889 = vpop.f32.mrb[0].mxu0
  %v890 = vpop.f32.mrb[0].mxu0
  %v891 = vadd.f32 %v826, %v890
  %v892 = vpop.f32.mrb[0].mxu0
  %893 = vmatprep.mubr.bf16.mxu0 0
  %894 = vmatmul.mubr.bf16.gmra.mrb[0].mxu0 %v645
  %v895 = vpop.f32.mrb[0].mxu0
  %v896 = vadd.f32 %v831, %v895
  %v897 = vpop.f32.mrb[0].mxu0
  %v898 = vpop.f32.mrb[0].mxu0
  %v899 = vadd.f32 %v834, %v898
  %v900 = vpop.f32.mrb[0].mxu0
  %901 = vmatprep.mubr.bf16.mxu0 0
  %902 = vmatmul.mubr.bf16.gmra.mrb[0].mxu0 %v648
  %v903 = vpop.f32.mrb[0].mxu0
  %v904 = vadd.f32 %v839, %v903
  %v905 = vpop.f32.mrb[0].mxu0
  %v906 = vpop.f32.mrb[0].mxu0
  %v907 = vadd.f32 %v842, %v906
  %v908 = vpop.f32.mrb[0].mxu0
  %909 = vdwg.mxu0
  %910 = vst [vmem:[%s3] sm:$0xff] %v880
  %911 = vst [vmem:[%s3 + $0x8] sm:$0xff] %v883
  %912 = vst [vmem:[%s3 + $0x10] sm:$0xff] %v888
  %913 = vst [vmem:[%s3 + $0x18] sm:$0xff] %v891
  %914 = vst [vmem:[%s3 + $0x20] sm:$0xff] %v896
  %915 = vst [vmem:[%s3 + $0x28] sm:$0xff] %v899
  %916 = vst [vmem:[%s3 + $0x30] sm:$0xff] %v904
  %917 = vst [vmem:[%s3 + $0x38] sm:$0xff] %v907
  %918 = vadd.xlane.f32.xlu0 %v880
  %v919 = vpop.xlane.xlu0 %918
  %920 = vadd.xlane.f32.xlu0 %v883
  %v921 = vpop.xlane.xlu0 %920
  %922 = vadd.xlane.f32.xlu0 %v888
  %v923 = vpop.xlane.xlu0 %922
  %924 = vadd.xlane.f32.xlu0 %v891
  %v925 = vpop.xlane.xlu0 %924
  %926 = vadd.xlane.f32.xlu0 %v896
  %v927 = vpop.xlane.xlu0 %926
  %928 = vadd.xlane.f32.xlu0 %v899
  %v929 = vpop.xlane.xlu0 %928
  %930 = vadd.xlane.f32.xlu0 %v904
  %v931 = vpop.xlane.xlu0 %930
  %932 = vadd.xlane.f32.xlu0 %v907
  %v933 = vpop.xlane.xlu0 %932
  %v934 = vmul.f32 %v880, %v880
  %v935 = vmul.f32 %v883, %v883
  %v936 = vmul.f32 %v888, %v888
  %v937 = vmul.f32 %v891, %v891
  %v938 = vmul.f32 %v896, %v896
  %v939 = vmul.f32 %v899, %v899
  %v940 = vmul.f32 %v904, %v904
  %v941 = vmul.f32 %v907, %v907
  %942 = vadd.xlane.f32.xlu0 %v934
  %v943 = vpop.xlane.xlu0 %942
  %944 = vadd.xlane.f32.xlu0 %v935
  %v945 = vpop.xlane.xlu0 %944
  %946 = vadd.xlane.f32.xlu0 %v936
  %v947 = vpop.xlane.xlu0 %946
  %948 = vadd.xlane.f32.xlu0 %v937
  %v949 = vpop.xlane.xlu0 %948
  %950 = vadd.xlane.f32.xlu0 %v938
  %v951 = vpop.xlane.xlu0 %950
  %952 = vadd.xlane.f32.xlu0 %v939
  %v953 = vpop.xlane.xlu0 %952
  %954 = vadd.xlane.f32.xlu0 %v940
  %v955 = vpop.xlane.xlu0 %954
  %956 = vadd.xlane.f32.xlu0 %v941
  %v957 = vpop.xlane.xlu0 %956
  %v958 = vlaneseq
  %v959 = vand.u32 %v958, 127
  %vm960 = vcmp.eq.s32.totalorder %v959, 0
  %vm961 = vcmp.eq.s32.totalorder %v959, 1
  %v962 = vsel %vm961, %v943, 0.0
  %v963 = vsel %vm961, %v945, 0.0
  %v964 = vsel %vm961, %v947, 0.0
  %v965 = vsel %vm961, %v949, 0.0
  %v966 = vsel %vm961, %v951, 0.0
  %v967 = vsel %vm961, %v953, 0.0
  %v968 = vsel %vm961, %v955, 0.0
  %v969 = vsel %vm961, %v957, 0.0
  %v970 = vsel %vm960, %v919, %v962
  %v971 = vsel %vm960, %v921, %v963
  %v972 = vsel %vm960, %v923, %v964
  %v973 = vsel %vm960, %v925, %v965
  %v974 = vsel %vm960, %v927, %v966
  %v975 = vsel %vm960, %v929, %v967
  %v976 = vsel %vm960, %v931, %v968
  %v977 = vsel %vm960, %v933, %v969
  %978 = vst [vmem:[%s4] sm:$0xff] %v970
  %979 = vst [vmem:[%s4 + $0x8] sm:$0xff] %v971
  %980 = vst [vmem:[%s4 + $0x10] sm:$0xff] %v972
  %981 = vst [vmem:[%s4 + $0x18] sm:$0xff] %v973
  %982 = vst [vmem:[%s4 + $0x20] sm:$0xff] %v974
  %983 = vst [vmem:[%s4 + $0x28] sm:$0xff] %v975
  %984 = vst [vmem:[%s4 + $0x30] sm:$0xff] %v976
  %985 = vst [vmem:[%s4 + $0x38] sm:$0xff] %v977
  // Predicated region
  $region14: #{discriminator_forward.11} parent=0 // pred_check
    _
  $region15: #{discriminator_forward.11} parent=0 // pred_check_branch
    %987 = sbr.rel (0) target = $region17
  $region16: #{discriminator_forward.11} parent=0 // pred_region
    _
  $region17: #{discriminator_forward.11} parent=0 // pred_fallthru
    _
  // Predicated region
  $region18: #{discriminator_forward.11} parent=0 // pred_check
    _
  $region19: #{discriminator_forward.11} parent=0 // pred_check_branch
    %989 = sbr.rel (0) target = $region21
  $region20: #{discriminator_forward.11} parent=0 // pred_region
    _
  $region21: #{discriminator_forward.11} parent=0 // pred_fallthru
    _
  // Predicated region
  $region22: #{discriminator_forward.11} parent=0 // pred_check
    _
  $region23: #{discriminator_forward.11} parent=0 // pred_check_branch
    %991 = sbr.rel (0) target = $region25
  $region24: #{discriminator_forward.11} parent=0 // pred_region
    _
  $region25: #{discriminator_forward.11} parent=0 // pred_fallthru
    _
  // Predicated region
  $region26: #{discriminator_forward.11} parent=0 // pred_check
    _
  $region27: #{discriminator_forward.11} parent=0 // pred_check_branch
    %993 = sbr.rel (0) target = $region29
  $region28: #{discriminator_forward.11} parent=0 // pred_region
    _
  $region29: #{discriminator_forward.11} parent=0 // pred_fallthru
    _

// kernel: discriminator_forward.14
$region0: #{discriminator_forward.14}
  #allocation0 [shape = 'u32[]', space=smem, size = 0x4, offset = 0x4, fixed_abs, tag = 'smem constant byte address 0x4 - core index']
  #allocation1 [shape = 'u32[144,128]{1,0:T(1,128)}', space=vmem, size = 0x12000, scoped, tag = 'internal scratch']
  %s0 = inlined_call_operand.vmem [shape: f32[128,32], index: 0, kind: input, shape index: {}]
  %s1 = inlined_call_operand.vmem [shape: f32[128,1], index: 1, kind: input, shape index: {}]
  %s2 = inlined_call_operand.vmem [shape: f32[128,1], index: 2, kind: input, shape index: {}]
  %s3 = inlined_call_operand.vmem [shape: bf16[128,32], index: 3, kind: output, shape index: {}]
  %s4 = sld [smem:[#allocation0]]
  $region22: #{discriminator_forward.14} parent=0
    _
  %s6 = ssub.s32 1, %s4
  %s7 = scalar_select 0, %s6, %s4
  // Predicated region
  $region2: #{discriminator_forward.14} parent=0 // pred_check
    _
  $region3: #{discriminator_forward.14} parent=0 // pred_check_branch
    %9 = sbr.rel (0) target = $region5
  $region4: #{discriminator_forward.14} parent=0 // pred_region
    _
  $region5: #{discriminator_forward.14} parent=0 // pred_fallthru
    _
  // Predicated region
  $region6: #{discriminator_forward.14} parent=0 // pred_check
    _
  $region7: #{discriminator_forward.14} parent=0 // pred_check_branch
    %11 = sbr.rel (0) target = $region9
  $region8: #{discriminator_forward.14} parent=0 // pred_region
    _
  $region9: #{discriminator_forward.14} parent=0 // pred_fallthru
    _
  // Predicated region
  $region10: #{discriminator_forward.14} parent=0 // pred_check
    _
  $region11: #{discriminator_forward.14} parent=0 // pred_check_branch
    %13 = sbr.rel (0) target = $region13
  $region12: #{discriminator_forward.14} parent=0 // pred_region
    _
  $region13: #{discriminator_forward.14} parent=0 // pred_fallthru
    _
  %v14 = vld [vmem:[%s0] sm:$0xff]
  %v15 = vld [vmem:[%s0 + $0x8] sm:$0xff]
  %v16 = vld [vmem:[%s0 + $0x10] sm:$0xff]
  %v17 = vld [vmem:[%s0 + $0x18] sm:$0xff]
  %v18 = vld [vmem:[%s0 + $0x20] sm:$0xff]
  %v19 = vld [vmem:[%s0 + $0x28] sm:$0xff]
  %v20 = vld [vmem:[%s0 + $0x30] sm:$0xff]
  %v21 = vld [vmem:[%s0 + $0x38] sm:$0xff]
  %v22 = vld [vmem:[%s0 + $0x40] sm:$0xff]
  %v23 = vld [vmem:[%s0 + $0x48] sm:$0xff]
  %v24 = vld [vmem:[%s0 + $0x50] sm:$0xff]
  %v25 = vld [vmem:[%s0 + $0x58] sm:$0xff]
  %v26 = vld [vmem:[%s0 + $0x60] sm:$0xff]
  %v27 = vld [vmem:[%s0 + $0x68] sm:$0xff]
  %v28 = vld [vmem:[%s0 + $0x70] sm:$0xff]
  %v29 = vld [vmem:[%s0 + $0x78] sm:$0xff]
  %v30 = vld [vmem:[%s1] sm:$0xff]
  %v31 = vld [vmem:[%s1 + $0x8] sm:$0xff]
  %v32 = vld [vmem:[%s1 + $0x10] sm:$0xff]
  %v33 = vld [vmem:[%s1 + $0x18] sm:$0xff]
  %v34 = vld [vmem:[%s1 + $0x20] sm:$0xff]
  %v35 = vld [vmem:[%s1 + $0x28] sm:$0xff]
  %v36 = vld [vmem:[%s1 + $0x30] sm:$0xff]
  %v37 = vld [vmem:[%s1 + $0x38] sm:$0xff]
  %v38 = vld [vmem:[%s1 + $0x40] sm:$0xff]
  %v39 = vld [vmem:[%s1 + $0x48] sm:$0xff]
  %v40 = vld [vmem:[%s1 + $0x50] sm:$0xff]
  %v41 = vld [vmem:[%s1 + $0x58] sm:$0xff]
  %v42 = vld [vmem:[%s1 + $0x60] sm:$0xff]
  %v43 = vld [vmem:[%s1 + $0x68] sm:$0xff]
  %v44 = vld [vmem:[%s1 + $0x70] sm:$0xff]
  %v45 = vld [vmem:[%s1 + $0x78] sm:$0xff]
  %47 = vset.pattern.permute.xlu0 0
  %48 = vperm.xlu0 %47, %v30
  %v49 = vpop.permute.xlu0 %48
  %52 = vset.pattern.permute.xlu0 0
  %53 = vperm.xlu0 %52, %v31
  %v54 = vpop.permute.xlu0 %53
  %57 = vset.pattern.permute.xlu0 0
  %58 = vperm.xlu0 %57, %v32
  %v59 = vpop.permute.xlu0 %58
  %62 = vset.pattern.permute.xlu0 0
  %63 = vperm.xlu0 %62, %v33
  %v64 = vpop.permute.xlu0 %63
  %67 = vset.pattern.permute.xlu0 0
  %68 = vperm.xlu0 %67, %v34
  %v69 = vpop.permute.xlu0 %68
  %72 = vset.pattern.permute.xlu0 0
  %73 = vperm.xlu0 %72, %v35
  %v74 = vpop.permute.xlu0 %73
  %77 = vset.pattern.permute.xlu0 0
  %78 = vperm.xlu0 %77, %v36
  %v79 = vpop.permute.xlu0 %78
  %82 = vset.pattern.permute.xlu0 0
  %83 = vperm.xlu0 %82, %v37
  %v84 = vpop.permute.xlu0 %83
  %87 = vset.pattern.permute.xlu0 0
  %88 = vperm.xlu0 %87, %v38
  %v89 = vpop.permute.xlu0 %88
  %92 = vset.pattern.permute.xlu0 0
  %93 = vperm.xlu0 %92, %v39
  %v94 = vpop.permute.xlu0 %93
  %97 = vset.pattern.permute.xlu0 0
  %98 = vperm.xlu0 %97, %v40
  %v99 = vpop.permute.xlu0 %98
  %102 = vset.pattern.permute.xlu0 0
  %103 = vperm.xlu0 %102, %v41
  %v104 = vpop.permute.xlu0 %103
  %107 = vset.pattern.permute.xlu0 0
  %108 = vperm.xlu0 %107, %v42
  %v109 = vpop.permute.xlu0 %108
  %112 = vset.pattern.permute.xlu0 0
  %113 = vperm.xlu0 %112, %v43
  %v114 = vpop.permute.xlu0 %113
  %117 = vset.pattern.permute.xlu0 0
  %118 = vperm.xlu0 %117, %v44
  %v119 = vpop.permute.xlu0 %118
  %122 = vset.pattern.permute.xlu0 0
  %123 = vperm.xlu0 %122, %v45
  %v124 = vpop.permute.xlu0 %123
  %v126 = vmul.f32 %v14, %v49
  %v127 = vmul.f32 %v15, %v54
  %v128 = vmul.f32 %v16, %v59
  %v129 = vmul.f32 %v17, %v64
  %v130 = vmul.f32 %v18, %v69
  %v131 = vmul.f32 %v19, %v74
  %v132 = vmul.f32 %v20, %v79
  %v133 = vmul.f32 %v21, %v84
  %v134 = vmul.f32 %v22, %v89
  %v135 = vmul.f32 %v23, %v94
  %v136 = vmul.f32 %v24, %v99
  %v137 = vmul.f32 %v25, %v104
  %v138 = vmul.f32 %v26, %v109
  %v139 = vmul.f32 %v27, %v114
  %v140 = vmul.f32 %v28, %v119
  %v141 = vmul.f32 %v29, %v124
  %v142 = vld [vmem:[%s2] sm:$0xff]
  %v143 = vld [vmem:[%s2 + $0x8] sm:$0xff]
  %v144 = vld [vmem:[%s2 + $0x10] sm:$0xff]
  %v145 = vld [vmem:[%s2 + $0x18] sm:$0xff]
  %v146 = vld [vmem:[%s2 + $0x20] sm:$0xff]
  %v147 = vld [vmem:[%s2 + $0x28] sm:$0xff]
  %v148 = vld [vmem:[%s2 + $0x30] sm:$0xff]
  %v149 = vld [vmem:[%s2 + $0x38] sm:$0xff]
  %v150 = vld [vmem:[%s2 + $0x40] sm:$0xff]
  %v151 = vld [vmem:[%s2 + $0x48] sm:$0xff]
  %v152 = vld [vmem:[%s2 + $0x50] sm:$0xff]
  %v153 = vld [vmem:[%s2 + $0x58] sm:$0xff]
  %v154 = vld [vmem:[%s2 + $0x60] sm:$0xff]
  %v155 = vld [vmem:[%s2 + $0x68] sm:$0xff]
  %v156 = vld [vmem:[%s2 + $0x70] sm:$0xff]
  %v157 = vld [vmem:[%s2 + $0x78] sm:$0xff]
  %159 = vset.pattern.permute.xlu0 0
  %160 = vperm.xlu0 %159, %v142
  %v161 = vpop.permute.xlu0 %160
  %164 = vset.pattern.permute.xlu0 0
  %165 = vperm.xlu0 %164, %v143
  %v166 = vpop.permute.xlu0 %165
  %169 = vset.pattern.permute.xlu0 0
  %170 = vperm.xlu0 %169, %v144
  %v171 = vpop.permute.xlu0 %170
  %174 = vset.pattern.permute.xlu0 0
  %175 = vperm.xlu0 %174, %v145
  %v176 = vpop.permute.xlu0 %175
  %179 = vset.pattern.permute.xlu0 0
  %180 = vperm.xlu0 %179, %v146
  %v181 = vpop.permute.xlu0 %180
  %184 = vset.pattern.permute.xlu0 0
  %185 = vperm.xlu0 %184, %v147
  %v186 = vpop.permute.xlu0 %185
  %189 = vset.pattern.permute.xlu0 0
  %190 = vperm.xlu0 %189, %v148
  %v191 = vpop.permute.xlu0 %190
  %194 = vset.pattern.permute.xlu0 0
  %195 = vperm.xlu0 %194, %v149
  %v196 = vpop.permute.xlu0 %195
  %199 = vset.pattern.permute.xlu0 0
  %200 = vperm.xlu0 %199, %v150
  %v201 = vpop.permute.xlu0 %200
  %204 = vset.pattern.permute.xlu0 0
  %205 = vperm.xlu0 %204, %v151
  %v206 = vpop.permute.xlu0 %205
  %209 = vset.pattern.permute.xlu0 0
  %210 = vperm.xlu0 %209, %v152
  %v211 = vpop.permute.xlu0 %210
  %214 = vset.pattern.permute.xlu0 0
  %215 = vperm.xlu0 %214, %v153
  %v216 = vpop.permute.xlu0 %215
  %219 = vset.pattern.permute.xlu0 0
  %220 = vperm.xlu0 %219, %v154
  %v221 = vpop.permute.xlu0 %220
  %224 = vset.pattern.permute.xlu0 0
  %225 = vperm.xlu0 %224, %v155
  %v226 = vpop.permute.xlu0 %225
  %229 = vset.pattern.permute.xlu0 0
  %230 = vperm.xlu0 %229, %v156
  %v231 = vpop.permute.xlu0 %230
  %234 = vset.pattern.permute.xlu0 0
  %235 = vperm.xlu0 %234, %v157
  %v236 = vpop.permute.xlu0 %235
  %v238 = vadd.f32 %v126, %v161
  %v239 = vadd.f32 %v127, %v166
  %v240 = vadd.f32 %v128, %v171
  %v241 = vadd.f32 %v129, %v176
  %v242 = vadd.f32 %v130, %v181
  %v243 = vadd.f32 %v131, %v186
  %v244 = vadd.f32 %v132, %v191
  %v245 = vadd.f32 %v133, %v196
  %v246 = vadd.f32 %v134, %v201
  %v247 = vadd.f32 %v135, %v206
  %v248 = vadd.f32 %v136, %v211
  %v249 = vadd.f32 %v137, %v216
  %v250 = vadd.f32 %v138, %v221
  %v251 = vadd.f32 %v139, %v226
  %v252 = vadd.f32 %v140, %v231
  %v253 = vadd.f32 %v141, %v236
  %v254 = vmul.f32 %v238, 0.2
  %v255 = vmul.f32 %v239, 0.2
  %v256 = vmul.f32 %v240, 0.2
  %v257 = vmul.f32 %v241, 0.2
  %v258 = vmul.f32 %v242, 0.2
  %v259 = vmul.f32 %v243, 0.2
  %v260 = vmul.f32 %v244, 0.2
  %v261 = vmul.f32 %v245, 0.2
  %v262 = vmul.f32 %v246, 0.2
  %v263 = vmul.f32 %v247, 0.2
  %v264 = vmul.f32 %v248, 0.2
  %v265 = vmul.f32 %v249, 0.2
  %v266 = vmul.f32 %v250, 0.2
  %v267 = vmul.f32 %v251, 0.2
  %v268 = vmul.f32 %v252, 0.2
  %v269 = vmul.f32 %v253, 0.2
  %v270 = vmax.f32 %v238, %v254
  %v271 = vmax.f32 %v239, %v255
  %v272 = vmax.f32 %v240, %v256
  %v273 = vmax.f32 %v241, %v257
  %v274 = vmax.f32 %v242, %v258
  %v275 = vmax.f32 %v243, %v259
  %v276 = vmax.f32 %v244, %v260
  %v277 = vmax.f32 %v245, %v261
  %v278 = vmax.f32 %v246, %v262
  %v279 = vmax.f32 %v247, %v263
  %v280 = vmax.f32 %v248, %v264
  %v281 = vmax.f32 %v249, %v265
  %v282 = vmax.f32 %v250, %v266
  %v283 = vmax.f32 %v251, %v267
  %v284 = vmax.f32 %v252, %v268
  %v285 = vmax.f32 %v253, %v269
  %v286 = vpack.c.bf16 %v271, %v270
  %v287 = vpack.c.bf16 %v273, %v272
  %v288 = vpack.c.bf16 %v275, %v274
  %v289 = vpack.c.bf16 %v277, %v276
  %v290 = vpack.c.bf16 %v279, %v278
  %v291 = vpack.c.bf16 %v281, %v280
  %v292 = vpack.c.bf16 %v283, %v282
  %v293 = vpack.c.bf16 %v285, %v284
  %v302 = vunpack.c.l.b16 %v286
  %v303 = vunpack.c.h.b16 %v286
  %v304 = vunpack.c.l.b16 %v287
  %v305 = vunpack.c.h.b16 %v287
  %v306 = vunpack.c.l.b16 %v288
  %v307 = vunpack.c.h.b16 %v288
  %v308 = vunpack.c.l.b16 %v289
  %v309 = vunpack.c.h.b16 %v289
  %v310 = vunpack.c.l.b16 %v290
  %v311 = vunpack.c.h.b16 %v290
  %v312 = vunpack.c.l.b16 %v291
  %v313 = vunpack.c.h.b16 %v291
  %v314 = vunpack.c.l.b16 %v292
  %v315 = vunpack.c.h.b16 %v292
  %v316 = vunpack.c.l.b16 %v293
  %v317 = vunpack.c.h.b16 %v293
  %v318 = vpack.c.b16 %v302, %v302
  %v319 = vpack.c.b16 %v303, %v303
  %v320 = vpack.c.b16 %v304, %v304
  %v321 = vpack.c.b16 %v305, %v305
  %v322 = vpack.c.b16 %v306, %v306
  %v323 = vpack.c.b16 %v307, %v307
  %v324 = vpack.c.b16 %v308, %v308
  %v325 = vpack.c.b16 %v309, %v309
  %v326 = vpack.c.b16 %v310, %v310
  %v327 = vpack.c.b16 %v311, %v311
  %v328 = vpack.c.b16 %v312, %v312
  %v329 = vpack.c.b16 %v313, %v313
  %v330 = vpack.c.b16 %v314, %v314
  %v331 = vpack.c.b16 %v315, %v315
  %v332 = vpack.c.b16 %v316, %v316
  %v333 = vpack.c.b16 %v317, %v317
  %vm350 = vcmask 257024
  %351 = vst.msk [vmem:[%s3] sm:$0xf] %vm350, %v318
  %352 = vst.msk [vmem:[%s3 + $0x4] sm:$0xf] %vm350, %v319
  %353 = vst.msk [vmem:[%s3 + $0x8] sm:$0xf] %vm350, %v320
  %354 = vst.msk [vmem:[%s3 + $0xc] sm:$0xf] %vm350, %v321
  %355 = vst.msk [vmem:[%s3 + $0x10] sm:$0xf] %vm350, %v322
  %356 = vst.msk [vmem:[%s3 + $0x14] sm:$0xf] %vm350, %v323
  %357 = vst.msk [vmem:[%s3 + $0x18] sm:$0xf] %vm350, %v324
  %358 = vst.msk [vmem:[%s3 + $0x1c] sm:$0xf] %vm350, %v325
  %359 = vst.msk [vmem:[%s3 + $0x20] sm:$0xf] %vm350, %v326
  %360 = vst.msk [vmem:[%s3 + $0x24] sm:$0xf] %vm350, %v327
  %361 = vst.msk [vmem:[%s3 + $0x28] sm:$0xf] %vm350, %v328
  %362 = vst.msk [vmem:[%s3 + $0x2c] sm:$0xf] %vm350, %v329
  %363 = vst.msk [vmem:[%s3 + $0x30] sm:$0xf] %vm350, %v330
  %364 = vst.msk [vmem:[%s3 + $0x34] sm:$0xf] %vm350, %v331
  %365 = vst.msk [vmem:[%s3 + $0x38] sm:$0xf] %vm350, %v332
  %366 = vst.msk [vmem:[%s3 + $0x3c] sm:$0xf] %vm350, %v333
  // Predicated region
  $region14: #{discriminator_forward.14} parent=0 // pred_check
    _
  $region15: #{discriminator_forward.14} parent=0 // pred_check_branch
    %368 = sbr.rel (0) target = $region17
  $region16: #{discriminator_forward.14} parent=0 // pred_region
    _
  $region17: #{discriminator_forward.14} parent=0 // pred_fallthru
    _
  // Predicated region
  $region18: #{discriminator_forward.14} parent=0 // pred_check
    _
  $region19: #{discriminator_forward.14} parent=0 // pred_check_branch
    %370 = sbr.rel (0) target = $region21
  $region20: #{discriminator_forward.14} parent=0 // pred_region
    _
  $region21: #{discriminator_forward.14} parent=0 // pred_fallthru
    _

// kernel: discriminator_forward.13
$region0: #{discriminator_forward.13}
  #allocation0 [shape = 'u32[]', space=smem, size = 0x4, offset = 0x4, fixed_abs, tag = 'smem constant byte address 0x4 - core index']
  #allocation1 [shape = 'u32[144,128]{1,0:T(1,128)}', space=vmem, size = 0x12000, scoped, tag = 'internal scratch']
  %s0 = inlined_call_operand.vmem [shape: bf16[128,1600], index: 0, kind: input, shape index: {}]
  %s1 = inlined_call_operand.vmem [shape: bf16[1600,32], index: 1, kind: input, shape index: {}]
  %s2 = inlined_call_operand.vmem [shape: f32[128,1], index: 2, kind: input, shape index: {}]
  %s3 = inlined_call_operand.vmem [shape: f32[128,32], index: 3, kind: output, shape index: {0}]
  %s4 = inlined_call_operand.vmem [shape: f32[128,128], index: 4, kind: output, shape index: {1}]
  %5 = xla_tuple %s3, %s4
  %s6 = sld [smem:[#allocation0]]
  $region30: #{discriminator_forward.13} parent=0
    _
  %s8 = ssub.s32 1, %s6
  %s9 = scalar_select 0, %s8, %s6
  // Predicated region
  $region2: #{discriminator_forward.13} parent=0 // pred_check
    _
  $region3: #{discriminator_forward.13} parent=0 // pred_check_branch
    %11 = sbr.rel (0) target = $region5
  $region4: #{discriminator_forward.13} parent=0 // pred_region
    _
  $region5: #{discriminator_forward.13} parent=0 // pred_fallthru
    _
  // Predicated region
  $region6: #{discriminator_forward.13} parent=0 // pred_check
    _
  $region7: #{discriminator_forward.13} parent=0 // pred_check_branch
    %13 = sbr.rel (0) target = $region9
  $region8: #{discriminator_forward.13} parent=0 // pred_region
    _
  $region9: #{discriminator_forward.13} parent=0 // pred_fallthru
    _
  // Predicated region
  $region10: #{discriminator_forward.13} parent=0 // pred_check
    _
  $region11: #{discriminator_forward.13} parent=0 // pred_check_branch
    %15 = sbr.rel (0) target = $region13
  $region12: #{discriminator_forward.13} parent=0 // pred_region
    _
  $region13: #{discriminator_forward.13} parent=0 // pred_fallthru
    _
  %v17 = vld [vmem:[%s0] sm:$0xff]
  %v18 = vld [vmem:[%s0 + $0x8] sm:$0xff]
  %v19 = vld [vmem:[%s0 + $0x10] sm:$0xff]
  %v20 = vld [vmem:[%s0 + $0x18] sm:$0xff]
  %v21 = vld [vmem:[%s0 + $0x20] sm:$0xff]
  %v22 = vld [vmem:[%s0 + $0x28] sm:$0xff]
  %v23 = vld [vmem:[%s0 + $0x30] sm:$0xf]
  %v24 = vld [vmem:[%s0 + $0x34] sm:$0xff]
  %v25 = vld [vmem:[%s0 + $0x3c] sm:$0xff]
  %v26 = vld [vmem:[%s0 + $0x44] sm:$0xff]
  %v27 = vld [vmem:[%s0 + $0x4c] sm:$0xff]
  %v28 = vld [vmem:[%s0 + $0x54] sm:$0xff]
  %v29 = vld [vmem:[%s0 + $0x5c] sm:$0xff]
  %v30 = vld [vmem:[%s0 + $0x64] sm:$0xf]
  %v31 = vld [vmem:[%s0 + $0x68] sm:$0xff]
  %v32 = vld [vmem:[%s0 + $0x70] sm:$0xff]
  %v33 = vld [vmem:[%s0 + $0x78] sm:$0xff]
  %v34 = vld [vmem:[%s0 + $0x80] sm:$0xff]
  %v35 = vld [vmem:[%s0 + $0x88] sm:$0xff]
  %v36 = vld [vmem:[%s0 + $0x90] sm:$0xff]
  %v37 = vld [vmem:[%s0 + $0x98] sm:$0xf]
  %v38 = vld [vmem:[%s0 + $0x9c] sm:$0xff]
  %v39 = vld [vmem:[%s0 + $0xa4] sm:$0xff]
  %v40 = vld [vmem:[%s0 + $0xac] sm:$0xff]
  %v41 = vld [vmem:[%s0 + $0xb4] sm:$0xff]
  %v42 = vld [vmem:[%s0 + $0xbc] sm:$0xff]
  %v43 = vld [vmem:[%s0 + $0xc4] sm:$0xff]
  %v44 = vld [vmem:[%s0 + $0xcc] sm:$0xf]
  %v45 = vld [vmem:[%s0 + $0xd0] sm:$0xff]
  %v46 = vld [vmem:[%s0 + $0xd8] sm:$0xff]
  %v47 = vld [vmem:[%s0 + $0xe0] sm:$0xff]
  %v48 = vld [vmem:[%s0 + $0xe8] sm:$0xff]
  %v49 = vld [vmem:[%s0 + $0xf0] sm:$0xff]
  %v50 = vld [vmem:[%s0 + $0xf8] sm:$0xff]
  %v51 = vld [vmem:[%s0 + $0x100] sm:$0xf]
  %v52 = vld [vmem:[%s0 + $0x104] sm:$0xff]
  %v53 = vld [vmem:[%s0 + $0x10c] sm:$0xff]
  %v54 = vld [vmem:[%s0 + $0x114] sm:$0xff]
  %v55 = vld [vmem:[%s0 + $0x11c] sm:$0xff]
  %v56 = vld [vmem:[%s0 + $0x124] sm:$0xff]
  %v57 = vld [vmem:[%s0 + $0x12c] sm:$0xff]
  %v58 = vld [vmem:[%s0 + $0x134] sm:$0xf]
  %v59 = vld [vmem:[%s0 + $0x138] sm:$0xff]
  %v60 = vld [vmem:[%s0 + $0x140] sm:$0xff]
  %v61 = vld [vmem:[%s0 + $0x148] sm:$0xff]
  %v62 = vld [vmem:[%s0 + $0x150] sm:$0xff]
  %v63 = vld [vmem:[%s0 + $0x158] sm:$0xff]
  %v64 = vld [vmem:[%s0 + $0x160] sm:$0xff]
  %v65 = vld [vmem:[%s0 + $0x168] sm:$0xf]
  %v66 = vld [vmem:[%s0 + $0x16c] sm:$0xff]
  %v67 = vld [vmem:[%s0 + $0x174] sm:$0xff]
  %v68 = vld [vmem:[%s0 + $0x17c] sm:$0xff]
  %v69 = vld [vmem:[%s0 + $0x184] sm:$0xff]
  %v70 = vld [vmem:[%s0 + $0x18c] sm:$0xff]
  %v71 = vld [vmem:[%s0 + $0x194] sm:$0xff]
  %v72 = vld [vmem:[%s0 + $0x19c] sm:$0xf]
  %v73 = vld [vmem:[%s0 + $0x1a0] sm:$0xff]
  %v74 = vld [vmem:[%s0 + $0x1a8] sm:$0xff]
  %v75 = vld [vmem:[%s0 + $0x1b0] sm:$0xff]
  %v76 = vld [vmem:[%s0 + $0x1b8] sm:$0xff]
  %v77 = vld [vmem:[%s0 + $0x1c0] sm:$0xff]
  %v78 = vld [vmem:[%s0 + $0x1c8] sm:$0xff]
  %v79 = vld [vmem:[%s0 + $0x1d0] sm:$0xf]
  %v80 = vld [vmem:[%s0 + $0x1d4] sm:$0xff]
  %v81 = vld [vmem:[%s0 + $0x1dc] sm:$0xff]
  %v82 = vld [vmem:[%s0 + $0x1e4] sm:$0xff]
  %v83 = vld [vmem:[%s0 + $0x1ec] sm:$0xff]
  %v84 = vld [vmem:[%s0 + $0x1f4] sm:$0xff]
  %v85 = vld [vmem:[%s0 + $0x1fc] sm:$0xff]
  %v86 = vld [vmem:[%s0 + $0x204] sm:$0xf]
  %v87 = vld [vmem:[%s0 + $0x208] sm:$0xff]
  %v88 = vld [vmem:[%s0 + $0x210] sm:$0xff]
  %v89 = vld [vmem:[%s0 + $0x218] sm:$0xff]
  %v90 = vld [vmem:[%s0 + $0x220] sm:$0xff]
  %v91 = vld [vmem:[%s0 + $0x228] sm:$0xff]
  %v92 = vld [vmem:[%s0 + $0x230] sm:$0xff]
  %v93 = vld [vmem:[%s0 + $0x238] sm:$0xf]
  %v94 = vld [vmem:[%s0 + $0x23c] sm:$0xff]
  %v95 = vld [vmem:[%s0 + $0x244] sm:$0xff]
  %v96 = vld [vmem:[%s0 + $0x24c] sm:$0xff]
  %v97 = vld [vmem:[%s0 + $0x254] sm:$0xff]
  %v98 = vld [vmem:[%s0 + $0x25c] sm:$0xff]
  %v99 = vld [vmem:[%s0 + $0x264] sm:$0xff]
  %v100 = vld [vmem:[%s0 + $0x26c] sm:$0xf]
  %v101 = vld [vmem:[%s0 + $0x270] sm:$0xff]
  %v102 = vld [vmem:[%s0 + $0x278] sm:$0xff]
  %v103 = vld [vmem:[%s0 + $0x280] sm:$0xff]
  %v104 = vld [vmem:[%s0 + $0x288] sm:$0xff]
  %v105 = vld [vmem:[%s0 + $0x290] sm:$0xff]
  %v106 = vld [vmem:[%s0 + $0x298] sm:$0xff]
  %v107 = vld [vmem:[%s0 + $0x2a0] sm:$0xf]
  %v108 = vld [vmem:[%s0 + $0x2a4] sm:$0xff]
  %v109 = vld [vmem:[%s0 + $0x2ac] sm:$0xff]
  %v110 = vld [vmem:[%s0 + $0x2b4] sm:$0xff]
  %v111 = vld [vmem:[%s0 + $0x2bc] sm:$0xff]
  %v112 = vld [vmem:[%s0 + $0x2c4] sm:$0xff]
  %v113 = vld [vmem:[%s0 + $0x2cc] sm:$0xff]
  %v114 = vld [vmem:[%s0 + $0x2d4] sm:$0xf]
  %v115 = vld [vmem:[%s0 + $0x2d8] sm:$0xff]
  %v116 = vld [vmem:[%s0 + $0x2e0] sm:$0xff]
  %v117 = vld [vmem:[%s0 + $0x2e8] sm:$0xff]
  %v118 = vld [vmem:[%s0 + $0x2f0] sm:$0xff]
  %v119 = vld [vmem:[%s0 + $0x2f8] sm:$0xff]
  %v120 = vld [vmem:[%s0 + $0x300] sm:$0xff]
  %v121 = vld [vmem:[%s0 + $0x308] sm:$0xf]
  %v122 = vld [vmem:[%s0 + $0x30c] sm:$0xff]
  %v123 = vld [vmem:[%s0 + $0x314] sm:$0xff]
  %v124 = vld [vmem:[%s0 + $0x31c] sm:$0xff]
  %v125 = vld [vmem:[%s0 + $0x324] sm:$0xff]
  %v126 = vld [vmem:[%s0 + $0x32c] sm:$0xff]
  %v127 = vld [vmem:[%s0 + $0x334] sm:$0xff]
  %v128 = vld [vmem:[%s0 + $0x33c] sm:$0xf]
  %v129 = vld [vmem:[%s1] sm:$0xf]
  %v130 = vld [vmem:[%s1 + $0x4] sm:$0xf]
  %v131 = vld [vmem:[%s1 + $0x8] sm:$0xf]
  %v132 = vld [vmem:[%s1 + $0xc] sm:$0xf]
  %v133 = vld [vmem:[%s1 + $0x10] sm:$0xf]
  %v134 = vld [vmem:[%s1 + $0x14] sm:$0xf]
  %v135 = vld [vmem:[%s1 + $0x18] sm:$0xf]
  %v136 = vld [vmem:[%s1 + $0x1c] sm:$0xf]
  %v137 = vld [vmem:[%s1 + $0x20] sm:$0xf]
  %v138 = vld [vmem:[%s1 + $0x24] sm:$0xf]
  %v139 = vld [vmem:[%s1 + $0x28] sm:$0xf]
  %v140 = vld [vmem:[%s1 + $0x2c] sm:$0xf]
  %v141 = vld [vmem:[%s1 + $0x30] sm:$0xf]
  %v142 = vld [vmem:[%s1 + $0x34] sm:$0xf]
  %v143 = vld [vmem:[%s1 + $0x38] sm:$0xf]
  %v144 = vld [vmem:[%s1 + $0x3c] sm:$0xf]
  %v145 = vld [vmem:[%s1 + $0x40] sm:$0xf]
  %v146 = vld [vmem:[%s1 + $0x44] sm:$0xf]
  %v147 = vld [vmem:[%s1 + $0x48] sm:$0xf]
  %v148 = vld [vmem:[%s1 + $0x4c] sm:$0xf]
  %v149 = vld [vmem:[%s1 + $0x50] sm:$0xf]
  %v150 = vld [vmem:[%s1 + $0x54] sm:$0xf]
  %v151 = vld [vmem:[%s1 + $0x58] sm:$0xf]
  %v152 = vld [vmem:[%s1 + $0x5c] sm:$0xf]
  %v153 = vld [vmem:[%s1 + $0x60] sm:$0xf]
  %v154 = vld [vmem:[%s1 + $0x64] sm:$0xf]
  %v155 = vld [vmem:[%s1 + $0x68] sm:$0xf]
  %v156 = vld [vmem:[%s1 + $0x6c] sm:$0xf]
  %v157 = vld [vmem:[%s1 + $0x70] sm:$0xf]
  %v158 = vld [vmem:[%s1 + $0x74] sm:$0xf]
  %v159 = vld [vmem:[%s1 + $0x78] sm:$0xf]
  %v160 = vld [vmem:[%s1 + $0x7c] sm:$0xf]
  %v161 = vld [vmem:[%s1 + $0x80] sm:$0xf]
  %v162 = vld [vmem:[%s1 + $0x84] sm:$0xf]
  %v163 = vld [vmem:[%s1 + $0x88] sm:$0xf]
  %v164 = vld [vmem:[%s1 + $0x8c] sm:$0xf]
  %v165 = vld [vmem:[%s1 + $0x90] sm:$0xf]
  %v166 = vld [vmem:[%s1 + $0x94] sm:$0xf]
  %v167 = vld [vmem:[%s1 + $0x98] sm:$0xf]
  %v168 = vld [vmem:[%s1 + $0x9c] sm:$0xf]
  %v169 = vld [vmem:[%s1 + $0xa0] sm:$0xf]
  %v170 = vld [vmem:[%s1 + $0xa4] sm:$0xf]
  %v171 = vld [vmem:[%s1 + $0xa8] sm:$0xf]
  %v172 = vld [vmem:[%s1 + $0xac] sm:$0xf]
  %v173 = vld [vmem:[%s1 + $0xb0] sm:$0xf]
  %v174 = vld [vmem:[%s1 + $0xb4] sm:$0xf]
  %v175 = vld [vmem:[%s1 + $0xb8] sm:$0xf]
  %v176 = vld [vmem:[%s1 + $0xbc] sm:$0xf]
  %v177 = vld [vmem:[%s1 + $0xc0] sm:$0xf]
  %v178 = vld [vmem:[%s1 + $0xc4] sm:$0xf]
  %v179 = vld [vmem:[%s1 + $0xc8] sm:$0xf]
  %v180 = vld [vmem:[%s1 + $0xcc] sm:$0xf]
  %v181 = vld [vmem:[%s1 + $0xd0] sm:$0xf]
  %v182 = vld [vmem:[%s1 + $0xd4] sm:$0xf]
  %v183 = vld [vmem:[%s1 + $0xd8] sm:$0xf]
  %v184 = vld [vmem:[%s1 + $0xdc] sm:$0xf]
  %v185 = vld [vmem:[%s1 + $0xe0] sm:$0xf]
  %v186 = vld [vmem:[%s1 + $0xe4] sm:$0xf]
  %v187 = vld [vmem:[%s1 + $0xe8] sm:$0xf]
  %v188 = vld [vmem:[%s1 + $0xec] sm:$0xf]
  %v189 = vld [vmem:[%s1 + $0xf0] sm:$0xf]
  %v190 = vld [vmem:[%s1 + $0xf4] sm:$0xf]
  %v191 = vld [vmem:[%s1 + $0xf8] sm:$0xf]
  %v192 = vld [vmem:[%s1 + $0xfc] sm:$0xf]
  %v193 = vld [vmem:[%s1 + $0x100] sm:$0xf]
  %v194 = vld [vmem:[%s1 + $0x104] sm:$0xf]
  %v195 = vld [vmem:[%s1 + $0x108] sm:$0xf]
  %v196 = vld [vmem:[%s1 + $0x10c] sm:$0xf]
  %v197 = vld [vmem:[%s1 + $0x110] sm:$0xf]
  %v198 = vld [vmem:[%s1 + $0x114] sm:$0xf]
  %v199 = vld [vmem:[%s1 + $0x118] sm:$0xf]
  %v200 = vld [vmem:[%s1 + $0x11c] sm:$0xf]
  %v201 = vld [vmem:[%s1 + $0x120] sm:$0xf]
  %v202 = vld [vmem:[%s1 + $0x124] sm:$0xf]
  %v203 = vld [vmem:[%s1 + $0x128] sm:$0xf]
  %v204 = vld [vmem:[%s1 + $0x12c] sm:$0xf]
  %v205 = vld [vmem:[%s1 + $0x130] sm:$0xf]
  %v206 = vld [vmem:[%s1 + $0x134] sm:$0xf]
  %v207 = vld [vmem:[%s1 + $0x138] sm:$0xf]
  %v208 = vld [vmem:[%s1 + $0x13c] sm:$0xf]
  %v209 = vld [vmem:[%s1 + $0x140] sm:$0xf]
  %v210 = vld [vmem:[%s1 + $0x144] sm:$0xf]
  %v211 = vld [vmem:[%s1 + $0x148] sm:$0xf]
  %v212 = vld [vmem:[%s1 + $0x14c] sm:$0xf]
  %v213 = vld [vmem:[%s1 + $0x150] sm:$0xf]
  %v214 = vld [vmem:[%s1 + $0x154] sm:$0xf]
  %v215 = vld [vmem:[%s1 + $0x158] sm:$0xf]
  %v216 = vld [vmem:[%s1 + $0x15c] sm:$0xf]
  %v217 = vld [vmem:[%s1 + $0x160] sm:$0xf]
  %v218 = vld [vmem:[%s1 + $0x164] sm:$0xf]
  %v219 = vld [vmem:[%s1 + $0x168] sm:$0xf]
  %v220 = vld [vmem:[%s1 + $0x16c] sm:$0xf]
  %v221 = vld [vmem:[%s1 + $0x170] sm:$0xf]
  %v222 = vld [vmem:[%s1 + $0x174] sm:$0xf]
  %v223 = vld [vmem:[%s1 + $0x178] sm:$0xf]
  %v224 = vld [vmem:[%s1 + $0x17c] sm:$0xf]
  %v225 = vld [vmem:[%s1 + $0x180] sm:$0xf]
  %v226 = vld [vmem:[%s1 + $0x184] sm:$0xf]
  %v227 = vld [vmem:[%s1 + $0x188] sm:$0xf]
  %v228 = vld [vmem:[%s1 + $0x18c] sm:$0xf]
  %v229 = vld [vmem:[%s1 + $0x190] sm:$0xf]
  %v230 = vld [vmem:[%s1 + $0x194] sm:$0xf]
  %v231 = vld [vmem:[%s1 + $0x198] sm:$0xf]
  %v232 = vld [vmem:[%s1 + $0x19c] sm:$0xf]
  %v233 = vld [vmem:[%s1 + $0x1a0] sm:$0xf]
  %v234 = vld [vmem:[%s1 + $0x1a4] sm:$0xf]
  %v235 = vld [vmem:[%s1 + $0x1a8] sm:$0xf]
  %v236 = vld [vmem:[%s1 + $0x1ac] sm:$0xf]
  %v237 = vld [vmem:[%s1 + $0x1b0] sm:$0xf]
  %v238 = vld [vmem:[%s1 + $0x1b4] sm:$0xf]
  %v239 = vld [vmem:[%s1 + $0x1b8] sm:$0xf]
  %v240 = vld [vmem:[%s1 + $0x1bc] sm:$0xf]
  %v241 = vld [vmem:[%s1 + $0x1c0] sm:$0xf]
  %v242 = vld [vmem:[%s1 + $0x1c4] sm:$0xf]
  %v243 = vld [vmem:[%s1 + $0x1c8] sm:$0xf]
  %v244 = vld [vmem:[%s1 + $0x1cc] sm:$0xf]
  %v245 = vld [vmem:[%s1 + $0x1d0] sm:$0xf]
  %v246 = vld [vmem:[%s1 + $0x1d4] sm:$0xf]
  %v247 = vld [vmem:[%s1 + $0x1d8] sm:$0xf]
  %v248 = vld [vmem:[%s1 + $0x1dc] sm:$0xf]
  %v249 = vld [vmem:[%s1 + $0x1e0] sm:$0xf]
  %v250 = vld [vmem:[%s1 + $0x1e4] sm:$0xf]
  %v251 = vld [vmem:[%s1 + $0x1e8] sm:$0xf]
  %v252 = vld [vmem:[%s1 + $0x1ec] sm:$0xf]
  %v253 = vld [vmem:[%s1 + $0x1f0] sm:$0xf]
  %v254 = vld [vmem:[%s1 + $0x1f4] sm:$0xf]
  %v255 = vld [vmem:[%s1 + $0x1f8] sm:$0xf]
  %v256 = vld [vmem:[%s1 + $0x1fc] sm:$0xf]
  %v257 = vld [vmem:[%s1 + $0x200] sm:$0xf]
  %v258 = vld [vmem:[%s1 + $0x204] sm:$0xf]
  %v259 = vld [vmem:[%s1 + $0x208] sm:$0xf]
  %v260 = vld [vmem:[%s1 + $0x20c] sm:$0xf]
  %v261 = vld [vmem:[%s1 + $0x210] sm:$0xf]
  %v262 = vld [vmem:[%s1 + $0x214] sm:$0xf]
  %v263 = vld [vmem:[%s1 + $0x218] sm:$0xf]
  %v264 = vld [vmem:[%s1 + $0x21c] sm:$0xf]
  %v265 = vld [vmem:[%s1 + $0x220] sm:$0xf]
  %v266 = vld [vmem:[%s1 + $0x224] sm:$0xf]
  %v267 = vld [vmem:[%s1 + $0x228] sm:$0xf]
  %v268 = vld [vmem:[%s1 + $0x22c] sm:$0xf]
  %v269 = vld [vmem:[%s1 + $0x230] sm:$0xf]
  %v270 = vld [vmem:[%s1 + $0x234] sm:$0xf]
  %v271 = vld [vmem:[%s1 + $0x238] sm:$0xf]
  %v272 = vld [vmem:[%s1 + $0x23c] sm:$0xf]
  %v273 = vld [vmem:[%s1 + $0x240] sm:$0xf]
  %v274 = vld [vmem:[%s1 + $0x244] sm:$0xf]
  %v275 = vld [vmem:[%s1 + $0x248] sm:$0xf]
  %v276 = vld [vmem:[%s1 + $0x24c] sm:$0xf]
  %v277 = vld [vmem:[%s1 + $0x250] sm:$0xf]
  %v278 = vld [vmem:[%s1 + $0x254] sm:$0xf]
  %v279 = vld [vmem:[%s1 + $0x258] sm:$0xf]
  %v280 = vld [vmem:[%s1 + $0x25c] sm:$0xf]
  %v281 = vld [vmem:[%s1 + $0x260] sm:$0xf]
  %v282 = vld [vmem:[%s1 + $0x264] sm:$0xf]
  %v283 = vld [vmem:[%s1 + $0x268] sm:$0xf]
  %v284 = vld [vmem:[%s1 + $0x26c] sm:$0xf]
  %v285 = vld [vmem:[%s1 + $0x270] sm:$0xf]
  %v286 = vld [vmem:[%s1 + $0x274] sm:$0xf]
  %v287 = vld [vmem:[%s1 + $0x278] sm:$0xf]
  %v288 = vld [vmem:[%s1 + $0x27c] sm:$0xf]
  %v289 = vld [vmem:[%s1 + $0x280] sm:$0xf]
  %v290 = vld [vmem:[%s1 + $0x284] sm:$0xf]
  %v291 = vld [vmem:[%s1 + $0x288] sm:$0xf]
  %v292 = vld [vmem:[%s1 + $0x28c] sm:$0xf]
  %v293 = vld [vmem:[%s1 + $0x290] sm:$0xf]
  %v294 = vld [vmem:[%s1 + $0x294] sm:$0xf]
  %v295 = vld [vmem:[%s1 + $0x298] sm:$0xf]
  %v296 = vld [vmem:[%s1 + $0x29c] sm:$0xf]
  %v297 = vld [vmem:[%s1 + $0x2a0] sm:$0xf]
  %v298 = vld [vmem:[%s1 + $0x2a4] sm:$0xf]
  %v299 = vld [vmem:[%s1 + $0x2a8] sm:$0xf]
  %v300 = vld [vmem:[%s1 + $0x2ac] sm:$0xf]
  %v301 = vld [vmem:[%s1 + $0x2b0] sm:$0xf]
  %v302 = vld [vmem:[%s1 + $0x2b4] sm:$0xf]
  %v303 = vld [vmem:[%s1 + $0x2b8] sm:$0xf]
  %v304 = vld [vmem:[%s1 + $0x2bc] sm:$0xf]
  %v305 = vld [vmem:[%s1 + $0x2c0] sm:$0xf]
  %v306 = vld [vmem:[%s1 + $0x2c4] sm:$0xf]
  %v307 = vld [vmem:[%s1 + $0x2c8] sm:$0xf]
  %v308 = vld [vmem:[%s1 + $0x2cc] sm:$0xf]
  %v309 = vld [vmem:[%s1 + $0x2d0] sm:$0xf]
  %v310 = vld [vmem:[%s1 + $0x2d4] sm:$0xf]
  %v311 = vld [vmem:[%s1 + $0x2d8] sm:$0xf]
  %v312 = vld [vmem:[%s1 + $0x2dc] sm:$0xf]
  %v313 = vld [vmem:[%s1 + $0x2e0] sm:$0xf]
  %v314 = vld [vmem:[%s1 + $0x2e4] sm:$0xf]
  %v315 = vld [vmem:[%s1 + $0x2e8] sm:$0xf]
  %v316 = vld [vmem:[%s1 + $0x2ec] sm:$0xf]
  %v317 = vld [vmem:[%s1 + $0x2f0] sm:$0xf]
  %v318 = vld [vmem:[%s1 + $0x2f4] sm:$0xf]
  %v319 = vld [vmem:[%s1 + $0x2f8] sm:$0xf]
  %v320 = vld [vmem:[%s1 + $0x2fc] sm:$0xf]
  %v321 = vld [vmem:[%s1 + $0x300] sm:$0xf]
  %v322 = vld [vmem:[%s1 + $0x304] sm:$0xf]
  %v323 = vld [vmem:[%s1 + $0x308] sm:$0xf]
  %v324 = vld [vmem:[%s1 + $0x30c] sm:$0xf]
  %v325 = vld [vmem:[%s1 + $0x310] sm:$0xf]
  %v326 = vld [vmem:[%s1 + $0x314] sm:$0xf]
  %v327 = vld [vmem:[%s1 + $0x318] sm:$0xf]
  %v328 = vld [vmem:[%s1 + $0x31c] sm:$0xf]
  %v329 = vld [vmem:[%s2] sm:$0xff]
  %v330 = vld [vmem:[%s2 + $0x8] sm:$0xff]
  %v331 = vld [vmem:[%s2 + $0x10] sm:$0xff]
  %v332 = vld [vmem:[%s2 + $0x18] sm:$0xff]
  %v333 = vld [vmem:[%s2 + $0x20] sm:$0xff]
  %v334 = vld [vmem:[%s2 + $0x28] sm:$0xff]
  %v335 = vld [vmem:[%s2 + $0x30] sm:$0xff]
  %v336 = vld [vmem:[%s2 + $0x38] sm:$0xff]
  %v337 = vld [vmem:[%s2 + $0x40] sm:$0xff]
  %v338 = vld [vmem:[%s2 + $0x48] sm:$0xff]
  %v339 = vld [vmem:[%s2 + $0x50] sm:$0xff]
  %v340 = vld [vmem:[%s2 + $0x58] sm:$0xff]
  %v341 = vld [vmem:[%s2 + $0x60] sm:$0xff]
  %v342 = vld [vmem:[%s2 + $0x68] sm:$0xff]
  %v343 = vld [vmem:[%s2 + $0x70] sm:$0xff]
  %v344 = vld [vmem:[%s2 + $0x78] sm:$0xff]
  %346 = vset.pattern.permute.xlu0 0
  %347 = vperm.xlu0 %346, %v329
  %v348 = vpop.permute.xlu0 %347
  %351 = vset.pattern.permute.xlu0 0
  %352 = vperm.xlu0 %351, %v330
  %v353 = vpop.permute.xlu0 %352
  %356 = vset.pattern.permute.xlu0 0
  %357 = vperm.xlu0 %356, %v331
  %v358 = vpop.permute.xlu0 %357
  %361 = vset.pattern.permute.xlu0 0
  %362 = vperm.xlu0 %361, %v332
  %v363 = vpop.permute.xlu0 %362
  %366 = vset.pattern.permute.xlu0 0
  %367 = vperm.xlu0 %366, %v333
  %v368 = vpop.permute.xlu0 %367
  %371 = vset.pattern.permute.xlu0 0
  %372 = vperm.xlu0 %371, %v334
  %v373 = vpop.permute.xlu0 %372
  %376 = vset.pattern.permute.xlu0 0
  %377 = vperm.xlu0 %376, %v335
  %v378 = vpop.permute.xlu0 %377
  %381 = vset.pattern.permute.xlu0 0
  %382 = vperm.xlu0 %381, %v336
  %v383 = vpop.permute.xlu0 %382
  %386 = vset.pattern.permute.xlu0 0
  %387 = vperm.xlu0 %386, %v337
  %v388 = vpop.permute.xlu0 %387
  %391 = vset.pattern.permute.xlu0 0
  %392 = vperm.xlu0 %391, %v338
  %v393 = vpop.permute.xlu0 %392
  %396 = vset.pattern.permute.xlu0 0
  %397 = vperm.xlu0 %396, %v339
  %v398 = vpop.permute.xlu0 %397
  %401 = vset.pattern.permute.xlu0 0
  %402 = vperm.xlu0 %401, %v340
  %v403 = vpop.permute.xlu0 %402
  %406 = vset.pattern.permute.xlu0 0
  %407 = vperm.xlu0 %406, %v341
  %v408 = vpop.permute.xlu0 %407
  %411 = vset.pattern.permute.xlu0 0
  %412 = vperm.xlu0 %411, %v342
  %v413 = vpop.permute.xlu0 %412
  %416 = vset.pattern.permute.xlu0 0
  %417 = vperm.xlu0 %416, %v343
  %v418 = vpop.permute.xlu0 %417
  %421 = vset.pattern.permute.xlu0 0
  %422 = vperm.xlu0 %421, %v344
  %v423 = vpop.permute.xlu0 %422
  %v537 = vunpack.c.l.b16 %v17
  %v538 = vunpack.c.h.b16 %v17
  %v539 = vunpack.c.l.b16 %v18
  %v540 = vunpack.c.h.b16 %v18
  %v541 = vunpack.c.l.b16 %v19
  %v542 = vunpack.c.h.b16 %v19
  %v543 = vunpack.c.l.b16 %v20
  %v544 = vunpack.c.h.b16 %v20
  %v545 = vunpack.c.l.b16 %v21
  %v546 = vunpack.c.h.b16 %v21
  %v547 = vunpack.c.l.b16 %v22
  %v548 = vunpack.c.h.b16 %v22
  %v549 = vunpack.c.l.b16 %v23
  %v550 = vunpack.c.l.b16 %v24
  %v551 = vunpack.c.h.b16 %v24
  %v552 = vunpack.c.l.b16 %v25
  %v553 = vunpack.c.h.b16 %v25
  %v554 = vunpack.c.l.b16 %v26
  %v555 = vunpack.c.h.b16 %v26
  %v556 = vunpack.c.l.b16 %v27
  %v557 = vunpack.c.h.b16 %v27
  %v558 = vunpack.c.l.b16 %v28
  %v559 = vunpack.c.h.b16 %v28
  %v560 = vunpack.c.l.b16 %v29
  %v561 = vunpack.c.h.b16 %v29
  %v562 = vunpack.c.l.b16 %v30
  %v563 = vunpack.c.l.b16 %v31
  %v564 = vunpack.c.h.b16 %v31
  %v565 = vunpack.c.l.b16 %v32
  %v566 = vunpack.c.h.b16 %v32
  %v567 = vunpack.c.l.b16 %v33
  %v568 = vunpack.c.h.b16 %v33
  %v569 = vunpack.c.l.b16 %v34
  %v570 = vunpack.c.h.b16 %v34
  %v571 = vunpack.c.l.b16 %v35
  %v572 = vunpack.c.h.b16 %v35
  %v573 = vunpack.c.l.b16 %v36
  %v574 = vunpack.c.h.b16 %v36
  %v575 = vunpack.c.l.b16 %v37
  %v576 = vunpack.c.l.b16 %v38
  %v577 = vunpack.c.h.b16 %v38
  %v578 = vunpack.c.l.b16 %v39
  %v579 = vunpack.c.h.b16 %v39
  %v580 = vunpack.c.l.b16 %v40
  %v581 = vunpack.c.h.b16 %v40
  %v582 = vunpack.c.l.b16 %v41
  %v583 = vunpack.c.h.b16 %v41
  %v584 = vunpack.c.l.b16 %v42
  %v585 = vunpack.c.h.b16 %v42
  %v586 = vunpack.c.l.b16 %v43
  %v587 = vunpack.c.h.b16 %v43
  %v588 = vunpack.c.l.b16 %v44
  %v589 = vunpack.c.l.b16 %v45
  %v590 = vunpack.c.h.b16 %v45
  %v591 = vunpack.c.l.b16 %v46
  %v592 = vunpack.c.h.b16 %v46
  %v593 = vunpack.c.l.b16 %v47
  %v594 = vunpack.c.h.b16 %v47
  %v595 = vunpack.c.l.b16 %v48
  %v596 = vunpack.c.h.b16 %v48
  %v597 = vunpack.c.l.b16 %v49
  %v598 = vunpack.c.h.b16 %v49
  %v599 = vunpack.c.l.b16 %v50
  %v600 = vunpack.c.h.b16 %v50
  %v601 = vunpack.c.l.b16 %v51
  %v602 = vunpack.c.l.b16 %v52
  %v603 = vunpack.c.h.b16 %v52
  %v604 = vunpack.c.l.b16 %v53
  %v605 = vunpack.c.h.b16 %v53
  %v606 = vunpack.c.l.b16 %v54
  %v607 = vunpack.c.h.b16 %v54
  %v608 = vunpack.c.l.b16 %v55
  %v609 = vunpack.c.h.b16 %v55
  %v610 = vunpack.c.l.b16 %v56
  %v611 = vunpack.c.h.b16 %v56
  %v612 = vunpack.c.l.b16 %v57
  %v613 = vunpack.c.h.b16 %v57
  %v614 = vunpack.c.l.b16 %v58
  %v615 = vunpack.c.l.b16 %v59
  %v616 = vunpack.c.h.b16 %v59
  %v617 = vunpack.c.l.b16 %v60
  %v618 = vunpack.c.h.b16 %v60
  %v619 = vunpack.c.l.b16 %v61
  %v620 = vunpack.c.h.b16 %v61
  %v621 = vunpack.c.l.b16 %v62
  %v622 = vunpack.c.h.b16 %v62
  %v623 = vunpack.c.l.b16 %v63
  %v624 = vunpack.c.h.b16 %v63
  %v625 = vunpack.c.l.b16 %v64
  %v626 = vunpack.c.h.b16 %v64
  %v627 = vunpack.c.l.b16 %v65
  %v628 = vunpack.c.l.b16 %v66
  %v629 = vunpack.c.h.b16 %v66
  %v630 = vunpack.c.l.b16 %v67
  %v631 = vunpack.c.h.b16 %v67
  %v632 = vunpack.c.l.b16 %v68
  %v633 = vunpack.c.h.b16 %v68
  %v634 = vunpack.c.l.b16 %v69
  %v635 = vunpack.c.h.b16 %v69
  %v636 = vunpack.c.l.b16 %v70
  %v637 = vunpack.c.h.b16 %v70
  %v638 = vunpack.c.l.b16 %v71
  %v639 = vunpack.c.h.b16 %v71
  %v640 = vunpack.c.l.b16 %v72
  %v641 = vunpack.c.l.b16 %v73
  %v642 = vunpack.c.h.b16 %v73
  %v643 = vunpack.c.l.b16 %v74
  %v644 = vunpack.c.h.b16 %v74
  %v645 = vunpack.c.l.b16 %v75
  %v646 = vunpack.c.h.b16 %v75
  %v647 = vunpack.c.l.b16 %v76
  %v648 = vunpack.c.h.b16 %v76
  %v649 = vunpack.c.l.b16 %v77
  %v650 = vunpack.c.h.b16 %v77
  %v651 = vunpack.c.l.b16 %v78
  %v652 = vunpack.c.h.b16 %v78
  %v653 = vunpack.c.l.b16 %v79
  %v654 = vunpack.c.l.b16 %v80
  %v655 = vunpack.c.h.b16 %v80
  %v656 = vunpack.c.l.b16 %v81
  %v657 = vunpack.c.h.b16 %v81
  %v658 = vunpack.c.l.b16 %v82
  %v659 = vunpack.c.h.b16 %v82
  %v660 = vunpack.c.l.b16 %v83
  %v661 = vunpack.c.h.b16 %v83
  %v662 = vunpack.c.l.b16 %v84
  %v663 = vunpack.c.h.b16 %v84
  %v664 = vunpack.c.l.b16 %v85
  %v665 = vunpack.c.h.b16 %v85
  %v666 = vunpack.c.l.b16 %v86
  %v667 = vunpack.c.l.b16 %v87
  %v668 = vunpack.c.h.b16 %v87
  %v669 = vunpack.c.l.b16 %v88
  %v670 = vunpack.c.h.b16 %v88
  %v671 = vunpack.c.l.b16 %v89
  %v672 = vunpack.c.h.b16 %v89
  %v673 = vunpack.c.l.b16 %v90
  %v674 = vunpack.c.h.b16 %v90
  %v675 = vunpack.c.l.b16 %v91
  %v676 = vunpack.c.h.b16 %v91
  %v677 = vunpack.c.l.b16 %v92
  %v678 = vunpack.c.h.b16 %v92
  %v679 = vunpack.c.l.b16 %v93
  %v680 = vunpack.c.l.b16 %v94
  %v681 = vunpack.c.h.b16 %v94
  %v682 = vunpack.c.l.b16 %v95
  %v683 = vunpack.c.h.b16 %v95
  %v684 = vunpack.c.l.b16 %v96
  %v685 = vunpack.c.h.b16 %v96
  %v686 = vunpack.c.l.b16 %v97
  %v687 = vunpack.c.h.b16 %v97
  %v688 = vunpack.c.l.b16 %v98
  %v689 = vunpack.c.h.b16 %v98
  %v690 = vunpack.c.l.b16 %v99
  %v691 = vunpack.c.h.b16 %v99
  %v692 = vunpack.c.l.b16 %v100
  %v693 = vunpack.c.l.b16 %v101
  %v694 = vunpack.c.h.b16 %v101
  %v695 = vunpack.c.l.b16 %v102
  %v696 = vunpack.c.h.b16 %v102
  %v697 = vunpack.c.l.b16 %v103
  %v698 = vunpack.c.h.b16 %v103
  %v699 = vunpack.c.l.b16 %v104
  %v700 = vunpack.c.h.b16 %v104
  %v701 = vunpack.c.l.b16 %v105
  %v702 = vunpack.c.h.b16 %v105
  %v703 = vunpack.c.l.b16 %v106
  %v704 = vunpack.c.h.b16 %v106
  %v705 = vunpack.c.l.b16 %v107
  %v706 = vunpack.c.l.b16 %v108
  %v707 = vunpack.c.h.b16 %v108
  %v708 = vunpack.c.l.b16 %v109
  %v709 = vunpack.c.h.b16 %v109
  %v710 = vunpack.c.l.b16 %v110
  %v711 = vunpack.c.h.b16 %v110
  %v712 = vunpack.c.l.b16 %v111
  %v713 = vunpack.c.h.b16 %v111
  %v714 = vunpack.c.l.b16 %v112
  %v715 = vunpack.c.h.b16 %v112
  %v716 = vunpack.c.l.b16 %v113
  %v717 = vunpack.c.h.b16 %v113
  %v718 = vunpack.c.l.b16 %v114
  %v719 = vunpack.c.l.b16 %v115
  %v720 = vunpack.c.h.b16 %v115
  %v721 = vunpack.c.l.b16 %v116
  %v722 = vunpack.c.h.b16 %v116
  %v723 = vunpack.c.l.b16 %v117
  %v724 = vunpack.c.h.b16 %v117
  %v725 = vunpack.c.l.b16 %v118
  %v726 = vunpack.c.h.b16 %v118
  %v727 = vunpack.c.l.b16 %v119
  %v728 = vunpack.c.h.b16 %v119
  %v729 = vunpack.c.l.b16 %v120
  %v730 = vunpack.c.h.b16 %v120
  %v731 = vunpack.c.l.b16 %v121
  %v732 = vunpack.c.l.b16 %v122
  %v733 = vunpack.c.h.b16 %v122
  %v734 = vunpack.c.l.b16 %v123
  %v735 = vunpack.c.h.b16 %v123
  %v736 = vunpack.c.l.b16 %v124
  %v737 = vunpack.c.h.b16 %v124
  %v738 = vunpack.c.l.b16 %v125
  %v739 = vunpack.c.h.b16 %v125
  %v740 = vunpack.c.l.b16 %v126
  %v741 = vunpack.c.h.b16 %v126
  %v742 = vunpack.c.l.b16 %v127
  %v743 = vunpack.c.h.b16 %v127
  %v744 = vunpack.c.l.b16 %v128
  %v745 = vpack.c.b16 %v550, %v537
  %v746 = vpack.c.b16 %v551, %v538
  %v747 = vpack.c.b16 %v552, %v539
  %v748 = vpack.c.b16 %v553, %v540
  %v749 = vpack.c.b16 %v554, %v541
  %v750 = vpack.c.b16 %v555, %v542
  %v751 = vpack.c.b16 %v556, %v543
  %v752 = vpack.c.b16 %v557, %v544
  %v753 = vpack.c.b16 %v558, %v545
  %v754 = vpack.c.b16 %v559, %v546
  %v755 = vpack.c.b16 %v560, %v547
  %v756 = vpack.c.b16 %v561, %v548
  %v757 = vpack.c.b16 %v562, %v549
  %v758 = vpack.c.b16 %v576, %v563
  %v759 = vpack.c.b16 %v577, %v564
  %v760 = vpack.c.b16 %v578, %v565
  %v761 = vpack.c.b16 %v579, %v566
  %v762 = vpack.c.b16 %v580, %v567
  %v763 = vpack.c.b16 %v581, %v568
  %v764 = vpack.c.b16 %v582, %v569
  %v765 = vpack.c.b16 %v583, %v570
  %v766 = vpack.c.b16 %v584, %v571
  %v767 = vpack.c.b16 %v585, %v572
  %v768 = vpack.c.b16 %v586, %v573
  %v769 = vpack.c.b16 %v587, %v574
  %v770 = vpack.c.b16 %v588, %v575
  %v771 = vpack.c.b16 %v602, %v589
  %v772 = vpack.c.b16 %v603, %v590
  %v773 = vpack.c.b16 %v604, %v591
  %v774 = vpack.c.b16 %v605, %v592
  %v775 = vpack.c.b16 %v606, %v593
  %v776 = vpack.c.b16 %v607, %v594
  %v777 = vpack.c.b16 %v608, %v595
  %v778 = vpack.c.b16 %v609, %v596
  %v779 = vpack.c.b16 %v610, %v597
  %v780 = vpack.c.b16 %v611, %v598
  %v781 = vpack.c.b16 %v612, %v599
  %v782 = vpack.c.b16 %v613, %v600
  %v783 = vpack.c.b16 %v614, %v601
  %v784 = vpack.c.b16 %v628, %v615
  %v785 = vpack.c.b16 %v629, %v616
  %v786 = vpack.c.b16 %v630, %v617
  %v787 = vpack.c.b16 %v631, %v618
  %v788 = vpack.c.b16 %v632, %v619
  %v789 = vpack.c.b16 %v633, %v620
  %v790 = vpack.c.b16 %v634, %v621
  %v791 = vpack.c.b16 %v635, %v622
  %v792 = vpack.c.b16 %v636, %v623
  %v793 = vpack.c.b16 %v637, %v624
  %v794 = vpack.c.b16 %v638, %v625
  %v795 = vpack.c.b16 %v639, %v626
  %v796 = vpack.c.b16 %v640, %v627
  %v797 = vpack.c.b16 %v654, %v641
  %v798 = vpack.c.b16 %v655, %v642
  %v799 = vpack.c.b16 %v656, %v643
  %v800 = vpack.c.b16 %v657, %v644
  %v801 = vpack.c.b16 %v658, %v645
  %v802 = vpack.c.b16 %v659, %v646
  %v803 = vpack.c.b16 %v660, %v647
  %v804 = vpack.c.b16 %v661, %v648
  %v805 = vpack.c.b16 %v662, %v649
  %v806 = vpack.c.b16 %v663, %v650
  %v807 = vpack.c.b16 %v664, %v651
  %v808 = vpack.c.b16 %v665, %v652
  %v809 = vpack.c.b16 %v666, %v653
  %v810 = vpack.c.b16 %v680, %v667
  %v811 = vpack.c.b16 %v681, %v668
  %v812 = vpack.c.b16 %v682, %v669
  %v813 = vpack.c.b16 %v683, %v670
  %v814 = vpack.c.b16 %v684, %v671
  %v815 = vpack.c.b16 %v685, %v672
  %v816 = vpack.c.b16 %v686, %v673
  %v817 = vpack.c.b16 %v687, %v674
  %v818 = vpack.c.b16 %v688, %v675
  %v819 = vpack.c.b16 %v689, %v676
  %v820 = vpack.c.b16 %v690, %v677
  %v821 = vpack.c.b16 %v691, %v678
  %v822 = vpack.c.b16 %v692, %v679
  %v823 = vpack.c.b16 %v706, %v693
  %v824 = vpack.c.b16 %v707, %v694
  %v825 = vpack.c.b16 %v708, %v695
  %v826 = vpack.c.b16 %v709, %v696
  %v827 = vpack.c.b16 %v710, %v697
  %v828 = vpack.c.b16 %v711, %v698
  %v829 = vpack.c.b16 %v712, %v699
  %v830 = vpack.c.b16 %v713, %v700
  %v831 = vpack.c.b16 %v714, %v701
  %v832 = vpack.c.b16 %v715, %v702
  %v833 = vpack.c.b16 %v716, %v703
  %v834 = vpack.c.b16 %v717, %v704
  %v835 = vpack.c.b16 %v718, %v705
  %v836 = vpack.c.b16 %v732, %v719
  %v837 = vpack.c.b16 %v733, %v720
  %v838 = vpack.c.b16 %v734, %v721
  %v839 = vpack.c.b16 %v735, %v722
  %v840 = vpack.c.b16 %v736, %v723
  %v841 = vpack.c.b16 %v737, %v724
  %v842 = vpack.c.b16 %v738, %v725
  %v843 = vpack.c.b16 %v739, %v726
  %v844 = vpack.c.b16 %v740, %v727
  %v845 = vpack.c.b16 %v741, %v728
  %v846 = vpack.c.b16 %v742, %v729
  %v847 = vpack.c.b16 %v743, %v730
  %v848 = vpack.c.b16 %v744, %v731
  %v1145 = vunpack.c.l.b16 %v129
  %v1146 = vunpack.c.l.b16 %v130
  %v1147 = vunpack.c.l.b16 %v131
  %v1148 = vunpack.c.l.b16 %v132
  %v1149 = vunpack.c.l.b16 %v133
  %v1150 = vunpack.c.l.b16 %v134
  %v1151 = vunpack.c.l.b16 %v135
  %v1152 = vunpack.c.l.b16 %v136
  %v1153 = vunpack.c.l.b16 %v137
  %v1154 = vunpack.c.l.b16 %v138
  %v1155 = vunpack.c.l.b16 %v139
  %v1156 = vunpack.c.l.b16 %v140
  %v1157 = vunpack.c.l.b16 %v141
  %v1158 = vunpack.c.l.b16 %v142
  %v1159 = vunpack.c.l.b16 %v143
  %v1160 = vunpack.c.l.b16 %v144
  %v1161 = vunpack.c.l.b16 %v145
  %v1162 = vunpack.c.l.b16 %v146
  %v1163 = vunpack.c.l.b16 %v147
  %v1164 = vunpack.c.l.b16 %v148
  %v1165 = vunpack.c.l.b16 %v149
  %v1166 = vunpack.c.l.b16 %v150
  %v1167 = vunpack.c.l.b16 %v151
  %v1168 = vunpack.c.l.b16 %v152
  %v1169 = vunpack.c.l.b16 %v153
  %v1170 = vunpack.c.l.b16 %v154
  %v1171 = vunpack.c.l.b16 %v155
  %v1172 = vunpack.c.l.b16 %v156
  %v1173 = vunpack.c.l.b16 %v157
  %v1174 = vunpack.c.l.b16 %v158
  %v1175 = vunpack.c.l.b16 %v159
  %v1176 = vunpack.c.l.b16 %v160
  %v1177 = vunpack.c.l.b16 %v161
  %v1178 = vunpack.c.l.b16 %v162
  %v1179 = vunpack.c.l.b16 %v163
  %v1180 = vunpack.c.l.b16 %v164
  %v1181 = vunpack.c.l.b16 %v165
  %v1182 = vunpack.c.l.b16 %v166
  %v1183 = vunpack.c.l.b16 %v167
  %v1184 = vunpack.c.l.b16 %v168
  %v1185 = vunpack.c.l.b16 %v169
  %v1186 = vunpack.c.l.b16 %v170
  %v1187 = vunpack.c.l.b16 %v171
  %v1188 = vunpack.c.l.b16 %v172
  %v1189 = vunpack.c.l.b16 %v173
  %v1190 = vunpack.c.l.b16 %v174
  %v1191 = vunpack.c.l.b16 %v175
  %v1192 = vunpack.c.l.b16 %v176
  %v1193 = vunpack.c.l.b16 %v177
  %v1194 = vunpack.c.l.b16 %v178
  %v1195 = vunpack.c.l.b16 %v179
  %v1196 = vunpack.c.l.b16 %v180
  %v1197 = vunpack.c.l.b16 %v181
  %v1198 = vunpack.c.l.b16 %v182
  %v1199 = vunpack.c.l.b16 %v183
  %v1200 = vunpack.c.l.b16 %v184
  %v1201 = vunpack.c.l.b16 %v185
  %v1202 = vunpack.c.l.b16 %v186
  %v1203 = vunpack.c.l.b16 %v187
  %v1204 = vunpack.c.l.b16 %v188
  %v1205 = vunpack.c.l.b16 %v189
  %v1206 = vunpack.c.l.b16 %v190
  %v1207 = vunpack.c.l.b16 %v191
  %v1208 = vunpack.c.l.b16 %v192
  %v1209 = vunpack.c.l.b16 %v193
  %v1210 = vunpack.c.l.b16 %v194
  %v1211 = vunpack.c.l.b16 %v195
  %v1212 = vunpack.c.l.b16 %v196
  %v1213 = vunpack.c.l.b16 %v197
  %v1214 = vunpack.c.l.b16 %v198
  %v1215 = vunpack.c.l.b16 %v199
  %v1216 = vunpack.c.l.b16 %v200
  %v1217 = vunpack.c.l.b16 %v201
  %v1218 = vunpack.c.l.b16 %v202
  %v1219 = vunpack.c.l.b16 %v203
  %v1220 = vunpack.c.l.b16 %v204
  %v1221 = vunpack.c.l.b16 %v205
  %v1222 = vunpack.c.l.b16 %v206
  %v1223 = vunpack.c.l.b16 %v207
  %v1224 = vunpack.c.l.b16 %v208
  %v1225 = vunpack.c.l.b16 %v209
  %v1226 = vunpack.c.l.b16 %v210
  %v1227 = vunpack.c.l.b16 %v211
  %v1228 = vunpack.c.l.b16 %v212
  %v1229 = vunpack.c.l.b16 %v213
  %v1230 = vunpack.c.l.b16 %v214
  %v1231 = vunpack.c.l.b16 %v215
  %v1232 = vunpack.c.l.b16 %v216
  %v1233 = vunpack.c.l.b16 %v217
  %v1234 = vunpack.c.l.b16 %v218
  %v1235 = vunpack.c.l.b16 %v219
  %v1236 = vunpack.c.l.b16 %v220
  %v1237 = vunpack.c.l.b16 %v221
  %v1238 = vunpack.c.l.b16 %v222
  %v1239 = vunpack.c.l.b16 %v223
  %v1240 = vunpack.c.l.b16 %v224
  %v1241 = vunpack.c.l.b16 %v225
  %v1242 = vunpack.c.l.b16 %v226
  %v1243 = vunpack.c.l.b16 %v227
  %v1244 = vunpack.c.l.b16 %v228
  %v1245 = vunpack.c.l.b16 %v229
  %v1246 = vunpack.c.l.b16 %v230
  %v1247 = vunpack.c.l.b16 %v231
  %v1248 = vunpack.c.l.b16 %v232
  %v1249 = vunpack.c.l.b16 %v233
  %v1250 = vunpack.c.l.b16 %v234
  %v1251 = vunpack.c.l.b16 %v235
  %v1252 = vunpack.c.l.b16 %v236
  %v1253 = vunpack.c.l.b16 %v237
  %v1254 = vunpack.c.l.b16 %v238
  %v1255 = vunpack.c.l.b16 %v239
  %v1256 = vunpack.c.l.b16 %v240
  %v1257 = vunpack.c.l.b16 %v241
  %v1258 = vunpack.c.l.b16 %v242
  %v1259 = vunpack.c.l.b16 %v243
  %v1260 = vunpack.c.l.b16 %v244
  %v1261 = vunpack.c.l.b16 %v245
  %v1262 = vunpack.c.l.b16 %v246
  %v1263 = vunpack.c.l.b16 %v247
  %v1264 = vunpack.c.l.b16 %v248
  %v1265 = vunpack.c.l.b16 %v249
  %v1266 = vunpack.c.l.b16 %v250
  %v1267 = vunpack.c.l.b16 %v251
  %v1268 = vunpack.c.l.b16 %v252
  %v1269 = vunpack.c.l.b16 %v253
  %v1270 = vunpack.c.l.b16 %v254
  %v1271 = vunpack.c.l.b16 %v255
  %v1272 = vunpack.c.l.b16 %v256
  %v1273 = vunpack.c.l.b16 %v257
  %v1274 = vunpack.c.l.b16 %v258
  %v1275 = vunpack.c.l.b16 %v259
  %v1276 = vunpack.c.l.b16 %v260
  %v1277 = vunpack.c.l.b16 %v261
  %v1278 = vunpack.c.l.b16 %v262
  %v1279 = vunpack.c.l.b16 %v263
  %v1280 = vunpack.c.l.b16 %v264
  %v1281 = vunpack.c.l.b16 %v265
  %v1282 = vunpack.c.l.b16 %v266
  %v1283 = vunpack.c.l.b16 %v267
  %v1284 = vunpack.c.l.b16 %v268
  %v1285 = vunpack.c.l.b16 %v269
  %v1286 = vunpack.c.l.b16 %v270
  %v1287 = vunpack.c.l.b16 %v271
  %v1288 = vunpack.c.l.b16 %v272
  %v1289 = vunpack.c.l.b16 %v273
  %v1290 = vunpack.c.l.b16 %v274
  %v1291 = vunpack.c.l.b16 %v275
  %v1292 = vunpack.c.l.b16 %v276
  %v1293 = vunpack.c.l.b16 %v277
  %v1294 = vunpack.c.l.b16 %v278
  %v1295 = vunpack.c.l.b16 %v279
  %v1296 = vunpack.c.l.b16 %v280
  %v1297 = vunpack.c.l.b16 %v281
  %v1298 = vunpack.c.l.b16 %v282
  %v1299 = vunpack.c.l.b16 %v283
  %v1300 = vunpack.c.l.b16 %v284
  %v1301 = vunpack.c.l.b16 %v285
  %v1302 = vunpack.c.l.b16 %v286
  %v1303 = vunpack.c.l.b16 %v287
  %v1304 = vunpack.c.l.b16 %v288
  %v1305 = vunpack.c.l.b16 %v289
  %v1306 = vunpack.c.l.b16 %v290
  %v1307 = vunpack.c.l.b16 %v291
  %v1308 = vunpack.c.l.b16 %v292
  %v1309 = vunpack.c.l.b16 %v293
  %v1310 = vunpack.c.l.b16 %v294
  %v1311 = vunpack.c.l.b16 %v295
  %v1312 = vunpack.c.l.b16 %v296
  %v1313 = vunpack.c.l.b16 %v297
  %v1314 = vunpack.c.l.b16 %v298
  %v1315 = vunpack.c.l.b16 %v299
  %v1316 = vunpack.c.l.b16 %v300
  %v1317 = vunpack.c.l.b16 %v301
  %v1318 = vunpack.c.l.b16 %v302
  %v1319 = vunpack.c.l.b16 %v303
  %v1320 = vunpack.c.l.b16 %v304
  %v1321 = vunpack.c.l.b16 %v305
  %v1322 = vunpack.c.l.b16 %v306
  %v1323 = vunpack.c.l.b16 %v307
  %v1324 = vunpack.c.l.b16 %v308
  %v1325 = vunpack.c.l.b16 %v309
  %v1326 = vunpack.c.l.b16 %v310
  %v1327 = vunpack.c.l.b16 %v311
  %v1328 = vunpack.c.l.b16 %v312
  %v1329 = vunpack.c.l.b16 %v313
  %v1330 = vunpack.c.l.b16 %v314
  %v1331 = vunpack.c.l.b16 %v315
  %v1332 = vunpack.c.l.b16 %v316
  %v1333 = vunpack.c.l.b16 %v317
  %v1334 = vunpack.c.l.b16 %v318
  %v1335 = vunpack.c.l.b16 %v319
  %v1336 = vunpack.c.l.b16 %v320
  %v1337 = vunpack.c.l.b16 %v321
  %v1338 = vunpack.c.l.b16 %v322
  %v1339 = vunpack.c.l.b16 %v323
  %v1340 = vunpack.c.l.b16 %v324
  %v1341 = vunpack.c.l.b16 %v325
  %v1342 = vunpack.c.l.b16 %v326
  %v1343 = vunpack.c.l.b16 %v327
  %v1344 = vunpack.c.l.b16 %v328
  %v1345 = vpack.c.b16 %v1146, %v1145
  %v1346 = vpack.c.b16 %v1148, %v1147
  %v1347 = vpack.c.b16 %v1150, %v1149
  %v1348 = vpack.c.b16 %v1152, %v1151
  %v1349 = vpack.c.b16 %v1154, %v1153
  %v1350 = vpack.c.b16 %v1156, %v1155
  %v1351 = vpack.c.b16 %v1158, %v1157
  %v1352 = vpack.c.b16 %v1160, %v1159
  %v1353 = vpack.c.b16 %v1162, %v1161
  %v1354 = vpack.c.b16 %v1164, %v1163
  %v1355 = vpack.c.b16 %v1166, %v1165
  %v1356 = vpack.c.b16 %v1168, %v1167
  %v1357 = vpack.c.b16 %v1170, %v1169
  %v1358 = vpack.c.b16 %v1172, %v1171
  %v1359 = vpack.c.b16 %v1174, %v1173
  %v1360 = vpack.c.b16 %v1176, %v1175
  %v1361 = vpack.c.b16 %v1178, %v1177
  %v1362 = vpack.c.b16 %v1180, %v1179
  %v1363 = vpack.c.b16 %v1182, %v1181
  %v1364 = vpack.c.b16 %v1184, %v1183
  %v1365 = vpack.c.b16 %v1186, %v1185
  %v1366 = vpack.c.b16 %v1188, %v1187
  %v1367 = vpack.c.b16 %v1190, %v1189
  %v1368 = vpack.c.b16 %v1192, %v1191
  %v1369 = vpack.c.b16 %v1194, %v1193
  %v1370 = vpack.c.b16 %v1196, %v1195
  %v1371 = vpack.c.b16 %v1198, %v1197
  %v1372 = vpack.c.b16 %v1200, %v1199
  %v1373 = vpack.c.b16 %v1202, %v1201
  %v1374 = vpack.c.b16 %v1204, %v1203
  %v1375 = vpack.c.b16 %v1206, %v1205
  %v1376 = vpack.c.b16 %v1208, %v1207
  %v1377 = vpack.c.b16 %v1210, %v1209
  %v1378 = vpack.c.b16 %v1212, %v1211
  %v1379 = vpack.c.b16 %v1214, %v1213
  %v1380 = vpack.c.b16 %v1216, %v1215
  %v1381 = vpack.c.b16 %v1218, %v1217
  %v1382 = vpack.c.b16 %v1220, %v1219
  %v1383 = vpack.c.b16 %v1222, %v1221
  %v1384 = vpack.c.b16 %v1224, %v1223
  %v1385 = vpack.c.b16 %v1226, %v1225
  %v1386 = vpack.c.b16 %v1228, %v1227
  %v1387 = vpack.c.b16 %v1230, %v1229
  %v1388 = vpack.c.b16 %v1232, %v1231
  %v1389 = vpack.c.b16 %v1234, %v1233
  %v1390 = vpack.c.b16 %v1236, %v1235
  %v1391 = vpack.c.b16 %v1238, %v1237
  %v1392 = vpack.c.b16 %v1240, %v1239
  %v1393 = vpack.c.b16 %v1242, %v1241
  %v1394 = vpack.c.b16 %v1244, %v1243
  %v1395 = vpack.c.b16 %v1246, %v1245
  %v1396 = vpack.c.b16 %v1248, %v1247
  %v1397 = vpack.c.b16 %v1250, %v1249
  %v1398 = vpack.c.b16 %v1252, %v1251
  %v1399 = vpack.c.b16 %v1254, %v1253
  %v1400 = vpack.c.b16 %v1256, %v1255
  %v1401 = vpack.c.b16 %v1258, %v1257
  %v1402 = vpack.c.b16 %v1260, %v1259
  %v1403 = vpack.c.b16 %v1262, %v1261
  %v1404 = vpack.c.b16 %v1264, %v1263
  %v1405 = vpack.c.b16 %v1266, %v1265
  %v1406 = vpack.c.b16 %v1268, %v1267
  %v1407 = vpack.c.b16 %v1270, %v1269
  %v1408 = vpack.c.b16 %v1272, %v1271
  %v1409 = vpack.c.b16 %v1274, %v1273
  %v1410 = vpack.c.b16 %v1276, %v1275
  %v1411 = vpack.c.b16 %v1278, %v1277
  %v1412 = vpack.c.b16 %v1280, %v1279
  %v1413 = vpack.c.b16 %v1282, %v1281
  %v1414 = vpack.c.b16 %v1284, %v1283
  %v1415 = vpack.c.b16 %v1286, %v1285
  %v1416 = vpack.c.b16 %v1288, %v1287
  %v1417 = vpack.c.b16 %v1290, %v1289
  %v1418 = vpack.c.b16 %v1292, %v1291
  %v1419 = vpack.c.b16 %v1294, %v1293
  %v1420 = vpack.c.b16 %v1296, %v1295
  %v1421 = vpack.c.b16 %v1298, %v1297
  %v1422 = vpack.c.b16 %v1300, %v1299
  %v1423 = vpack.c.b16 %v1302, %v1301
  %v1424 = vpack.c.b16 %v1304, %v1303
  %v1425 = vpack.c.b16 %v1306, %v1305
  %v1426 = vpack.c.b16 %v1308, %v1307
  %v1427 = vpack.c.b16 %v1310, %v1309
  %v1428 = vpack.c.b16 %v1312, %v1311
  %v1429 = vpack.c.b16 %v1314, %v1313
  %v1430 = vpack.c.b16 %v1316, %v1315
  %v1431 = vpack.c.b16 %v1318, %v1317
  %v1432 = vpack.c.b16 %v1320, %v1319
  %v1433 = vpack.c.b16 %v1322, %v1321
  %v1434 = vpack.c.b16 %v1324, %v1323
  %v1435 = vpack.c.b16 %v1326, %v1325
  %v1436 = vpack.c.b16 %v1328, %v1327
  %v1437 = vpack.c.b16 %v1330, %v1329
  %v1438 = vpack.c.b16 %v1332, %v1331
  %v1439 = vpack.c.b16 %v1334, %v1333
  %v1440 = vpack.c.b16 %v1336, %v1335
  %v1441 = vpack.c.b16 %v1338, %v1337
  %v1442 = vpack.c.b16 %v1340, %v1339
  %v1443 = vpack.c.b16 %v1342, %v1341
  %v1444 = vpack.c.b16 %v1344, %v1343
  %vm1545 = vcmask 523264
  %v1547 = vsel %vm1545, %v757, 0
  %v1550 = vsel %vm1545, %v770, 0
  %v1553 = vsel %vm1545, %v783, 0
  %v1556 = vsel %vm1545, %v796, 0
  %v1559 = vsel %vm1545, %v809, 0
  %v1562 = vsel %vm1545, %v822, 0
  %v1565 = vsel %vm1545, %v835, 0
  %v1568 = vsel %vm1545, %v848, 0
  %1570 = vmatprep.subr.bf16.mxu0 0
  %1571 = vmatpush1.bf16.msra.mxu0 %v1345
  %1572 = vmatprep.subr.bf16.mxu0 0
  %1573 = vmatpush1.bf16.msra.mxu0 %v1346
  %1574 = vmatprep.subr.bf16.mxu0 0
  %1575 = vmatpush1.bf16.msra.mxu0 %v1347
  %1576 = vmatprep.subr.bf16.mxu0 0
  %1577 = vmatpush1.bf16.msra.mxu0 %v1348
  %1578 = vmatprep.subr.bf16.mxu0 0
  %1579 = vmatpush1.bf16.msra.mxu0 %v1349
  %1580 = vmatprep.subr.bf16.mxu0 0
  %1581 = vmatpush1.bf16.msra.mxu0 %v1350
  %1582 = vmatprep.subr.bf16.mxu0 0
  %1583 = vmatpush1.bf16.msra.mxu0 %v1351
  %1584 = vmatprep.subr.bf16.mxu0 0
  %1585 = vmatpush1.bf16.msra.mxu0 %v1352
  %1586 = vmatprep.subr.bf16.mxu0 0
  %1587 = vmatpush1.bf16.msra.mxu0 %v1353
  %1588 = vmatprep.subr.bf16.mxu0 0
  %1589 = vmatpush1.bf16.msra.mxu0 %v1354
  %1590 = vmatprep.subr.bf16.mxu0 0
  %1591 = vmatpush1.bf16.msra.mxu0 %v1355
  %1592 = vmatprep.subr.bf16.mxu0 0
  %1593 = vmatpush1.bf16.msra.mxu0 %v1356
  %1594 = vmatprep.subr.bf16.mxu0 0
  %1595 = vmatpush1.bf16.msra.mxu0 %v1357
  %1596 = vmatprep.subr.bf16.mxu0 0
  %1597 = vmatpush1.bf16.msra.mxu0 %v1358
  %1598 = vmatprep.subr.bf16.mxu0 0
  %1599 = vmatpush1.bf16.msra.mxu0 %v1359
  %1600 = vmatprep.subr.bf16.mxu0 0
  %1601 = vmatpush1.bf16.msra.mxu0 %v1360
  %1602 = vmatprep.mubr.bf16.mxu0 %v746
  %1603 = vmatmul.mubr.bf16.gmra.mrb[0].mxu0 %v745
  %v1604 = vpop.f32.mrb[0].mxu0
  %v1605 = vadd.f32 %v348, %v1604
  %v1606 = vpop.f32.mrb[0].mxu0
  %v1607 = vpop.f32.mrb[0].mxu0
  %v1608 = vadd.f32 %v353, %v1607
  %v1609 = vpop.f32.mrb[0].mxu0
  %1610 = vmatprep.mubr.bf16.mxu0 %v759
  %1611 = vmatmul.mubr.bf16.gmra.mrb[0].mxu0 %v758
  %v1612 = vpop.f32.mrb[0].mxu0
  %v1613 = vadd.f32 %v358, %v1612
  %v1614 = vpop.f32.mrb[0].mxu0
  %v1615 = vpop.f32.mrb[0].mxu0
  %v1616 = vadd.f32 %v363, %v1615
  %v1617 = vpop.f32.mrb[0].mxu0
  %1618 = vmatprep.mubr.bf16.mxu0 %v772
  %1619 = vmatmul.mubr.bf16.gmra.mrb[0].mxu0 %v771
  %v1620 = vpop.f32.mrb[0].mxu0
  %v1621 = vadd.f32 %v368, %v1620
  %v1622 = vpop.f32.mrb[0].mxu0
  %v1623 = vpop.f32.mrb[0].mxu0
  %v1624 = vadd.f32 %v373, %v1623
  %v1625 = vpop.f32.mrb[0].mxu0
  %1626 = vmatprep.mubr.bf16.mxu0 %v785
  %1627 = vmatmul.mubr.bf16.gmra.mrb[0].mxu0 %v784
  %v1628 = vpop.f32.mrb[0].mxu0
  %v1629 = vadd.f32 %v378, %v1628
  %v1630 = vpop.f32.mrb[0].mxu0
  %v1631 = vpop.f32.mrb[0].mxu0
  %v1632 = vadd.f32 %v383, %v1631
  %v1633 = vpop.f32.mrb[0].mxu0
  %1634 = vmatprep.mubr.bf16.mxu0 %v798
  %1635 = vmatmul.mubr.bf16.gmra.mrb[0].mxu0 %v797
  %v1636 = vpop.f32.mrb[0].mxu0
  %v1637 = vadd.f32 %v388, %v1636
  %v1638 = vpop.f32.mrb[0].mxu0
  %v1639 = vpop.f32.mrb[0].mxu0
  %v1640 = vadd.f32 %v393, %v1639
  %v1641 = vpop.f32.mrb[0].mxu0
  %1642 = vmatprep.mubr.bf16.mxu0 %v811
  %1643 = vmatmul.mubr.bf16.gmra.mrb[0].mxu0 %v810
  %v1644 = vpop.f32.mrb[0].mxu0
  %v1645 = vadd.f32 %v398, %v1644
  %v1646 = vpop.f32.mrb[0].mxu0
  %v1647 = vpop.f32.mrb[0].mxu0
  %v1648 = vadd.f32 %v403, %v1647
  %v1649 = vpop.f32.mrb[0].mxu0
  %1650 = vmatprep.mubr.bf16.mxu0 %v824
  %1651 = vmatmul.mubr.bf16.gmra.mrb[0].mxu0 %v823
  %v1652 = vpop.f32.mrb[0].mxu0
  %v1653 = vadd.f32 %v408, %v1652
  %v1654 = vpop.f32.mrb[0].mxu0
  %v1655 = vpop.f32.mrb[0].mxu0
  %v1656 = vadd.f32 %v413, %v1655
  %v1657 = vpop.f32.mrb[0].mxu0
  %1658 = vmatprep.mubr.bf16.mxu0 %v837
  %1659 = vmatmul.mubr.bf16.gmra.mrb[0].mxu0 %v836
  %v1660 = vpop.f32.mrb[0].mxu0
  %v1661 = vadd.f32 %v418, %v1660
  %v1662 = vpop.f32.mrb[0].mxu0
  %v1663 = vpop.f32.mrb[0].mxu0
  %v1664 = vadd.f32 %v423, %v1663
  %v1665 = vpop.f32.mrb[0].mxu0
  %1666 = vdwg.mxu0
  %1667 = vmatprep.subr.bf16.mxu0 0
  %1668 = vmatpush1.bf16.msra.mxu0 %v1361
  %1669 = vmatprep.subr.bf16.mxu0 0
  %1670 = vmatpush1.bf16.msra.mxu0 %v1362
  %1671 = vmatprep.subr.bf16.mxu0 0
  %1672 = vmatpush1.bf16.msra.mxu0 %v1363
  %1673 = vmatprep.subr.bf16.mxu0 0
  %1674 = vmatpush1.bf16.msra.mxu0 %v1364
  %1675 = vmatprep.subr.bf16.mxu0 0
  %1676 = vmatpush1.bf16.msra.mxu0 %v1365
  %1677 = vmatprep.subr.bf16.mxu0 0
  %1678 = vmatpush1.bf16.msra.mxu0 %v1366
  %1679 = vmatprep.subr.bf16.mxu0 0
  %1680 = vmatpush1.bf16.msra.mxu0 %v1367
  %1681 = vmatprep.subr.bf16.mxu0 0
  %1682 = vmatpush1.bf16.msra.mxu0 %v1368
  %1683 = vmatprep.subr.bf16.mxu0 0
  %1684 = vmatpush1.bf16.msra.mxu0 %v1369
  %1685 = vmatprep.subr.bf16.mxu0 0
  %1686 = vmatpush1.bf16.msra.mxu0 %v1370
  %1687 = vmatprep.subr.bf16.mxu0 0
  %1688 = vmatpush1.bf16.msra.mxu0 %v1371
  %1689 = vmatprep.subr.bf16.mxu0 0
  %1690 = vmatpush1.bf16.msra.mxu0 %v1372
  %1691 = vmatprep.subr.bf16.mxu0 0
  %1692 = vmatpush1.bf16.msra.mxu0 %v1373
  %1693 = vmatprep.subr.bf16.mxu0 0
  %1694 = vmatpush1.bf16.msra.mxu0 %v1374
  %1695 = vmatprep.subr.bf16.mxu0 0
  %1696 = vmatpush1.bf16.msra.mxu0 %v1375
  %1697 = vmatprep.subr.bf16.mxu0 0
  %1698 = vmatpush1.bf16.msra.mxu0 %v1376
  %1699 = vmatprep.mubr.bf16.mxu0 %v748
  %1700 = vmatmul.mubr.bf16.gmra.mrb[0].mxu0 %v747
  %v1701 = vpop.f32.mrb[0].mxu0
  %v1702 = vadd.f32 %v1605, %v1701
  %v1703 = vpop.f32.mrb[0].mxu0
  %v1704 = vpop.f32.mrb[0].mxu0
  %v1705 = vadd.f32 %v1608, %v1704
  %v1706 = vpop.f32.mrb[0].mxu0
  %1707 = vmatprep.mubr.bf16.mxu0 %v761
  %1708 = vmatmul.mubr.bf16.gmra.mrb[0].mxu0 %v760
  %v1709 = vpop.f32.mrb[0].mxu0
  %v1710 = vadd.f32 %v1613, %v1709
  %v1711 = vpop.f32.mrb[0].mxu0
  %v1712 = vpop.f32.mrb[0].mxu0
  %v1713 = vadd.f32 %v1616, %v1712
  %v1714 = vpop.f32.mrb[0].mxu0
  %1715 = vmatprep.mubr.bf16.mxu0 %v774
  %1716 = vmatmul.mubr.bf16.gmra.mrb[0].mxu0 %v773
  %v1717 = vpop.f32.mrb[0].mxu0
  %v1718 = vadd.f32 %v1621, %v1717
  %v1719 = vpop.f32.mrb[0].mxu0
  %v1720 = vpop.f32.mrb[0].mxu0
  %v1721 = vadd.f32 %v1624, %v1720
  %v1722 = vpop.f32.mrb[0].mxu0
  %1723 = vmatprep.mubr.bf16.mxu0 %v787
  %1724 = vmatmul.mubr.bf16.gmra.mrb[0].mxu0 %v786
  %v1725 = vpop.f32.mrb[0].mxu0
  %v1726 = vadd.f32 %v1629, %v1725
  %v1727 = vpop.f32.mrb[0].mxu0
  %v1728 = vpop.f32.mrb[0].mxu0
  %v1729 = vadd.f32 %v1632, %v1728
  %v1730 = vpop.f32.mrb[0].mxu0
  %1731 = vmatprep.mubr.bf16.mxu0 %v800
  %1732 = vmatmul.mubr.bf16.gmra.mrb[0].mxu0 %v799
  %v1733 = vpop.f32.mrb[0].mxu0
  %v1734 = vadd.f32 %v1637, %v1733
  %v1735 = vpop.f32.mrb[0].mxu0
  %v1736 = vpop.f32.mrb[0].mxu0
  %v1737 = vadd.f32 %v1640, %v1736
  %v1738 = vpop.f32.mrb[0].mxu0
  %1739 = vmatprep.mubr.bf16.mxu0 %v813
  %1740 = vmatmul.mubr.bf16.gmra.mrb[0].mxu0 %v812
  %v1741 = vpop.f32.mrb[0].mxu0
  %v1742 = vadd.f32 %v1645, %v1741
  %v1743 = vpop.f32.mrb[0].mxu0
  %v1744 = vpop.f32.mrb[0].mxu0
  %v1745 = vadd.f32 %v1648, %v1744
  %v1746 = vpop.f32.mrb[0].mxu0
  %1747 = vmatprep.mubr.bf16.mxu0 %v826
  %1748 = vmatmul.mubr.bf16.gmra.mrb[0].mxu0 %v825
  %v1749 = vpop.f32.mrb[0].mxu0
  %v1750 = vadd.f32 %v1653, %v1749
  %v1751 = vpop.f32.mrb[0].mxu0
  %v1752 = vpop.f32.mrb[0].mxu0
  %v1753 = vadd.f32 %v1656, %v1752
  %v1754 = vpop.f32.mrb[0].mxu0
  %1755 = vmatprep.mubr.bf16.mxu0 %v839
  %1756 = vmatmul.mubr.bf16.gmra.mrb[0].mxu0 %v838
  %v1757 = vpop.f32.mrb[0].mxu0
  %v1758 = vadd.f32 %v1661, %v1757
  %v1759 = vpop.f32.mrb[0].mxu0
  %v1760 = vpop.f32.mrb[0].mxu0
  %v1761 = vadd.f32 %v1664, %v1760
  %v1762 = vpop.f32.mrb[0].mxu0
  %1763 = vdwg.mxu0
  %1764 = vmatprep.subr.bf16.mxu0 0
  %1765 = vmatpush1.bf16.msra.mxu0 %v1377
  %1766 = vmatprep.subr.bf16.mxu0 0
  %1767 = vmatpush1.bf16.msra.mxu0 %v1378
  %1768 = vmatprep.subr.bf16.mxu0 0
  %1769 = vmatpush1.bf16.msra.mxu0 %v1379
  %1770 = vmatprep.subr.bf16.mxu0 0
  %1771 = vmatpush1.bf16.msra.mxu0 %v1380
  %1772 = vmatprep.subr.bf16.mxu0 0
  %1773 = vmatpush1.bf16.msra.mxu0 %v1381
  %1774 = vmatprep.subr.bf16.mxu0 0
  %1775 = vmatpush1.bf16.msra.mxu0 %v1382
  %1776 = vmatprep.subr.bf16.mxu0 0
  %1777 = vmatpush1.bf16.msra.mxu0 %v1383
  %1778 = vmatprep.subr.bf16.mxu0 0
  %1779 = vmatpush1.bf16.msra.mxu0 %v1384
  %1780 = vmatprep.subr.bf16.mxu0 0
  %1781 = vmatpush1.bf16.msra.mxu0 %v1385
  %1782 = vmatprep.subr.bf16.mxu0 0
  %1783 = vmatpush1.bf16.msra.mxu0 %v1386
  %1784 = vmatprep.subr.bf16.mxu0 0
  %1785 = vmatpush1.bf16.msra.mxu0 %v1387
  %1786 = vmatprep.subr.bf16.mxu0 0
  %1787 = vmatpush1.bf16.msra.mxu0 %v1388
  %1788 = vmatprep.subr.bf16.mxu0 0
  %1789 = vmatpush1.bf16.msra.mxu0 %v1389
  %1790 = vmatprep.subr.bf16.mxu0 0
  %1791 = vmatpush1.bf16.msra.mxu0 %v1390
  %1792 = vmatprep.subr.bf16.mxu0 0
  %1793 = vmatpush1.bf16.msra.mxu0 %v1391
  %1794 = vmatprep.subr.bf16.mxu0 0
  %1795 = vmatpush1.bf16.msra.mxu0 %v1392
  %1796 = vmatprep.mubr.bf16.mxu0 %v750
  %1797 = vmatmul.mubr.bf16.gmra.mrb[0].mxu0 %v749
  %v1798 = vpop.f32.mrb[0].mxu0
  %v1799 = vadd.f32 %v1702, %v1798
  %v1800 = vpop.f32.mrb[0].mxu0
  %v1801 = vpop.f32.mrb[0].mxu0
  %v1802 = vadd.f32 %v1705, %v1801
  %v1803 = vpop.f32.mrb[0].mxu0
  %1804 = vmatprep.mubr.bf16.mxu0 %v763
  %1805 = vmatmul.mubr.bf16.gmra.mrb[0].mxu0 %v762
  %v1806 = vpop.f32.mrb[0].mxu0
  %v1807 = vadd.f32 %v1710, %v1806
  %v1808 = vpop.f32.mrb[0].mxu0
  %v1809 = vpop.f32.mrb[0].mxu0
  %v1810 = vadd.f32 %v1713, %v1809
  %v1811 = vpop.f32.mrb[0].mxu0
  %1812 = vmatprep.mubr.bf16.mxu0 %v776
  %1813 = vmatmul.mubr.bf16.gmra.mrb[0].mxu0 %v775
  %v1814 = vpop.f32.mrb[0].mxu0
  %v1815 = vadd.f32 %v1718, %v1814
  %v1816 = vpop.f32.mrb[0].mxu0
  %v1817 = vpop.f32.mrb[0].mxu0
  %v1818 = vadd.f32 %v1721, %v1817
  %v1819 = vpop.f32.mrb[0].mxu0
  %1820 = vmatprep.mubr.bf16.mxu0 %v789
  %1821 = vmatmul.mubr.bf16.gmra.mrb[0].mxu0 %v788
  %v1822 = vpop.f32.mrb[0].mxu0
  %v1823 = vadd.f32 %v1726, %v1822
  %v1824 = vpop.f32.mrb[0].mxu0
  %v1825 = vpop.f32.mrb[0].mxu0
  %v1826 = vadd.f32 %v1729, %v1825
  %v1827 = vpop.f32.mrb[0].mxu0
  %1828 = vmatprep.mubr.bf16.mxu0 %v802
  %1829 = vmatmul.mubr.bf16.gmra.mrb[0].mxu0 %v801
  %v1830 = vpop.f32.mrb[0].mxu0
  %v1831 = vadd.f32 %v1734, %v1830
  %v1832 = vpop.f32.mrb[0].mxu0
  %v1833 = vpop.f32.mrb[0].mxu0
  %v1834 = vadd.f32 %v1737, %v1833
  %v1835 = vpop.f32.mrb[0].mxu0
  %1836 = vmatprep.mubr.bf16.mxu0 %v815
  %1837 = vmatmul.mubr.bf16.gmra.mrb[0].mxu0 %v814
  %v1838 = vpop.f32.mrb[0].mxu0
  %v1839 = vadd.f32 %v1742, %v1838
  %v1840 = vpop.f32.mrb[0].mxu0
  %v1841 = vpop.f32.mrb[0].mxu0
  %v1842 = vadd.f32 %v1745, %v1841
  %v1843 = vpop.f32.mrb[0].mxu0
  %1844 = vmatprep.mubr.bf16.mxu0 %v828
  %1845 = vmatmul.mubr.bf16.gmra.mrb[0].mxu0 %v827
  %v1846 = vpop.f32.mrb[0].mxu0
  %v1847 = vadd.f32 %v1750, %v1846
  %v1848 = vpop.f32.mrb[0].mxu0
  %v1849 = vpop.f32.mrb[0].mxu0
  %v1850 = vadd.f32 %v1753, %v1849
  %v1851 = vpop.f32.mrb[0].mxu0
  %1852 = vmatprep.mubr.bf16.mxu0 %v841
  %1853 = vmatmul.mubr.bf16.gmra.mrb[0].mxu0 %v840
  %v1854 = vpop.f32.mrb[0].mxu0
  %v1855 = vadd.f32 %v1758, %v1854
  %v1856 = vpop.f32.mrb[0].mxu0
  %v1857 = vpop.f32.mrb[0].mxu0
  %v1858 = vadd.f32 %v1761, %v1857
  %v1859 = vpop.f32.mrb[0].mxu0
  %1860 = vdwg.mxu0
  %1861 = vmatprep.subr.bf16.mxu0 0
  %1862 = vmatpush1.bf16.msra.mxu0 %v1393
  %1863 = vmatprep.subr.bf16.mxu0 0
  %1864 = vmatpush1.bf16.msra.mxu0 %v1394
  %1865 = vmatprep.subr.bf16.mxu0 0
  %1866 = vmatpush1.bf16.msra.mxu0 %v1395
  %1867 = vmatprep.subr.bf16.mxu0 0
  %1868 = vmatpush1.bf16.msra.mxu0 %v1396
  %1869 = vmatprep.subr.bf16.mxu0 0
  %1870 = vmatpush1.bf16.msra.mxu0 %v1397
  %1871 = vmatprep.subr.bf16.mxu0 0
  %1872 = vmatpush1.bf16.msra.mxu0 %v1398
  %1873 = vmatprep.subr.bf16.mxu0 0
  %1874 = vmatpush1.bf16.msra.mxu0 %v1399
  %1875 = vmatprep.subr.bf16.mxu0 0
  %1876 = vmatpush1.bf16.msra.mxu0 %v1400
  %1877 = vmatprep.subr.bf16.mxu0 0
  %1878 = vmatpush1.bf16.msra.mxu0 %v1401
  %1879 = vmatprep.subr.bf16.mxu0 0
  %1880 = vmatpush1.bf16.msra.mxu0 %v1402
  %1881 = vmatprep.subr.bf16.mxu0 0
  %1882 = vmatpush1.bf16.msra.mxu0 %v1403
  %1883 = vmatprep.subr.bf16.mxu0 0
  %1884 = vmatpush1.bf16.msra.mxu0 %v1404
  %1885 = vmatprep.subr.bf16.mxu0 0
  %1886 = vmatpush1.bf16.msra.mxu0 %v1405
  %1887 = vmatprep.subr.bf16.mxu0 0
  %1888 = vmatpush1.bf16.msra.mxu0 %v1406
  %1889 = vmatprep.subr.bf16.mxu0 0
  %1890 = vmatpush1.bf16.msra.mxu0 %v1407
  %1891 = vmatprep.subr.bf16.mxu0 0
  %1892 = vmatpush1.bf16.msra.mxu0 %v1408
  %1893 = vmatprep.mubr.bf16.mxu0 %v752
  %1894 = vmatmul.mubr.bf16.gmra.mrb[0].mxu0 %v751
  %v1895 = vpop.f32.mrb[0].mxu0
  %v1896 = vadd.f32 %v1799, %v1895
  %v1897 = vpop.f32.mrb[0].mxu0
  %v1898 = vpop.f32.mrb[0].mxu0
  %v1899 = vadd.f32 %v1802, %v1898
  %v1900 = vpop.f32.mrb[0].mxu0
  %1901 = vmatprep.mubr.bf16.mxu0 %v765
  %1902 = vmatmul.mubr.bf16.gmra.mrb[0].mxu0 %v764
  %v1903 = vpop.f32.mrb[0].mxu0
  %v1904 = vadd.f32 %v1807, %v1903
  %v1905 = vpop.f32.mrb[0].mxu0
  %v1906 = vpop.f32.mrb[0].mxu0
  %v1907 = vadd.f32 %v1810, %v1906
  %v1908 = vpop.f32.mrb[0].mxu0
  %1909 = vmatprep.mubr.bf16.mxu0 %v778
  %1910 = vmatmul.mubr.bf16.gmra.mrb[0].mxu0 %v777
  %v1911 = vpop.f32.mrb[0].mxu0
  %v1912 = vadd.f32 %v1815, %v1911
  %v1913 = vpop.f32.mrb[0].mxu0
  %v1914 = vpop.f32.mrb[0].mxu0
  %v1915 = vadd.f32 %v1818, %v1914
  %v1916 = vpop.f32.mrb[0].mxu0
  %1917 = vmatprep.mubr.bf16.mxu0 %v791
  %1918 = vmatmul.mubr.bf16.gmra.mrb[0].mxu0 %v790
  %v1919 = vpop.f32.mrb[0].mxu0
  %v1920 = vadd.f32 %v1823, %v1919
  %v1921 = vpop.f32.mrb[0].mxu0
  %v1922 = vpop.f32.mrb[0].mxu0
  %v1923 = vadd.f32 %v1826, %v1922
  %v1924 = vpop.f32.mrb[0].mxu0
  %1925 = vmatprep.mubr.bf16.mxu0 %v804
  %1926 = vmatmul.mubr.bf16.gmra.mrb[0].mxu0 %v803
  %v1927 = vpop.f32.mrb[0].mxu0
  %v1928 = vadd.f32 %v1831, %v1927
  %v1929 = vpop.f32.mrb[0].mxu0
  %v1930 = vpop.f32.mrb[0].mxu0
  %v1931 = vadd.f32 %v1834, %v1930
  %v1932 = vpop.f32.mrb[0].mxu0
  %1933 = vmatprep.mubr.bf16.mxu0 %v817
  %1934 = vmatmul.mubr.bf16.gmra.mrb[0].mxu0 %v816
  %v1935 = vpop.f32.mrb[0].mxu0
  %v1936 = vadd.f32 %v1839, %v1935
  %v1937 = vpop.f32.mrb[0].mxu0
  %v1938 = vpop.f32.mrb[0].mxu0
  %v1939 = vadd.f32 %v1842, %v1938
  %v1940 = vpop.f32.mrb[0].mxu0
  %1941 = vmatprep.mubr.bf16.mxu0 %v830
  %1942 = vmatmul.mubr.bf16.gmra.mrb[0].mxu0 %v829
  %v1943 = vpop.f32.mrb[0].mxu0
  %v1944 = vadd.f32 %v1847, %v1943
  %v1945 = vpop.f32.mrb[0].mxu0
  %v1946 = vpop.f32.mrb[0].mxu0
  %v1947 = vadd.f32 %v1850, %v1946
  %v1948 = vpop.f32.mrb[0].mxu0
  %1949 = vmatprep.mubr.bf16.mxu0 %v843
  %1950 = vmatmul.mubr.bf16.gmra.mrb[0].mxu0 %v842
  %v1951 = vpop.f32.mrb[0].mxu0
  %v1952 = vadd.f32 %v1855, %v1951
  %v1953 = vpop.f32.mrb[0].mxu0
  %v1954 = vpop.f32.mrb[0].mxu0
  %v1955 = vadd.f32 %v1858, %v1954
  %v1956 = vpop.f32.mrb[0].mxu0
  %1957 = vdwg.mxu0
  %1958 = vmatprep.subr.bf16.mxu0 0
  %1959 = vmatpush1.bf16.msra.mxu0 %v1409
  %1960 = vmatprep.subr.bf16.mxu0 0
  %1961 = vmatpush1.bf16.msra.mxu0 %v1410
  %1962 = vmatprep.subr.bf16.mxu0 0
  %1963 = vmatpush1.bf16.msra.mxu0 %v1411
  %1964 = vmatprep.subr.bf16.mxu0 0
  %1965 = vmatpush1.bf16.msra.mxu0 %v1412
  %1966 = vmatprep.subr.bf16.mxu0 0
  %1967 = vmatpush1.bf16.msra.mxu0 %v1413
  %1968 = vmatprep.subr.bf16.mxu0 0
  %1969 = vmatpush1.bf16.msra.mxu0 %v1414
  %1970 = vmatprep.subr.bf16.mxu0 0
  %1971 = vmatpush1.bf16.msra.mxu0 %v1415
  %1972 = vmatprep.subr.bf16.mxu0 0
  %1973 = vmatpush1.bf16.msra.mxu0 %v1416
  %1974 = vmatprep.subr.bf16.mxu0 0
  %1975 = vmatpush1.bf16.msra.mxu0 %v1417
  %1976 = vmatprep.subr.bf16.mxu0 0
  %1977 = vmatpush1.bf16.msra.mxu0 %v1418
  %1978 = vmatprep.subr.bf16.mxu0 0
  %1979 = vmatpush1.bf16.msra.mxu0 %v1419
  %1980 = vmatprep.subr.bf16.mxu0 0
  %1981 = vmatpush1.bf16.msra.mxu0 %v1420
  %1982 = vmatprep.subr.bf16.mxu0 0
  %1983 = vmatpush1.bf16.msra.mxu0 %v1421
  %1984 = vmatprep.subr.bf16.mxu0 0
  %1985 = vmatpush1.bf16.msra.mxu0 %v1422
  %1986 = vmatprep.subr.bf16.mxu0 0
  %1987 = vmatpush1.bf16.msra.mxu0 %v1423
  %1988 = vmatprep.subr.bf16.mxu0 0
  %1989 = vmatpush1.bf16.msra.mxu0 %v1424
  %1990 = vmatprep.mubr.bf16.mxu0 %v754
  %1991 = vmatmul.mubr.bf16.gmra.mrb[0].mxu0 %v753
  %v1992 = vpop.f32.mrb[0].mxu0
  %v1993 = vadd.f32 %v1896, %v1992
  %v1994 = vpop.f32.mrb[0].mxu0
  %v1995 = vpop.f32.mrb[0].mxu0
  %v1996 = vadd.f32 %v1899, %v1995
  %v1997 = vpop.f32.mrb[0].mxu0
  %1998 = vmatprep.mubr.bf16.mxu0 %v767
  %1999 = vmatmul.mubr.bf16.gmra.mrb[0].mxu0 %v766
  %v2000 = vpop.f32.mrb[0].mxu0
  %v2001 = vadd.f32 %v1904, %v2000
  %v2002 = vpop.f32.mrb[0].mxu0
  %v2003 = vpop.f32.mrb[0].mxu0
  %v2004 = vadd.f32 %v1907, %v2003
  %v2005 = vpop.f32.mrb[0].mxu0
  %2006 = vmatprep.mubr.bf16.mxu0 %v780
  %2007 = vmatmul.mubr.bf16.gmra.mrb[0].mxu0 %v779
  %v2008 = vpop.f32.mrb[0].mxu0
  %v2009 = vadd.f32 %v1912, %v2008
  %v2010 = vpop.f32.mrb[0].mxu0
  %v2011 = vpop.f32.mrb[0].mxu0
  %v2012 = vadd.f32 %v1915, %v2011
  %v2013 = vpop.f32.mrb[0].mxu0
  %2014 = vmatprep.mubr.bf16.mxu0 %v793
  %2015 = vmatmul.mubr.bf16.gmra.mrb[0].mxu0 %v792
  %v2016 = vpop.f32.mrb[0].mxu0
  %v2017 = vadd.f32 %v1920, %v2016
  %v2018 = vpop.f32.mrb[0].mxu0
  %v2019 = vpop.f32.mrb[0].mxu0
  %v2020 = vadd.f32 %v1923, %v2019
  %v2021 = vpop.f32.mrb[0].mxu0
  %2022 = vmatprep.mubr.bf16.mxu0 %v806
  %2023 = vmatmul.mubr.bf16.gmra.mrb[0].mxu0 %v805
  %v2024 = vpop.f32.mrb[0].mxu0
  %v2025 = vadd.f32 %v1928, %v2024
  %v2026 = vpop.f32.mrb[0].mxu0
  %v2027 = vpop.f32.mrb[0].mxu0
  %v2028 = vadd.f32 %v1931, %v2027
  %v2029 = vpop.f32.mrb[0].mxu0
  %2030 = vmatprep.mubr.bf16.mxu0 %v819
  %2031 = vmatmul.mubr.bf16.gmra.mrb[0].mxu0 %v818
  %v2032 = vpop.f32.mrb[0].mxu0
  %v2033 = vadd.f32 %v1936, %v2032
  %v2034 = vpop.f32.mrb[0].mxu0
  %v2035 = vpop.f32.mrb[0].mxu0
  %v2036 = vadd.f32 %v1939, %v2035
  %v2037 = vpop.f32.mrb[0].mxu0
  %2038 = vmatprep.mubr.bf16.mxu0 %v832
  %2039 = vmatmul.mubr.bf16.gmra.mrb[0].mxu0 %v831
  %v2040 = vpop.f32.mrb[0].mxu0
  %v2041 = vadd.f32 %v1944, %v2040
  %v2042 = vpop.f32.mrb[0].mxu0
  %v2043 = vpop.f32.mrb[0].mxu0
  %v2044 = vadd.f32 %v1947, %v2043
  %v2045 = vpop.f32.mrb[0].mxu0
  %2046 = vmatprep.mubr.bf16.mxu0 %v845
  %2047 = vmatmul.mubr.bf16.gmra.mrb[0].mxu0 %v844
  %v2048 = vpop.f32.mrb[0].mxu0
  %v2049 = vadd.f32 %v1952, %v2048
  %v2050 = vpop.f32.mrb[0].mxu0
  %v2051 = vpop.f32.mrb[0].mxu0
  %v2052 = vadd.f32 %v1955, %v2051
  %v2053 = vpop.f32.mrb[0].mxu0
  %2054 = vdwg.mxu0
  %2055 = vmatprep.subr.bf16.mxu0 0
  %2056 = vmatpush1.bf16.msra.mxu0 %v1425
  %2057 = vmatprep.subr.bf16.mxu0 0
  %2058 = vmatpush1.bf16.msra.mxu0 %v1426
  %2059 = vmatprep.subr.bf16.mxu0 0
  %2060 = vmatpush1.bf16.msra.mxu0 %v1427
  %2061 = vmatprep.subr.bf16.mxu0 0
  %2062 = vmatpush1.bf16.msra.mxu0 %v1428
  %2063 = vmatprep.subr.bf16.mxu0 0
  %2064 = vmatpush1.bf16.msra.mxu0 %v1429
  %2065 = vmatprep.subr.bf16.mxu0 0
  %2066 = vmatpush1.bf16.msra.mxu0 %v1430
  %2067 = vmatprep.subr.bf16.mxu0 0
  %2068 = vmatpush1.bf16.msra.mxu0 %v1431
  %2069 = vmatprep.subr.bf16.mxu0 0
  %2070 = vmatpush1.bf16.msra.mxu0 %v1432
  %2071 = vmatprep.subr.bf16.mxu0 0
  %2072 = vmatpush1.bf16.msra.mxu0 %v1433
  %2073 = vmatprep.subr.bf16.mxu0 0
  %2074 = vmatpush1.bf16.msra.mxu0 %v1434
  %2075 = vmatprep.subr.bf16.mxu0 0
  %2076 = vmatpush1.bf16.msra.mxu0 %v1435
  %2077 = vmatprep.subr.bf16.mxu0 0
  %2078 = vmatpush1.bf16.msra.mxu0 %v1436
  %2079 = vmatprep.subr.bf16.mxu0 0
  %2080 = vmatpush1.bf16.msra.mxu0 %v1437
  %2081 = vmatprep.subr.bf16.mxu0 0
  %2082 = vmatpush1.bf16.msra.mxu0 %v1438
  %2083 = vmatprep.subr.bf16.mxu0 0
  %2084 = vmatpush1.bf16.msra.mxu0 %v1439
  %2085 = vmatprep.subr.bf16.mxu0 0
  %2086 = vmatpush1.bf16.msra.mxu0 %v1440
  %2087 = vmatprep.mubr.bf16.mxu0 %v756
  %2088 = vmatmul.mubr.bf16.gmra.mrb[0].mxu0 %v755
  %v2089 = vpop.f32.mrb[0].mxu0
  %v2090 = vadd.f32 %v1993, %v2089
  %v2091 = vpop.f32.mrb[0].mxu0
  %v2092 = vpop.f32.mrb[0].mxu0
  %v2093 = vadd.f32 %v1996, %v2092
  %v2094 = vpop.f32.mrb[0].mxu0
  %2095 = vmatprep.mubr.bf16.mxu0 %v769
  %2096 = vmatmul.mubr.bf16.gmra.mrb[0].mxu0 %v768
  %v2097 = vpop.f32.mrb[0].mxu0
  %v2098 = vadd.f32 %v2001, %v2097
  %v2099 = vpop.f32.mrb[0].mxu0
  %v2100 = vpop.f32.mrb[0].mxu0
  %v2101 = vadd.f32 %v2004, %v2100
  %v2102 = vpop.f32.mrb[0].mxu0
  %2103 = vmatprep.mubr.bf16.mxu0 %v782
  %2104 = vmatmul.mubr.bf16.gmra.mrb[0].mxu0 %v781
  %v2105 = vpop.f32.mrb[0].mxu0
  %v2106 = vadd.f32 %v2009, %v2105
  %v2107 = vpop.f32.mrb[0].mxu0
  %v2108 = vpop.f32.mrb[0].mxu0
  %v2109 = vadd.f32 %v2012, %v2108
  %v2110 = vpop.f32.mrb[0].mxu0
  %2111 = vmatprep.mubr.bf16.mxu0 %v795
  %2112 = vmatmul.mubr.bf16.gmra.mrb[0].mxu0 %v794
  %v2113 = vpop.f32.mrb[0].mxu0
  %v2114 = vadd.f32 %v2017, %v2113
  %v2115 = vpop.f32.mrb[0].mxu0
  %v2116 = vpop.f32.mrb[0].mxu0
  %v2117 = vadd.f32 %v2020, %v2116
  %v2118 = vpop.f32.mrb[0].mxu0
  %2119 = vmatprep.mubr.bf16.mxu0 %v808
  %2120 = vmatmul.mubr.bf16.gmra.mrb[0].mxu0 %v807
  %v2121 = vpop.f32.mrb[0].mxu0
  %v2122 = vadd.f32 %v2025, %v2121
  %v2123 = vpop.f32.mrb[0].mxu0
  %v2124 = vpop.f32.mrb[0].mxu0
  %v2125 = vadd.f32 %v2028, %v2124
  %v2126 = vpop.f32.mrb[0].mxu0
  %2127 = vmatprep.mubr.bf16.mxu0 %v821
  %2128 = vmatmul.mubr.bf16.gmra.mrb[0].mxu0 %v820
  %v2129 = vpop.f32.mrb[0].mxu0
  %v2130 = vadd.f32 %v2033, %v2129
  %v2131 = vpop.f32.mrb[0].mxu0
  %v2132 = vpop.f32.mrb[0].mxu0
  %v2133 = vadd.f32 %v2036, %v2132
  %v2134 = vpop.f32.mrb[0].mxu0
  %2135 = vmatprep.mubr.bf16.mxu0 %v834
  %2136 = vmatmul.mubr.bf16.gmra.mrb[0].mxu0 %v833
  %v2137 = vpop.f32.mrb[0].mxu0
  %v2138 = vadd.f32 %v2041, %v2137
  %v2139 = vpop.f32.mrb[0].mxu0
  %v2140 = vpop.f32.mrb[0].mxu0
  %v2141 = vadd.f32 %v2044, %v2140
  %v2142 = vpop.f32.mrb[0].mxu0
  %2143 = vmatprep.mubr.bf16.mxu0 %v847
  %2144 = vmatmul.mubr.bf16.gmra.mrb[0].mxu0 %v846
  %v2145 = vpop.f32.mrb[0].mxu0
  %v2146 = vadd.f32 %v2049, %v2145
  %v2147 = vpop.f32.mrb[0].mxu0
  %v2148 = vpop.f32.mrb[0].mxu0
  %v2149 = vadd.f32 %v2052, %v2148
  %v2150 = vpop.f32.mrb[0].mxu0
  %2151 = vdwg.mxu0
  %2152 = vmatprep.subr.bf16.mxu0 0
  %2153 = vmatpush1.bf16.msra.mxu0 %v1441
  %2154 = vmatprep.subr.bf16.mxu0 0
  %2155 = vmatpush1.bf16.msra.mxu0 %v1442
  %2156 = vmatprep.subr.bf16.mxu0 0
  %2157 = vmatpush1.bf16.msra.mxu0 %v1443
  %2158 = vmatprep.subr.bf16.mxu0 0
  %2159 = vmatpush1.bf16.msra.mxu0 %v1444
  %2160 = vmatprep.subr.bf16.mxu0 0
  %2161 = vmatpush1.bf16.msra.mxu0 0
  %2162 = vmatprep.subr.bf16.mxu0 0
  %2163 = vmatpush1.bf16.msra.mxu0 0
  %2164 = vmatprep.subr.bf16.mxu0 0
  %2165 = vmatpush1.bf16.msra.mxu0 0
  %2166 = vmatprep.subr.bf16.mxu0 0
  %2167 = vmatpush1.bf16.msra.mxu0 0
  %2168 = vmatprep.subr.bf16.mxu0 0
  %2169 = vmatpush1.bf16.msra.mxu0 0
  %2170 = vmatprep.subr.bf16.mxu0 0
  %2171 = vmatpush1.bf16.msra.mxu0 0
  %2172 = vmatprep.subr.bf16.mxu0 0
  %2173 = vmatpush1.bf16.msra.mxu0 0
  %2174 = vmatprep.subr.bf16.mxu0 0
  %2175 = vmatpush1.bf16.msra.mxu0 0
  %2176 = vmatprep.subr.bf16.mxu0 0
  %2177 = vmatpush1.bf16.msra.mxu0 0
  %2178 = vmatprep.subr.bf16.mxu0 0
  %2179 = vmatpush1.bf16.msra.mxu0 0
  %2180 = vmatprep.subr.bf16.mxu0 0
  %2181 = vmatpush1.bf16.msra.mxu0 0
  %2182 = vmatprep.subr.bf16.mxu0 0
  %2183 = vmatpush1.bf16.msra.mxu0 0
  %2184 = vmatprep.mubr.bf16.mxu0 0
  %2185 = vmatmul.mubr.bf16.gmra.mrb[0].mxu0 %v1547
  %v2186 = vpop.f32.mrb[0].mxu0
  %v2187 = vadd.f32 %v2090, %v2186
  %v2188 = vpop.f32.mrb[0].mxu0
  %v2189 = vpop.f32.mrb[0].mxu0
  %v2190 = vadd.f32 %v2093, %v2189
  %v2191 = vpop.f32.mrb[0].mxu0
  %2192 = vmatprep.mubr.bf16.mxu0 0
  %2193 = vmatmul.mubr.bf16.gmra.mrb[0].mxu0 %v1550
  %v2194 = vpop.f32.mrb[0].mxu0
  %v2195 = vadd.f32 %v2098, %v2194
  %v2196 = vpop.f32.mrb[0].mxu0
  %v2197 = vpop.f32.mrb[0].mxu0
  %v2198 = vadd.f32 %v2101, %v2197
  %v2199 = vpop.f32.mrb[0].mxu0
  %2200 = vmatprep.mubr.bf16.mxu0 0
  %2201 = vmatmul.mubr.bf16.gmra.mrb[0].mxu0 %v1553
  %v2202 = vpop.f32.mrb[0].mxu0
  %v2203 = vadd.f32 %v2106, %v2202
  %v2204 = vpop.f32.mrb[0].mxu0
  %v2205 = vpop.f32.mrb[0].mxu0
  %v2206 = vadd.f32 %v2109, %v2205
  %v2207 = vpop.f32.mrb[0].mxu0
  %2208 = vmatprep.mubr.bf16.mxu0 0
  %2209 = vmatmul.mubr.bf16.gmra.mrb[0].mxu0 %v1556
  %v2210 = vpop.f32.mrb[0].mxu0
  %v2211 = vadd.f32 %v2114, %v2210
  %v2212 = vpop.f32.mrb[0].mxu0
  %v2213 = vpop.f32.mrb[0].mxu0
  %v2214 = vadd.f32 %v2117, %v2213
  %v2215 = vpop.f32.mrb[0].mxu0
  %2216 = vmatprep.mubr.bf16.mxu0 0
  %2217 = vmatmul.mubr.bf16.gmra.mrb[0].mxu0 %v1559
  %v2218 = vpop.f32.mrb[0].mxu0
  %v2219 = vadd.f32 %v2122, %v2218
  %v2220 = vpop.f32.mrb[0].mxu0
  %v2221 = vpop.f32.mrb[0].mxu0
  %v2222 = vadd.f32 %v2125, %v2221
  %v2223 = vpop.f32.mrb[0].mxu0
  %2224 = vmatprep.mubr.bf16.mxu0 0
  %2225 = vmatmul.mubr.bf16.gmra.mrb[0].mxu0 %v1562
  %v2226 = vpop.f32.mrb[0].mxu0
  %v2227 = vadd.f32 %v2130, %v2226
  %v2228 = vpop.f32.mrb[0].mxu0
  %v2229 = vpop.f32.mrb[0].mxu0
  %v2230 = vadd.f32 %v2133, %v2229
  %v2231 = vpop.f32.mrb[0].mxu0
  %2232 = vmatprep.mubr.bf16.mxu0 0
  %2233 = vmatmul.mubr.bf16.gmra.mrb[0].mxu0 %v1565
  %v2234 = vpop.f32.mrb[0].mxu0
  %v2235 = vadd.f32 %v2138, %v2234
  %v2236 = vpop.f32.mrb[0].mxu0
  %v2237 = vpop.f32.mrb[0].mxu0
  %v2238 = vadd.f32 %v2141, %v2237
  %v2239 = vpop.f32.mrb[0].mxu0
  %2240 = vmatprep.mubr.bf16.mxu0 0
  %2241 = vmatmul.mubr.bf16.gmra.mrb[0].mxu0 %v1568
  %v2242 = vpop.f32.mrb[0].mxu0
  %v2243 = vadd.f32 %v2146, %v2242
  %v2244 = vpop.f32.mrb[0].mxu0
  %v2245 = vpop.f32.mrb[0].mxu0
  %v2246 = vadd.f32 %v2149, %v2245
  %v2247 = vpop.f32.mrb[0].mxu0
  %2248 = vdwg.mxu0
  %vm2249 = vcmask 261120
  %2250 = vst.msk [vmem:[%s3] sm:$0xff] %vm2249, %v2187
  %2251 = vst.msk [vmem:[%s3 + $0x8] sm:$0xff] %vm2249, %v2190
  %2252 = vst.msk [vmem:[%s3 + $0x10] sm:$0xff] %vm2249, %v2195
  %2253 = vst.msk [vmem:[%s3 + $0x18] sm:$0xff] %vm2249, %v2198
  %2254 = vst.msk [vmem:[%s3 + $0x20] sm:$0xff] %vm2249, %v2203
  %2255 = vst.msk [vmem:[%s3 + $0x28] sm:$0xff] %vm2249, %v2206
  %2256 = vst.msk [vmem:[%s3 + $0x30] sm:$0xff] %vm2249, %v2211
  %2257 = vst.msk [vmem:[%s3 + $0x38] sm:$0xff] %vm2249, %v2214
  %2258 = vst.msk [vmem:[%s3 + $0x40] sm:$0xff] %vm2249, %v2219
  %2259 = vst.msk [vmem:[%s3 + $0x48] sm:$0xff] %vm2249, %v2222
  %2260 = vst.msk [vmem:[%s3 + $0x50] sm:$0xff] %vm2249, %v2227
  %2261 = vst.msk [vmem:[%s3 + $0x58] sm:$0xff] %vm2249, %v2230
  %2262 = vst.msk [vmem:[%s3 + $0x60] sm:$0xff] %vm2249, %v2235
  %2263 = vst.msk [vmem:[%s3 + $0x68] sm:$0xff] %vm2249, %v2238
  %2264 = vst.msk [vmem:[%s3 + $0x70] sm:$0xff] %vm2249, %v2243
  %2265 = vst.msk [vmem:[%s3 + $0x78] sm:$0xff] %vm2249, %v2246
  %v2266 = vsel %vm2249, %v2187, 0.0
  %2267 = vadd.xlane.f32.xlu0 %v2266
  %v2268 = vpop.xlane.xlu0 %2267
  %v2269 = vsel %vm2249, %v2190, 0.0
  %2270 = vadd.xlane.f32.xlu0 %v2269
  %v2271 = vpop.xlane.xlu0 %2270
  %v2272 = vsel %vm2249, %v2195, 0.0
  %2273 = vadd.xlane.f32.xlu0 %v2272
  %v2274 = vpop.xlane.xlu0 %2273
  %v2275 = vsel %vm2249, %v2198, 0.0
  %2276 = vadd.xlane.f32.xlu0 %v2275
  %v2277 = vpop.xlane.xlu0 %2276
  %v2278 = vsel %vm2249, %v2203, 0.0
  %2279 = vadd.xlane.f32.xlu0 %v2278
  %v2280 = vpop.xlane.xlu0 %2279
  %v2281 = vsel %vm2249, %v2206, 0.0
  %2282 = vadd.xlane.f32.xlu0 %v2281
  %v2283 = vpop.xlane.xlu0 %2282
  %v2284 = vsel %vm2249, %v2211, 0.0
  %2285 = vadd.xlane.f32.xlu0 %v2284
  %v2286 = vpop.xlane.xlu0 %2285
  %v2287 = vsel %vm2249, %v2214, 0.0
  %2288 = vadd.xlane.f32.xlu0 %v2287
  %v2289 = vpop.xlane.xlu0 %2288
  %v2290 = vsel %vm2249, %v2219, 0.0
  %2291 = vadd.xlane.f32.xlu0 %v2290
  %v2292 = vpop.xlane.xlu0 %2291
  %v2293 = vsel %vm2249, %v2222, 0.0
  %2294 = vadd.xlane.f32.xlu0 %v2293
  %v2295 = vpop.xlane.xlu0 %2294
  %v2296 = vsel %vm2249, %v2227, 0.0
  %2297 = vadd.xlane.f32.xlu0 %v2296
  %v2298 = vpop.xlane.xlu0 %2297
  %v2299 = vsel %vm2249, %v2230, 0.0
  %2300 = vadd.xlane.f32.xlu0 %v2299
  %v2301 = vpop.xlane.xlu0 %2300
  %v2302 = vsel %vm2249, %v2235, 0.0
  %2303 = vadd.xlane.f32.xlu0 %v2302
  %v2304 = vpop.xlane.xlu0 %2303
  %v2305 = vsel %vm2249, %v2238, 0.0
  %2306 = vadd.xlane.f32.xlu0 %v2305
  %v2307 = vpop.xlane.xlu0 %2306
  %v2308 = vsel %vm2249, %v2243, 0.0
  %2309 = vadd.xlane.f32.xlu0 %v2308
  %v2310 = vpop.xlane.xlu0 %2309
  %v2311 = vsel %vm2249, %v2246, 0.0
  %2312 = vadd.xlane.f32.xlu0 %v2311
  %v2313 = vpop.xlane.xlu0 %2312
  %v2314 = vmul.f32 %v2187, %v2187
  %v2315 = vmul.f32 %v2190, %v2190
  %v2316 = vmul.f32 %v2195, %v2195
  %v2317 = vmul.f32 %v2198, %v2198
  %v2318 = vmul.f32 %v2203, %v2203
  %v2319 = vmul.f32 %v2206, %v2206
  %v2320 = vmul.f32 %v2211, %v2211
  %v2321 = vmul.f32 %v2214, %v2214
  %v2322 = vmul.f32 %v2219, %v2219
  %v2323 = vmul.f32 %v2222, %v2222
  %v2324 = vmul.f32 %v2227, %v2227
  %v2325 = vmul.f32 %v2230, %v2230
  %v2326 = vmul.f32 %v2235, %v2235
  %v2327 = vmul.f32 %v2238, %v2238
  %v2328 = vmul.f32 %v2243, %v2243
  %v2329 = vmul.f32 %v2246, %v2246
  %v2330 = vsel %vm2249, %v2314, 0.0
  %2331 = vadd.xlane.f32.xlu0 %v2330
  %v2332 = vpop.xlane.xlu0 %2331
  %v2333 = vsel %vm2249, %v2315, 0.0
  %2334 = vadd.xlane.f32.xlu0 %v2333
  %v2335 = vpop.xlane.xlu0 %2334
  %v2336 = vsel %vm2249, %v2316, 0.0
  %2337 = vadd.xlane.f32.xlu0 %v2336
  %v2338 = vpop.xlane.xlu0 %2337
  %v2339 = vsel %vm2249, %v2317, 0.0
  %2340 = vadd.xlane.f32.xlu0 %v2339
  %v2341 = vpop.xlane.xlu0 %2340
  %v2342 = vsel %vm2249, %v2318, 0.0
  %2343 = vadd.xlane.f32.xlu0 %v2342
  %v2344 = vpop.xlane.xlu0 %2343
  %v2345 = vsel %vm2249, %v2319, 0.0
  %2346 = vadd.xlane.f32.xlu0 %v2345
  %v2347 = vpop.xlane.xlu0 %2346
  %v2348 = vsel %vm2249, %v2320, 0.0
  %2349 = vadd.xlane.f32.xlu0 %v2348
  %v2350 = vpop.xlane.xlu0 %2349
  %v2351 = vsel %vm2249, %v2321, 0.0
  %2352 = vadd.xlane.f32.xlu0 %v2351
  %v2353 = vpop.xlane.xlu0 %2352
  %v2354 = vsel %vm2249, %v2322, 0.0
  %2355 = vadd.xlane.f32.xlu0 %v2354
  %v2356 = vpop.xlane.xlu0 %2355
  %v2357 = vsel %vm2249, %v2323, 0.0
  %2358 = vadd.xlane.f32.xlu0 %v2357
  %v2359 = vpop.xlane.xlu0 %2358
  %v2360 = vsel %vm2249, %v2324, 0.0
  %2361 = vadd.xlane.f32.xlu0 %v2360
  %v2362 = vpop.xlane.xlu0 %2361
  %v2363 = vsel %vm2249, %v2325, 0.0
  %2364 = vadd.xlane.f32.xlu0 %v2363
  %v2365 = vpop.xlane.xlu0 %2364
  %v2366 = vsel %vm2249, %v2326, 0.0
  %2367 = vadd.xlane.f32.xlu0 %v2366
  %v2368 = vpop.xlane.xlu0 %2367
  %v2369 = vsel %vm2249, %v2327, 0.0
  %2370 = vadd.xlane.f32.xlu0 %v2369
  %v2371 = vpop.xlane.xlu0 %2370
  %v2372 = vsel %vm2249, %v2328, 0.0
  %2373 = vadd.xlane.f32.xlu0 %v2372
  %v2374 = vpop.xlane.xlu0 %2373
  %v2375 = vsel %vm2249, %v2329, 0.0
  %2376 = vadd.xlane.f32.xlu0 %v2375
  %v2377 = vpop.xlane.xlu0 %2376
  %v2378 = vlaneseq
  %v2379 = vand.u32 %v2378, 127
  %vm2380 = vcmp.eq.s32.totalorder %v2379, 0
  %vm2381 = vcmp.eq.s32.totalorder %v2379, 1
  %v2382 = vsel %vm2381, %v2332, 0.0
  %v2383 = vsel %vm2381, %v2335, 0.0
  %v2384 = vsel %vm2381, %v2338, 0.0
  %v2385 = vsel %vm2381, %v2341, 0.0
  %v2386 = vsel %vm2381, %v2344, 0.0
  %v2387 = vsel %vm2381, %v2347, 0.0
  %v2388 = vsel %vm2381, %v2350, 0.0
  %v2389 = vsel %vm2381, %v2353, 0.0
  %v2390 = vsel %vm2381, %v2356, 0.0
  %v2391 = vsel %vm2381, %v2359, 0.0
  %v2392 = vsel %vm2381, %v2362, 0.0
  %v2393 = vsel %vm2381, %v2365, 0.0
  %v2394 = vsel %vm2381, %v2368, 0.0
  %v2395 = vsel %vm2381, %v2371, 0.0
  %v2396 = vsel %vm2381, %v2374, 0.0
  %v2397 = vsel %vm2381, %v2377, 0.0
  %v2398 = vsel %vm2380, %v2268, %v2382
  %v2399 = vsel %vm2380, %v2271, %v2383
  %v2400 = vsel %vm2380, %v2274, %v2384
  %v2401 = vsel %vm2380, %v2277, %v2385
  %v2402 = vsel %vm2380, %v2280, %v2386
  %v2403 = vsel %vm2380, %v2283, %v2387
  %v2404 = vsel %vm2380, %v2286, %v2388
  %v2405 = vsel %vm2380, %v2289, %v2389
  %v2406 = vsel %vm2380, %v2292, %v2390
  %v2407 = vsel %vm2380, %v2295, %v2391
  %v2408 = vsel %vm2380, %v2298, %v2392
  %v2409 = vsel %vm2380, %v2301, %v2393
  %v2410 = vsel %vm2380, %v2304, %v2394
  %v2411 = vsel %vm2380, %v2307, %v2395
  %v2412 = vsel %vm2380, %v2310, %v2396
  %v2413 = vsel %vm2380, %v2313, %v2397
  %2414 = vst [vmem:[%s4] sm:$0xff] %v2398
  %2415 = vst [vmem:[%s4 + $0x8] sm:$0xff] %v2399
  %2416 = vst [vmem:[%s4 + $0x10] sm:$0xff] %v2400
  %2417 = vst [vmem:[%s4 + $0x18] sm:$0xff] %v2401
  %2418 = vst [vmem:[%s4 + $0x20] sm:$0xff] %v2402
  %2419 = vst [vmem:[%s4 + $0x28] sm:$0xff] %v2403
  %2420 = vst [vmem:[%s4 + $0x30] sm:$0xff] %v2404
  %2421 = vst [vmem:[%s4 + $0x38] sm:$0xff] %v2405
  %2422 = vst [vmem:[%s4 + $0x40] sm:$0xff] %v2406
  %2423 = vst [vmem:[%s4 + $0x48] sm:$0xff] %v2407
  %2424 = vst [vmem:[%s4 + $0x50] sm:$0xff] %v2408
  %2425 = vst [vmem:[%s4 + $0x58] sm:$0xff] %v2409
  %2426 = vst [vmem:[%s4 + $0x60] sm:$0xff] %v2410
  %2427 = vst [vmem:[%s4 + $0x68] sm:$0xff] %v2411
  %2428 = vst [vmem:[%s4 + $0x70] sm:$0xff] %v2412
  %2429 = vst [vmem:[%s4 + $0x78] sm:$0xff] %v2413
  // Predicated region
  $region14: #{discriminator_forward.13} parent=0 // pred_check
    _
  $region15: #{discriminator_forward.13} parent=0 // pred_check_branch
    %2431 = sbr.rel (0) target = $region17
  $region16: #{discriminator_forward.13} parent=0 // pred_region
    _
  $region17: #{discriminator_forward.13} parent=0 // pred_fallthru
    _
  // Predicated region
  $region18: #{discriminator_forward.13} parent=0 // pred_check
    _
  $region19: #{discriminator_forward.13} parent=0 // pred_check_branch
    %2433 = sbr.rel (0) target = $region21
  $region20: #{discriminator_forward.13} parent=0 // pred_region
    _
  $region21: #{discriminator_forward.13} parent=0 // pred_fallthru
    _
  // Predicated region
  $region22: #{discriminator_forward.13} parent=0 // pred_check
    _
  $region23: #{discriminator_forward.13} parent=0 // pred_check_branch
    %2435 = sbr.rel (0) target = $region25
  $region24: #{discriminator_forward.13} parent=0 // pred_region
    _
  $region25: #{discriminator_forward.13} parent=0 // pred_fallthru
    _
  // Predicated region
  $region26: #{discriminator_forward.13} parent=0 // pred_check
    _
  $region27: #{discriminator_forward.13} parent=0 // pred_check_branch
    %2437 = sbr.rel (0) target = $region29
  $region28: #{discriminator_forward.13} parent=0 // pred_region
    _
  $region29: #{discriminator_forward.13} parent=0 // pred_fallthru
    _

// kernel: discriminator_forward.15
$region0: #{discriminator_forward.15}
  #allocation0 [shape = 'u32[]', space=smem, size = 0x4, offset = 0x4, fixed_abs, tag = 'smem constant byte address 0x4 - core index']
  #allocation1 [shape = 'u32[144,128]{1,0:T(1,128)}', space=vmem, size = 0x12000, scoped, tag = 'internal scratch']
  #allocation2 [shape = 'f32[1,1]{1,0:T(1,128)S(1)}', space=vmem, size = 0x200, scoped, tag = 'scoped memory for discriminator_forward.15']
  %s0 = inlined_call_operand.vmem [shape: bf16[1,2048], index: 0, kind: input, shape index: {}]
  %s1 = inlined_call_operand.vmem [shape: bf16[2048,2], index: 1, kind: input, shape index: {}]
  %s2 = inlined_call_operand.<no memory space> [shape: f32[1,1], index: 2, kind: input, shape index: {}]
  %s3 = inlined_call_operand.hbm [shape: f32[1,2], index: 3, kind: output, shape index: {}]
  %s4 = sld [smem:[#allocation0]]
  $region22: #{discriminator_forward.15} parent=0
    _
  %s6 = ssub.s32 1, %s4
  %s7 = scalar_select 0, %s6, %s4
  %v8 = vstv %s2
  %9 = vst [vmem:[#allocation2] sm:$0x1] %v8
  $region1: #{discriminator_forward.15} parent=0
    #allocation3 [shape = 'u8[512]{0}', space=vmem, size = 0x400, scoped, tag = 'output window, operand 0, single buffered']
    #allocation4 [shape = 's32[1]{0}', space=sflag, size = 0x4, scoped, tag = 'scoped memory for discriminator_forward.15']
    %10 = vsyncpa [#allocation4], 0
    // Predicated region
    $region2: #{discriminator_forward.15} parent=1 // pred_check
      _
    $region3: #{discriminator_forward.15} parent=1 // pred_check_branch
      %12 = sbr.rel (0) target = $region5
    $region4: #{discriminator_forward.15} parent=1 // pred_region
      _
    $region5: #{discriminator_forward.15} parent=1 // pred_fallthru
      _
    // Predicated region
    $region6: #{discriminator_forward.15} parent=1 // pred_check
      _
    $region7: #{discriminator_forward.15} parent=1 // pred_check_branch
      %14 = sbr.rel (0) target = $region9
    $region8: #{discriminator_forward.15} parent=1 // pred_region
      _
    $region9: #{discriminator_forward.15} parent=1 // pred_fallthru
      _
    // Predicated region
    $region10: #{discriminator_forward.15} parent=1 // pred_check
      _
    $region11: #{discriminator_forward.15} parent=1 // pred_check_branch
      %16 = sbr.rel (0) target = $region13
    $region12: #{discriminator_forward.15} parent=1 // pred_region
      _
    $region13: #{discriminator_forward.15} parent=1 // pred_fallthru
      _
    %v18 = vld [vmem:[%s0] sm:$0xff]
    %v19 = vld [vmem:[%s0 + $0x8] sm:$0xff]
    %v20 = vld [vmem:[%s1] sm:$0xf]
    %v21 = vld [vmem:[%s1 + $0x4] sm:$0xf]
    %v22 = vld [vmem:[%s1 + $0x8] sm:$0xf]
    %v23 = vld [vmem:[%s1 + $0xc] sm:$0xf]
    %v24 = vld [vmem:[%s1 + $0x10] sm:$0xf]
    %v25 = vld [vmem:[%s1 + $0x14] sm:$0xf]
    %v26 = vld [vmem:[%s1 + $0x18] sm:$0xf]
    %v27 = vld [vmem:[%s1 + $0x1c] sm:$0xf]
    %v28 = vld [vmem:[%s1 + $0x20] sm:$0xf]
    %v29 = vld [vmem:[%s1 + $0x24] sm:$0xf]
    %v30 = vld [vmem:[%s1 + $0x28] sm:$0xf]
    %v31 = vld [vmem:[%s1 + $0x2c] sm:$0xf]
    %v32 = vld [vmem:[%s1 + $0x30] sm:$0xf]
    %v33 = vld [vmem:[%s1 + $0x34] sm:$0xf]
    %v34 = vld [vmem:[%s1 + $0x38] sm:$0xf]
    %v35 = vld [vmem:[%s1 + $0x3c] sm:$0xf]
    %v36 = vld [vmem:[%s1 + $0x40] sm:$0xf]
    %v37 = vld [vmem:[%s1 + $0x44] sm:$0xf]
    %v38 = vld [vmem:[%s1 + $0x48] sm:$0xf]
    %v39 = vld [vmem:[%s1 + $0x4c] sm:$0xf]
    %v40 = vld [vmem:[%s1 + $0x50] sm:$0xf]
    %v41 = vld [vmem:[%s1 + $0x54] sm:$0xf]
    %v42 = vld [vmem:[%s1 + $0x58] sm:$0xf]
    %v43 = vld [vmem:[%s1 + $0x5c] sm:$0xf]
    %v44 = vld [vmem:[%s1 + $0x60] sm:$0xf]
    %v45 = vld [vmem:[%s1 + $0x64] sm:$0xf]
    %v46 = vld [vmem:[%s1 + $0x68] sm:$0xf]
    %v47 = vld [vmem:[%s1 + $0x6c] sm:$0xf]
    %v48 = vld [vmem:[%s1 + $0x70] sm:$0xf]
    %v49 = vld [vmem:[%s1 + $0x74] sm:$0xf]
    %v50 = vld [vmem:[%s1 + $0x78] sm:$0xf]
    %v51 = vld [vmem:[%s1 + $0x7c] sm:$0xf]
    %v52 = vld [vmem:[%s1 + $0x80] sm:$0xf]
    %v53 = vld [vmem:[%s1 + $0x84] sm:$0xf]
    %v54 = vld [vmem:[%s1 + $0x88] sm:$0xf]
    %v55 = vld [vmem:[%s1 + $0x8c] sm:$0xf]
    %v56 = vld [vmem:[%s1 + $0x90] sm:$0xf]
    %v57 = vld [vmem:[%s1 + $0x94] sm:$0xf]
    %v58 = vld [vmem:[%s1 + $0x98] sm:$0xf]
    %v59 = vld [vmem:[%s1 + $0x9c] sm:$0xf]
    %v60 = vld [vmem:[%s1 + $0xa0] sm:$0xf]
    %v61 = vld [vmem:[%s1 + $0xa4] sm:$0xf]
    %v62 = vld [vmem:[%s1 + $0xa8] sm:$0xf]
    %v63 = vld [vmem:[%s1 + $0xac] sm:$0xf]
    %v64 = vld [vmem:[%s1 + $0xb0] sm:$0xf]
    %v65 = vld [vmem:[%s1 + $0xb4] sm:$0xf]
    %v66 = vld [vmem:[%s1 + $0xb8] sm:$0xf]
    %v67 = vld [vmem:[%s1 + $0xbc] sm:$0xf]
    %v68 = vld [vmem:[%s1 + $0xc0] sm:$0xf]
    %v69 = vld [vmem:[%s1 + $0xc4] sm:$0xf]
    %v70 = vld [vmem:[%s1 + $0xc8] sm:$0xf]
    %v71 = vld [vmem:[%s1 + $0xcc] sm:$0xf]
    %v72 = vld [vmem:[%s1 + $0xd0] sm:$0xf]
    %v73 = vld [vmem:[%s1 + $0xd4] sm:$0xf]
    %v74 = vld [vmem:[%s1 + $0xd8] sm:$0xf]
    %v75 = vld [vmem:[%s1 + $0xdc] sm:$0xf]
    %v76 = vld [vmem:[%s1 + $0xe0] sm:$0xf]
    %v77 = vld [vmem:[%s1 + $0xe4] sm:$0xf]
    %v78 = vld [vmem:[%s1 + $0xe8] sm:$0xf]
    %v79 = vld [vmem:[%s1 + $0xec] sm:$0xf]
    %v80 = vld [vmem:[%s1 + $0xf0] sm:$0xf]
    %v81 = vld [vmem:[%s1 + $0xf4] sm:$0xf]
    %v82 = vld [vmem:[%s1 + $0xf8] sm:$0xf]
    %v83 = vld [vmem:[%s1 + $0xfc] sm:$0xf]
    %v84 = vld [vmem:[%s1 + $0x100] sm:$0xf]
    %v85 = vld [vmem:[%s1 + $0x104] sm:$0xf]
    %v86 = vld [vmem:[%s1 + $0x108] sm:$0xf]
    %v87 = vld [vmem:[%s1 + $0x10c] sm:$0xf]
    %v88 = vld [vmem:[%s1 + $0x110] sm:$0xf]
    %v89 = vld [vmem:[%s1 + $0x114] sm:$0xf]
    %v90 = vld [vmem:[%s1 + $0x118] sm:$0xf]
    %v91 = vld [vmem:[%s1 + $0x11c] sm:$0xf]
    %v92 = vld [vmem:[%s1 + $0x120] sm:$0xf]
    %v93 = vld [vmem:[%s1 + $0x124] sm:$0xf]
    %v94 = vld [vmem:[%s1 + $0x128] sm:$0xf]
    %v95 = vld [vmem:[%s1 + $0x12c] sm:$0xf]
    %v96 = vld [vmem:[%s1 + $0x130] sm:$0xf]
    %v97 = vld [vmem:[%s1 + $0x134] sm:$0xf]
    %v98 = vld [vmem:[%s1 + $0x138] sm:$0xf]
    %v99 = vld [vmem:[%s1 + $0x13c] sm:$0xf]
    %v100 = vld [vmem:[%s1 + $0x140] sm:$0xf]
    %v101 = vld [vmem:[%s1 + $0x144] sm:$0xf]
    %v102 = vld [vmem:[%s1 + $0x148] sm:$0xf]
    %v103 = vld [vmem:[%s1 + $0x14c] sm:$0xf]
    %v104 = vld [vmem:[%s1 + $0x150] sm:$0xf]
    %v105 = vld [vmem:[%s1 + $0x154] sm:$0xf]
    %v106 = vld [vmem:[%s1 + $0x158] sm:$0xf]
    %v107 = vld [vmem:[%s1 + $0x15c] sm:$0xf]
    %v108 = vld [vmem:[%s1 + $0x160] sm:$0xf]
    %v109 = vld [vmem:[%s1 + $0x164] sm:$0xf]
    %v110 = vld [vmem:[%s1 + $0x168] sm:$0xf]
    %v111 = vld [vmem:[%s1 + $0x16c] sm:$0xf]
    %v112 = vld [vmem:[%s1 + $0x170] sm:$0xf]
    %v113 = vld [vmem:[%s1 + $0x174] sm:$0xf]
    %v114 = vld [vmem:[%s1 + $0x178] sm:$0xf]
    %v115 = vld [vmem:[%s1 + $0x17c] sm:$0xf]
    %v116 = vld [vmem:[%s1 + $0x180] sm:$0xf]
    %v117 = vld [vmem:[%s1 + $0x184] sm:$0xf]
    %v118 = vld [vmem:[%s1 + $0x188] sm:$0xf]
    %v119 = vld [vmem:[%s1 + $0x18c] sm:$0xf]
    %v120 = vld [vmem:[%s1 + $0x190] sm:$0xf]
    %v121 = vld [vmem:[%s1 + $0x194] sm:$0xf]
    %v122 = vld [vmem:[%s1 + $0x198] sm:$0xf]
    %v123 = vld [vmem:[%s1 + $0x19c] sm:$0xf]
    %v124 = vld [vmem:[%s1 + $0x1a0] sm:$0xf]
    %v125 = vld [vmem:[%s1 + $0x1a4] sm:$0xf]
    %v126 = vld [vmem:[%s1 + $0x1a8] sm:$0xf]
    %v127 = vld [vmem:[%s1 + $0x1ac] sm:$0xf]
    %v128 = vld [vmem:[%s1 + $0x1b0] sm:$0xf]
    %v129 = vld [vmem:[%s1 + $0x1b4] sm:$0xf]
    %v130 = vld [vmem:[%s1 + $0x1b8] sm:$0xf]
    %v131 = vld [vmem:[%s1 + $0x1bc] sm:$0xf]
    %v132 = vld [vmem:[%s1 + $0x1c0] sm:$0xf]
    %v133 = vld [vmem:[%s1 + $0x1c4] sm:$0xf]
    %v134 = vld [vmem:[%s1 + $0x1c8] sm:$0xf]
    %v135 = vld [vmem:[%s1 + $0x1cc] sm:$0xf]
    %v136 = vld [vmem:[%s1 + $0x1d0] sm:$0xf]
    %v137 = vld [vmem:[%s1 + $0x1d4] sm:$0xf]
    %v138 = vld [vmem:[%s1 + $0x1d8] sm:$0xf]
    %v139 = vld [vmem:[%s1 + $0x1dc] sm:$0xf]
    %v140 = vld [vmem:[%s1 + $0x1e0] sm:$0xf]
    %v141 = vld [vmem:[%s1 + $0x1e4] sm:$0xf]
    %v142 = vld [vmem:[%s1 + $0x1e8] sm:$0xf]
    %v143 = vld [vmem:[%s1 + $0x1ec] sm:$0xf]
    %v144 = vld [vmem:[%s1 + $0x1f0] sm:$0xf]
    %v145 = vld [vmem:[%s1 + $0x1f4] sm:$0xf]
    %v146 = vld [vmem:[%s1 + $0x1f8] sm:$0xf]
    %v147 = vld [vmem:[%s1 + $0x1fc] sm:$0xf]
    %v148 = vld [vmem:[%s1 + $0x200] sm:$0xf]
    %v149 = vld [vmem:[%s1 + $0x204] sm:$0xf]
    %v150 = vld [vmem:[%s1 + $0x208] sm:$0xf]
    %v151 = vld [vmem:[%s1 + $0x20c] sm:$0xf]
    %v152 = vld [vmem:[%s1 + $0x210] sm:$0xf]
    %v153 = vld [vmem:[%s1 + $0x214] sm:$0xf]
    %v154 = vld [vmem:[%s1 + $0x218] sm:$0xf]
    %v155 = vld [vmem:[%s1 + $0x21c] sm:$0xf]
    %v156 = vld [vmem:[%s1 + $0x220] sm:$0xf]
    %v157 = vld [vmem:[%s1 + $0x224] sm:$0xf]
    %v158 = vld [vmem:[%s1 + $0x228] sm:$0xf]
    %v159 = vld [vmem:[%s1 + $0x22c] sm:$0xf]
    %v160 = vld [vmem:[%s1 + $0x230] sm:$0xf]
    %v161 = vld [vmem:[%s1 + $0x234] sm:$0xf]
    %v162 = vld [vmem:[%s1 + $0x238] sm:$0xf]
    %v163 = vld [vmem:[%s1 + $0x23c] sm:$0xf]
    %v164 = vld [vmem:[%s1 + $0x240] sm:$0xf]
    %v165 = vld [vmem:[%s1 + $0x244] sm:$0xf]
    %v166 = vld [vmem:[%s1 + $0x248] sm:$0xf]
    %v167 = vld [vmem:[%s1 + $0x24c] sm:$0xf]
    %v168 = vld [vmem:[%s1 + $0x250] sm:$0xf]
    %v169 = vld [vmem:[%s1 + $0x254] sm:$0xf]
    %v170 = vld [vmem:[%s1 + $0x258] sm:$0xf]
    %v171 = vld [vmem:[%s1 + $0x25c] sm:$0xf]
    %v172 = vld [vmem:[%s1 + $0x260] sm:$0xf]
    %v173 = vld [vmem:[%s1 + $0x264] sm:$0xf]
    %v174 = vld [vmem:[%s1 + $0x268] sm:$0xf]
    %v175 = vld [vmem:[%s1 + $0x26c] sm:$0xf]
    %v176 = vld [vmem:[%s1 + $0x270] sm:$0xf]
    %v177 = vld [vmem:[%s1 + $0x274] sm:$0xf]
    %v178 = vld [vmem:[%s1 + $0x278] sm:$0xf]
    %v179 = vld [vmem:[%s1 + $0x27c] sm:$0xf]
    %v180 = vld [vmem:[%s1 + $0x280] sm:$0xf]
    %v181 = vld [vmem:[%s1 + $0x284] sm:$0xf]
    %v182 = vld [vmem:[%s1 + $0x288] sm:$0xf]
    %v183 = vld [vmem:[%s1 + $0x28c] sm:$0xf]
    %v184 = vld [vmem:[%s1 + $0x290] sm:$0xf]
    %v185 = vld [vmem:[%s1 + $0x294] sm:$0xf]
    %v186 = vld [vmem:[%s1 + $0x298] sm:$0xf]
    %v187 = vld [vmem:[%s1 + $0x29c] sm:$0xf]
    %v188 = vld [vmem:[%s1 + $0x2a0] sm:$0xf]
    %v189 = vld [vmem:[%s1 + $0x2a4] sm:$0xf]
    %v190 = vld [vmem:[%s1 + $0x2a8] sm:$0xf]
    %v191 = vld [vmem:[%s1 + $0x2ac] sm:$0xf]
    %v192 = vld [vmem:[%s1 + $0x2b0] sm:$0xf]
    %v193 = vld [vmem:[%s1 + $0x2b4] sm:$0xf]
    %v194 = vld [vmem:[%s1 + $0x2b8] sm:$0xf]
    %v195 = vld [vmem:[%s1 + $0x2bc] sm:$0xf]
    %v196 = vld [vmem:[%s1 + $0x2c0] sm:$0xf]
    %v197 = vld [vmem:[%s1 + $0x2c4] sm:$0xf]
    %v198 = vld [vmem:[%s1 + $0x2c8] sm:$0xf]
    %v199 = vld [vmem:[%s1 + $0x2cc] sm:$0xf]
    %v200 = vld [vmem:[%s1 + $0x2d0] sm:$0xf]
    %v201 = vld [vmem:[%s1 + $0x2d4] sm:$0xf]
    %v202 = vld [vmem:[%s1 + $0x2d8] sm:$0xf]
    %v203 = vld [vmem:[%s1 + $0x2dc] sm:$0xf]
    %v204 = vld [vmem:[%s1 + $0x2e0] sm:$0xf]
    %v205 = vld [vmem:[%s1 + $0x2e4] sm:$0xf]
    %v206 = vld [vmem:[%s1 + $0x2e8] sm:$0xf]
    %v207 = vld [vmem:[%s1 + $0x2ec] sm:$0xf]
    %v208 = vld [vmem:[%s1 + $0x2f0] sm:$0xf]
    %v209 = vld [vmem:[%s1 + $0x2f4] sm:$0xf]
    %v210 = vld [vmem:[%s1 + $0x2f8] sm:$0xf]
    %v211 = vld [vmem:[%s1 + $0x2fc] sm:$0xf]
    %v212 = vld [vmem:[%s1 + $0x300] sm:$0xf]
    %v213 = vld [vmem:[%s1 + $0x304] sm:$0xf]
    %v214 = vld [vmem:[%s1 + $0x308] sm:$0xf]
    %v215 = vld [vmem:[%s1 + $0x30c] sm:$0xf]
    %v216 = vld [vmem:[%s1 + $0x310] sm:$0xf]
    %v217 = vld [vmem:[%s1 + $0x314] sm:$0xf]
    %v218 = vld [vmem:[%s1 + $0x318] sm:$0xf]
    %v219 = vld [vmem:[%s1 + $0x31c] sm:$0xf]
    %v220 = vld [vmem:[%s1 + $0x320] sm:$0xf]
    %v221 = vld [vmem:[%s1 + $0x324] sm:$0xf]
    %v222 = vld [vmem:[%s1 + $0x328] sm:$0xf]
    %v223 = vld [vmem:[%s1 + $0x32c] sm:$0xf]
    %v224 = vld [vmem:[%s1 + $0x330] sm:$0xf]
    %v225 = vld [vmem:[%s1 + $0x334] sm:$0xf]
    %v226 = vld [vmem:[%s1 + $0x338] sm:$0xf]
    %v227 = vld [vmem:[%s1 + $0x33c] sm:$0xf]
    %v228 = vld [vmem:[%s1 + $0x340] sm:$0xf]
    %v229 = vld [vmem:[%s1 + $0x344] sm:$0xf]
    %v230 = vld [vmem:[%s1 + $0x348] sm:$0xf]
    %v231 = vld [vmem:[%s1 + $0x34c] sm:$0xf]
    %v232 = vld [vmem:[%s1 + $0x350] sm:$0xf]
    %v233 = vld [vmem:[%s1 + $0x354] sm:$0xf]
    %v234 = vld [vmem:[%s1 + $0x358] sm:$0xf]
    %v235 = vld [vmem:[%s1 + $0x35c] sm:$0xf]
    %v236 = vld [vmem:[%s1 + $0x360] sm:$0xf]
    %v237 = vld [vmem:[%s1 + $0x364] sm:$0xf]
    %v238 = vld [vmem:[%s1 + $0x368] sm:$0xf]
    %v239 = vld [vmem:[%s1 + $0x36c] sm:$0xf]
    %v240 = vld [vmem:[%s1 + $0x370] sm:$0xf]
    %v241 = vld [vmem:[%s1 + $0x374] sm:$0xf]
    %v242 = vld [vmem:[%s1 + $0x378] sm:$0xf]
    %v243 = vld [vmem:[%s1 + $0x37c] sm:$0xf]
    %v244 = vld [vmem:[%s1 + $0x380] sm:$0xf]
    %v245 = vld [vmem:[%s1 + $0x384] sm:$0xf]
    %v246 = vld [vmem:[%s1 + $0x388] sm:$0xf]
    %v247 = vld [vmem:[%s1 + $0x38c] sm:$0xf]
    %v248 = vld [vmem:[%s1 + $0x390] sm:$0xf]
    %v249 = vld [vmem:[%s1 + $0x394] sm:$0xf]
    %v250 = vld [vmem:[%s1 + $0x398] sm:$0xf]
    %v251 = vld [vmem:[%s1 + $0x39c] sm:$0xf]
    %v252 = vld [vmem:[%s1 + $0x3a0] sm:$0xf]
    %v253 = vld [vmem:[%s1 + $0x3a4] sm:$0xf]
    %v254 = vld [vmem:[%s1 + $0x3a8] sm:$0xf]
    %v255 = vld [vmem:[%s1 + $0x3ac] sm:$0xf]
    %v256 = vld [vmem:[%s1 + $0x3b0] sm:$0xf]
    %v257 = vld [vmem:[%s1 + $0x3b4] sm:$0xf]
    %v258 = vld [vmem:[%s1 + $0x3b8] sm:$0xf]
    %v259 = vld [vmem:[%s1 + $0x3bc] sm:$0xf]
    %v260 = vld [vmem:[%s1 + $0x3c0] sm:$0xf]
    %v261 = vld [vmem:[%s1 + $0x3c4] sm:$0xf]
    %v262 = vld [vmem:[%s1 + $0x3c8] sm:$0xf]
    %v263 = vld [vmem:[%s1 + $0x3cc] sm:$0xf]
    %v264 = vld [vmem:[%s1 + $0x3d0] sm:$0xf]
    %v265 = vld [vmem:[%s1 + $0x3d4] sm:$0xf]
    %v266 = vld [vmem:[%s1 + $0x3d8] sm:$0xf]
    %v267 = vld [vmem:[%s1 + $0x3dc] sm:$0xf]
    %v268 = vld [vmem:[%s1 + $0x3e0] sm:$0xf]
    %v269 = vld [vmem:[%s1 + $0x3e4] sm:$0xf]
    %v270 = vld [vmem:[%s1 + $0x3e8] sm:$0xf]
    %v271 = vld [vmem:[%s1 + $0x3ec] sm:$0xf]
    %v272 = vld [vmem:[%s1 + $0x3f0] sm:$0xf]
    %v273 = vld [vmem:[%s1 + $0x3f4] sm:$0xf]
    %v274 = vld [vmem:[%s1 + $0x3f8] sm:$0xf]
    %v275 = vld [vmem:[%s1 + $0x3fc] sm:$0xf]
    %v276 = vld [vmem:[#allocation2] sm:$0x1]
    %278 = vset.pattern.permute.xlu0 0
    %279 = vperm.xlu0 %278, %v276
    %v280 = vpop.permute.xlu0 %279
    %v282 = vlaneseq
    %v283 = vshrl.u32 %v282, 7
    %v284 = vsub.s32 0, %v283
    %v285 = vrot.slane %v280, %v284
    %v288 = vcombine.high %v18, %v18
    %v290 = vunpack.c.l.s4 1966171168
    %v291 = vunpack.c.0.s8 %v290
    %v292 = vlaneseq
    %v293 = vshrl.u32 %v292, 7
    %v294 = vsub.s32 %v291, %v293
    %v295 = vrot.slane %v18, %v294
    %v297 = vunpack.c.l.s4 1966171168
    %v298 = vunpack.c.0.s8 %v297
    %v299 = vlaneseq
    %v300 = vshrl.u32 %v299, 7
    %v301 = vsub.s32 %v298, %v300
    %v302 = vrot.slane %v288, %v301
    %v303 = vcombine.high %v295, %v295
    %v304 = vcombine.high %v302, %v302
    %v306 = vunpack.c.l.s4 1966171168
    %v307 = vunpack.c.0.s8 %v306
    %v308 = vlaneseq
    %v309 = vshrl.u32 %v308, 7
    %v310 = vsub.s32 %v307, %v309
    %v311 = vrot.slane %v295, %v310
    %v313 = vunpack.c.l.s4 1966171168
    %v314 = vunpack.c.0.s8 %v313
    %v315 = vlaneseq
    %v316 = vshrl.u32 %v315, 7
    %v317 = vsub.s32 %v314, %v316
    %v318 = vrot.slane %v302, %v317
    %v320 = vunpack.c.l.s4 1966171168
    %v321 = vunpack.c.0.s8 %v320
    %v322 = vlaneseq
    %v323 = vshrl.u32 %v322, 7
    %v324 = vsub.s32 %v321, %v323
    %v325 = vrot.slane %v303, %v324
    %v327 = vunpack.c.l.s4 1966171168
    %v328 = vunpack.c.0.s8 %v327
    %v329 = vlaneseq
    %v330 = vshrl.u32 %v329, 7
    %v331 = vsub.s32 %v328, %v330
    %v332 = vrot.slane %v304, %v331
    %v333 = vcombine.high %v311, %v311
    %v334 = vcombine.high %v318, %v318
    %v335 = vcombine.high %v325, %v325
    %v336 = vcombine.high %v332, %v332
    %v337 = vcombine.high %v19, %v19
    %v339 = vunpack.c.l.s4 1966171168
    %v340 = vunpack.c.0.s8 %v339
    %v341 = vlaneseq
    %v342 = vshrl.u32 %v341, 7
    %v343 = vsub.s32 %v340, %v342
    %v344 = vrot.slane %v19, %v343
    %v346 = vunpack.c.l.s4 1966171168
    %v347 = vunpack.c.0.s8 %v346
    %v348 = vlaneseq
    %v349 = vshrl.u32 %v348, 7
    %v350 = vsub.s32 %v347, %v349
    %v351 = vrot.slane %v337, %v350
    %v352 = vcombine.high %v344, %v344
    %v353 = vcombine.high %v351, %v351
    %v355 = vunpack.c.l.s4 1966171168
    %v356 = vunpack.c.0.s8 %v355
    %v357 = vlaneseq
    %v358 = vshrl.u32 %v357, 7
    %v359 = vsub.s32 %v356, %v358
    %v360 = vrot.slane %v344, %v359
    %v362 = vunpack.c.l.s4 1966171168
    %v363 = vunpack.c.0.s8 %v362
    %v364 = vlaneseq
    %v365 = vshrl.u32 %v364, 7
    %v366 = vsub.s32 %v363, %v365
    %v367 = vrot.slane %v351, %v366
    %v369 = vunpack.c.l.s4 1966171168
    %v370 = vunpack.c.0.s8 %v369
    %v371 = vlaneseq
    %v372 = vshrl.u32 %v371, 7
    %v373 = vsub.s32 %v370, %v372
    %v374 = vrot.slane %v352, %v373
    %v376 = vunpack.c.l.s4 1966171168
    %v377 = vunpack.c.0.s8 %v376
    %v378 = vlaneseq
    %v379 = vshrl.u32 %v378, 7
    %v380 = vsub.s32 %v377, %v379
    %v381 = vrot.slane %v353, %v380
    %v382 = vcombine.high %v360, %v360
    %v383 = vcombine.high %v367, %v367
    %v384 = vcombine.high %v374, %v374
    %v385 = vcombine.high %v381, %v381
    %v658 = vunpack.c.l.b16 %v20
    %v659 = vunpack.c.l.b16 %v21
    %v660 = vunpack.c.l.b16 %v22
    %v661 = vunpack.c.l.b16 %v23
    %v662 = vunpack.c.l.b16 %v24
    %v663 = vunpack.c.l.b16 %v25
    %v664 = vunpack.c.l.b16 %v26
    %v665 = vunpack.c.l.b16 %v27
    %v666 = vunpack.c.l.b16 %v28
    %v667 = vunpack.c.l.b16 %v29
    %v668 = vunpack.c.l.b16 %v30
    %v669 = vunpack.c.l.b16 %v31
    %v670 = vunpack.c.l.b16 %v32
    %v671 = vunpack.c.l.b16 %v33
    %v672 = vunpack.c.l.b16 %v34
    %v673 = vunpack.c.l.b16 %v35
    %v674 = vunpack.c.l.b16 %v36
    %v675 = vunpack.c.l.b16 %v37
    %v676 = vunpack.c.l.b16 %v38
    %v677 = vunpack.c.l.b16 %v39
    %v678 = vunpack.c.l.b16 %v40
    %v679 = vunpack.c.l.b16 %v41
    %v680 = vunpack.c.l.b16 %v42
    %v681 = vunpack.c.l.b16 %v43
    %v682 = vunpack.c.l.b16 %v44
    %v683 = vunpack.c.l.b16 %v45
    %v684 = vunpack.c.l.b16 %v46
    %v685 = vunpack.c.l.b16 %v47
    %v686 = vunpack.c.l.b16 %v48
    %v687 = vunpack.c.l.b16 %v49
    %v688 = vunpack.c.l.b16 %v50
    %v689 = vunpack.c.l.b16 %v51
    %v690 = vunpack.c.l.b16 %v52
    %v691 = vunpack.c.l.b16 %v53
    %v692 = vunpack.c.l.b16 %v54
    %v693 = vunpack.c.l.b16 %v55
    %v694 = vunpack.c.l.b16 %v56
    %v695 = vunpack.c.l.b16 %v57
    %v696 = vunpack.c.l.b16 %v58
    %v697 = vunpack.c.l.b16 %v59
    %v698 = vunpack.c.l.b16 %v60
    %v699 = vunpack.c.l.b16 %v61
    %v700 = vunpack.c.l.b16 %v62
    %v701 = vunpack.c.l.b16 %v63
    %v702 = vunpack.c.l.b16 %v64
    %v703 = vunpack.c.l.b16 %v65
    %v704 = vunpack.c.l.b16 %v66
    %v705 = vunpack.c.l.b16 %v67
    %v706 = vunpack.c.l.b16 %v68
    %v707 = vunpack.c.l.b16 %v69
    %v708 = vunpack.c.l.b16 %v70
    %v709 = vunpack.c.l.b16 %v71
    %v710 = vunpack.c.l.b16 %v72
    %v711 = vunpack.c.l.b16 %v73
    %v712 = vunpack.c.l.b16 %v74
    %v713 = vunpack.c.l.b16 %v75
    %v714 = vunpack.c.l.b16 %v76
    %v715 = vunpack.c.l.b16 %v77
    %v716 = vunpack.c.l.b16 %v78
    %v717 = vunpack.c.l.b16 %v79
    %v718 = vunpack.c.l.b16 %v80
    %v719 = vunpack.c.l.b16 %v81
    %v720 = vunpack.c.l.b16 %v82
    %v721 = vunpack.c.l.b16 %v83
    %v722 = vunpack.c.l.b16 %v84
    %v723 = vunpack.c.l.b16 %v85
    %v724 = vunpack.c.l.b16 %v86
    %v725 = vunpack.c.l.b16 %v87
    %v726 = vunpack.c.l.b16 %v88
    %v727 = vunpack.c.l.b16 %v89
    %v728 = vunpack.c.l.b16 %v90
    %v729 = vunpack.c.l.b16 %v91
    %v730 = vunpack.c.l.b16 %v92
    %v731 = vunpack.c.l.b16 %v93
    %v732 = vunpack.c.l.b16 %v94
    %v733 = vunpack.c.l.b16 %v95
    %v734 = vunpack.c.l.b16 %v96
    %v735 = vunpack.c.l.b16 %v97
    %v736 = vunpack.c.l.b16 %v98
    %v737 = vunpack.c.l.b16 %v99
    %v738 = vunpack.c.l.b16 %v100
    %v739 = vunpack.c.l.b16 %v101
    %v740 = vunpack.c.l.b16 %v102
    %v741 = vunpack.c.l.b16 %v103
    %v742 = vunpack.c.l.b16 %v104
    %v743 = vunpack.c.l.b16 %v105
    %v744 = vunpack.c.l.b16 %v106
    %v745 = vunpack.c.l.b16 %v107
    %v746 = vunpack.c.l.b16 %v108
    %v747 = vunpack.c.l.b16 %v109
    %v748 = vunpack.c.l.b16 %v110
    %v749 = vunpack.c.l.b16 %v111
    %v750 = vunpack.c.l.b16 %v112
    %v751 = vunpack.c.l.b16 %v113
    %v752 = vunpack.c.l.b16 %v114
    %v753 = vunpack.c.l.b16 %v115
    %v754 = vunpack.c.l.b16 %v116
    %v755 = vunpack.c.l.b16 %v117
    %v756 = vunpack.c.l.b16 %v118
    %v757 = vunpack.c.l.b16 %v119
    %v758 = vunpack.c.l.b16 %v120
    %v759 = vunpack.c.l.b16 %v121
    %v760 = vunpack.c.l.b16 %v122
    %v761 = vunpack.c.l.b16 %v123
    %v762 = vunpack.c.l.b16 %v124
    %v763 = vunpack.c.l.b16 %v125
    %v764 = vunpack.c.l.b16 %v126
    %v765 = vunpack.c.l.b16 %v127
    %v766 = vunpack.c.l.b16 %v128
    %v767 = vunpack.c.l.b16 %v129
    %v768 = vunpack.c.l.b16 %v130
    %v769 = vunpack.c.l.b16 %v131
    %v770 = vunpack.c.l.b16 %v132
    %v771 = vunpack.c.l.b16 %v133
    %v772 = vunpack.c.l.b16 %v134
    %v773 = vunpack.c.l.b16 %v135
    %v774 = vunpack.c.l.b16 %v136
    %v775 = vunpack.c.l.b16 %v137
    %v776 = vunpack.c.l.b16 %v138
    %v777 = vunpack.c.l.b16 %v139
    %v778 = vunpack.c.l.b16 %v140
    %v779 = vunpack.c.l.b16 %v141
    %v780 = vunpack.c.l.b16 %v142
    %v781 = vunpack.c.l.b16 %v143
    %v782 = vunpack.c.l.b16 %v144
    %v783 = vunpack.c.l.b16 %v145
    %v784 = vunpack.c.l.b16 %v146
    %v785 = vunpack.c.l.b16 %v147
    %v786 = vunpack.c.l.b16 %v148
    %v787 = vunpack.c.l.b16 %v149
    %v788 = vunpack.c.l.b16 %v150
    %v789 = vunpack.c.l.b16 %v151
    %v790 = vunpack.c.l.b16 %v152
    %v791 = vunpack.c.l.b16 %v153
    %v792 = vunpack.c.l.b16 %v154
    %v793 = vunpack.c.l.b16 %v155
    %v794 = vunpack.c.l.b16 %v156
    %v795 = vunpack.c.l.b16 %v157
    %v796 = vunpack.c.l.b16 %v158
    %v797 = vunpack.c.l.b16 %v159
    %v798 = vunpack.c.l.b16 %v160
    %v799 = vunpack.c.l.b16 %v161
    %v800 = vunpack.c.l.b16 %v162
    %v801 = vunpack.c.l.b16 %v163
    %v802 = vunpack.c.l.b16 %v164
    %v803 = vunpack.c.l.b16 %v165
    %v804 = vunpack.c.l.b16 %v166
    %v805 = vunpack.c.l.b16 %v167
    %v806 = vunpack.c.l.b16 %v168
    %v807 = vunpack.c.l.b16 %v169
    %v808 = vunpack.c.l.b16 %v170
    %v809 = vunpack.c.l.b16 %v171
    %v810 = vunpack.c.l.b16 %v172
    %v811 = vunpack.c.l.b16 %v173
    %v812 = vunpack.c.l.b16 %v174
    %v813 = vunpack.c.l.b16 %v175
    %v814 = vunpack.c.l.b16 %v176
    %v815 = vunpack.c.l.b16 %v177
    %v816 = vunpack.c.l.b16 %v178
    %v817 = vunpack.c.l.b16 %v179
    %v818 = vunpack.c.l.b16 %v180
    %v819 = vunpack.c.l.b16 %v181
    %v820 = vunpack.c.l.b16 %v182
    %v821 = vunpack.c.l.b16 %v183
    %v822 = vunpack.c.l.b16 %v184
    %v823 = vunpack.c.l.b16 %v185
    %v824 = vunpack.c.l.b16 %v186
    %v825 = vunpack.c.l.b16 %v187
    %v826 = vunpack.c.l.b16 %v188
    %v827 = vunpack.c.l.b16 %v189
    %v828 = vunpack.c.l.b16 %v190
    %v829 = vunpack.c.l.b16 %v191
    %v830 = vunpack.c.l.b16 %v192
    %v831 = vunpack.c.l.b16 %v193
    %v832 = vunpack.c.l.b16 %v194
    %v833 = vunpack.c.l.b16 %v195
    %v834 = vunpack.c.l.b16 %v196
    %v835 = vunpack.c.l.b16 %v197
    %v836 = vunpack.c.l.b16 %v198
    %v837 = vunpack.c.l.b16 %v199
    %v838 = vunpack.c.l.b16 %v200
    %v839 = vunpack.c.l.b16 %v201
    %v840 = vunpack.c.l.b16 %v202
    %v841 = vunpack.c.l.b16 %v203
    %v842 = vunpack.c.l.b16 %v204
    %v843 = vunpack.c.l.b16 %v205
    %v844 = vunpack.c.l.b16 %v206
    %v845 = vunpack.c.l.b16 %v207
    %v846 = vunpack.c.l.b16 %v208
    %v847 = vunpack.c.l.b16 %v209
    %v848 = vunpack.c.l.b16 %v210
    %v849 = vunpack.c.l.b16 %v211
    %v850 = vunpack.c.l.b16 %v212
    %v851 = vunpack.c.l.b16 %v213
    %v852 = vunpack.c.l.b16 %v214
    %v853 = vunpack.c.l.b16 %v215
    %v854 = vunpack.c.l.b16 %v216
    %v855 = vunpack.c.l.b16 %v217
    %v856 = vunpack.c.l.b16 %v218
    %v857 = vunpack.c.l.b16 %v219
    %v858 = vunpack.c.l.b16 %v220
    %v859 = vunpack.c.l.b16 %v221
    %v860 = vunpack.c.l.b16 %v222
    %v861 = vunpack.c.l.b16 %v223
    %v862 = vunpack.c.l.b16 %v224
    %v863 = vunpack.c.l.b16 %v225
    %v864 = vunpack.c.l.b16 %v226
    %v865 = vunpack.c.l.b16 %v227
    %v866 = vunpack.c.l.b16 %v228
    %v867 = vunpack.c.l.b16 %v229
    %v868 = vunpack.c.l.b16 %v230
    %v869 = vunpack.c.l.b16 %v231
    %v870 = vunpack.c.l.b16 %v232
    %v871 = vunpack.c.l.b16 %v233
    %v872 = vunpack.c.l.b16 %v234
    %v873 = vunpack.c.l.b16 %v235
    %v874 = vunpack.c.l.b16 %v236
    %v875 = vunpack.c.l.b16 %v237
    %v876 = vunpack.c.l.b16 %v238
    %v877 = vunpack.c.l.b16 %v239
    %v878 = vunpack.c.l.b16 %v240
    %v879 = vunpack.c.l.b16 %v241
    %v880 = vunpack.c.l.b16 %v242
    %v881 = vunpack.c.l.b16 %v243
    %v882 = vunpack.c.l.b16 %v244
    %v883 = vunpack.c.l.b16 %v245
    %v884 = vunpack.c.l.b16 %v246
    %v885 = vunpack.c.l.b16 %v247
    %v886 = vunpack.c.l.b16 %v248
    %v887 = vunpack.c.l.b16 %v249
    %v888 = vunpack.c.l.b16 %v250
    %v889 = vunpack.c.l.b16 %v251
    %v890 = vunpack.c.l.b16 %v252
    %v891 = vunpack.c.l.b16 %v253
    %v892 = vunpack.c.l.b16 %v254
    %v893 = vunpack.c.l.b16 %v255
    %v894 = vunpack.c.l.b16 %v256
    %v895 = vunpack.c.l.b16 %v257
    %v896 = vunpack.c.l.b16 %v258
    %v897 = vunpack.c.l.b16 %v259
    %v898 = vunpack.c.l.b16 %v260
    %v899 = vunpack.c.l.b16 %v261
    %v900 = vunpack.c.l.b16 %v262
    %v901 = vunpack.c.l.b16 %v263
    %v902 = vunpack.c.l.b16 %v264
    %v903 = vunpack.c.l.b16 %v265
    %v904 = vunpack.c.l.b16 %v266
    %v905 = vunpack.c.l.b16 %v267
    %v906 = vunpack.c.l.b16 %v268
    %v907 = vunpack.c.l.b16 %v269
    %v908 = vunpack.c.l.b16 %v270
    %v909 = vunpack.c.l.b16 %v271
    %v910 = vunpack.c.l.b16 %v272
    %v911 = vunpack.c.l.b16 %v273
    %v912 = vunpack.c.l.b16 %v274
    %v913 = vunpack.c.l.b16 %v275
    %v914 = vpack.c.b16 %v659, %v658
    %v915 = vpack.c.b16 %v661, %v660
    %v916 = vpack.c.b16 %v663, %v662
    %v917 = vpack.c.b16 %v665, %v664
    %v918 = vpack.c.b16 %v667, %v666
    %v919 = vpack.c.b16 %v669, %v668
    %v920 = vpack.c.b16 %v671, %v670
    %v921 = vpack.c.b16 %v673, %v672
    %v922 = vpack.c.b16 %v675, %v674
    %v923 = vpack.c.b16 %v677, %v676
    %v924 = vpack.c.b16 %v679, %v678
    %v925 = vpack.c.b16 %v681, %v680
    %v926 = vpack.c.b16 %v683, %v682
    %v927 = vpack.c.b16 %v685, %v684
    %v928 = vpack.c.b16 %v687, %v686
    %v929 = vpack.c.b16 %v689, %v688
    %v930 = vpack.c.b16 %v691, %v690
    %v931 = vpack.c.b16 %v693, %v692
    %v932 = vpack.c.b16 %v695, %v694
    %v933 = vpack.c.b16 %v697, %v696
    %v934 = vpack.c.b16 %v699, %v698
    %v935 = vpack.c.b16 %v701, %v700
    %v936 = vpack.c.b16 %v703, %v702
    %v937 = vpack.c.b16 %v705, %v704
    %v938 = vpack.c.b16 %v707, %v706
    %v939 = vpack.c.b16 %v709, %v708
    %v940 = vpack.c.b16 %v711, %v710
    %v941 = vpack.c.b16 %v713, %v712
    %v942 = vpack.c.b16 %v715, %v714
    %v943 = vpack.c.b16 %v717, %v716
    %v944 = vpack.c.b16 %v719, %v718
    %v945 = vpack.c.b16 %v721, %v720
    %v946 = vpack.c.b16 %v723, %v722
    %v947 = vpack.c.b16 %v725, %v724
    %v948 = vpack.c.b16 %v727, %v726
    %v949 = vpack.c.b16 %v729, %v728
    %v950 = vpack.c.b16 %v731, %v730
    %v951 = vpack.c.b16 %v733, %v732
    %v952 = vpack.c.b16 %v735, %v734
    %v953 = vpack.c.b16 %v737, %v736
    %v954 = vpack.c.b16 %v739, %v738
    %v955 = vpack.c.b16 %v741, %v740
    %v956 = vpack.c.b16 %v743, %v742
    %v957 = vpack.c.b16 %v745, %v744
    %v958 = vpack.c.b16 %v747, %v746
    %v959 = vpack.c.b16 %v749, %v748
    %v960 = vpack.c.b16 %v751, %v750
    %v961 = vpack.c.b16 %v753, %v752
    %v962 = vpack.c.b16 %v755, %v754
    %v963 = vpack.c.b16 %v757, %v756
    %v964 = vpack.c.b16 %v759, %v758
    %v965 = vpack.c.b16 %v761, %v760
    %v966 = vpack.c.b16 %v763, %v762
    %v967 = vpack.c.b16 %v765, %v764
    %v968 = vpack.c.b16 %v767, %v766
    %v969 = vpack.c.b16 %v769, %v768
    %v970 = vpack.c.b16 %v771, %v770
    %v971 = vpack.c.b16 %v773, %v772
    %v972 = vpack.c.b16 %v775, %v774
    %v973 = vpack.c.b16 %v777, %v776
    %v974 = vpack.c.b16 %v779, %v778
    %v975 = vpack.c.b16 %v781, %v780
    %v976 = vpack.c.b16 %v783, %v782
    %v977 = vpack.c.b16 %v785, %v784
    %v978 = vpack.c.b16 %v787, %v786
    %v979 = vpack.c.b16 %v789, %v788
    %v980 = vpack.c.b16 %v791, %v790
    %v981 = vpack.c.b16 %v793, %v792
    %v982 = vpack.c.b16 %v795, %v794
    %v983 = vpack.c.b16 %v797, %v796
    %v984 = vpack.c.b16 %v799, %v798
    %v985 = vpack.c.b16 %v801, %v800
    %v986 = vpack.c.b16 %v803, %v802
    %v987 = vpack.c.b16 %v805, %v804
    %v988 = vpack.c.b16 %v807, %v806
    %v989 = vpack.c.b16 %v809, %v808
    %v990 = vpack.c.b16 %v811, %v810
    %v991 = vpack.c.b16 %v813, %v812
    %v992 = vpack.c.b16 %v815, %v814
    %v993 = vpack.c.b16 %v817, %v816
    %v994 = vpack.c.b16 %v819, %v818
    %v995 = vpack.c.b16 %v821, %v820
    %v996 = vpack.c.b16 %v823, %v822
    %v997 = vpack.c.b16 %v825, %v824
    %v998 = vpack.c.b16 %v827, %v826
    %v999 = vpack.c.b16 %v829, %v828
    %v1000 = vpack.c.b16 %v831, %v830
    %v1001 = vpack.c.b16 %v833, %v832
    %v1002 = vpack.c.b16 %v835, %v834
    %v1003 = vpack.c.b16 %v837, %v836
    %v1004 = vpack.c.b16 %v839, %v838
    %v1005 = vpack.c.b16 %v841, %v840
    %v1006 = vpack.c.b16 %v843, %v842
    %v1007 = vpack.c.b16 %v845, %v844
    %v1008 = vpack.c.b16 %v847, %v846
    %v1009 = vpack.c.b16 %v849, %v848
    %v1010 = vpack.c.b16 %v851, %v850
    %v1011 = vpack.c.b16 %v853, %v852
    %v1012 = vpack.c.b16 %v855, %v854
    %v1013 = vpack.c.b16 %v857, %v856
    %v1014 = vpack.c.b16 %v859, %v858
    %v1015 = vpack.c.b16 %v861, %v860
    %v1016 = vpack.c.b16 %v863, %v862
    %v1017 = vpack.c.b16 %v865, %v864
    %v1018 = vpack.c.b16 %v867, %v866
    %v1019 = vpack.c.b16 %v869, %v868
    %v1020 = vpack.c.b16 %v871, %v870
    %v1021 = vpack.c.b16 %v873, %v872
    %v1022 = vpack.c.b16 %v875, %v874
    %v1023 = vpack.c.b16 %v877, %v876
    %v1024 = vpack.c.b16 %v879, %v878
    %v1025 = vpack.c.b16 %v881, %v880
    %v1026 = vpack.c.b16 %v883, %v882
    %v1027 = vpack.c.b16 %v885, %v884
    %v1028 = vpack.c.b16 %v887, %v886
    %v1029 = vpack.c.b16 %v889, %v888
    %v1030 = vpack.c.b16 %v891, %v890
    %v1031 = vpack.c.b16 %v893, %v892
    %v1032 = vpack.c.b16 %v895, %v894
    %v1033 = vpack.c.b16 %v897, %v896
    %v1034 = vpack.c.b16 %v899, %v898
    %v1035 = vpack.c.b16 %v901, %v900
    %v1036 = vpack.c.b16 %v903, %v902
    %v1037 = vpack.c.b16 %v905, %v904
    %v1038 = vpack.c.b16 %v907, %v906
    %v1039 = vpack.c.b16 %v909, %v908
    %v1040 = vpack.c.b16 %v911, %v910
    %v1041 = vpack.c.b16 %v913, %v912
    %1170 = vmatprep.subr.bf16.mxu0 0
    %1171 = vmatpush1.bf16.msra.mxu0 %v914
    %1172 = vmatprep.subr.bf16.mxu0 0
    %1173 = vmatpush1.bf16.msra.mxu0 %v915
    %1174 = vmatprep.subr.bf16.mxu0 0
    %1175 = vmatpush1.bf16.msra.mxu0 %v916
    %1176 = vmatprep.subr.bf16.mxu0 0
    %1177 = vmatpush1.bf16.msra.mxu0 %v917
    %1178 = vmatprep.subr.bf16.mxu0 0
    %1179 = vmatpush1.bf16.msra.mxu0 %v918
    %1180 = vmatprep.subr.bf16.mxu0 0
    %1181 = vmatpush1.bf16.msra.mxu0 %v919
    %1182 = vmatprep.subr.bf16.mxu0 0
    %1183 = vmatpush1.bf16.msra.mxu0 %v920
    %1184 = vmatprep.subr.bf16.mxu0 0
    %1185 = vmatpush1.bf16.msra.mxu0 %v921
    %1186 = vmatprep.subr.bf16.mxu0 0
    %1187 = vmatpush1.bf16.msra.mxu0 %v922
    %1188 = vmatprep.subr.bf16.mxu0 0
    %1189 = vmatpush1.bf16.msra.mxu0 %v923
    %1190 = vmatprep.subr.bf16.mxu0 0
    %1191 = vmatpush1.bf16.msra.mxu0 %v924
    %1192 = vmatprep.subr.bf16.mxu0 0
    %1193 = vmatpush1.bf16.msra.mxu0 %v925
    %1194 = vmatprep.subr.bf16.mxu0 0
    %1195 = vmatpush1.bf16.msra.mxu0 %v926
    %1196 = vmatprep.subr.bf16.mxu0 0
    %1197 = vmatpush1.bf16.msra.mxu0 %v927
    %1198 = vmatprep.subr.bf16.mxu0 0
    %1199 = vmatpush1.bf16.msra.mxu0 %v928
    %1200 = vmatprep.subr.bf16.mxu0 0
    %1201 = vmatpush1.bf16.msra.mxu0 %v929
    %1202 = vmatprep.mubr.bf16.mxu0 %v325
    %1203 = vmatmul.mubr.bf16.gmra.mrb[0].mxu0 %v311
    %v1204 = vpop.f32.mrb[0].mxu0
    %v1205 = vadd.f32 %v285, %v1204
    %v1206 = vpop.f32.mrb[0].mxu0
    %v1207 = vpop.f32.mrb[0].mxu0
    %v1208 = vpop.f32.mrb[0].mxu0
    %1209 = vdwg.mxu0
    %1210 = vmatprep.subr.bf16.mxu0 0
    %1211 = vmatpush1.bf16.msra.mxu0 %v930
    %1212 = vmatprep.subr.bf16.mxu0 0
    %1213 = vmatpush1.bf16.msra.mxu0 %v931
    %1214 = vmatprep.subr.bf16.mxu0 0
    %1215 = vmatpush1.bf16.msra.mxu0 %v932
    %1216 = vmatprep.subr.bf16.mxu0 0
    %1217 = vmatpush1.bf16.msra.mxu0 %v933
    %1218 = vmatprep.subr.bf16.mxu0 0
    %1219 = vmatpush1.bf16.msra.mxu0 %v934
    %1220 = vmatprep.subr.bf16.mxu0 0
    %1221 = vmatpush1.bf16.msra.mxu0 %v935
    %1222 = vmatprep.subr.bf16.mxu0 0
    %1223 = vmatpush1.bf16.msra.mxu0 %v936
    %1224 = vmatprep.subr.bf16.mxu0 0
    %1225 = vmatpush1.bf16.msra.mxu0 %v937
    %1226 = vmatprep.subr.bf16.mxu0 0
    %1227 = vmatpush1.bf16.msra.mxu0 %v938
    %1228 = vmatprep.subr.bf16.mxu0 0
    %1229 = vmatpush1.bf16.msra.mxu0 %v939
    %1230 = vmatprep.subr.bf16.mxu0 0
    %1231 = vmatpush1.bf16.msra.mxu0 %v940
    %1232 = vmatprep.subr.bf16.mxu0 0
    %1233 = vmatpush1.bf16.msra.mxu0 %v941
    %1234 = vmatprep.subr.bf16.mxu0 0
    %1235 = vmatpush1.bf16.msra.mxu0 %v942
    %1236 = vmatprep.subr.bf16.mxu0 0
    %1237 = vmatpush1.bf16.msra.mxu0 %v943
    %1238 = vmatprep.subr.bf16.mxu0 0
    %1239 = vmatpush1.bf16.msra.mxu0 %v944
    %1240 = vmatprep.subr.bf16.mxu0 0
    %1241 = vmatpush1.bf16.msra.mxu0 %v945
    %1242 = vmatprep.mubr.bf16.mxu0 %v335
    %1243 = vmatmul.mubr.bf16.gmra.mrb[0].mxu0 %v333
    %v1244 = vpop.f32.mrb[0].mxu0
    %v1245 = vadd.f32 %v1205, %v1244
    %v1246 = vpop.f32.mrb[0].mxu0
    %v1247 = vpop.f32.mrb[0].mxu0
    %v1248 = vpop.f32.mrb[0].mxu0
    %1249 = vdwg.mxu0
    %1250 = vmatprep.subr.bf16.mxu0 0
    %1251 = vmatpush1.bf16.msra.mxu0 %v946
    %1252 = vmatprep.subr.bf16.mxu0 0
    %1253 = vmatpush1.bf16.msra.mxu0 %v947
    %1254 = vmatprep.subr.bf16.mxu0 0
    %1255 = vmatpush1.bf16.msra.mxu0 %v948
    %1256 = vmatprep.subr.bf16.mxu0 0
    %1257 = vmatpush1.bf16.msra.mxu0 %v949
    %1258 = vmatprep.subr.bf16.mxu0 0
    %1259 = vmatpush1.bf16.msra.mxu0 %v950
    %1260 = vmatprep.subr.bf16.mxu0 0
    %1261 = vmatpush1.bf16.msra.mxu0 %v951
    %1262 = vmatprep.subr.bf16.mxu0 0
    %1263 = vmatpush1.bf16.msra.mxu0 %v952
    %1264 = vmatprep.subr.bf16.mxu0 0
    %1265 = vmatpush1.bf16.msra.mxu0 %v953
    %1266 = vmatprep.subr.bf16.mxu0 0
    %1267 = vmatpush1.bf16.msra.mxu0 %v954
    %1268 = vmatprep.subr.bf16.mxu0 0
    %1269 = vmatpush1.bf16.msra.mxu0 %v955
    %1270 = vmatprep.subr.bf16.mxu0 0
    %1271 = vmatpush1.bf16.msra.mxu0 %v956
    %1272 = vmatprep.subr.bf16.mxu0 0
    %1273 = vmatpush1.bf16.msra.mxu0 %v957
    %1274 = vmatprep.subr.bf16.mxu0 0
    %1275 = vmatpush1.bf16.msra.mxu0 %v958
    %1276 = vmatprep.subr.bf16.mxu0 0
    %1277 = vmatpush1.bf16.msra.mxu0 %v959
    %1278 = vmatprep.subr.bf16.mxu0 0
    %1279 = vmatpush1.bf16.msra.mxu0 %v960
    %1280 = vmatprep.subr.bf16.mxu0 0
    %1281 = vmatpush1.bf16.msra.mxu0 %v961
    %1282 = vmatprep.mubr.bf16.mxu0 %v332
    %1283 = vmatmul.mubr.bf16.gmra.mrb[0].mxu0 %v318
    %v1284 = vpop.f32.mrb[0].mxu0
    %v1285 = vadd.f32 %v1245, %v1284
    %v1286 = vpop.f32.mrb[0].mxu0
    %v1287 = vpop.f32.mrb[0].mxu0
    %v1288 = vpop.f32.mrb[0].mxu0
    %1289 = vdwg.mxu0
    %1290 = vmatprep.subr.bf16.mxu0 0
    %1291 = vmatpush1.bf16.msra.mxu0 %v962
    %1292 = vmatprep.subr.bf16.mxu0 0
    %1293 = vmatpush1.bf16.msra.mxu0 %v963
    %1294 = vmatprep.subr.bf16.mxu0 0
    %1295 = vmatpush1.bf16.msra.mxu0 %v964
    %1296 = vmatprep.subr.bf16.mxu0 0
    %1297 = vmatpush1.bf16.msra.mxu0 %v965
    %1298 = vmatprep.subr.bf16.mxu0 0
    %1299 = vmatpush1.bf16.msra.mxu0 %v966
    %1300 = vmatprep.subr.bf16.mxu0 0
    %1301 = vmatpush1.bf16.msra.mxu0 %v967
    %1302 = vmatprep.subr.bf16.mxu0 0
    %1303 = vmatpush1.bf16.msra.mxu0 %v968
    %1304 = vmatprep.subr.bf16.mxu0 0
    %1305 = vmatpush1.bf16.msra.mxu0 %v969
    %1306 = vmatprep.subr.bf16.mxu0 0
    %1307 = vmatpush1.bf16.msra.mxu0 %v970
    %1308 = vmatprep.subr.bf16.mxu0 0
    %1309 = vmatpush1.bf16.msra.mxu0 %v971
    %1310 = vmatprep.subr.bf16.mxu0 0
    %1311 = vmatpush1.bf16.msra.mxu0 %v972
    %1312 = vmatprep.subr.bf16.mxu0 0
    %1313 = vmatpush1.bf16.msra.mxu0 %v973
    %1314 = vmatprep.subr.bf16.mxu0 0
    %1315 = vmatpush1.bf16.msra.mxu0 %v974
    %1316 = vmatprep.subr.bf16.mxu0 0
    %1317 = vmatpush1.bf16.msra.mxu0 %v975
    %1318 = vmatprep.subr.bf16.mxu0 0
    %1319 = vmatpush1.bf16.msra.mxu0 %v976
    %1320 = vmatprep.subr.bf16.mxu0 0
    %1321 = vmatpush1.bf16.msra.mxu0 %v977
    %1322 = vmatprep.mubr.bf16.mxu0 %v336
    %1323 = vmatmul.mubr.bf16.gmra.mrb[0].mxu0 %v334
    %v1324 = vpop.f32.mrb[0].mxu0
    %v1325 = vadd.f32 %v1285, %v1324
    %v1326 = vpop.f32.mrb[0].mxu0
    %v1327 = vpop.f32.mrb[0].mxu0
    %v1328 = vpop.f32.mrb[0].mxu0
    %1329 = vdwg.mxu0
    %1330 = vmatprep.subr.bf16.mxu0 0
    %1331 = vmatpush1.bf16.msra.mxu0 %v978
    %1332 = vmatprep.subr.bf16.mxu0 0
    %1333 = vmatpush1.bf16.msra.mxu0 %v979
    %1334 = vmatprep.subr.bf16.mxu0 0
    %1335 = vmatpush1.bf16.msra.mxu0 %v980
    %1336 = vmatprep.subr.bf16.mxu0 0
    %1337 = vmatpush1.bf16.msra.mxu0 %v981
    %1338 = vmatprep.subr.bf16.mxu0 0
    %1339 = vmatpush1.bf16.msra.mxu0 %v982
    %1340 = vmatprep.subr.bf16.mxu0 0
    %1341 = vmatpush1.bf16.msra.mxu0 %v983
    %1342 = vmatprep.subr.bf16.mxu0 0
    %1343 = vmatpush1.bf16.msra.mxu0 %v984
    %1344 = vmatprep.subr.bf16.mxu0 0
    %1345 = vmatpush1.bf16.msra.mxu0 %v985
    %1346 = vmatprep.subr.bf16.mxu0 0
    %1347 = vmatpush1.bf16.msra.mxu0 %v986
    %1348 = vmatprep.subr.bf16.mxu0 0
    %1349 = vmatpush1.bf16.msra.mxu0 %v987
    %1350 = vmatprep.subr.bf16.mxu0 0
    %1351 = vmatpush1.bf16.msra.mxu0 %v988
    %1352 = vmatprep.subr.bf16.mxu0 0
    %1353 = vmatpush1.bf16.msra.mxu0 %v989
    %1354 = vmatprep.subr.bf16.mxu0 0
    %1355 = vmatpush1.bf16.msra.mxu0 %v990
    %1356 = vmatprep.subr.bf16.mxu0 0
    %1357 = vmatpush1.bf16.msra.mxu0 %v991
    %1358 = vmatprep.subr.bf16.mxu0 0
    %1359 = vmatpush1.bf16.msra.mxu0 %v992
    %1360 = vmatprep.subr.bf16.mxu0 0
    %1361 = vmatpush1.bf16.msra.mxu0 %v993
    %1362 = vmatprep.mubr.bf16.mxu0 %v374
    %1363 = vmatmul.mubr.bf16.gmra.mrb[0].mxu0 %v360
    %v1364 = vpop.f32.mrb[0].mxu0
    %v1365 = vadd.f32 %v1325, %v1364
    %v1366 = vpop.f32.mrb[0].mxu0
    %v1367 = vpop.f32.mrb[0].mxu0
    %v1368 = vpop.f32.mrb[0].mxu0
    %1369 = vdwg.mxu0
    %1370 = vmatprep.subr.bf16.mxu0 0
    %1371 = vmatpush1.bf16.msra.mxu0 %v994
    %1372 = vmatprep.subr.bf16.mxu0 0
    %1373 = vmatpush1.bf16.msra.mxu0 %v995
    %1374 = vmatprep.subr.bf16.mxu0 0
    %1375 = vmatpush1.bf16.msra.mxu0 %v996
    %1376 = vmatprep.subr.bf16.mxu0 0
    %1377 = vmatpush1.bf16.msra.mxu0 %v997
    %1378 = vmatprep.subr.bf16.mxu0 0
    %1379 = vmatpush1.bf16.msra.mxu0 %v998
    %1380 = vmatprep.subr.bf16.mxu0 0
    %1381 = vmatpush1.bf16.msra.mxu0 %v999
    %1382 = vmatprep.subr.bf16.mxu0 0
    %1383 = vmatpush1.bf16.msra.mxu0 %v1000
    %1384 = vmatprep.subr.bf16.mxu0 0
    %1385 = vmatpush1.bf16.msra.mxu0 %v1001
    %1386 = vmatprep.subr.bf16.mxu0 0
    %1387 = vmatpush1.bf16.msra.mxu0 %v1002
    %1388 = vmatprep.subr.bf16.mxu0 0
    %1389 = vmatpush1.bf16.msra.mxu0 %v1003
    %1390 = vmatprep.subr.bf16.mxu0 0
    %1391 = vmatpush1.bf16.msra.mxu0 %v1004
    %1392 = vmatprep.subr.bf16.mxu0 0
    %1393 = vmatpush1.bf16.msra.mxu0 %v1005
    %1394 = vmatprep.subr.bf16.mxu0 0
    %1395 = vmatpush1.bf16.msra.mxu0 %v1006
    %1396 = vmatprep.subr.bf16.mxu0 0
    %1397 = vmatpush1.bf16.msra.mxu0 %v1007
    %1398 = vmatprep.subr.bf16.mxu0 0
    %1399 = vmatpush1.bf16.msra.mxu0 %v1008
    %1400 = vmatprep.subr.bf16.mxu0 0
    %1401 = vmatpush1.bf16.msra.mxu0 %v1009
    %1402 = vmatprep.mubr.bf16.mxu0 %v384
    %1403 = vmatmul.mubr.bf16.gmra.mrb[0].mxu0 %v382
    %v1404 = vpop.f32.mrb[0].mxu0
    %v1405 = vadd.f32 %v1365, %v1404
    %v1406 = vpop.f32.mrb[0].mxu0
    %v1407 = vpop.f32.mrb[0].mxu0
    %v1408 = vpop.f32.mrb[0].mxu0
    %1409 = vdwg.mxu0
    %1410 = vmatprep.subr.bf16.mxu0 0
    %1411 = vmatpush1.bf16.msra.mxu0 %v1010
    %1412 = vmatprep.subr.bf16.mxu0 0
    %1413 = vmatpush1.bf16.msra.mxu0 %v1011
    %1414 = vmatprep.subr.bf16.mxu0 0
    %1415 = vmatpush1.bf16.msra.mxu0 %v1012
    %1416 = vmatprep.subr.bf16.mxu0 0
    %1417 = vmatpush1.bf16.msra.mxu0 %v1013
    %1418 = vmatprep.subr.bf16.mxu0 0
    %1419 = vmatpush1.bf16.msra.mxu0 %v1014
    %1420 = vmatprep.subr.bf16.mxu0 0
    %1421 = vmatpush1.bf16.msra.mxu0 %v1015
    %1422 = vmatprep.subr.bf16.mxu0 0
    %1423 = vmatpush1.bf16.msra.mxu0 %v1016
    %1424 = vmatprep.subr.bf16.mxu0 0
    %1425 = vmatpush1.bf16.msra.mxu0 %v1017
    %1426 = vmatprep.subr.bf16.mxu0 0
    %1427 = vmatpush1.bf16.msra.mxu0 %v1018
    %1428 = vmatprep.subr.bf16.mxu0 0
    %1429 = vmatpush1.bf16.msra.mxu0 %v1019
    %1430 = vmatprep.subr.bf16.mxu0 0
    %1431 = vmatpush1.bf16.msra.mxu0 %v1020
    %1432 = vmatprep.subr.bf16.mxu0 0
    %1433 = vmatpush1.bf16.msra.mxu0 %v1021
    %1434 = vmatprep.subr.bf16.mxu0 0
    %1435 = vmatpush1.bf16.msra.mxu0 %v1022
    %1436 = vmatprep.subr.bf16.mxu0 0
    %1437 = vmatpush1.bf16.msra.mxu0 %v1023
    %1438 = vmatprep.subr.bf16.mxu0 0
    %1439 = vmatpush1.bf16.msra.mxu0 %v1024
    %1440 = vmatprep.subr.bf16.mxu0 0
    %1441 = vmatpush1.bf16.msra.mxu0 %v1025
    %1442 = vmatprep.mubr.bf16.mxu0 %v381
    %1443 = vmatmul.mubr.bf16.gmra.mrb[0].mxu0 %v367
    %v1444 = vpop.f32.mrb[0].mxu0
    %v1445 = vadd.f32 %v1405, %v1444
    %v1446 = vpop.f32.mrb[0].mxu0
    %v1447 = vpop.f32.mrb[0].mxu0
    %v1448 = vpop.f32.mrb[0].mxu0
    %1449 = vdwg.mxu0
    %1450 = vmatprep.subr.bf16.mxu0 0
    %1451 = vmatpush1.bf16.msra.mxu0 %v1026
    %1452 = vmatprep.subr.bf16.mxu0 0
    %1453 = vmatpush1.bf16.msra.mxu0 %v1027
    %1454 = vmatprep.subr.bf16.mxu0 0
    %1455 = vmatpush1.bf16.msra.mxu0 %v1028
    %1456 = vmatprep.subr.bf16.mxu0 0
    %1457 = vmatpush1.bf16.msra.mxu0 %v1029
    %1458 = vmatprep.subr.bf16.mxu0 0
    %1459 = vmatpush1.bf16.msra.mxu0 %v1030
    %1460 = vmatprep.subr.bf16.mxu0 0
    %1461 = vmatpush1.bf16.msra.mxu0 %v1031
    %1462 = vmatprep.subr.bf16.mxu0 0
    %1463 = vmatpush1.bf16.msra.mxu0 %v1032
    %1464 = vmatprep.subr.bf16.mxu0 0
    %1465 = vmatpush1.bf16.msra.mxu0 %v1033
    %1466 = vmatprep.subr.bf16.mxu0 0
    %1467 = vmatpush1.bf16.msra.mxu0 %v1034
    %1468 = vmatprep.subr.bf16.mxu0 0
    %1469 = vmatpush1.bf16.msra.mxu0 %v1035
    %1470 = vmatprep.subr.bf16.mxu0 0
    %1471 = vmatpush1.bf16.msra.mxu0 %v1036
    %1472 = vmatprep.subr.bf16.mxu0 0
    %1473 = vmatpush1.bf16.msra.mxu0 %v1037
    %1474 = vmatprep.subr.bf16.mxu0 0
    %1475 = vmatpush1.bf16.msra.mxu0 %v1038
    %1476 = vmatprep.subr.bf16.mxu0 0
    %1477 = vmatpush1.bf16.msra.mxu0 %v1039
    %1478 = vmatprep.subr.bf16.mxu0 0
    %1479 = vmatpush1.bf16.msra.mxu0 %v1040
    %1480 = vmatprep.subr.bf16.mxu0 0
    %1481 = vmatpush1.bf16.msra.mxu0 %v1041
    %1482 = vmatprep.mubr.bf16.mxu0 %v385
    %1483 = vmatmul.mubr.bf16.gmra.mrb[0].mxu0 %v383
    %v1484 = vpop.f32.mrb[0].mxu0
    %v1485 = vadd.f32 %v1445, %v1484
    %v1486 = vpop.f32.mrb[0].mxu0
    %v1487 = vpop.f32.mrb[0].mxu0
    %v1488 = vpop.f32.mrb[0].mxu0
    %1489 = vdwg.mxu0
    %v1490 = vsub.f32 0.0, %v1485
    %v1491 = vmul.f32 %v1490, 1.442695
    %v1492 = vpow.pop %v1491
    %v1493 = vadd.f32 %v1492, 1.0
    %v1494 = vrcp.pop %v1493
    %v1495 = vmul.f32 1.0, %v1494
    %vm1496 = vcmask 8192
    %1497 = vst.msk [vmem:[#allocation3] sm:$0x1] %vm1496, %v1495
    // Predicated region
    $region14: #{discriminator_forward.15} parent=1 // pred_check
      _
    $region15: #{discriminator_forward.15} parent=1 // pred_check_branch
      %1499 = sbr.rel (0) target = $region17
    $region16: #{discriminator_forward.15} parent=1 // pred_region
      %s1501 = ssub.s32 16, 16
      %1502 = vsyncadd [#allocation4], %s1501
      %s1504 = sshll.u32 [#allocation3], 4
      %s1505 = int_to_ptr.vmem [resolvable:$true] %s1504
      %1507 = dma.vmem_to_hbm [thread:$0]  %s1505, 16, %s3, [#allocation4]
    $region17: #{discriminator_forward.15} parent=1 // pred_fallthru
      _
    // Predicated region
    $region18: #{discriminator_forward.15} parent=1 // pred_check
      _
    $region19: #{discriminator_forward.15} parent=1 // pred_check_branch
      %1509 = sbr.rel (0) target = $region21
    $region20: #{discriminator_forward.15} parent=1 // pred_region
      %1510 = dma.done [#allocation4], 16
    $region21: #{discriminator_forward.15} parent=1 // pred_fallthru
      _
    %1511 = vsyncpa [#allocation4], 1

</llo_original>
